<compile_context>
chip_gen: v7x
topology: tpu7x:2x2x1
jax: 0.10.0
libtpu: 0.0.40
codegen_flags: <defaults>
</compile_context>

<pallas_src>
import jax
import jax.numpy as jnp
from jax.experimental import pallas as pl
from jax.experimental.pallas import tpu as pltpu

# ------------------------- configuration (small shapes) -------------------------
B = 2              # batch size
N = 16             # num_nodes
T = 12             # num_timesteps_input (ODEG hard-codes temporal_dim=12)
F_IN = 3           # num_features
T_OUT = 3          # num_timesteps_output
C_HID = 64         # out_channels[-1] of every STGCN block
TC = T * C_HID     # 768 lanes: (t, c) flattened, t outer
H_PRED = T_OUT * 32  # 96 real head hidden width
H_PAD = 128        # lane-dense padded head hidden width
P_OUT = 128        # lane-dense padded head output width
BN_ROWS = B * N    # 32 rows: (b, n) flattened, b outer
R = T * BN_ROWS    # 384 TCN rows, ordered (t, b, n)
N_BRANCH = 6       # 3 spatial-graph + 3 semantic-graph branches
ODE_TIME = 6.0     # ODEG(..., time=6): single forward-Euler step of size 6
BN_EPS = 1e-5
BN_CNT = float(B * T * C_HID)   # per-node normalization count
DTYPE = jnp.float32


# ================================ Pallas kernel =================================

def _stgode_kernel(x_ref, tw0_ref, tb0_ref, w1p_ref, w1c_ref, tb1_ref,
                   w2p_ref, w2c_ref, tb2_ref, a_ref, alpha_ref, m_ref,
                   gamma_ref, beta_ref, hw1_ref, hb1_ref, hw2_ref, hb2_ref,
                   o_ref, mx_ref):
    """One grid step = one full STGCN branch (TCN -> ODEG -> BN -> relu -> ODEG -> BN)
    plus a running max over branches; the prediction head runs on the last step."""
    s = pl.program_id(0)
    x = x_ref[...]                                            # (R, F_IN), rows (t, b, n)

    # ---------------- TemporalConvNet(F_IN -> [64, 32, 64]) ----------------
    def shift_rows(h, dil):
        # causal shift by `dil` time steps: rows come in whole (b, n) blocks per t,
        # so it is a sublane roll by dil*BN_ROWS plus a zero mask (no full-block copy).
        k = dil * BN_ROWS
        rolled = pltpu.roll(h, shift=k, axis=0)
        row = jax.lax.broadcasted_iota(jnp.int32, h.shape, 0)
        return jnp.where(row >= k, rolled, 0.0)

    # level 0 (dilation 1, 3 -> 64) with the 1x1 downsample folded in:
    # [x(t-1) | x(t)] @ [[W0prev, 0], [W0cur, Wds]] -> [conv0 | downsample] (128 lanes)
    taps0 = jnp.concatenate([shift_rows(x, 1), x], axis=1)    # (R, 6) — tiny
    y0 = jnp.dot(taps0, tw0_ref[0], preferred_element_type=jnp.float32) + tb0_ref[0]
    h = jnp.maximum(y0[:, :C_HID], 0.0)                       # per-level ReLU (dropout = id)
    ds = y0[:, C_HID:]                                        # downsample path

    # levels 1/2: two accumulating dots per level — no tap-concat materialization
    y1 = (jnp.dot(shift_rows(h, 2), w1p_ref[0], preferred_element_type=jnp.float32)
          + jnp.dot(h, w1c_ref[0], preferred_element_type=jnp.float32) + tb1_ref[0])
    h = jnp.maximum(y1, 0.0)                                  # dilation 2, 64 -> 32
    y2 = (jnp.dot(shift_rows(h, 4), w2p_ref[0], preferred_element_type=jnp.float32)
          + jnp.dot(h, w2c_ref[0], preferred_element_type=jnp.float32) + tb2_ref[0])
    h = jnp.maximum(jnp.maximum(y2, 0.0) + ds, 0.0)           # relu(network(y) + downsample(y))

    # ---- switch to lane-dense layout once: rows=(b,n), lanes=(t,c) -> (32, 768) ----
    H = jnp.concatenate([h[t * BN_ROWS:(t + 1) * BN_ROWS, :] for t in range(T)], axis=1)

    a_blk = a_ref[0]           # (32, 32) graph, block-diagonal over the batch
    alpha = alpha_ref[...]     # (32, 1) per-row (node) alpha
    m_op = m_ref[...]          # (768, 768) combined ODE operator (shared, DMA'd once)

    def odeg(hh):
        # single forward-Euler step of size ODE_TIME, then ReLU:
        #   f = alpha * (A @ H) + H @ (kron(I,Wfeat) + kron(Wt^T,I) - 2I)
        # TODO(synk): ODEG source is not in the prompt; canonical STGODE ODEFunc assumed.
        f = alpha * jnp.dot(a_blk, hh, preferred_element_type=jnp.float32) \
            + jnp.dot(hh, m_op, preferred_element_type=jnp.float32)
        return jnp.maximum(hh + ODE_TIME * f, 0.0)

    def batch_norm(hh):
        # BatchNorm2d(num_nodes): per-node batch stats over (B, T, C).  Rows r and r+N
        # are the two batch copies of node r.  Centered two-pass variance.
        rs = jnp.sum(hh, axis=1, keepdims=True)               # (32, 1) lane reduction (XLU)
        tot = rs[:N, :] + rs[N:, :]                           # fold the two batch rows
        mean = jnp.concatenate([tot, tot], axis=0) * (1.0 / BN_CNT)
        d = hh - mean
        vs = jnp.sum(d * d, axis=1, keepdims=True)
        vtot = vs[:N, :] + vs[N:, :]
        var = jnp.concatenate([vtot, vtot], axis=0) * (1.0 / BN_CNT)
        scale = jax.lax.rsqrt(var + BN_EPS) * gamma_ref[...]
        return d * scale + beta_ref[...]

    # STGCNBlock #1: TCN -> ODEG -> BN ; STGCNBlock #2: relu -> ODEG -> BN
    # TODO(synk): block #2's TemporalConvNet (64->64, downsample=None) degenerates to
    # relu(x) per the given TemporalConvNet.forward ternary.
    H = batch_norm(odeg(H))
    H = jnp.maximum(H, 0.0)
    H = batch_norm(odeg(H))

    # -------- fused torch.max over branches + Linear-ReLU-Linear prediction head --------
    @pl.when(s == 0)
    def _():
        mx_ref[...] = H

    @pl.when(s > 0)
    def _():
        mx_ref[...] = jnp.maximum(mx_ref[...], H)

    @pl.when(s == pl.num_programs(0) - 1)
    def _():
        hid = jnp.maximum(
            jnp.dot(mx_ref[...], hw1_ref[...], preferred_element_type=jnp.float32)
            + hb1_ref[...], 0.0)
        o_ref[...] = jnp.dot(hid, hw2_ref[...],
                             preferred_element_type=jnp.float32) + hb2_ref[...]


# ================================ kernel wrapper =================================

def stgode_pallas(x_rows, p):
    per_branch = lambda s: (s, 0, 0)
    shared = lambda s: (0, 0)
    in_specs = [
        pl.BlockSpec((R, F_IN), shared),                    # x (shared by all branches)
        pl.BlockSpec((1, 2 * F_IN, 2 * C_HID), per_branch), # level-0 conv + downsample, packed
        pl.BlockSpec((1, 1, 2 * C_HID), per_branch),
        pl.BlockSpec((1, C_HID, 32), per_branch),           # level-1 prev tap
        pl.BlockSpec((1, C_HID, 32), per_branch),           # level-1 cur tap
        pl.BlockSpec((1, 1, 32), per_branch),
        pl.BlockSpec((1, 32, C_HID), per_branch),           # level-2 prev tap
        pl.BlockSpec((1, 32, C_HID), per_branch),           # level-2 cur tap
        pl.BlockSpec((1, 1, C_HID), per_branch),
        pl.BlockSpec((1, BN_ROWS, BN_ROWS), per_branch),    # graph (block-diag over batch)
        pl.BlockSpec((BN_ROWS, 1), shared),                 # alpha per row
        pl.BlockSpec((TC, TC), shared),                     # combined ODE operator
        pl.BlockSpec((BN_ROWS, 1), shared),                 # bn gamma per row
        pl.BlockSpec((BN_ROWS, 1), shared),                 # bn beta per row
        pl.BlockSpec((TC, H_PAD), shared),                  # head W1 (hidden padded to 128)
        pl.BlockSpec((1, H_PAD), shared),
        pl.BlockSpec((H_PAD, P_OUT), shared),               # head W2 (output padded to 128)
        pl.BlockSpec((1, P_OUT), shared),
    ]
    return pl.pallas_call(
        _stgode_kernel,
        out_shape=jax.ShapeDtypeStruct((BN_ROWS, P_OUT), DTYPE),
        grid=(N_BRANCH,),
        in_specs=in_specs,
        out_specs=pl.BlockSpec((BN_ROWS, P_OUT), shared),
        scratch_shapes=[pltpu.VMEM((BN_ROWS, TC), jnp.float32)],   # running-max accumulator
        # "arbitrary": the max scratch + resident output carry state across the branch
        # axis, so it must run sequentially (v7x megacore sharding would break it).
        compiler_params=pltpu.CompilerParams(dimension_semantics=("arbitrary",)),
    )(x_rows, p["tw0"], p["tb0"], p["w1p"], p["w1c"], p["tb1"],
      p["w2p"], p["w2c"], p["tb2"], p["a_blk"], p["alpha_bn"], p["m_op"],
      p["bn_gamma"], p["bn_beta"], p["hw1"], p["hb1"], p["hw2"], p["hb2"])


# ================================ parameters / glue ==============================

def calculate_laplacian_with_self_loop(mat):
    mat = mat + jnp.eye(mat.shape[0], dtype=mat.dtype)
    row_sum = mat.sum(1)
    d_inv_sqrt = jnp.where(row_sum > 0, row_sum ** -0.5, 0.0)
    d_mat = jnp.diag(d_inv_sqrt)
    return ((mat @ d_mat).T @ d_mat).astype(DTYPE)


def make_ode_operator():
    # ODEFunc deterministic inits: alpha = 0.8*ones(N), w = I_64, d = 1, w2 = I_12, d2 = 1.
    alpha = 0.8 * jnp.ones((N,), DTYPE)
    w = jnp.eye(C_HID, dtype=DTYPE)
    d = jnp.ones((C_HID,), DTYPE)
    w2 = jnp.eye(T, dtype=DTYPE)
    d2 = jnp.ones((T,), DTYPE)
    alpha_n = (jax.nn.sigmoid(alpha) / 2.0).reshape(N, 1).astype(DTYPE)
    w_feat = (w * jnp.clip(d, 0.0, 1.0)) @ w.T                 # (64, 64) feature transform
    w_time = (w2 * jnp.clip(d2, 0.0, 1.0)) @ w2.T              # (12, 12) temporal transform
    # combined right-hand linear operator in the (rows=(b,n), lanes=(t,c)) layout
    m_op = (jnp.kron(jnp.eye(T, dtype=DTYPE), w_feat)
            + jnp.kron(w_time.T, jnp.eye(C_HID, dtype=DTYPE))
            - 2.0 * jnp.eye(TC, dtype=DTYPE)).astype(DTYPE)
    alpha_bn = jnp.tile(alpha_n, (B, 1)).astype(DTYPE)         # (32, 1), rows (b, n)
    return alpha_bn, m_op


def init_params(key):
    kit = iter(jax.random.split(key, 128))

    def nrm(shape, std=0.01):
        return (std * jax.random.normal(next(kit), shape)).astype(DTYPE)

    def tcn_branch():
        # Conv2d(cin, cout, (1, 2)) split into its two temporal taps; the level-0 taps and
        # the 1x1 downsample are packed into a single (6, 128) lane-dense matmul weight.
        w0p, w0c, b0 = nrm((F_IN, C_HID)), nrm((F_IN, C_HID)), nrm((1, C_HID))
        wds, bds = nrm((F_IN, C_HID)), nrm((1, C_HID))
        tw0 = jnp.concatenate(
            [jnp.concatenate([w0p, jnp.zeros((F_IN, C_HID), DTYPE)], axis=1),
             jnp.concatenate([w0c, wds], axis=1)], axis=0)     # (2*F_IN, 128)
        tb0 = jnp.concatenate([b0, bds], axis=1)               # (1, 128)
        return dict(tw0=tw0, tb0=tb0,
                    w1p=nrm((C_HID, 32)), w1c=nrm((C_HID, 32)), tb1=nrm((1, 32)),
                    w2p=nrm((32, C_HID)), w2c=nrm((32, C_HID)), tb2=nrm((1, C_HID)))

    # TODO(synk): the real A_sp / A_se come from dataset distance / DTW matrices; synthesized.
    a_sp = (jax.random.uniform(next(kit), (N, N)) < 0.3).astype(DTYPE)
    a_sp = jnp.maximum(a_sp, a_sp.T)
    a_se = jax.random.uniform(next(kit), (N, N)).astype(DTYPE)
    a_se = 0.5 * (a_se + a_se.T)
    a_sp_blk = jnp.kron(jnp.eye(B, dtype=DTYPE), calculate_laplacian_with_self_loop(a_sp))
    a_se_blk = jnp.kron(jnp.eye(B, dtype=DTYPE), calculate_laplacian_with_self_loop(a_se))

    tcns = [tcn_branch() for _ in range(N_BRANCH)]             # 0-2: spatial, 3-5: semantic
    alpha_bn, m_op = make_ode_operator()

    params = dict(
        tw0=jnp.stack([t["tw0"] for t in tcns]),               # (6, 6, 128)
        tb0=jnp.stack([t["tb0"] for t in tcns]),
        w1p=jnp.stack([t["w1p"] for t in tcns]),               # (6, 64, 32)
        w1c=jnp.stack([t["w1c"] for t in tcns]),
        tb1=jnp.stack([t["tb1"] for t in tcns]),
        w2p=jnp.stack([t["w2p"] for t in tcns]),               # (6, 32, 64)
        w2c=jnp.stack([t["w2c"] for t in tcns]),
        tb2=jnp.stack([t["tb2"] for t in tcns]),
        a_blk=jnp.stack([a_sp_blk] * 3 + [a_se_blk] * 3),      # (6, 32, 32)
        alpha_bn=alpha_bn,                                     # (32, 1)
        m_op=m_op,                                             # (768, 768)
        bn_gamma=jnp.ones((BN_ROWS, 1), DTYPE),
        bn_beta=jnp.zeros((BN_ROWS, 1), DTYPE),
    )

    # prediction head Linear(768, 96) -> ReLU -> Linear(96, 3), zero-padded lane-dense
    w1 = nrm((TC, H_PRED), 0.02)
    b1 = nrm((1, H_PRED), 0.02)
    w2 = nrm((H_PRED, T_OUT), 0.02)
    b2 = nrm((1, T_OUT), 0.02)
    params.update(
        hw1=jnp.concatenate([w1, jnp.zeros((TC, H_PAD - H_PRED), DTYPE)], axis=1),
        hb1=jnp.concatenate([b1, jnp.zeros((1, H_PAD - H_PRED), DTYPE)], axis=1),
        hw2=jnp.concatenate(
            [jnp.concatenate([w2, jnp.zeros((H_PRED, P_OUT - T_OUT), DTYPE)], axis=1),
             jnp.zeros((H_PAD - H_PRED, P_OUT), DTYPE)], axis=0),
        hb2=jnp.concatenate([b2, jnp.zeros((1, P_OUT - T_OUT), DTYPE)], axis=1),
    )
    return params


@jax.jit
def stgode_forward(x, params):
    """x: (B, F_IN, N, T), the PyTorch-layout input to STGODE.forward."""
    # permute to (T, B, N, F) and flatten to time-major rows (t, b, n).
    x_rows = jnp.transpose(x, (3, 0, 2, 1)).reshape(R, F_IN)
    pred_pad = stgode_pallas(x_rows, params)                   # (B*N, 128), lane-dense
    pred = pred_pad[:, :T_OUT].reshape(B, N, T_OUT)
    return pred[:, None, :, :]                                 # unsqueeze(1) -> (B,1,N,T_OUT)


if __name__ == "__main__":
    key = jax.random.PRNGKey(0)
    kx, kp = jax.random.split(key)
    x = jax.random.normal(kx, (B, F_IN, N, T), dtype=DTYPE)
    params = init_params(kp)
    out = jax.block_until_ready(stgode_forward(x, params))
    assert out.shape == (B, 1, N, T_OUT), out.shape
    assert bool(jnp.all(jnp.isfinite(out)))
    print("KERNEL_OK")
</pallas_src>

<mosaic_0001>
module attributes {stable_mosaic.version = 11 : i64} {
  func.func @_stgode_kernel(%arg0: i32, %arg1: memref<384x3xf32, #tpu.memory_space<vmem>>, %arg2: memref<1x6x128xf32, #tpu.memory_space<vmem>>, %arg3: memref<1x1x128xf32, #tpu.memory_space<vmem>>, %arg4: memref<1x64x32xf32, #tpu.memory_space<vmem>>, %arg5: memref<1x64x32xf32, #tpu.memory_space<vmem>>, %arg6: memref<1x1x32xf32, #tpu.memory_space<vmem>>, %arg7: memref<1x32x64xf32, #tpu.memory_space<vmem>>, %arg8: memref<1x32x64xf32, #tpu.memory_space<vmem>>, %arg9: memref<1x1x64xf32, #tpu.memory_space<vmem>>, %arg10: memref<1x32x32xf32, #tpu.memory_space<vmem>>, %arg11: memref<32x1xf32, #tpu.memory_space<vmem>>, %arg12: memref<768x768xf32, #tpu.memory_space<vmem>>, %arg13: memref<32x1xf32, #tpu.memory_space<vmem>>, %arg14: memref<32x1xf32, #tpu.memory_space<vmem>>, %arg15: memref<768x128xf32, #tpu.memory_space<vmem>>, %arg16: memref<1x128xf32, #tpu.memory_space<vmem>>, %arg17: memref<128x128xf32, #tpu.memory_space<vmem>>, %arg18: memref<1x128xf32, #tpu.memory_space<vmem>>, %arg19: memref<32x128xf32, #tpu.memory_space<vmem>>, %arg20: memref<32x768xf32, #tpu.memory_space<vmem>>) attributes {dimension_semantics = [#tpu.dimension_semantics<arbitrary>], iteration_bounds = array<i64: 6>, scalar_prefetch = 0 : i64, scratch_operands = 1 : i64, tpu.core_type = #tpu.core_type<tc>, window_params = [{pipeline_mode = #tpu.pipeline_mode<synchronous>, transform_indices = @transform_0, window_bounds = array<i64: 384, 3>}, {transform_indices = @transform_1, window_bounds = array<i64: 1, 6, 128>}, {transform_indices = @transform_2, window_bounds = array<i64: 1, 1, 128>}, {transform_indices = @transform_3, window_bounds = array<i64: 1, 64, 32>}, {transform_indices = @transform_4, window_bounds = array<i64: 1, 64, 32>}, {transform_indices = @transform_5, window_bounds = array<i64: 1, 1, 32>}, {transform_indices = @transform_6, window_bounds = array<i64: 1, 32, 64>}, {transform_indices = @transform_7, window_bounds = array<i64: 1, 32, 64>}, {transform_indices = @transform_8, window_bounds = array<i64: 1, 1, 64>}, {transform_indices = @transform_9, window_bounds = array<i64: 1, 32, 32>}, {pipeline_mode = #tpu.pipeline_mode<synchronous>, transform_indices = @transform_10, window_bounds = array<i64: 32, 1>}, {pipeline_mode = #tpu.pipeline_mode<synchronous>, transform_indices = @transform_11, window_bounds = array<i64: 768, 768>}, {pipeline_mode = #tpu.pipeline_mode<synchronous>, transform_indices = @transform_12, window_bounds = array<i64: 32, 1>}, {pipeline_mode = #tpu.pipeline_mode<synchronous>, transform_indices = @transform_13, window_bounds = array<i64: 32, 1>}, {pipeline_mode = #tpu.pipeline_mode<synchronous>, transform_indices = @transform_14, window_bounds = array<i64: 768, 128>}, {pipeline_mode = #tpu.pipeline_mode<synchronous>, transform_indices = @transform_15, window_bounds = array<i64: 1, 128>}, {pipeline_mode = #tpu.pipeline_mode<synchronous>, transform_indices = @transform_16, window_bounds = array<i64: 128, 128>}, {pipeline_mode = #tpu.pipeline_mode<synchronous>, transform_indices = @transform_17, window_bounds = array<i64: 1, 128>}, {pipeline_mode = #tpu.pipeline_mode<synchronous>, transform_indices = @transform_18, window_bounds = array<i64: 32, 128>}]} {
    %c0 = arith.constant 0 : index
    %c0_0 = arith.constant 0 : index
    %0 = vector.load %arg1[%c0, %c0_0] : memref<384x3xf32, #tpu.memory_space<vmem>>, vector<384x3xf32>
    %c32_i32 = arith.constant 32 : i32
    %1 = tpu.dynamic_rotate %0 by %c32_i32 dim 0 : vector<384x3xf32>, i32 -> vector<384x3xf32>
    %2 = tpu.iota {dimensions = array<i32: 0>} : vector<384x3xi32>
    %c32_i32_1 = arith.constant 32 : i32
    %3 = vector.broadcast %c32_i32_1 : i32 to vector<384x3xi32>
    %4 = arith.cmpi sge, %2, %3 : vector<384x3xi32>
    %cst = arith.constant 0.000000e+00 : f32
    %5 = vector.broadcast %cst : f32 to vector<384x3xf32>
    %6 = arith.select %4, %1, %5 : vector<384x3xi1>, vector<384x3xf32>
    %7 = tpu.concatenate %6, %0 in 1 : vector<384x3xf32>, vector<384x3xf32> -> vector<384x6xf32>
    %c0_2 = arith.constant 0 : index
    %c0_3 = arith.constant 0 : index
    %c0_4 = arith.constant 0 : index
    %8 = vector.load %arg2[%c0_2, %c0_3, %c0_4] : memref<1x6x128xf32, #tpu.memory_space<vmem>>, vector<1x6x128xf32>
    %9 = vector.shape_cast %8 : vector<1x6x128xf32> to vector<6x128xf32>
    %cst_5 = arith.constant dense<0.000000e+00> : vector<384x128xf32>
    %10 = tpu.matmul %7, %9, %cst_5 {dimension_numbers = #tpu.dot_dimension_numbers<[1], [0], [0], [1], [0, 0, 1, 1], [], []>} : vector<384x6xf32>, vector<6x128xf32>, vector<384x128xf32> -> vector<384x128xf32>
    %c0_6 = arith.constant 0 : index
    %c0_7 = arith.constant 0 : index
    %c0_8 = arith.constant 0 : index
    %11 = vector.load %arg3[%c0_6, %c0_7, %c0_8] : memref<1x1x128xf32, #tpu.memory_space<vmem>>, vector<1x1x128xf32>
    %12 = vector.shape_cast %11 : vector<1x1x128xf32> to vector<1x128xf32>
    %13 = vector.broadcast %12 : vector<1x128xf32> to vector<384x128xf32>
    %14 = arith.addf %10, %13 : vector<384x128xf32>
    %15 = vector.extract_strided_slice %14 {offsets = [0, 0], sizes = [384, 64], strides = [1, 1]} : vector<384x128xf32> to vector<384x64xf32>
    %cst_9 = arith.constant 0.000000e+00 : f32
    %16 = vector.broadcast %cst_9 : f32 to vector<384x64xf32>
    %17 = arith.maximumf %15, %16 : vector<384x64xf32>
    %18 = vector.extract_strided_slice %14 {offsets = [0, 64], sizes = [384, 64], strides = [1, 1]} : vector<384x128xf32> to vector<384x64xf32>
    %c64_i32 = arith.constant 64 : i32
    %19 = tpu.dynamic_rotate %17 by %c64_i32 dim 0 : vector<384x64xf32>, i32 -> vector<384x64xf32>
    %20 = tpu.iota {dimensions = array<i32: 0>} : vector<384x64xi32>
    %c64_i32_10 = arith.constant 64 : i32
    %21 = vector.broadcast %c64_i32_10 : i32 to vector<384x64xi32>
    %22 = arith.cmpi sge, %20, %21 : vector<384x64xi32>
    %cst_11 = arith.constant 0.000000e+00 : f32
    %23 = vector.broadcast %cst_11 : f32 to vector<384x64xf32>
    %24 = arith.select %22, %19, %23 : vector<384x64xi1>, vector<384x64xf32>
    %c0_12 = arith.constant 0 : index
    %c0_13 = arith.constant 0 : index
    %c0_14 = arith.constant 0 : index
    %25 = vector.load %arg4[%c0_12, %c0_13, %c0_14] : memref<1x64x32xf32, #tpu.memory_space<vmem>>, vector<1x64x32xf32>
    %26 = vector.shape_cast %25 : vector<1x64x32xf32> to vector<64x32xf32>
    %cst_15 = arith.constant dense<0.000000e+00> : vector<384x32xf32>
    %27 = tpu.matmul %24, %26, %cst_15 {dimension_numbers = #tpu.dot_dimension_numbers<[1], [0], [0], [1], [0, 0, 1, 1], [], []>} : vector<384x64xf32>, vector<64x32xf32>, vector<384x32xf32> -> vector<384x32xf32>
    %c0_16 = arith.constant 0 : index
    %c0_17 = arith.constant 0 : index
    %c0_18 = arith.constant 0 : index
    %28 = vector.load %arg5[%c0_16, %c0_17, %c0_18] : memref<1x64x32xf32, #tpu.memory_space<vmem>>, vector<1x64x32xf32>
    %29 = vector.shape_cast %28 : vector<1x64x32xf32> to vector<64x32xf32>
    %cst_19 = arith.constant dense<0.000000e+00> : vector<384x32xf32>
    %30 = tpu.matmul %17, %29, %cst_19 {dimension_numbers = #tpu.dot_dimension_numbers<[1], [0], [0], [1], [0, 0, 1, 1], [], []>} : vector<384x64xf32>, vector<64x32xf32>, vector<384x32xf32> -> vector<384x32xf32>
    %31 = arith.addf %27, %30 : vector<384x32xf32>
    %c0_20 = arith.constant 0 : index
    %c0_21 = arith.constant 0 : index
    %c0_22 = arith.constant 0 : index
    %32 = vector.load %arg6[%c0_20, %c0_21, %c0_22] : memref<1x1x32xf32, #tpu.memory_space<vmem>>, vector<1x1x32xf32>
    %33 = vector.shape_cast %32 : vector<1x1x32xf32> to vector<1x32xf32>
    %34 = vector.broadcast %33 : vector<1x32xf32> to vector<384x32xf32>
    %35 = arith.addf %31, %34 : vector<384x32xf32>
    %cst_23 = arith.constant 0.000000e+00 : f32
    %36 = vector.broadcast %cst_23 : f32 to vector<384x32xf32>
    %37 = arith.maximumf %35, %36 : vector<384x32xf32>
    %c128_i32 = arith.constant 128 : i32
    %38 = tpu.dynamic_rotate %37 by %c128_i32 dim 0 : vector<384x32xf32>, i32 -> vector<384x32xf32>
    %39 = tpu.iota {dimensions = array<i32: 0>} : vector<384x32xi32>
    %c128_i32_24 = arith.constant 128 : i32
    %40 = vector.broadcast %c128_i32_24 : i32 to vector<384x32xi32>
    %41 = arith.cmpi sge, %39, %40 : vector<384x32xi32>
    %cst_25 = arith.constant 0.000000e+00 : f32
    %42 = vector.broadcast %cst_25 : f32 to vector<384x32xf32>
    %43 = arith.select %41, %38, %42 : vector<384x32xi1>, vector<384x32xf32>
    %c0_26 = arith.constant 0 : index
    %c0_27 = arith.constant 0 : index
    %c0_28 = arith.constant 0 : index
    %44 = vector.load %arg7[%c0_26, %c0_27, %c0_28] : memref<1x32x64xf32, #tpu.memory_space<vmem>>, vector<1x32x64xf32>
    %45 = vector.shape_cast %44 : vector<1x32x64xf32> to vector<32x64xf32>
    %cst_29 = arith.constant dense<0.000000e+00> : vector<384x64xf32>
    %46 = tpu.matmul %43, %45, %cst_29 {dimension_numbers = #tpu.dot_dimension_numbers<[1], [0], [0], [1], [0, 0, 1, 1], [], []>} : vector<384x32xf32>, vector<32x64xf32>, vector<384x64xf32> -> vector<384x64xf32>
    %c0_30 = arith.constant 0 : index
    %c0_31 = arith.constant 0 : index
    %c0_32 = arith.constant 0 : index
    %47 = vector.load %arg8[%c0_30, %c0_31, %c0_32] : memref<1x32x64xf32, #tpu.memory_space<vmem>>, vector<1x32x64xf32>
    %48 = vector.shape_cast %47 : vector<1x32x64xf32> to vector<32x64xf32>
    %cst_33 = arith.constant dense<0.000000e+00> : vector<384x64xf32>
    %49 = tpu.matmul %37, %48, %cst_33 {dimension_numbers = #tpu.dot_dimension_numbers<[1], [0], [0], [1], [0, 0, 1, 1], [], []>} : vector<384x32xf32>, vector<32x64xf32>, vector<384x64xf32> -> vector<384x64xf32>
    %50 = arith.addf %46, %49 : vector<384x64xf32>
    %c0_34 = arith.constant 0 : index
    %c0_35 = arith.constant 0 : index
    %c0_36 = arith.constant 0 : index
    %51 = vector.load %arg9[%c0_34, %c0_35, %c0_36] : memref<1x1x64xf32, #tpu.memory_space<vmem>>, vector<1x1x64xf32>
    %52 = vector.shape_cast %51 : vector<1x1x64xf32> to vector<1x64xf32>
    %53 = vector.broadcast %52 : vector<1x64xf32> to vector<384x64xf32>
    %54 = arith.addf %50, %53 : vector<384x64xf32>
    %cst_37 = arith.constant 0.000000e+00 : f32
    %55 = vector.broadcast %cst_37 : f32 to vector<384x64xf32>
    %56 = arith.maximumf %54, %55 : vector<384x64xf32>
    %57 = arith.addf %56, %18 : vector<384x64xf32>
    %cst_38 = arith.constant 0.000000e+00 : f32
    %58 = vector.broadcast %cst_38 : f32 to vector<384x64xf32>
    %59 = arith.maximumf %57, %58 : vector<384x64xf32>
    %60 = vector.extract_strided_slice %59 {offsets = [0, 0], sizes = [32, 64], strides = [1, 1]} : vector<384x64xf32> to vector<32x64xf32>
    %61 = vector.extract_strided_slice %59 {offsets = [32, 0], sizes = [32, 64], strides = [1, 1]} : vector<384x64xf32> to vector<32x64xf32>
    %62 = vector.extract_strided_slice %59 {offsets = [64, 0], sizes = [32, 64], strides = [1, 1]} : vector<384x64xf32> to vector<32x64xf32>
    %63 = vector.extract_strided_slice %59 {offsets = [96, 0], sizes = [32, 64], strides = [1, 1]} : vector<384x64xf32> to vector<32x64xf32>
    %64 = vector.extract_strided_slice %59 {offsets = [128, 0], sizes = [32, 64], strides = [1, 1]} : vector<384x64xf32> to vector<32x64xf32>
    %65 = vector.extract_strided_slice %59 {offsets = [160, 0], sizes = [32, 64], strides = [1, 1]} : vector<384x64xf32> to vector<32x64xf32>
    %66 = vector.extract_strided_slice %59 {offsets = [192, 0], sizes = [32, 64], strides = [1, 1]} : vector<384x64xf32> to vector<32x64xf32>
    %67 = vector.extract_strided_slice %59 {offsets = [224, 0], sizes = [32, 64], strides = [1, 1]} : vector<384x64xf32> to vector<32x64xf32>
    %68 = vector.extract_strided_slice %59 {offsets = [256, 0], sizes = [32, 64], strides = [1, 1]} : vector<384x64xf32> to vector<32x64xf32>
    %69 = vector.extract_strided_slice %59 {offsets = [288, 0], sizes = [32, 64], strides = [1, 1]} : vector<384x64xf32> to vector<32x64xf32>
    %70 = vector.extract_strided_slice %59 {offsets = [320, 0], sizes = [32, 64], strides = [1, 1]} : vector<384x64xf32> to vector<32x64xf32>
    %71 = vector.extract_strided_slice %59 {offsets = [352, 0], sizes = [32, 64], strides = [1, 1]} : vector<384x64xf32> to vector<32x64xf32>
    %72 = tpu.concatenate %60, %61, %62, %63, %64, %65, %66, %67, %68, %69, %70, %71 in 1 : vector<32x64xf32>, vector<32x64xf32>, vector<32x64xf32>, vector<32x64xf32>, vector<32x64xf32>, vector<32x64xf32>, vector<32x64xf32>, vector<32x64xf32>, vector<32x64xf32>, vector<32x64xf32>, vector<32x64xf32>, vector<32x64xf32> -> vector<32x768xf32>
    %c0_39 = arith.constant 0 : index
    %c0_40 = arith.constant 0 : index
    %c0_41 = arith.constant 0 : index
    %73 = vector.load %arg10[%c0_39, %c0_40, %c0_41] : memref<1x32x32xf32, #tpu.memory_space<vmem>>, vector<1x32x32xf32>
    %74 = vector.shape_cast %73 : vector<1x32x32xf32> to vector<32x32xf32>
    %c0_42 = arith.constant 0 : index
    %c0_43 = arith.constant 0 : index
    %75 = vector.load %arg11[%c0_42, %c0_43] : memref<32x1xf32, #tpu.memory_space<vmem>>, vector<32x1xf32>
    %c0_44 = arith.constant 0 : index
    %c0_45 = arith.constant 0 : index
    %76 = vector.load %arg12[%c0_44, %c0_45] : memref<768x768xf32, #tpu.memory_space<vmem>>, vector<768x768xf32>
    %cst_46 = arith.constant dense<0.000000e+00> : vector<32x768xf32>
    %77 = tpu.matmul %74, %72, %cst_46 {dimension_numbers = #tpu.dot_dimension_numbers<[1], [0], [0], [1], [0, 0, 1, 1], [], []>} : vector<32x32xf32>, vector<32x768xf32>, vector<32x768xf32> -> vector<32x768xf32>
    %78 = vector.broadcast %75 : vector<32x1xf32> to vector<32x768xf32>
    %79 = arith.mulf %78, %77 : vector<32x768xf32>
    %cst_47 = arith.constant dense<0.000000e+00> : vector<32x768xf32>
    %80 = tpu.matmul %72, %76, %cst_47 {dimension_numbers = #tpu.dot_dimension_numbers<[1], [0], [0], [1], [0, 0, 1, 1], [], []>} : vector<32x768xf32>, vector<768x768xf32>, vector<32x768xf32> -> vector<32x768xf32>
    %81 = arith.addf %79, %80 : vector<32x768xf32>
    %cst_48 = arith.constant 6.000000e+00 : f32
    %82 = vector.broadcast %cst_48 : f32 to vector<32x768xf32>
    %83 = arith.mulf %82, %81 : vector<32x768xf32>
    %84 = arith.addf %72, %83 : vector<32x768xf32>
    %cst_49 = arith.constant 0.000000e+00 : f32
    %85 = vector.broadcast %cst_49 : f32 to vector<32x768xf32>
    %86 = arith.maximumf %84, %85 : vector<32x768xf32>
    %cst_50 = arith.constant dense<0.000000e+00> : vector<32xf32>
    %87 = vector.multi_reduction <add>, %86, %cst_50 [1] : vector<32x768xf32> to vector<32xf32>
    %88 = vector.shape_cast %87 : vector<32xf32> to vector<32x1xf32>
    %89 = vector.extract_strided_slice %88 {offsets = [0, 0], sizes = [16, 1], strides = [1, 1]} : vector<32x1xf32> to vector<16x1xf32>
    %90 = vector.extract_strided_slice %88 {offsets = [16, 0], sizes = [16, 1], strides = [1, 1]} : vector<32x1xf32> to vector<16x1xf32>
    %91 = arith.addf %89, %90 : vector<16x1xf32>
    %92 = tpu.concatenate %91, %91 in 0 : vector<16x1xf32>, vector<16x1xf32> -> vector<32x1xf32>
    %cst_51 = arith.constant 6.51041686E-4 : f32
    %93 = vector.broadcast %cst_51 : f32 to vector<32x1xf32>
    %94 = arith.mulf %92, %93 : vector<32x1xf32>
    %95 = vector.broadcast %94 : vector<32x1xf32> to vector<32x768xf32>
    %96 = arith.subf %86, %95 : vector<32x768xf32>
    %97 = arith.mulf %96, %96 : vector<32x768xf32>
    %cst_52 = arith.constant dense<0.000000e+00> : vector<32xf32>
    %98 = vector.multi_reduction <add>, %97, %cst_52 [1] : vector<32x768xf32> to vector<32xf32>
    %99 = vector.shape_cast %98 : vector<32xf32> to vector<32x1xf32>
    %100 = vector.extract_strided_slice %99 {offsets = [0, 0], sizes = [16, 1], strides = [1, 1]} : vector<32x1xf32> to vector<16x1xf32>
    %101 = vector.extract_strided_slice %99 {offsets = [16, 0], sizes = [16, 1], strides = [1, 1]} : vector<32x1xf32> to vector<16x1xf32>
    %102 = arith.addf %100, %101 : vector<16x1xf32>
    %103 = tpu.concatenate %102, %102 in 0 : vector<16x1xf32>, vector<16x1xf32> -> vector<32x1xf32>
    %cst_53 = arith.constant 6.51041686E-4 : f32
    %104 = vector.broadcast %cst_53 : f32 to vector<32x1xf32>
    %105 = arith.mulf %103, %104 : vector<32x1xf32>
    %cst_54 = arith.constant 9.99999974E-6 : f32
    %106 = vector.broadcast %cst_54 : f32 to vector<32x1xf32>
    %107 = arith.addf %105, %106 : vector<32x1xf32>
    %108 = math.rsqrt %107 : vector<32x1xf32>
    %c0_55 = arith.constant 0 : index
    %c0_56 = arith.constant 0 : index
    %109 = vector.load %arg13[%c0_55, %c0_56] : memref<32x1xf32, #tpu.memory_space<vmem>>, vector<32x1xf32>
    %110 = arith.mulf %108, %109 : vector<32x1xf32>
    %111 = vector.broadcast %110 : vector<32x1xf32> to vector<32x768xf32>
    %112 = arith.mulf %96, %111 : vector<32x768xf32>
    %c0_57 = arith.constant 0 : index
    %c0_58 = arith.constant 0 : index
    %113 = vector.load %arg14[%c0_57, %c0_58] : memref<32x1xf32, #tpu.memory_space<vmem>>, vector<32x1xf32>
    %114 = vector.broadcast %113 : vector<32x1xf32> to vector<32x768xf32>
    %115 = arith.addf %112, %114 : vector<32x768xf32>
    %cst_59 = arith.constant 0.000000e+00 : f32
    %116 = vector.broadcast %cst_59 : f32 to vector<32x768xf32>
    %117 = arith.maximumf %115, %116 : vector<32x768xf32>
    %cst_60 = arith.constant dense<0.000000e+00> : vector<32x768xf32>
    %118 = tpu.matmul %74, %117, %cst_60 {dimension_numbers = #tpu.dot_dimension_numbers<[1], [0], [0], [1], [0, 0, 1, 1], [], []>} : vector<32x32xf32>, vector<32x768xf32>, vector<32x768xf32> -> vector<32x768xf32>
    %119 = vector.broadcast %75 : vector<32x1xf32> to vector<32x768xf32>
    %120 = arith.mulf %119, %118 : vector<32x768xf32>
    %cst_61 = arith.constant dense<0.000000e+00> : vector<32x768xf32>
    %121 = tpu.matmul %117, %76, %cst_61 {dimension_numbers = #tpu.dot_dimension_numbers<[1], [0], [0], [1], [0, 0, 1, 1], [], []>} : vector<32x768xf32>, vector<768x768xf32>, vector<32x768xf32> -> vector<32x768xf32>
    %122 = arith.addf %120, %121 : vector<32x768xf32>
    %cst_62 = arith.constant 6.000000e+00 : f32
    %123 = vector.broadcast %cst_62 : f32 to vector<32x768xf32>
    %124 = arith.mulf %123, %122 : vector<32x768xf32>
    %125 = arith.addf %117, %124 : vector<32x768xf32>
    %cst_63 = arith.constant 0.000000e+00 : f32
    %126 = vector.broadcast %cst_63 : f32 to vector<32x768xf32>
    %127 = arith.maximumf %125, %126 : vector<32x768xf32>
    %cst_64 = arith.constant dense<0.000000e+00> : vector<32xf32>
    %128 = vector.multi_reduction <add>, %127, %cst_64 [1] : vector<32x768xf32> to vector<32xf32>
    %129 = vector.shape_cast %128 : vector<32xf32> to vector<32x1xf32>
    %130 = vector.extract_strided_slice %129 {offsets = [0, 0], sizes = [16, 1], strides = [1, 1]} : vector<32x1xf32> to vector<16x1xf32>
    %131 = vector.extract_strided_slice %129 {offsets = [16, 0], sizes = [16, 1], strides = [1, 1]} : vector<32x1xf32> to vector<16x1xf32>
    %132 = arith.addf %130, %131 : vector<16x1xf32>
    %133 = tpu.concatenate %132, %132 in 0 : vector<16x1xf32>, vector<16x1xf32> -> vector<32x1xf32>
    %cst_65 = arith.constant 6.51041686E-4 : f32
    %134 = vector.broadcast %cst_65 : f32 to vector<32x1xf32>
    %135 = arith.mulf %133, %134 : vector<32x1xf32>
    %136 = vector.broadcast %135 : vector<32x1xf32> to vector<32x768xf32>
    %137 = arith.subf %127, %136 : vector<32x768xf32>
    %138 = arith.mulf %137, %137 : vector<32x768xf32>
    %cst_66 = arith.constant dense<0.000000e+00> : vector<32xf32>
    %139 = vector.multi_reduction <add>, %138, %cst_66 [1] : vector<32x768xf32> to vector<32xf32>
    %140 = vector.shape_cast %139 : vector<32xf32> to vector<32x1xf32>
    %141 = vector.extract_strided_slice %140 {offsets = [0, 0], sizes = [16, 1], strides = [1, 1]} : vector<32x1xf32> to vector<16x1xf32>
    %142 = vector.extract_strided_slice %140 {offsets = [16, 0], sizes = [16, 1], strides = [1, 1]} : vector<32x1xf32> to vector<16x1xf32>
    %143 = arith.addf %141, %142 : vector<16x1xf32>
    %144 = tpu.concatenate %143, %143 in 0 : vector<16x1xf32>, vector<16x1xf32> -> vector<32x1xf32>
    %cst_67 = arith.constant 6.51041686E-4 : f32
    %145 = vector.broadcast %cst_67 : f32 to vector<32x1xf32>
    %146 = arith.mulf %144, %145 : vector<32x1xf32>
    %cst_68 = arith.constant 9.99999974E-6 : f32
    %147 = vector.broadcast %cst_68 : f32 to vector<32x1xf32>
    %148 = arith.addf %146, %147 : vector<32x1xf32>
    %149 = math.rsqrt %148 : vector<32x1xf32>
    %c0_69 = arith.constant 0 : index
    %c0_70 = arith.constant 0 : index
    %150 = vector.load %arg13[%c0_69, %c0_70] : memref<32x1xf32, #tpu.memory_space<vmem>>, vector<32x1xf32>
    %151 = arith.mulf %149, %150 : vector<32x1xf32>
    %152 = vector.broadcast %151 : vector<32x1xf32> to vector<32x768xf32>
    %153 = arith.mulf %137, %152 : vector<32x768xf32>
    %c0_71 = arith.constant 0 : index
    %c0_72 = arith.constant 0 : index
    %154 = vector.load %arg14[%c0_71, %c0_72] : memref<32x1xf32, #tpu.memory_space<vmem>>, vector<32x1xf32>
    %155 = vector.broadcast %154 : vector<32x1xf32> to vector<32x768xf32>
    %156 = arith.addf %153, %155 : vector<32x768xf32>
    %c0_i32 = arith.constant 0 : i32
    %157 = arith.cmpi eq, %arg0, %c0_i32 : i32
    %158 = arith.extui %157 : i1 to i32
    %c0_i32_73 = arith.constant 0 : i32
    %159 = arith.cmpi ne, %158, %c0_i32_73 : i32
    scf.if %159 {
      %c0_77 = arith.constant 0 : index
      %c0_78 = arith.constant 0 : index
      %166 = vector.load %arg20[%c0_77, %c0_78] : memref<32x768xf32, #tpu.memory_space<vmem>>, vector<32x768xf32>
      tpu.vector_store %arg20[%c0_77, %c0_78], %156 {strides = array<i32>} : memref<32x768xf32, #tpu.memory_space<vmem>>, vector<32x768xf32>,
    } else {
    }
    %c0_i32_74 = arith.constant 0 : i32
    %160 = arith.cmpi sgt, %arg0, %c0_i32_74 : i32
    %161 = arith.extui %160 : i1 to i32
    %c0_i32_75 = arith.constant 0 : i32
    %162 = arith.cmpi ne, %161, %c0_i32_75 : i32
    scf.if %162 {
      %c0_77 = arith.constant 0 : index
      %c0_78 = arith.constant 0 : index
      %166 = vector.load %arg20[%c0_77, %c0_78] : memref<32x768xf32, #tpu.memory_space<vmem>>, vector<32x768xf32>
      %167 = arith.maximumf %166, %156 : vector<32x768xf32>
      %c0_79 = arith.constant 0 : index
      %c0_80 = arith.constant 0 : index
      %168 = vector.load %arg20[%c0_79, %c0_80] : memref<32x768xf32, #tpu.memory_space<vmem>>, vector<32x768xf32>
      tpu.vector_store %arg20[%c0_79, %c0_80], %167 {strides = array<i32>} : memref<32x768xf32, #tpu.memory_space<vmem>>, vector<32x768xf32>,
    } else {
    }
    %c5_i32 = arith.constant 5 : i32
    %163 = arith.cmpi eq, %arg0, %c5_i32 : i32
    %164 = arith.extui %163 : i1 to i32
    %c0_i32_76 = arith.constant 0 : i32
    %165 = arith.cmpi ne, %164, %c0_i32_76 : i32
    scf.if %165 {
      %c0_77 = arith.constant 0 : index
      %c0_78 = arith.constant 0 : index
      %166 = vector.load %arg20[%c0_77, %c0_78] : memref<32x768xf32, #tpu.memory_space<vmem>>, vector<32x768xf32>
      %c0_79 = arith.constant 0 : index
      %c0_80 = arith.constant 0 : index
      %167 = vector.load %arg15[%c0_79, %c0_80] : memref<768x128xf32, #tpu.memory_space<vmem>>, vector<768x128xf32>
      %cst_81 = arith.constant dense<0.000000e+00> : vector<32x128xf32>
      %168 = tpu.matmul %166, %167, %cst_81 {dimension_numbers = #tpu.dot_dimension_numbers<[1], [0], [0], [1], [0, 0, 1, 1], [], []>} : vector<32x768xf32>, vector<768x128xf32>, vector<32x128xf32> -> vector<32x128xf32>
      %c0_82 = arith.constant 0 : index
      %c0_83 = arith.constant 0 : index
      %169 = vector.load %arg16[%c0_82, %c0_83] : memref<1x128xf32, #tpu.memory_space<vmem>>, vector<1x128xf32>
      %170 = vector.broadcast %169 : vector<1x128xf32> to vector<32x128xf32>
      %171 = arith.addf %168, %170 : vector<32x128xf32>
      %cst_84 = arith.constant 0.000000e+00 : f32
      %172 = vector.broadcast %cst_84 : f32 to vector<32x128xf32>
      %173 = arith.maximumf %171, %172 : vector<32x128xf32>
      %c0_85 = arith.constant 0 : index
      %c0_86 = arith.constant 0 : index
      %174 = vector.load %arg17[%c0_85, %c0_86] : memref<128x128xf32, #tpu.memory_space<vmem>>, vector<128x128xf32>
      %cst_87 = arith.constant dense<0.000000e+00> : vector<32x128xf32>
      %175 = tpu.matmul %173, %174, %cst_87 {dimension_numbers = #tpu.dot_dimension_numbers<[1], [0], [0], [1], [0, 0, 1, 1], [], []>} : vector<32x128xf32>, vector<128x128xf32>, vector<32x128xf32> -> vector<32x128xf32>
      %c0_88 = arith.constant 0 : index
      %c0_89 = arith.constant 0 : index
      %176 = vector.load %arg18[%c0_88, %c0_89] : memref<1x128xf32, #tpu.memory_space<vmem>>, vector<1x128xf32>
      %177 = vector.broadcast %176 : vector<1x128xf32> to vector<32x128xf32>
      %178 = arith.addf %175, %177 : vector<32x128xf32>
      %c0_90 = arith.constant 0 : index
      %c0_91 = arith.constant 0 : index
      %179 = vector.load %arg19[%c0_90, %c0_91] : memref<32x128xf32, #tpu.memory_space<vmem>>, vector<32x128xf32>
      tpu.vector_store %arg19[%c0_90, %c0_91], %178 {strides = array<i32>} : memref<32x128xf32, #tpu.memory_space<vmem>>, vector<32x128xf32>,
    } else {
    }
    return
  }
  func.func @transform_0(%arg0: i32) -> (i32, i32) {
    %c0_i32 = arith.constant 0 : i32
    %c0_i32_0 = arith.constant 0 : i32
    %c0_i32_1 = arith.constant 0 : i32
    return %c0_i32, %c0_i32_0 : i32, i32
  }
  func.func @transform_1(%arg0: i32) -> (i32, i32, i32) {
    %c0_i32 = arith.constant 0 : i32
    %c0_i32_0 = arith.constant 0 : i32
    %c0_i32_1 = arith.constant 0 : i32
    return %arg0, %c0_i32, %c0_i32_0 : i32, i32, i32
  }
  func.func @transform_2(%arg0: i32) -> (i32, i32, i32) {
    %c0_i32 = arith.constant 0 : i32
    %c0_i32_0 = arith.constant 0 : i32
    %c0_i32_1 = arith.constant 0 : i32
    return %arg0, %c0_i32, %c0_i32_0 : i32, i32, i32
  }
  func.func @transform_3(%arg0: i32) -> (i32, i32, i32) {
    %c0_i32 = arith.constant 0 : i32
    %c0_i32_0 = arith.constant 0 : i32
    %c0_i32_1 = arith.constant 0 : i32
    return %arg0, %c0_i32, %c0_i32_0 : i32, i32, i32
  }
  func.func @transform_4(%arg0: i32) -> (i32, i32, i32) {
    %c0_i32 = arith.constant 0 : i32
    %c0_i32_0 = arith.constant 0 : i32
    %c0_i32_1 = arith.constant 0 : i32
    return %arg0, %c0_i32, %c0_i32_0 : i32, i32, i32
  }
  func.func @transform_5(%arg0: i32) -> (i32, i32, i32) {
    %c0_i32 = arith.constant 0 : i32
    %c0_i32_0 = arith.constant 0 : i32
    %c0_i32_1 = arith.constant 0 : i32
    return %arg0, %c0_i32, %c0_i32_0 : i32, i32, i32
  }
  func.func @transform_6(%arg0: i32) -> (i32, i32, i32) {
    %c0_i32 = arith.constant 0 : i32
    %c0_i32_0 = arith.constant 0 : i32
    %c0_i32_1 = arith.constant 0 : i32
    return %arg0, %c0_i32, %c0_i32_0 : i32, i32, i32
  }
  func.func @transform_7(%arg0: i32) -> (i32, i32, i32) {
    %c0_i32 = arith.constant 0 : i32
    %c0_i32_0 = arith.constant 0 : i32
    %c0_i32_1 = arith.constant 0 : i32
    return %arg0, %c0_i32, %c0_i32_0 : i32, i32, i32
  }
  func.func @transform_8(%arg0: i32) -> (i32, i32, i32) {
    %c0_i32 = arith.constant 0 : i32
    %c0_i32_0 = arith.constant 0 : i32
    %c0_i32_1 = arith.constant 0 : i32
    return %arg0, %c0_i32, %c0_i32_0 : i32, i32, i32
  }
  func.func @transform_9(%arg0: i32) -> (i32, i32, i32) {
    %c0_i32 = arith.constant 0 : i32
    %c0_i32_0 = arith.constant 0 : i32
    %c0_i32_1 = arith.constant 0 : i32
    return %arg0, %c0_i32, %c0_i32_0 : i32, i32, i32
  }
  func.func @transform_10(%arg0: i32) -> (i32, i32) {
    %c0_i32 = arith.constant 0 : i32
    %c0_i32_0 = arith.constant 0 : i32
    %c0_i32_1 = arith.constant 0 : i32
    return %c0_i32, %c0_i32_0 : i32, i32
  }
  func.func @transform_11(%arg0: i32) -> (i32, i32) {
    %c0_i32 = arith.constant 0 : i32
    %c0_i32_0 = arith.constant 0 : i32
    %c0_i32_1 = arith.constant 0 : i32
    return %c0_i32, %c0_i32_0 : i32, i32
  }
  func.func @transform_12(%arg0: i32) -> (i32, i32) {
    %c0_i32 = arith.constant 0 : i32
    %c0_i32_0 = arith.constant 0 : i32
    %c0_i32_1 = arith.constant 0 : i32
    return %c0_i32, %c0_i32_0 : i32, i32
  }
  func.func @transform_13(%arg0: i32) -> (i32, i32) {
    %c0_i32 = arith.constant 0 : i32
    %c0_i32_0 = arith.constant 0 : i32
    %c0_i32_1 = arith.constant 0 : i32
    return %c0_i32, %c0_i32_0 : i32, i32
  }
  func.func @transform_14(%arg0: i32) -> (i32, i32) {
    %c0_i32 = arith.constant 0 : i32
    %c0_i32_0 = arith.constant 0 : i32
    %c0_i32_1 = arith.constant 0 : i32
    return %c0_i32, %c0_i32_0 : i32, i32
  }
  func.func @transform_15(%arg0: i32) -> (i32, i32) {
    %c0_i32 = arith.constant 0 : i32
    %c0_i32_0 = arith.constant 0 : i32
    %c0_i32_1 = arith.constant 0 : i32
    return %c0_i32, %c0_i32_0 : i32, i32
  }
  func.func @transform_16(%arg0: i32) -> (i32, i32) {
    %c0_i32 = arith.constant 0 : i32
    %c0_i32_0 = arith.constant 0 : i32
    %c0_i32_1 = arith.constant 0 : i32
    return %c0_i32, %c0_i32_0 : i32, i32
  }
  func.func @transform_17(%arg0: i32) -> (i32, i32) {
    %c0_i32 = arith.constant 0 : i32
    %c0_i32_0 = arith.constant 0 : i32
    %c0_i32_1 = arith.constant 0 : i32
    return %c0_i32, %c0_i32_0 : i32, i32
  }
  func.func @transform_18(%arg0: i32) -> (i32, i32) {
    %c0_i32 = arith.constant 0 : i32
    %c0_i32_0 = arith.constant 0 : i32
    %c0_i32_1 = arith.constant 0 : i32
    return %c0_i32, %c0_i32_0 : i32, i32
  }
}

</mosaic_0001>

<llo_original>
// kernel: stgode_forward.1
$region0: #{stgode_forward.1}
  #allocation0 [shape = 'u32[]', space=smem, size = 0x4, offset = 0x4, fixed_abs, tag = 'smem constant byte address 0x4 - core index']
  #allocation1 [shape = 'u32[144,128]{1,0:T(1,128)}', space=vmem, size = 0x12000, scoped, tag = 'internal scratch']
  #allocation2 [shape = 'f32[32,768]{1,0:T(8,128)}', space=vmem, size = 0x18000, scoped, tag = 'scratch operand']
  %s0 = inlined_call_operand.vmem [shape: f32[384,3], index: 0, kind: input, shape index: {}]
  %s1 = inlined_call_operand.hbm [shape: f32[6,6,128], index: 1, kind: input, shape index: {}]
  %s2 = inlined_call_operand.hbm [shape: f32[6,1,128], index: 2, kind: input, shape index: {}]
  %s3 = inlined_call_operand.vmem [shape: f32[6,64,32], index: 3, kind: input, shape index: {}]
  %s4 = inlined_call_operand.vmem [shape: f32[6,64,32], index: 4, kind: input, shape index: {}]
  %s5 = inlined_call_operand.hbm [shape: f32[6,1,32], index: 5, kind: input, shape index: {}]
  %s6 = inlined_call_operand.hbm [shape: f32[6,32,64], index: 6, kind: input, shape index: {}]
  %s7 = inlined_call_operand.hbm [shape: f32[6,32,64], index: 7, kind: input, shape index: {}]
  %s8 = inlined_call_operand.hbm [shape: f32[6,1,64], index: 8, kind: input, shape index: {}]
  %s9 = inlined_call_operand.hbm [shape: f32[6,32,32], index: 9, kind: input, shape index: {}]
  %s10 = inlined_call_operand.vmem [shape: f32[32,1], index: 10, kind: input, shape index: {}]
  %s11 = inlined_call_operand.hbm [shape: f32[768,768], index: 11, kind: input, shape index: {}]
  %s12 = inlined_call_operand.vmem [shape: f32[32,1], index: 12, kind: input, shape index: {}]
  %s13 = inlined_call_operand.vmem [shape: f32[32,1], index: 13, kind: input, shape index: {}]
  %s14 = inlined_call_operand.hbm [shape: f32[768,128], index: 14, kind: input, shape index: {}]
  %s15 = inlined_call_operand.hbm [shape: f32[1,128], index: 15, kind: input, shape index: {}]
  %s16 = inlined_call_operand.hbm [shape: f32[128,128], index: 16, kind: input, shape index: {}]
  %s17 = inlined_call_operand.hbm [shape: f32[1,128], index: 17, kind: input, shape index: {}]
  %s18 = inlined_call_operand.vmem [shape: f32[32,128], index: 18, kind: output, shape index: {}]
  %s19 = sld [smem:[#allocation0]]
  $region165: #{stgode_forward.1} parent=0
    _
  %s21 = ssub.s32 1, %s19
  %s22 = scalar_select 0, %s21, %s19
  $region1: #{stgode_forward.1} parent=0
    #allocation3 [shape = 'u8[8192]{0}', space=vmem, size = 0x2000, scoped, tag = 'input window, operand 1']
    #allocation4 [shape = 's32[2]{0}', space=sflag, size = 0x8, scoped, tag = 'scoped memory for stgode_forward.1']
    #allocation5 [shape = 'u8[1024]{0}', space=vmem, size = 0x400, scoped, tag = 'input window, operand 2']
    #allocation6 [shape = 's32[2]{0}', space=sflag, size = 0x8, scoped, tag = 'scoped memory for stgode_forward.1']
    #allocation7 [shape = 'u8[1024]{0}', space=vmem, size = 0x400, scoped, tag = 'input window, operand 5']
    #allocation8 [shape = 'u8[32768]{0}', space=vmem, size = 0x8000, scoped, tag = 'input window, operand 6']
    #allocation9 [shape = 's32[2]{0}', space=sflag, size = 0x8, scoped, tag = 'scoped memory for stgode_forward.1']
    #allocation10 [shape = 'u8[32768]{0}', space=vmem, size = 0x8000, scoped, tag = 'input window, operand 7']
    #allocation11 [shape = 'u8[1024]{0}', space=vmem, size = 0x400, scoped, tag = 'input window, operand 8']
    #allocation12 [shape = 's32[2]{0}', space=sflag, size = 0x8, scoped, tag = 'scoped memory for stgode_forward.1']
    #allocation13 [shape = 'u8[32768]{0}', space=vmem, size = 0x8000, scoped, tag = 'input window, operand 9']
    #allocation14 [shape = 'u8[2359296]{0}', space=vmem, size = 0x240000, scoped, tag = 'input window, operand 11, single buffered']
    #allocation15 [shape = 's32[1]{0}', space=sflag, size = 0x4, scoped, tag = 'scoped memory for stgode_forward.1']
    #allocation16 [shape = 'u8[393216]{0}', space=vmem, size = 0x60000, scoped, tag = 'input window, operand 14, single buffered']
    #allocation17 [shape = 'u8[512]{0}', space=vmem, size = 0x400, scoped, tag = 'input window, operand 15, single buffered']
    #allocation18 [shape = 's32[1]{0}', space=sflag, size = 0x4, scoped, tag = 'scoped memory for stgode_forward.1']
    #allocation19 [shape = 'u8[65536]{0}', space=vmem, size = 0x10000, scoped, tag = 'input window, operand 16, single buffered']
    #allocation20 [shape = 'u8[512]{0}', space=vmem, size = 0x400, scoped, tag = 'input window, operand 17, single buffered']
    #allocation21 [shape = 's32[1]{0}', space=sflag, size = 0x4, scoped, tag = 'scoped memory for stgode_forward.1']
    %23 = vsyncpa [#allocation4], 0
    %s24 = scalar_lea.sflag [#allocation4], 1
    %25 = vsyncpa %s24, 0
    %26 = vsyncpa [#allocation6], 0
    %s27 = scalar_lea.sflag [#allocation6], 1
    %28 = vsyncpa %s27, 0
    %29 = vsyncpa [#allocation9], 0
    %s30 = scalar_lea.sflag [#allocation9], 1
    %31 = vsyncpa %s30, 0
    %32 = vsyncpa [#allocation12], 0
    %s33 = scalar_lea.sflag [#allocation12], 1
    %34 = vsyncpa %s33, 0
    %35 = vsyncpa [#allocation15], 0
    %36 = vsyncpa [#allocation18], 0
    %37 = vsyncpa [#allocation21], 0
    loop: start=0, step=1, limit=8
    $region2: #{stgode_forward.1} parent=1 // loop_pre_header
      _
    $region3: #{stgode_forward.1} parent=1 // loop_header
      %s39 = sphi 0, %s43
      %p40 = scmp.ge.s32.totalorder %s39, 8
      %s47 = sphi 0, %s47
      %s49 = sphi 0, %s47
      %s50 = sphi 0, %s49
      %s64 = sphi 0, %s50
      %s70 = sphi 0, %s72
      %s73 = sphi 0, %s70
      %s74 = sphi 0, %s73
      %s90 = sphi 0, %s74
      %s96 = sphi 0, %s98
      %s99 = sphi 0, %s96
      %s100 = sphi 0, %s99
      %s116 = sphi 0, %s100
      %s122 = sphi 0, %s124
      %s125 = sphi 0, %s122
      %s126 = sphi 0, %s125
      %s142 = sphi 0, %s126
      %s148 = sphi 0, %s150
      %s151 = sphi 0, %s148
      %s152 = sphi 0, %s151
      %s168 = sphi 0, %s152
      %s174 = sphi 0, %s176
      %s177 = sphi 0, %s174
      %s178 = sphi 0, %s177
      %s194 = sphi 0, %s178
      %s200 = sphi 0, %s202
      %s203 = sphi 0, %s200
      %s204 = sphi 0, %s203
      %s220 = sphi 0, %s204
      %s226 = sphi 0, %s228
      %s229 = sphi 0, %s226
      %s230 = sphi 0, %s229
      %s246 = sphi 0, %s230
      %s252 = sphi 0, %s254
      %s255 = sphi 0, %s252
      %s256 = sphi 0, %s255
      %s272 = sphi 0, %s256
      %s278 = sphi 0, %s280
      %s281 = sphi 0, %s278
      %s282 = sphi 0, %s281
      %s298 = sphi 0, %s282
      %s302 = sphi 0, %s302
      %s304 = sphi 0, %s302
      %s305 = sphi 0, %s304
      %s319 = sphi 0, %s305
      %s323 = sphi 0, %s323
      %s325 = sphi 0, %s323
      %s326 = sphi 0, %s325
      %s340 = sphi 0, %s326
      %s344 = sphi 0, %s344
      %s346 = sphi 0, %s344
      %s347 = sphi 0, %s346
      %s361 = sphi 0, %s347
      %s365 = sphi 0, %s365
      %s367 = sphi 0, %s365
      %s368 = sphi 0, %s367
      %s382 = sphi 0, %s368
      %s386 = sphi 0, %s386
      %s388 = sphi 0, %s386
      %s389 = sphi 0, %s388
      %s403 = sphi 0, %s389
      %s407 = sphi 0, %s407
      %s409 = sphi 0, %s407
      %s410 = sphi 0, %s409
      %s424 = sphi 0, %s410
      %s428 = sphi 0, %s428
      %s430 = sphi 0, %s428
      %s431 = sphi 0, %s430
      %s445 = sphi 0, %s431
      %s449 = sphi 0, %s449
      %s451 = sphi 0, %s449
      %s452 = sphi 0, %s451
      %s466 = sphi 0, %s452
      %s470 = sphi 0, %s470
      %s472 = sphi 0, %s470
      %s473 = sphi 0, %s472
      %s487 = sphi 0, %s473
    $region4: #{stgode_forward.1} parent=1 // loop_header_branch
      %42 = sbr.rel (%p40) target = $region8
    $region5: #{stgode_forward.1} parent=1 // loop_body
      %s44 = ssub.s32 %s39, 1
      %s45 = ssub.s32 %s39, 2
      %s46 = sadd.s32 %s39, 1
      %s48 = sadd.s32 %s47, 1
      %p51 = scmp.eq.s32.totalorder %s39, 5
      %p52 = scmp.ne.s32.totalorder %s47, %s49
      %p53 = scmp.eq.s32.totalorder %s39, 0
      %p54 = por %p52, %p53
      %p55 = scmp.ne.s32.totalorder %s47, %s49
      %p56 = scmp.eq.s32.totalorder %s44, 5
      %p57 = por %p55, %p56
      %p58 = scmp.ne.s32.totalorder %s49, %s50
      %p59 = scmp.eq.s32.totalorder %s44, 0
      %p60 = por %p58, %p59
      %p61 = scmp.ne.s32.totalorder %s49, %s50
      %p62 = scmp.eq.s32.totalorder %s45, 5
      %p63 = por %p61, %p62
      %p65 = scmp.ne.s32.totalorder %s50, %s64
      %p66 = scmp.eq.s32.totalorder %s45, 0
      %p67 = por %p65, %p66
      %s68 = ssub.s32 %s39, %s46
      %p69 = scmp.eq.s32.totalorder %s68, 0
      %s71 = sadd.s32 %s70, 1
      %s72 = scalar_select %p69, %s70, %s71
      %p75 = pneg %p69
      %p76 = scmp.eq.s32.totalorder %s39, 5
      %p77 = por %p75, %p76
      %p78 = scmp.ne.s32.totalorder %s70, %s73
      %p79 = scmp.eq.s32.totalorder %s39, 0
      %p80 = por %p78, %p79
      %p81 = scmp.ne.s32.totalorder %s70, %s73
      %p82 = scmp.eq.s32.totalorder %s44, 5
      %p83 = por %p81, %p82
      %p84 = scmp.ne.s32.totalorder %s73, %s74
      %p85 = scmp.eq.s32.totalorder %s44, 0
      %p86 = por %p84, %p85
      %p87 = scmp.ne.s32.totalorder %s73, %s74
      %p88 = scmp.eq.s32.totalorder %s45, 5
      %p89 = por %p87, %p88
      %p91 = scmp.ne.s32.totalorder %s74, %s90
      %p92 = scmp.eq.s32.totalorder %s45, 0
      %p93 = por %p91, %p92
      %s94 = ssub.s32 %s39, %s46
      %p95 = scmp.eq.s32.totalorder %s94, 0
      %s97 = sadd.s32 %s96, 1
      %s98 = scalar_select %p95, %s96, %s97
      %p101 = pneg %p95
      %p102 = scmp.eq.s32.totalorder %s39, 5
      %p103 = por %p101, %p102
      %p104 = scmp.ne.s32.totalorder %s96, %s99
      %p105 = scmp.eq.s32.totalorder %s39, 0
      %p106 = por %p104, %p105
      %p107 = scmp.ne.s32.totalorder %s96, %s99
      %p108 = scmp.eq.s32.totalorder %s44, 5
      %p109 = por %p107, %p108
      %p110 = scmp.ne.s32.totalorder %s99, %s100
      %p111 = scmp.eq.s32.totalorder %s44, 0
      %p112 = por %p110, %p111
      %p113 = scmp.ne.s32.totalorder %s99, %s100
      %p114 = scmp.eq.s32.totalorder %s45, 5
      %p115 = por %p113, %p114
      %p117 = scmp.ne.s32.totalorder %s100, %s116
      %p118 = scmp.eq.s32.totalorder %s45, 0
      %p119 = por %p117, %p118
      %s120 = ssub.s32 %s39, %s46
      %p121 = scmp.eq.s32.totalorder %s120, 0
      %s123 = sadd.s32 %s122, 1
      %s124 = scalar_select %p121, %s122, %s123
      %p127 = pneg %p121
      %p128 = scmp.eq.s32.totalorder %s39, 5
      %p129 = por %p127, %p128
      %p130 = scmp.ne.s32.totalorder %s122, %s125
      %p131 = scmp.eq.s32.totalorder %s39, 0
      %p132 = por %p130, %p131
      %p133 = scmp.ne.s32.totalorder %s122, %s125
      %p134 = scmp.eq.s32.totalorder %s44, 5
      %p135 = por %p133, %p134
      %p136 = scmp.ne.s32.totalorder %s125, %s126
      %p137 = scmp.eq.s32.totalorder %s44, 0
      %p138 = por %p136, %p137
      %p139 = scmp.ne.s32.totalorder %s125, %s126
      %p140 = scmp.eq.s32.totalorder %s45, 5
      %p141 = por %p139, %p140
      %p143 = scmp.ne.s32.totalorder %s126, %s142
      %p144 = scmp.eq.s32.totalorder %s45, 0
      %p145 = por %p143, %p144
      %s146 = ssub.s32 %s39, %s46
      %p147 = scmp.eq.s32.totalorder %s146, 0
      %s149 = sadd.s32 %s148, 1
      %s150 = scalar_select %p147, %s148, %s149
      %p153 = pneg %p147
      %p154 = scmp.eq.s32.totalorder %s39, 5
      %p155 = por %p153, %p154
      %p156 = scmp.ne.s32.totalorder %s148, %s151
      %p157 = scmp.eq.s32.totalorder %s39, 0
      %p158 = por %p156, %p157
      %p159 = scmp.ne.s32.totalorder %s148, %s151
      %p160 = scmp.eq.s32.totalorder %s44, 5
      %p161 = por %p159, %p160
      %p162 = scmp.ne.s32.totalorder %s151, %s152
      %p163 = scmp.eq.s32.totalorder %s44, 0
      %p164 = por %p162, %p163
      %p165 = scmp.ne.s32.totalorder %s151, %s152
      %p166 = scmp.eq.s32.totalorder %s45, 5
      %p167 = por %p165, %p166
      %p169 = scmp.ne.s32.totalorder %s152, %s168
      %p170 = scmp.eq.s32.totalorder %s45, 0
      %p171 = por %p169, %p170
      %s172 = ssub.s32 %s39, %s46
      %p173 = scmp.eq.s32.totalorder %s172, 0
      %s175 = sadd.s32 %s174, 1
      %s176 = scalar_select %p173, %s174, %s175
      %p179 = pneg %p173
      %p180 = scmp.eq.s32.totalorder %s39, 5
      %p181 = por %p179, %p180
      %p182 = scmp.ne.s32.totalorder %s174, %s177
      %p183 = scmp.eq.s32.totalorder %s39, 0
      %p184 = por %p182, %p183
      %p185 = scmp.ne.s32.totalorder %s174, %s177
      %p186 = scmp.eq.s32.totalorder %s44, 5
      %p187 = por %p185, %p186
      %p188 = scmp.ne.s32.totalorder %s177, %s178
      %p189 = scmp.eq.s32.totalorder %s44, 0
      %p190 = por %p188, %p189
      %p191 = scmp.ne.s32.totalorder %s177, %s178
      %p192 = scmp.eq.s32.totalorder %s45, 5
      %p193 = por %p191, %p192
      %p195 = scmp.ne.s32.totalorder %s178, %s194
      %p196 = scmp.eq.s32.totalorder %s45, 0
      %p197 = por %p195, %p196
      %s198 = ssub.s32 %s39, %s46
      %p199 = scmp.eq.s32.totalorder %s198, 0
      %s201 = sadd.s32 %s200, 1
      %s202 = scalar_select %p199, %s200, %s201
      %p205 = pneg %p199
      %p206 = scmp.eq.s32.totalorder %s39, 5
      %p207 = por %p205, %p206
      %p208 = scmp.ne.s32.totalorder %s200, %s203
      %p209 = scmp.eq.s32.totalorder %s39, 0
      %p210 = por %p208, %p209
      %p211 = scmp.ne.s32.totalorder %s200, %s203
      %p212 = scmp.eq.s32.totalorder %s44, 5
      %p213 = por %p211, %p212
      %p214 = scmp.ne.s32.totalorder %s203, %s204
      %p215 = scmp.eq.s32.totalorder %s44, 0
      %p216 = por %p214, %p215
      %p217 = scmp.ne.s32.totalorder %s203, %s204
      %p218 = scmp.eq.s32.totalorder %s45, 5
      %p219 = por %p217, %p218
      %p221 = scmp.ne.s32.totalorder %s204, %s220
      %p222 = scmp.eq.s32.totalorder %s45, 0
      %p223 = por %p221, %p222
      %s224 = ssub.s32 %s39, %s46
      %p225 = scmp.eq.s32.totalorder %s224, 0
      %s227 = sadd.s32 %s226, 1
      %s228 = scalar_select %p225, %s226, %s227
      %p231 = pneg %p225
      %p232 = scmp.eq.s32.totalorder %s39, 5
      %p233 = por %p231, %p232
      %p234 = scmp.ne.s32.totalorder %s226, %s229
      %p235 = scmp.eq.s32.totalorder %s39, 0
      %p236 = por %p234, %p235
      %p237 = scmp.ne.s32.totalorder %s226, %s229
      %p238 = scmp.eq.s32.totalorder %s44, 5
      %p239 = por %p237, %p238
      %p240 = scmp.ne.s32.totalorder %s229, %s230
      %p241 = scmp.eq.s32.totalorder %s44, 0
      %p242 = por %p240, %p241
      %p243 = scmp.ne.s32.totalorder %s229, %s230
      %p244 = scmp.eq.s32.totalorder %s45, 5
      %p245 = por %p243, %p244
      %p247 = scmp.ne.s32.totalorder %s230, %s246
      %p248 = scmp.eq.s32.totalorder %s45, 0
      %p249 = por %p247, %p248
      %s250 = ssub.s32 %s39, %s46
      %p251 = scmp.eq.s32.totalorder %s250, 0
      %s253 = sadd.s32 %s252, 1
      %s254 = scalar_select %p251, %s252, %s253
      %p257 = pneg %p251
      %p258 = scmp.eq.s32.totalorder %s39, 5
      %p259 = por %p257, %p258
      %p260 = scmp.ne.s32.totalorder %s252, %s255
      %p261 = scmp.eq.s32.totalorder %s39, 0
      %p262 = por %p260, %p261
      %p263 = scmp.ne.s32.totalorder %s252, %s255
      %p264 = scmp.eq.s32.totalorder %s44, 5
      %p265 = por %p263, %p264
      %p266 = scmp.ne.s32.totalorder %s255, %s256
      %p267 = scmp.eq.s32.totalorder %s44, 0
      %p268 = por %p266, %p267
      %p269 = scmp.ne.s32.totalorder %s255, %s256
      %p270 = scmp.eq.s32.totalorder %s45, 5
      %p271 = por %p269, %p270
      %p273 = scmp.ne.s32.totalorder %s256, %s272
      %p274 = scmp.eq.s32.totalorder %s45, 0
      %p275 = por %p273, %p274
      %s276 = ssub.s32 %s39, %s46
      %p277 = scmp.eq.s32.totalorder %s276, 0
      %s279 = sadd.s32 %s278, 1
      %s280 = scalar_select %p277, %s278, %s279
      %p283 = pneg %p277
      %p284 = scmp.eq.s32.totalorder %s39, 5
      %p285 = por %p283, %p284
      %p286 = scmp.ne.s32.totalorder %s278, %s281
      %p287 = scmp.eq.s32.totalorder %s39, 0
      %p288 = por %p286, %p287
      %p289 = scmp.ne.s32.totalorder %s278, %s281
      %p290 = scmp.eq.s32.totalorder %s44, 5
      %p291 = por %p289, %p290
      %p292 = scmp.ne.s32.totalorder %s281, %s282
      %p293 = scmp.eq.s32.totalorder %s44, 0
      %p294 = por %p292, %p293
      %p295 = scmp.ne.s32.totalorder %s281, %s282
      %p296 = scmp.eq.s32.totalorder %s45, 5
      %p297 = por %p295, %p296
      %p299 = scmp.ne.s32.totalorder %s282, %s298
      %p300 = scmp.eq.s32.totalorder %s45, 0
      %p301 = por %p299, %p300
      %s303 = sadd.s32 %s302, 1
      %p306 = scmp.eq.s32.totalorder %s39, 5
      %p307 = scmp.ne.s32.totalorder %s302, %s304
      %p308 = scmp.eq.s32.totalorder %s39, 0
      %p309 = por %p307, %p308
      %p310 = scmp.ne.s32.totalorder %s302, %s304
      %p311 = scmp.eq.s32.totalorder %s44, 5
      %p312 = por %p310, %p311
      %p313 = scmp.ne.s32.totalorder %s304, %s305
      %p314 = scmp.eq.s32.totalorder %s44, 0
      %p315 = por %p313, %p314
      %p316 = scmp.ne.s32.totalorder %s304, %s305
      %p317 = scmp.eq.s32.totalorder %s45, 5
      %p318 = por %p316, %p317
      %p320 = scmp.ne.s32.totalorder %s305, %s319
      %p321 = scmp.eq.s32.totalorder %s45, 0
      %p322 = por %p320, %p321
      %s324 = sadd.s32 %s323, 1
      %p327 = scmp.eq.s32.totalorder %s39, 5
      %p328 = scmp.ne.s32.totalorder %s323, %s325
      %p329 = scmp.eq.s32.totalorder %s39, 0
      %p330 = por %p328, %p329
      %p331 = scmp.ne.s32.totalorder %s323, %s325
      %p332 = scmp.eq.s32.totalorder %s44, 5
      %p333 = por %p331, %p332
      %p334 = scmp.ne.s32.totalorder %s325, %s326
      %p335 = scmp.eq.s32.totalorder %s44, 0
      %p336 = por %p334, %p335
      %p337 = scmp.ne.s32.totalorder %s325, %s326
      %p338 = scmp.eq.s32.totalorder %s45, 5
      %p339 = por %p337, %p338
      %p341 = scmp.ne.s32.totalorder %s326, %s340
      %p342 = scmp.eq.s32.totalorder %s45, 0
      %p343 = por %p341, %p342
      %s345 = sadd.s32 %s344, 1
      %p348 = scmp.eq.s32.totalorder %s39, 5
      %p349 = scmp.ne.s32.totalorder %s344, %s346
      %p350 = scmp.eq.s32.totalorder %s39, 0
      %p351 = por %p349, %p350
      %p352 = scmp.ne.s32.totalorder %s344, %s346
      %p353 = scmp.eq.s32.totalorder %s44, 5
      %p354 = por %p352, %p353
      %p355 = scmp.ne.s32.totalorder %s346, %s347
      %p356 = scmp.eq.s32.totalorder %s44, 0
      %p357 = por %p355, %p356
      %p358 = scmp.ne.s32.totalorder %s346, %s347
      %p359 = scmp.eq.s32.totalorder %s45, 5
      %p360 = por %p358, %p359
      %p362 = scmp.ne.s32.totalorder %s347, %s361
      %p363 = scmp.eq.s32.totalorder %s45, 0
      %p364 = por %p362, %p363
      %s366 = sadd.s32 %s365, 1
      %p369 = scmp.eq.s32.totalorder %s39, 5
      %p370 = scmp.ne.s32.totalorder %s365, %s367
      %p371 = scmp.eq.s32.totalorder %s39, 0
      %p372 = por %p370, %p371
      %p373 = scmp.ne.s32.totalorder %s365, %s367
      %p374 = scmp.eq.s32.totalorder %s44, 5
      %p375 = por %p373, %p374
      %p376 = scmp.ne.s32.totalorder %s367, %s368
      %p377 = scmp.eq.s32.totalorder %s44, 0
      %p378 = por %p376, %p377
      %p379 = scmp.ne.s32.totalorder %s367, %s368
      %p380 = scmp.eq.s32.totalorder %s45, 5
      %p381 = por %p379, %p380
      %p383 = scmp.ne.s32.totalorder %s368, %s382
      %p384 = scmp.eq.s32.totalorder %s45, 0
      %p385 = por %p383, %p384
      %s387 = sadd.s32 %s386, 1
      %p390 = scmp.eq.s32.totalorder %s39, 5
      %p391 = scmp.ne.s32.totalorder %s386, %s388
      %p392 = scmp.eq.s32.totalorder %s39, 0
      %p393 = por %p391, %p392
      %p394 = scmp.ne.s32.totalorder %s386, %s388
      %p395 = scmp.eq.s32.totalorder %s44, 5
      %p396 = por %p394, %p395
      %p397 = scmp.ne.s32.totalorder %s388, %s389
      %p398 = scmp.eq.s32.totalorder %s44, 0
      %p399 = por %p397, %p398
      %p400 = scmp.ne.s32.totalorder %s388, %s389
      %p401 = scmp.eq.s32.totalorder %s45, 5
      %p402 = por %p400, %p401
      %p404 = scmp.ne.s32.totalorder %s389, %s403
      %p405 = scmp.eq.s32.totalorder %s45, 0
      %p406 = por %p404, %p405
      %s408 = sadd.s32 %s407, 1
      %p411 = scmp.eq.s32.totalorder %s39, 5
      %p412 = scmp.ne.s32.totalorder %s407, %s409
      %p413 = scmp.eq.s32.totalorder %s39, 0
      %p414 = por %p412, %p413
      %p415 = scmp.ne.s32.totalorder %s407, %s409
      %p416 = scmp.eq.s32.totalorder %s44, 5
      %p417 = por %p415, %p416
      %p418 = scmp.ne.s32.totalorder %s409, %s410
      %p419 = scmp.eq.s32.totalorder %s44, 0
      %p420 = por %p418, %p419
      %p421 = scmp.ne.s32.totalorder %s409, %s410
      %p422 = scmp.eq.s32.totalorder %s45, 5
      %p423 = por %p421, %p422
      %p425 = scmp.ne.s32.totalorder %s410, %s424
      %p426 = scmp.eq.s32.totalorder %s45, 0
      %p427 = por %p425, %p426
      %s429 = sadd.s32 %s428, 1
      %p432 = scmp.eq.s32.totalorder %s39, 5
      %p433 = scmp.ne.s32.totalorder %s428, %s430
      %p434 = scmp.eq.s32.totalorder %s39, 0
      %p435 = por %p433, %p434
      %p436 = scmp.ne.s32.totalorder %s428, %s430
      %p437 = scmp.eq.s32.totalorder %s44, 5
      %p438 = por %p436, %p437
      %p439 = scmp.ne.s32.totalorder %s430, %s431
      %p440 = scmp.eq.s32.totalorder %s44, 0
      %p441 = por %p439, %p440
      %p442 = scmp.ne.s32.totalorder %s430, %s431
      %p443 = scmp.eq.s32.totalorder %s45, 5
      %p444 = por %p442, %p443
      %p446 = scmp.ne.s32.totalorder %s431, %s445
      %p447 = scmp.eq.s32.totalorder %s45, 0
      %p448 = por %p446, %p447
      %s450 = sadd.s32 %s449, 1
      %p453 = scmp.eq.s32.totalorder %s39, 5
      %p454 = scmp.ne.s32.totalorder %s449, %s451
      %p455 = scmp.eq.s32.totalorder %s39, 0
      %p456 = por %p454, %p455
      %p457 = scmp.ne.s32.totalorder %s449, %s451
      %p458 = scmp.eq.s32.totalorder %s44, 5
      %p459 = por %p457, %p458
      %p460 = scmp.ne.s32.totalorder %s451, %s452
      %p461 = scmp.eq.s32.totalorder %s44, 0
      %p462 = por %p460, %p461
      %p463 = scmp.ne.s32.totalorder %s451, %s452
      %p464 = scmp.eq.s32.totalorder %s45, 5
      %p465 = por %p463, %p464
      %p467 = scmp.ne.s32.totalorder %s452, %s466
      %p468 = scmp.eq.s32.totalorder %s45, 0
      %p469 = por %p467, %p468
      %s471 = sadd.s32 %s470, 1
      %p474 = scmp.eq.s32.totalorder %s39, 5
      %p475 = scmp.ne.s32.totalorder %s470, %s472
      %p476 = scmp.eq.s32.totalorder %s39, 0
      %p477 = por %p475, %p476
      %p478 = scmp.ne.s32.totalorder %s470, %s472
      %p479 = scmp.eq.s32.totalorder %s44, 5
      %p480 = por %p478, %p479
      %p481 = scmp.ne.s32.totalorder %s472, %s473
      %p482 = scmp.eq.s32.totalorder %s44, 0
      %p483 = por %p481, %p482
      %p484 = scmp.ne.s32.totalorder %s472, %s473
      %p485 = scmp.eq.s32.totalorder %s45, 5
      %p486 = por %p484, %p485
      %p488 = scmp.ne.s32.totalorder %s473, %s487
      %p489 = scmp.eq.s32.totalorder %s45, 0
      %p490 = por %p488, %p489
      %p491 = scmp.le.s32.totalorder 1, %s39
      %p492 = scmp.lt.s32.totalorder %s39, 7
      %p493 = pnand %p491, %p492
      %p494 = pneg %p493
      // Predicated region
      $region9: #{stgode_forward.1} parent=5 // pred_check
        _
      $region10: #{stgode_forward.1} parent=5 // pred_check_branch
        %496 = sbr.rel (%p493) target = $region12
      $region11: #{stgode_forward.1} parent=5 // pred_region
        %s497 = ssub.s32 %s39, 1
        // Predicated region
        $region13: #{stgode_forward.1} parent=11 // pred_check
          %p498 = pneg %p60
        $region14: #{stgode_forward.1} parent=11 // pred_check_branch
          %500 = sbr.rel (%p498) target = $region16
        $region15: #{stgode_forward.1} parent=11 // pred_region
          _
        $region16: #{stgode_forward.1} parent=11 // pred_fallthru
          _
        // Predicated region
        $region17: #{stgode_forward.1} parent=11 // pred_check
          %p501 = pneg %p315
        $region18: #{stgode_forward.1} parent=11 // pred_check_branch
          %503 = sbr.rel (%p501) target = $region20
        $region19: #{stgode_forward.1} parent=11 // pred_region
          _
        $region20: #{stgode_forward.1} parent=11 // pred_fallthru
          _
        // Predicated region
        $region21: #{stgode_forward.1} parent=11 // pred_check
          %p504 = pneg %p336
        $region22: #{stgode_forward.1} parent=11 // pred_check_branch
          %506 = sbr.rel (%p504) target = $region24
        $region23: #{stgode_forward.1} parent=11 // pred_region
          %s508 = ssub.s32 73728, 73728
          %509 = vsyncadd [#allocation15], %s508
          %s510 = sshll.u32 [#allocation14], 4
          %s511 = int_to_ptr.vmem [resolvable:$true] %s510
          %516 = dma.hbm_to_vmem [thread:$0]  %s11, 73728, %s511, [#allocation15], 768, 768, 48
        $region24: #{stgode_forward.1} parent=11 // pred_fallthru
          _
        // Predicated region
        $region25: #{stgode_forward.1} parent=11 // pred_check
          %p517 = pneg %p357
        $region26: #{stgode_forward.1} parent=11 // pred_check_branch
          %519 = sbr.rel (%p517) target = $region28
        $region27: #{stgode_forward.1} parent=11 // pred_region
          _
        $region28: #{stgode_forward.1} parent=11 // pred_fallthru
          _
        // Predicated region
        $region29: #{stgode_forward.1} parent=11 // pred_check
          %p520 = pneg %p378
        $region30: #{stgode_forward.1} parent=11 // pred_check_branch
          %522 = sbr.rel (%p520) target = $region32
        $region31: #{stgode_forward.1} parent=11 // pred_region
          _
        $region32: #{stgode_forward.1} parent=11 // pred_fallthru
          _
        // Predicated region
        $region33: #{stgode_forward.1} parent=11 // pred_check
          %p523 = pneg %p399
        $region34: #{stgode_forward.1} parent=11 // pred_check_branch
          %525 = sbr.rel (%p523) target = $region36
        $region35: #{stgode_forward.1} parent=11 // pred_region
          %s527 = ssub.s32 12288, 12288
          %528 = vsyncadd [#allocation15], %s527
          %s529 = sshll.u32 [#allocation16], 4
          %s530 = int_to_ptr.vmem [resolvable:$true] %s529
          %535 = dma.hbm_to_vmem [thread:$0]  %s14, 12288, %s530, [#allocation15], 128, 128, 8
        $region36: #{stgode_forward.1} parent=11 // pred_fallthru
          _
        // Predicated region
        $region37: #{stgode_forward.1} parent=11 // pred_check
          %p536 = pneg %p420
        $region38: #{stgode_forward.1} parent=11 // pred_check_branch
          %538 = sbr.rel (%p536) target = $region40
        $region39: #{stgode_forward.1} parent=11 // pred_region
          %s540 = ssub.s32 16, 16
          %541 = vsyncadd [#allocation18], %s540
          %s543 = sshll.u32 [#allocation17], 4
          %s544 = int_to_ptr.vmem [resolvable:$true] %s543
          %546 = dma.hbm_to_vmem [thread:$0]  %s15, 16, %s544, [#allocation18]
        $region40: #{stgode_forward.1} parent=11 // pred_fallthru
          _
        // Predicated region
        $region41: #{stgode_forward.1} parent=11 // pred_check
          %p547 = pneg %p441
        $region42: #{stgode_forward.1} parent=11 // pred_check_branch
          %549 = sbr.rel (%p547) target = $region44
        $region43: #{stgode_forward.1} parent=11 // pred_region
          %s551 = ssub.s32 2048, 2048
          %552 = vsyncadd [#allocation18], %s551
          %s553 = sshll.u32 [#allocation19], 4
          %s554 = int_to_ptr.vmem [resolvable:$true] %s553
          %559 = dma.hbm_to_vmem [thread:$0]  %s16, 2048, %s554, [#allocation18], 128, 128, 8
        $region44: #{stgode_forward.1} parent=11 // pred_fallthru
          _
        // Predicated region
        $region45: #{stgode_forward.1} parent=11 // pred_check
          %p560 = pneg %p462
        $region46: #{stgode_forward.1} parent=11 // pred_check_branch
          %562 = sbr.rel (%p560) target = $region48
        $region47: #{stgode_forward.1} parent=11 // pred_region
          %s564 = ssub.s32 16, 16
          %565 = vsyncadd [#allocation21], %s564
          %s567 = sshll.u32 [#allocation20], 4
          %s568 = int_to_ptr.vmem [resolvable:$true] %s567
          %570 = dma.hbm_to_vmem [thread:$0]  %s17, 16, %s568, [#allocation21]
        $region48: #{stgode_forward.1} parent=11 // pred_fallthru
          _
      $region12: #{stgode_forward.1} parent=5 // pred_fallthru
        _
      %p571 = scmp.lt.s32.totalorder %s39, 6
      // Predicated region
      $region49: #{stgode_forward.1} parent=5 // pred_check
        %p572 = pneg %p571
      $region50: #{stgode_forward.1} parent=5 // pred_check_branch
        %574 = sbr.rel (%p572) target = $region52
      $region51: #{stgode_forward.1} parent=5 // pred_region
        // Predicated region
        $region53: #{stgode_forward.1} parent=51 // pred_check
          %p575 = pneg %p80
        $region54: #{stgode_forward.1} parent=51 // pred_check_branch
          %577 = sbr.rel (%p575) target = $region56
        $region55: #{stgode_forward.1} parent=51 // pred_region
          %s578 = sand.u32 %s70, 1
          %s579 = scalar_lea.sflag [#allocation4], %s578
          %s580 = sand.u32 %s70, 1
          %s581 = smul.addr %s580, 8
          %s582 = scalar_lea.vmem [#allocation3], %s581
          %s584 = ssub.s32 128, 128
          %585 = vsyncadd %s579, %s584
          %s586 = smul.addr %s39, 128
          %s587 = scalar_lea.hbm %s1, %s586
          %s589 = sshll.u32 %s582, 4
          %s590 = int_to_ptr.vmem [resolvable:$true] %s589
          %592 = dma.hbm_to_vmem [thread:$0]  %s587, 128, %s590, %s579
        $region56: #{stgode_forward.1} parent=51 // pred_fallthru
          _
        // Predicated region
        $region57: #{stgode_forward.1} parent=51 // pred_check
          %p593 = pneg %p106
        $region58: #{stgode_forward.1} parent=51 // pred_check_branch
          %595 = sbr.rel (%p593) target = $region60
        $region59: #{stgode_forward.1} parent=51 // pred_region
          %s596 = sand.u32 %s39, 1
          %s597 = scalar_lea.sflag [#allocation6], %s596
          %s598 = sand.u32 %s96, 1
          %s599 = scalar_lea.vmem [#allocation5], %s598
          %s601 = ssub.s32 16, 16
          %602 = vsyncadd %s597, %s601
          %s603 = smul.addr %s39, 16
          %s604 = scalar_lea.hbm %s2, %s603
          %s606 = sshll.u32 %s599, 4
          %s607 = int_to_ptr.vmem [resolvable:$true] %s606
          %609 = dma.hbm_to_vmem [thread:$0]  %s604, 16, %s607, %s597
        $region60: #{stgode_forward.1} parent=51 // pred_fallthru
          _
        // Predicated region
        $region61: #{stgode_forward.1} parent=51 // pred_check
          %p610 = pneg %p132
        $region62: #{stgode_forward.1} parent=51 // pred_check_branch
          %612 = sbr.rel (%p610) target = $region64
        $region63: #{stgode_forward.1} parent=51 // pred_region
          %p613 = scmp.lt.s32.totalorder %s39, 5
          %s614 = scalar_select %p613, %s39, 5
          %s615 = smul.addr %s614, 8
          %s616 = smul.addr %s615, 8
          %s617 = scalar_lea.vmem %s3, %s616
        $region64: #{stgode_forward.1} parent=51 // pred_fallthru
          _
        // Predicated region
        $region65: #{stgode_forward.1} parent=51 // pred_check
          %p618 = pneg %p158
        $region66: #{stgode_forward.1} parent=51 // pred_check_branch
          %620 = sbr.rel (%p618) target = $region68
        $region67: #{stgode_forward.1} parent=51 // pred_region
          %p621 = scmp.lt.s32.totalorder %s39, 5
          %s622 = scalar_select %p621, %s39, 5
          %s623 = smul.addr %s622, 8
          %s624 = smul.addr %s623, 8
          %s625 = scalar_lea.vmem %s4, %s624
        $region68: #{stgode_forward.1} parent=51 // pred_fallthru
          _
        // Predicated region
        $region69: #{stgode_forward.1} parent=51 // pred_check
          %p626 = pneg %p184
        $region70: #{stgode_forward.1} parent=51 // pred_check_branch
          %628 = sbr.rel (%p626) target = $region72
        $region71: #{stgode_forward.1} parent=51 // pred_region
          %s629 = sand.u32 %s39, 1
          %s630 = scalar_lea.sflag [#allocation6], %s629
          %s631 = sand.u32 %s174, 1
          %s632 = scalar_lea.vmem [#allocation7], %s631
          %s634 = ssub.s32 16, 16
          %635 = vsyncadd %s630, %s634
          %s636 = smul.addr %s39, 16
          %s637 = scalar_lea.hbm %s5, %s636
          %s639 = sshll.u32 %s632, 4
          %s640 = int_to_ptr.vmem [resolvable:$true] %s639
          %642 = dma.hbm_to_vmem [thread:$0]  %s637, 16, %s640, %s630
        $region72: #{stgode_forward.1} parent=51 // pred_fallthru
          _
        // Predicated region
        $region73: #{stgode_forward.1} parent=51 // pred_check
          %p643 = pneg %p210
        $region74: #{stgode_forward.1} parent=51 // pred_check_branch
          %645 = sbr.rel (%p643) target = $region76
        $region75: #{stgode_forward.1} parent=51 // pred_region
          %s646 = sand.u32 %s39, 1
          %s647 = scalar_lea.sflag [#allocation9], %s646
          %s648 = sand.u32 %s200, 1
          %s649 = smul.addr %s648, 32
          %s650 = scalar_lea.vmem [#allocation8], %s649
          %s652 = ssub.s32 512, 512
          %653 = vsyncadd %s647, %s652
          %s654 = smul.addr %s39, 4
          %s655 = smul.addr %s654, 128
          %s656 = scalar_lea.hbm %s6, %s655
          %s657 = sshll.u32 %s650, 4
          %s658 = int_to_ptr.vmem [resolvable:$true] %s657
          %663 = dma.hbm_to_vmem [thread:$0]  %s656, 512, %s658, %s647, 128, 128, 8
        $region76: #{stgode_forward.1} parent=51 // pred_fallthru
          _
        // Predicated region
        $region77: #{stgode_forward.1} parent=51 // pred_check
          %p664 = pneg %p236
        $region78: #{stgode_forward.1} parent=51 // pred_check_branch
          %666 = sbr.rel (%p664) target = $region80
        $region79: #{stgode_forward.1} parent=51 // pred_region
          %s667 = sand.u32 %s39, 1
          %s668 = scalar_lea.sflag [#allocation9], %s667
          %s669 = sand.u32 %s226, 1
          %s670 = smul.addr %s669, 32
          %s671 = scalar_lea.vmem [#allocation10], %s670
          %s673 = ssub.s32 512, 512
          %674 = vsyncadd %s668, %s673
          %s675 = smul.addr %s39, 4
          %s676 = smul.addr %s675, 128
          %s677 = scalar_lea.hbm %s7, %s676
          %s678 = sshll.u32 %s671, 4
          %s679 = int_to_ptr.vmem [resolvable:$true] %s678
          %684 = dma.hbm_to_vmem [thread:$0]  %s677, 512, %s679, %s668, 128, 128, 8
        $region80: #{stgode_forward.1} parent=51 // pred_fallthru
          _
        // Predicated region
        $region81: #{stgode_forward.1} parent=51 // pred_check
          %p685 = pneg %p262
        $region82: #{stgode_forward.1} parent=51 // pred_check_branch
          %687 = sbr.rel (%p685) target = $region84
        $region83: #{stgode_forward.1} parent=51 // pred_region
          %s688 = sand.u32 %s39, 1
          %s689 = scalar_lea.sflag [#allocation12], %s688
          %s690 = sand.u32 %s252, 1
          %s691 = scalar_lea.vmem [#allocation11], %s690
          %s693 = ssub.s32 16, 16
          %694 = vsyncadd %s689, %s693
          %s695 = smul.addr %s39, 16
          %s696 = scalar_lea.hbm %s8, %s695
          %s698 = sshll.u32 %s691, 4
          %s699 = int_to_ptr.vmem [resolvable:$true] %s698
          %701 = dma.hbm_to_vmem [thread:$0]  %s696, 16, %s699, %s689
        $region84: #{stgode_forward.1} parent=51 // pred_fallthru
          _
        // Predicated region
        $region85: #{stgode_forward.1} parent=51 // pred_check
          %p702 = pneg %p288
        $region86: #{stgode_forward.1} parent=51 // pred_check_branch
          %704 = sbr.rel (%p702) target = $region88
        $region87: #{stgode_forward.1} parent=51 // pred_region
          %s705 = sand.u32 %s39, 1
          %s706 = scalar_lea.sflag [#allocation12], %s705
          %s707 = sand.u32 %s278, 1
          %s708 = smul.addr %s707, 32
          %s709 = scalar_lea.vmem [#allocation13], %s708
          %s711 = ssub.s32 512, 512
          %712 = vsyncadd %s706, %s711
          %s713 = smul.addr %s39, 4
          %s714 = smul.addr %s713, 128
          %s715 = scalar_lea.hbm %s9, %s714
          %s716 = sshll.u32 %s709, 4
          %s717 = int_to_ptr.vmem [resolvable:$true] %s716
          %722 = dma.hbm_to_vmem [thread:$0]  %s715, 512, %s717, %s706, 128, 128, 8
        $region88: #{stgode_forward.1} parent=51 // pred_fallthru
          _
      $region52: #{stgode_forward.1} parent=5 // pred_fallthru
        _
      %p723 = scmp.le.s32.totalorder 1, %s39
      %p724 = scmp.lt.s32.totalorder %s39, 7
      %p725 = pnand %p723, %p724
      %p726 = pneg %p725
      // Predicated region
      $region89: #{stgode_forward.1} parent=5 // pred_check
        _
      $region90: #{stgode_forward.1} parent=5 // pred_check_branch
        %728 = sbr.rel (%p725) target = $region92
      $region91: #{stgode_forward.1} parent=5 // pred_region
        %s729 = ssub.s32 %s39, 1
        %s730 = sand.u32 %s73, 1
        %s731 = scalar_lea.sflag [#allocation4], %s730
        %s732 = sand.u32 %s73, 1
        %s733 = smul.addr %s732, 8
        %s734 = scalar_lea.vmem [#allocation3], %s733
        // Predicated region
        $region93: #{stgode_forward.1} parent=91 // pred_check
          %p735 = pneg %p86
        $region94: #{stgode_forward.1} parent=91 // pred_check_branch
          %737 = sbr.rel (%p735) target = $region96
        $region95: #{stgode_forward.1} parent=91 // pred_region
          %738 = dma.done %s731, 128
        $region96: #{stgode_forward.1} parent=91 // pred_fallthru
          _
        %s739 = sand.u32 %s44, 1
        %s740 = scalar_lea.sflag [#allocation6], %s739
        %s741 = sand.u32 %s99, 1
        %s742 = scalar_lea.vmem [#allocation5], %s741
        // Predicated region
        $region97: #{stgode_forward.1} parent=91 // pred_check
          %p743 = pneg %p112
        $region98: #{stgode_forward.1} parent=91 // pred_check_branch
          %745 = sbr.rel (%p743) target = $region100
        $region99: #{stgode_forward.1} parent=91 // pred_region
          %746 = dma.done %s740, 16
        $region100: #{stgode_forward.1} parent=91 // pred_fallthru
          _
        %s747 = sand.u32 %s44, 1
        %s748 = scalar_lea.sflag [#allocation6], %s747
        %s749 = sand.u32 %s177, 1
        %s750 = scalar_lea.vmem [#allocation7], %s749
        // Predicated region
        $region101: #{stgode_forward.1} parent=91 // pred_check
          %p751 = pneg %p190
        $region102: #{stgode_forward.1} parent=91 // pred_check_branch
          %753 = sbr.rel (%p751) target = $region104
        $region103: #{stgode_forward.1} parent=91 // pred_region
          %754 = dma.done %s748, 16
        $region104: #{stgode_forward.1} parent=91 // pred_fallthru
          _
        %s755 = sand.u32 %s44, 1
        %s756 = scalar_lea.sflag [#allocation9], %s755
        %s757 = sand.u32 %s203, 1
        %s758 = smul.addr %s757, 32
        %s759 = scalar_lea.vmem [#allocation8], %s758
        // Predicated region
        $region105: #{stgode_forward.1} parent=91 // pred_check
          %p760 = pneg %p216
        $region106: #{stgode_forward.1} parent=91 // pred_check_branch
          %762 = sbr.rel (%p760) target = $region108
        $region107: #{stgode_forward.1} parent=91 // pred_region
          %763 = dma.done %s756, 512
        $region108: #{stgode_forward.1} parent=91 // pred_fallthru
          _
        %s764 = sand.u32 %s44, 1
        %s765 = scalar_lea.sflag [#allocation9], %s764
        %s766 = sand.u32 %s229, 1
        %s767 = smul.addr %s766, 32
        %s768 = scalar_lea.vmem [#allocation10], %s767
        // Predicated region
        $region109: #{stgode_forward.1} parent=91 // pred_check
          %p769 = pneg %p242
        $region110: #{stgode_forward.1} parent=91 // pred_check_branch
          %771 = sbr.rel (%p769) target = $region112
        $region111: #{stgode_forward.1} parent=91 // pred_region
          %772 = dma.done %s765, 512
        $region112: #{stgode_forward.1} parent=91 // pred_fallthru
          _
        %s773 = sand.u32 %s44, 1
        %s774 = scalar_lea.sflag [#allocation12], %s773
        %s775 = sand.u32 %s255, 1
        %s776 = scalar_lea.vmem [#allocation11], %s775
        // Predicated region
        $region113: #{stgode_forward.1} parent=91 // pred_check
          %p777 = pneg %p268
        $region114: #{stgode_forward.1} parent=91 // pred_check_branch
          %779 = sbr.rel (%p777) target = $region116
        $region115: #{stgode_forward.1} parent=91 // pred_region
          %780 = dma.done %s774, 16
        $region116: #{stgode_forward.1} parent=91 // pred_fallthru
          _
        %s781 = sand.u32 %s44, 1
        %s782 = scalar_lea.sflag [#allocation12], %s781
        %s783 = sand.u32 %s281, 1
        %s784 = smul.addr %s783, 32
        %s785 = scalar_lea.vmem [#allocation13], %s784
        // Predicated region
        $region117: #{stgode_forward.1} parent=91 // pred_check
          %p786 = pneg %p294
        $region118: #{stgode_forward.1} parent=91 // pred_check_branch
          %788 = sbr.rel (%p786) target = $region120
        $region119: #{stgode_forward.1} parent=91 // pred_region
          %789 = dma.done %s782, 512
        $region120: #{stgode_forward.1} parent=91 // pred_fallthru
          _
        // Predicated region
        $region121: #{stgode_forward.1} parent=91 // pred_check
          %p790 = pneg %p336
        $region122: #{stgode_forward.1} parent=91 // pred_check_branch
          %792 = sbr.rel (%p790) target = $region124
        $region123: #{stgode_forward.1} parent=91 // pred_region
          %793 = dma.done [#allocation15], 73728
        $region124: #{stgode_forward.1} parent=91 // pred_fallthru
          _
        // Predicated region
        $region125: #{stgode_forward.1} parent=91 // pred_check
          %p794 = pneg %p399
        $region126: #{stgode_forward.1} parent=91 // pred_check_branch
          %796 = sbr.rel (%p794) target = $region128
        $region127: #{stgode_forward.1} parent=91 // pred_region
          %797 = dma.done [#allocation15], 12288
        $region128: #{stgode_forward.1} parent=91 // pred_fallthru
          _
        // Predicated region
        $region129: #{stgode_forward.1} parent=91 // pred_check
          %p798 = pneg %p420
        $region130: #{stgode_forward.1} parent=91 // pred_check_branch
          %800 = sbr.rel (%p798) target = $region132
        $region131: #{stgode_forward.1} parent=91 // pred_region
          %801 = dma.done [#allocation18], 16
        $region132: #{stgode_forward.1} parent=91 // pred_fallthru
          _
        // Predicated region
        $region133: #{stgode_forward.1} parent=91 // pred_check
          %p802 = pneg %p441
        $region134: #{stgode_forward.1} parent=91 // pred_check_branch
          %804 = sbr.rel (%p802) target = $region136
        $region135: #{stgode_forward.1} parent=91 // pred_region
          %805 = dma.done [#allocation18], 2048
        $region136: #{stgode_forward.1} parent=91 // pred_fallthru
          _
        // Predicated region
        $region137: #{stgode_forward.1} parent=91 // pred_check
          %p806 = pneg %p462
        $region138: #{stgode_forward.1} parent=91 // pred_check_branch
          %808 = sbr.rel (%p806) target = $region140
        $region139: #{stgode_forward.1} parent=91 // pred_region
          %809 = dma.done [#allocation21], 16
        $region140: #{stgode_forward.1} parent=91 // pred_fallthru
          _
        %p810 = pneg %p60
        %p811 = pneg %p57
        %s812 = sand.u32 %s73, 1
        %s813 = scalar_lea.sflag [#allocation4], %s812
        %s814 = sand.u32 %s73, 1
        %s815 = smul.addr %s814, 8
        %s816 = scalar_lea.vmem [#allocation3], %s815
        %p817 = pneg %p86
        %p818 = pneg %p83
        %s819 = sand.u32 %s44, 1
        %s820 = scalar_lea.sflag [#allocation6], %s819
        %s821 = sand.u32 %s99, 1
        %s822 = scalar_lea.vmem [#allocation5], %s821
        %p823 = pneg %p112
        %p824 = pneg %p109
        %p825 = scmp.lt.s32.totalorder %s44, 5
        %s826 = scalar_select %p825, %s44, 5
        %s827 = smul.addr %s826, 8
        %s828 = smul.addr %s827, 8
        %s829 = scalar_lea.vmem %s3, %s828
        %p830 = pneg %p138
        %p831 = pneg %p135
        %p832 = scmp.lt.s32.totalorder %s44, 5
        %s833 = scalar_select %p832, %s44, 5
        %s834 = smul.addr %s833, 8
        %s835 = smul.addr %s834, 8
        %s836 = scalar_lea.vmem %s4, %s835
        %p837 = pneg %p164
        %p838 = pneg %p161
        %s839 = sand.u32 %s44, 1
        %s840 = scalar_lea.sflag [#allocation6], %s839
        %s841 = sand.u32 %s177, 1
        %s842 = scalar_lea.vmem [#allocation7], %s841
        %p843 = pneg %p190
        %p844 = pneg %p187
        %s845 = sand.u32 %s44, 1
        %s846 = scalar_lea.sflag [#allocation9], %s845
        %s847 = sand.u32 %s203, 1
        %s848 = smul.addr %s847, 32
        %s849 = scalar_lea.vmem [#allocation8], %s848
        %p850 = pneg %p216
        %p851 = pneg %p213
        %s852 = sand.u32 %s44, 1
        %s853 = scalar_lea.sflag [#allocation9], %s852
        %s854 = sand.u32 %s229, 1
        %s855 = smul.addr %s854, 32
        %s856 = scalar_lea.vmem [#allocation10], %s855
        %p857 = pneg %p242
        %p858 = pneg %p239
        %s859 = sand.u32 %s44, 1
        %s860 = scalar_lea.sflag [#allocation12], %s859
        %s861 = sand.u32 %s255, 1
        %s862 = scalar_lea.vmem [#allocation11], %s861
        %p863 = pneg %p268
        %p864 = pneg %p265
        %s865 = sand.u32 %s44, 1
        %s866 = scalar_lea.sflag [#allocation12], %s865
        %s867 = sand.u32 %s281, 1
        %s868 = smul.addr %s867, 32
        %s869 = scalar_lea.vmem [#allocation13], %s868
        %p870 = pneg %p294
        %p871 = pneg %p291
        %p872 = pneg %p315
        %p873 = pneg %p312
        %p874 = pneg %p336
        %p875 = pneg %p333
        %p876 = pneg %p357
        %p877 = pneg %p354
        %p878 = pneg %p378
        %p879 = pneg %p375
        %p880 = pneg %p399
        %p881 = pneg %p396
        %p882 = pneg %p420
        %p883 = pneg %p417
        %p884 = pneg %p441
        %p885 = pneg %p438
        %p886 = pneg %p462
        %p887 = pneg %p459
        %p888 = pneg %p483
        %p889 = pneg %p480
        %p890 = scmp.lt.s32.totalorder %s44, 5
        %s891 = scalar_select %p890, %s44, 5
        %s892 = smul.addr %s891, 8
        %s893 = smul.addr %s892, 8
        %s894 = scalar_lea.vmem %s3, %s893
        %p895 = scmp.lt.s32.totalorder %s44, 5
        %s896 = scalar_select %p895, %s44, 5
        %s897 = smul.addr %s896, 8
        %s898 = smul.addr %s897, 8
        %s899 = scalar_lea.vmem %s4, %s898
        %v900 = vld [vmem:[%s0] sm:$0xff]
        %v901 = vld [vmem:[%s0 + $0x8] sm:$0xff]
        %v902 = vld [vmem:[%s0 + $0x10] sm:$0xff]
        %v903 = vld [vmem:[%s0 + $0x18] sm:$0xff]
        %v904 = vld [vmem:[%s0 + $0x20] sm:$0xff]
        %v905 = vld [vmem:[%s0 + $0x28] sm:$0xff]
        %v906 = vld [vmem:[%s0 + $0x30] sm:$0xff]
        %v907 = vld [vmem:[%s0 + $0x38] sm:$0xff]
        %v908 = vld [vmem:[%s0 + $0x40] sm:$0xff]
        %v909 = vld [vmem:[%s0 + $0x48] sm:$0xff]
        %v910 = vld [vmem:[%s0 + $0x50] sm:$0xff]
        %v911 = vld [vmem:[%s0 + $0x58] sm:$0xff]
        %v912 = vld [vmem:[%s0 + $0x60] sm:$0xff]
        %v913 = vld [vmem:[%s0 + $0x68] sm:$0xff]
        %v914 = vld [vmem:[%s0 + $0x70] sm:$0xff]
        %v915 = vld [vmem:[%s0 + $0x78] sm:$0xff]
        %v916 = vld [vmem:[%s0 + $0x80] sm:$0xff]
        %v917 = vld [vmem:[%s0 + $0x88] sm:$0xff]
        %v918 = vld [vmem:[%s0 + $0x90] sm:$0xff]
        %v919 = vld [vmem:[%s0 + $0x98] sm:$0xff]
        %v920 = vld [vmem:[%s0 + $0xa0] sm:$0xff]
        %v921 = vld [vmem:[%s0 + $0xa8] sm:$0xff]
        %v922 = vld [vmem:[%s0 + $0xb0] sm:$0xff]
        %v923 = vld [vmem:[%s0 + $0xb8] sm:$0xff]
        %v924 = vld [vmem:[%s0 + $0xc0] sm:$0xff]
        %v925 = vld [vmem:[%s0 + $0xc8] sm:$0xff]
        %v926 = vld [vmem:[%s0 + $0xd0] sm:$0xff]
        %v927 = vld [vmem:[%s0 + $0xd8] sm:$0xff]
        %v928 = vld [vmem:[%s0 + $0xe0] sm:$0xff]
        %v929 = vld [vmem:[%s0 + $0xe8] sm:$0xff]
        %v930 = vld [vmem:[%s0 + $0xf0] sm:$0xff]
        %v931 = vld [vmem:[%s0 + $0xf8] sm:$0xff]
        %v932 = vld [vmem:[%s0 + $0x100] sm:$0xff]
        %v933 = vld [vmem:[%s0 + $0x108] sm:$0xff]
        %v934 = vld [vmem:[%s0 + $0x110] sm:$0xff]
        %v935 = vld [vmem:[%s0 + $0x118] sm:$0xff]
        %v936 = vld [vmem:[%s0 + $0x120] sm:$0xff]
        %v937 = vld [vmem:[%s0 + $0x128] sm:$0xff]
        %v938 = vld [vmem:[%s0 + $0x130] sm:$0xff]
        %v939 = vld [vmem:[%s0 + $0x138] sm:$0xff]
        %v940 = vld [vmem:[%s0 + $0x140] sm:$0xff]
        %v941 = vld [vmem:[%s0 + $0x148] sm:$0xff]
        %v942 = vld [vmem:[%s0 + $0x150] sm:$0xff]
        %v943 = vld [vmem:[%s0 + $0x158] sm:$0xff]
        %v944 = vld [vmem:[%s0 + $0x160] sm:$0xff]
        %v945 = vld [vmem:[%s0 + $0x168] sm:$0xff]
        %v946 = vld [vmem:[%s0 + $0x170] sm:$0xff]
        %v947 = vld [vmem:[%s0 + $0x178] sm:$0xff]
        %v948 = vlaneseq
        %v949 = vshrl.u32 %v948, 7
        %v950 = vadd.s32 %v949, 8
        %v951 = vadd.s32 %v949, 16
        %v952 = vadd.s32 %v949, 24
        %v953 = vadd.s32 %v949, 32
        %v954 = vadd.s32 %v949, 40
        %v955 = vadd.s32 %v949, 48
        %v956 = vadd.s32 %v949, 56
        %v957 = vadd.s32 %v949, 64
        %v958 = vadd.s32 %v949, 72
        %v959 = vadd.s32 %v949, 80
        %v960 = vadd.s32 %v949, 88
        %v961 = vadd.s32 %v949, 96
        %v962 = vadd.s32 %v949, 104
        %v963 = vadd.s32 %v949, 112
        %v964 = vadd.s32 %v949, 120
        %v965 = vadd.s32 %v949, 128
        %v966 = vadd.s32 %v949, 136
        %v967 = vadd.s32 %v949, 144
        %v968 = vadd.s32 %v949, 152
        %v969 = vadd.s32 %v949, 160
        %v970 = vadd.s32 %v949, 168
        %v971 = vadd.s32 %v949, 176
        %v972 = vadd.s32 %v949, 184
        %v973 = vadd.s32 %v949, 192
        %v974 = vadd.s32 %v949, 200
        %v975 = vadd.s32 %v949, 208
        %v976 = vadd.s32 %v949, 216
        %v977 = vadd.s32 %v949, 224
        %v978 = vadd.s32 %v949, 232
        %v979 = vadd.s32 %v949, 240
        %v980 = vadd.s32 %v949, 248
        %v981 = vadd.s32 %v949, 256
        %v982 = vadd.s32 %v949, 264
        %v983 = vadd.s32 %v949, 272
        %v984 = vadd.s32 %v949, 280
        %v985 = vadd.s32 %v949, 288
        %v986 = vadd.s32 %v949, 296
        %v987 = vadd.s32 %v949, 304
        %v988 = vadd.s32 %v949, 312
        %v989 = vadd.s32 %v949, 320
        %v990 = vadd.s32 %v949, 328
        %v991 = vadd.s32 %v949, 336
        %v992 = vadd.s32 %v949, 344
        %v993 = vadd.s32 %v949, 352
        %v994 = vadd.s32 %v949, 360
        %v995 = vadd.s32 %v949, 368
        %v996 = vadd.s32 %v949, 376
        %vm997 = vcmp.ge.s32.totalorder %v949, 32
        %vm998 = vcmp.ge.s32.totalorder %v950, 32
        %vm999 = vcmp.ge.s32.totalorder %v951, 32
        %vm1000 = vcmp.ge.s32.totalorder %v952, 32
        %vm1001 = vcmp.ge.s32.totalorder %v953, 32
        %vm1002 = vcmp.ge.s32.totalorder %v954, 32
        %vm1003 = vcmp.ge.s32.totalorder %v955, 32
        %vm1004 = vcmp.ge.s32.totalorder %v956, 32
        %vm1005 = vcmp.ge.s32.totalorder %v957, 32
        %vm1006 = vcmp.ge.s32.totalorder %v958, 32
        %vm1007 = vcmp.ge.s32.totalorder %v959, 32
        %vm1008 = vcmp.ge.s32.totalorder %v960, 32
        %vm1009 = vcmp.ge.s32.totalorder %v961, 32
        %vm1010 = vcmp.ge.s32.totalorder %v962, 32
        %vm1011 = vcmp.ge.s32.totalorder %v963, 32
        %vm1012 = vcmp.ge.s32.totalorder %v964, 32
        %vm1013 = vcmp.ge.s32.totalorder %v965, 32
        %vm1014 = vcmp.ge.s32.totalorder %v966, 32
        %vm1015 = vcmp.ge.s32.totalorder %v967, 32
        %vm1016 = vcmp.ge.s32.totalorder %v968, 32
        %vm1017 = vcmp.ge.s32.totalorder %v969, 32
        %vm1018 = vcmp.ge.s32.totalorder %v970, 32
        %vm1019 = vcmp.ge.s32.totalorder %v971, 32
        %vm1020 = vcmp.ge.s32.totalorder %v972, 32
        %vm1021 = vcmp.ge.s32.totalorder %v973, 32
        %vm1022 = vcmp.ge.s32.totalorder %v974, 32
        %vm1023 = vcmp.ge.s32.totalorder %v975, 32
        %vm1024 = vcmp.ge.s32.totalorder %v976, 32
        %vm1025 = vcmp.ge.s32.totalorder %v977, 32
        %vm1026 = vcmp.ge.s32.totalorder %v978, 32
        %vm1027 = vcmp.ge.s32.totalorder %v979, 32
        %vm1028 = vcmp.ge.s32.totalorder %v980, 32
        %vm1029 = vcmp.ge.s32.totalorder %v981, 32
        %vm1030 = vcmp.ge.s32.totalorder %v982, 32
        %vm1031 = vcmp.ge.s32.totalorder %v983, 32
        %vm1032 = vcmp.ge.s32.totalorder %v984, 32
        %vm1033 = vcmp.ge.s32.totalorder %v985, 32
        %vm1034 = vcmp.ge.s32.totalorder %v986, 32
        %vm1035 = vcmp.ge.s32.totalorder %v987, 32
        %vm1036 = vcmp.ge.s32.totalorder %v988, 32
        %vm1037 = vcmp.ge.s32.totalorder %v989, 32
        %vm1038 = vcmp.ge.s32.totalorder %v990, 32
        %vm1039 = vcmp.ge.s32.totalorder %v991, 32
        %vm1040 = vcmp.ge.s32.totalorder %v992, 32
        %vm1041 = vcmp.ge.s32.totalorder %v993, 32
        %vm1042 = vcmp.ge.s32.totalorder %v994, 32
        %vm1043 = vcmp.ge.s32.totalorder %v995, 32
        %vm1044 = vcmp.ge.s32.totalorder %v996, 32
        %v1045 = vsel %vm997, %v944, 0.0
        %v1046 = vsel %vm998, %v945, 0.0
        %v1047 = vsel %vm999, %v946, 0.0
        %v1048 = vsel %vm1000, %v947, 0.0
        %v1049 = vsel %vm1001, %v900, 0.0
        %v1050 = vsel %vm1002, %v901, 0.0
        %v1051 = vsel %vm1003, %v902, 0.0
        %v1052 = vsel %vm1004, %v903, 0.0
        %v1053 = vsel %vm1005, %v904, 0.0
        %v1054 = vsel %vm1006, %v905, 0.0
        %v1055 = vsel %vm1007, %v906, 0.0
        %v1056 = vsel %vm1008, %v907, 0.0
        %v1057 = vsel %vm1009, %v908, 0.0
        %v1058 = vsel %vm1010, %v909, 0.0
        %v1059 = vsel %vm1011, %v910, 0.0
        %v1060 = vsel %vm1012, %v911, 0.0
        %v1061 = vsel %vm1013, %v912, 0.0
        %v1062 = vsel %vm1014, %v913, 0.0
        %v1063 = vsel %vm1015, %v914, 0.0
        %v1064 = vsel %vm1016, %v915, 0.0
        %v1065 = vsel %vm1017, %v916, 0.0
        %v1066 = vsel %vm1018, %v917, 0.0
        %v1067 = vsel %vm1019, %v918, 0.0
        %v1068 = vsel %vm1020, %v919, 0.0
        %v1069 = vsel %vm1021, %v920, 0.0
        %v1070 = vsel %vm1022, %v921, 0.0
        %v1071 = vsel %vm1023, %v922, 0.0
        %v1072 = vsel %vm1024, %v923, 0.0
        %v1073 = vsel %vm1025, %v924, 0.0
        %v1074 = vsel %vm1026, %v925, 0.0
        %v1075 = vsel %vm1027, %v926, 0.0
        %v1076 = vsel %vm1028, %v927, 0.0
        %v1077 = vsel %vm1029, %v928, 0.0
        %v1078 = vsel %vm1030, %v929, 0.0
        %v1079 = vsel %vm1031, %v930, 0.0
        %v1080 = vsel %vm1032, %v931, 0.0
        %v1081 = vsel %vm1033, %v932, 0.0
        %v1082 = vsel %vm1034, %v933, 0.0
        %v1083 = vsel %vm1035, %v934, 0.0
        %v1084 = vsel %vm1036, %v935, 0.0
        %v1085 = vsel %vm1037, %v936, 0.0
        %v1086 = vsel %vm1038, %v937, 0.0
        %v1087 = vsel %vm1039, %v938, 0.0
        %v1088 = vsel %vm1040, %v939, 0.0
        %v1089 = vsel %vm1041, %v940, 0.0
        %v1090 = vsel %vm1042, %v941, 0.0
        %v1091 = vsel %vm1043, %v942, 0.0
        %v1092 = vsel %vm1044, %v943, 0.0
        %1141 = vrot.lane.b32.xlu0 %v900, 3
        %v1142 = vpop.permute.xlu0 %1141
        %1143 = vrot.lane.b32.xlu0 %v901, 3
        %v1144 = vpop.permute.xlu0 %1143
        %1145 = vrot.lane.b32.xlu0 %v902, 3
        %v1146 = vpop.permute.xlu0 %1145
        %1147 = vrot.lane.b32.xlu0 %v903, 3
        %v1148 = vpop.permute.xlu0 %1147
        %1149 = vrot.lane.b32.xlu0 %v904, 3
        %v1150 = vpop.permute.xlu0 %1149
        %1151 = vrot.lane.b32.xlu0 %v905, 3
        %v1152 = vpop.permute.xlu0 %1151
        %1153 = vrot.lane.b32.xlu0 %v906, 3
        %v1154 = vpop.permute.xlu0 %1153
        %1155 = vrot.lane.b32.xlu0 %v907, 3
        %v1156 = vpop.permute.xlu0 %1155
        %1157 = vrot.lane.b32.xlu0 %v908, 3
        %v1158 = vpop.permute.xlu0 %1157
        %1159 = vrot.lane.b32.xlu0 %v909, 3
        %v1160 = vpop.permute.xlu0 %1159
        %1161 = vrot.lane.b32.xlu0 %v910, 3
        %v1162 = vpop.permute.xlu0 %1161
        %1163 = vrot.lane.b32.xlu0 %v911, 3
        %v1164 = vpop.permute.xlu0 %1163
        %1165 = vrot.lane.b32.xlu0 %v912, 3
        %v1166 = vpop.permute.xlu0 %1165
        %1167 = vrot.lane.b32.xlu0 %v913, 3
        %v1168 = vpop.permute.xlu0 %1167
        %1169 = vrot.lane.b32.xlu0 %v914, 3
        %v1170 = vpop.permute.xlu0 %1169
        %1171 = vrot.lane.b32.xlu0 %v915, 3
        %v1172 = vpop.permute.xlu0 %1171
        %1173 = vrot.lane.b32.xlu0 %v916, 3
        %v1174 = vpop.permute.xlu0 %1173
        %1175 = vrot.lane.b32.xlu0 %v917, 3
        %v1176 = vpop.permute.xlu0 %1175
        %1177 = vrot.lane.b32.xlu0 %v918, 3
        %v1178 = vpop.permute.xlu0 %1177
        %1179 = vrot.lane.b32.xlu0 %v919, 3
        %v1180 = vpop.permute.xlu0 %1179
        %1181 = vrot.lane.b32.xlu0 %v920, 3
        %v1182 = vpop.permute.xlu0 %1181
        %1183 = vrot.lane.b32.xlu0 %v921, 3
        %v1184 = vpop.permute.xlu0 %1183
        %1185 = vrot.lane.b32.xlu0 %v922, 3
        %v1186 = vpop.permute.xlu0 %1185
        %1187 = vrot.lane.b32.xlu0 %v923, 3
        %v1188 = vpop.permute.xlu0 %1187
        %1189 = vrot.lane.b32.xlu0 %v924, 3
        %v1190 = vpop.permute.xlu0 %1189
        %1191 = vrot.lane.b32.xlu0 %v925, 3
        %v1192 = vpop.permute.xlu0 %1191
        %1193 = vrot.lane.b32.xlu0 %v926, 3
        %v1194 = vpop.permute.xlu0 %1193
        %1195 = vrot.lane.b32.xlu0 %v927, 3
        %v1196 = vpop.permute.xlu0 %1195
        %1197 = vrot.lane.b32.xlu0 %v928, 3
        %v1198 = vpop.permute.xlu0 %1197
        %1199 = vrot.lane.b32.xlu0 %v929, 3
        %v1200 = vpop.permute.xlu0 %1199
        %1201 = vrot.lane.b32.xlu0 %v930, 3
        %v1202 = vpop.permute.xlu0 %1201
        %1203 = vrot.lane.b32.xlu0 %v931, 3
        %v1204 = vpop.permute.xlu0 %1203
        %1205 = vrot.lane.b32.xlu0 %v932, 3
        %v1206 = vpop.permute.xlu0 %1205
        %1207 = vrot.lane.b32.xlu0 %v933, 3
        %v1208 = vpop.permute.xlu0 %1207
        %1209 = vrot.lane.b32.xlu0 %v934, 3
        %v1210 = vpop.permute.xlu0 %1209
        %1211 = vrot.lane.b32.xlu0 %v935, 3
        %v1212 = vpop.permute.xlu0 %1211
        %1213 = vrot.lane.b32.xlu0 %v936, 3
        %v1214 = vpop.permute.xlu0 %1213
        %1215 = vrot.lane.b32.xlu0 %v937, 3
        %v1216 = vpop.permute.xlu0 %1215
        %1217 = vrot.lane.b32.xlu0 %v938, 3
        %v1218 = vpop.permute.xlu0 %1217
        %1219 = vrot.lane.b32.xlu0 %v939, 3
        %v1220 = vpop.permute.xlu0 %1219
        %1221 = vrot.lane.b32.xlu0 %v940, 3
        %v1222 = vpop.permute.xlu0 %1221
        %1223 = vrot.lane.b32.xlu0 %v941, 3
        %v1224 = vpop.permute.xlu0 %1223
        %1225 = vrot.lane.b32.xlu0 %v942, 3
        %v1226 = vpop.permute.xlu0 %1225
        %1227 = vrot.lane.b32.xlu0 %v943, 3
        %v1228 = vpop.permute.xlu0 %1227
        %1229 = vrot.lane.b32.xlu0 %v944, 3
        %v1230 = vpop.permute.xlu0 %1229
        %1231 = vrot.lane.b32.xlu0 %v945, 3
        %v1232 = vpop.permute.xlu0 %1231
        %1233 = vrot.lane.b32.xlu0 %v946, 3
        %v1234 = vpop.permute.xlu0 %1233
        %1235 = vrot.lane.b32.xlu0 %v947, 3
        %v1236 = vpop.permute.xlu0 %1235
        %vm1285 = vcmask 23552
        %v1286 = vsel %vm1285, %v1045, %v1142
        %v1287 = vsel %vm1285, %v1046, %v1144
        %v1288 = vsel %vm1285, %v1047, %v1146
        %v1289 = vsel %vm1285, %v1048, %v1148
        %v1290 = vsel %vm1285, %v1049, %v1150
        %v1291 = vsel %vm1285, %v1050, %v1152
        %v1292 = vsel %vm1285, %v1051, %v1154
        %v1293 = vsel %vm1285, %v1052, %v1156
        %v1294 = vsel %vm1285, %v1053, %v1158
        %v1295 = vsel %vm1285, %v1054, %v1160
        %v1296 = vsel %vm1285, %v1055, %v1162
        %v1297 = vsel %vm1285, %v1056, %v1164
        %v1298 = vsel %vm1285, %v1057, %v1166
        %v1299 = vsel %vm1285, %v1058, %v1168
        %v1300 = vsel %vm1285, %v1059, %v1170
        %v1301 = vsel %vm1285, %v1060, %v1172
        %v1302 = vsel %vm1285, %v1061, %v1174
        %v1303 = vsel %vm1285, %v1062, %v1176
        %v1304 = vsel %vm1285, %v1063, %v1178
        %v1305 = vsel %vm1285, %v1064, %v1180
        %v1306 = vsel %vm1285, %v1065, %v1182
        %v1307 = vsel %vm1285, %v1066, %v1184
        %v1308 = vsel %vm1285, %v1067, %v1186
        %v1309 = vsel %vm1285, %v1068, %v1188
        %v1310 = vsel %vm1285, %v1069, %v1190
        %v1311 = vsel %vm1285, %v1070, %v1192
        %v1312 = vsel %vm1285, %v1071, %v1194
        %v1313 = vsel %vm1285, %v1072, %v1196
        %v1314 = vsel %vm1285, %v1073, %v1198
        %v1315 = vsel %vm1285, %v1074, %v1200
        %v1316 = vsel %vm1285, %v1075, %v1202
        %v1317 = vsel %vm1285, %v1076, %v1204
        %v1318 = vsel %vm1285, %v1077, %v1206
        %v1319 = vsel %vm1285, %v1078, %v1208
        %v1320 = vsel %vm1285, %v1079, %v1210
        %v1321 = vsel %vm1285, %v1080, %v1212
        %v1322 = vsel %vm1285, %v1081, %v1214
        %v1323 = vsel %vm1285, %v1082, %v1216
        %v1324 = vsel %vm1285, %v1083, %v1218
        %v1325 = vsel %vm1285, %v1084, %v1220
        %v1326 = vsel %vm1285, %v1085, %v1222
        %v1327 = vsel %vm1285, %v1086, %v1224
        %v1328 = vsel %vm1285, %v1087, %v1226
        %v1329 = vsel %vm1285, %v1088, %v1228
        %v1330 = vsel %vm1285, %v1089, %v1230
        %v1331 = vsel %vm1285, %v1090, %v1232
        %v1332 = vsel %vm1285, %v1091, %v1234
        %v1333 = vsel %vm1285, %v1092, %v1236
        %v1334 = vld [vmem:[%s734] sm:$0x3f]
        %v1335 = vld [vmem:[%s742] sm:$0x1]
        %v1337 = vlaneseq
        %v1338 = vshrl.u32 %v1337, 7
        %v1339 = vsub.s32 0, %v1338
        %v1340 = vrot.slane %v1335, %v1339
        %vm1342 = vcmask 48128
        %v1344 = vsel %vm1342, %v1286, 0
        %v1347 = vsel %vm1342, %v1287, 0
        %v1350 = vsel %vm1342, %v1288, 0
        %v1353 = vsel %vm1342, %v1289, 0
        %v1356 = vsel %vm1342, %v1290, 0
        %v1359 = vsel %vm1342, %v1291, 0
        %v1362 = vsel %vm1342, %v1292, 0
        %v1365 = vsel %vm1342, %v1293, 0
        %v1368 = vsel %vm1342, %v1294, 0
        %v1371 = vsel %vm1342, %v1295, 0
        %v1374 = vsel %vm1342, %v1296, 0
        %v1377 = vsel %vm1342, %v1297, 0
        %v1380 = vsel %vm1342, %v1298, 0
        %v1383 = vsel %vm1342, %v1299, 0
        %v1386 = vsel %vm1342, %v1300, 0
        %v1389 = vsel %vm1342, %v1301, 0
        %v1392 = vsel %vm1342, %v1302, 0
        %v1395 = vsel %vm1342, %v1303, 0
        %v1398 = vsel %vm1342, %v1304, 0
        %v1401 = vsel %vm1342, %v1305, 0
        %v1404 = vsel %vm1342, %v1306, 0
        %v1407 = vsel %vm1342, %v1307, 0
        %v1410 = vsel %vm1342, %v1308, 0
        %v1413 = vsel %vm1342, %v1309, 0
        %v1416 = vsel %vm1342, %v1310, 0
        %v1419 = vsel %vm1342, %v1311, 0
        %v1422 = vsel %vm1342, %v1312, 0
        %v1425 = vsel %vm1342, %v1313, 0
        %v1428 = vsel %vm1342, %v1314, 0
        %v1431 = vsel %vm1342, %v1315, 0
        %v1434 = vsel %vm1342, %v1316, 0
        %v1437 = vsel %vm1342, %v1317, 0
        %v1440 = vsel %vm1342, %v1318, 0
        %v1443 = vsel %vm1342, %v1319, 0
        %v1446 = vsel %vm1342, %v1320, 0
        %v1449 = vsel %vm1342, %v1321, 0
        %v1452 = vsel %vm1342, %v1322, 0
        %v1455 = vsel %vm1342, %v1323, 0
        %v1458 = vsel %vm1342, %v1324, 0
        %v1461 = vsel %vm1342, %v1325, 0
        %v1464 = vsel %vm1342, %v1326, 0
        %v1467 = vsel %vm1342, %v1327, 0
        %v1470 = vsel %vm1342, %v1328, 0
        %v1473 = vsel %vm1342, %v1329, 0
        %v1476 = vsel %vm1342, %v1330, 0
        %v1479 = vsel %vm1342, %v1331, 0
        %v1482 = vsel %vm1342, %v1332, 0
        %v1485 = vsel %vm1342, %v1333, 0
        %vm1487 = vcmask 1045504
        %v1489 = vsel %vm1487, %v1334, 0
        %1491 = vmatprep.subr.mxu0 0.0
        %1492 = vmatpush1.msra.mxu0 %v1489
        %1493 = vmatprep.subr.mxu0 0.0
        %1494 = vmatpush1.msra.mxu0 0.0
        %1495 = vmatprep.subr.mxu0 0.0
        %1496 = vmatpush1.msra.mxu0 0.0
        %1497 = vmatprep.subr.mxu0 0.0
        %1498 = vmatpush1.msra.mxu0 0.0
        %1499 = vmatprep.subr.mxu0 0.0
        %1500 = vmatpush1.msra.mxu0 0.0
        %1501 = vmatprep.subr.mxu0 0.0
        %1502 = vmatpush1.msra.mxu0 0.0
        %1503 = vmatprep.subr.mxu0 0.0
        %1504 = vmatpush1.msra.mxu0 0.0
        %1505 = vmatprep.subr.mxu0 0.0
        %1506 = vmatpush1.msra.mxu0 0.0
        %1507 = vmatprep.subr.mxu0 0.0
        %1508 = vmatpush1.msra.mxu0 0.0
        %1509 = vmatprep.subr.mxu0 0.0
        %1510 = vmatpush1.msra.mxu0 0.0
        %1511 = vmatprep.subr.mxu0 0.0
        %1512 = vmatpush1.msra.mxu0 0.0
        %1513 = vmatprep.subr.mxu0 0.0
        %1514 = vmatpush1.msra.mxu0 0.0
        %1515 = vmatprep.subr.mxu0 0.0
        %1516 = vmatpush1.msra.mxu0 0.0
        %1517 = vmatprep.subr.mxu0 0.0
        %1518 = vmatpush1.msra.mxu0 0.0
        %1519 = vmatprep.subr.mxu0 0.0
        %1520 = vmatpush1.msra.mxu0 0.0
        %1521 = vmatprep.subr.mxu0 0.0
        %1522 = vmatpush1.msra.mxu0 0.0
        %1523 = vmatprep.subr.mxu0 0.0
        %1524 = vmatpush1.msra.mxu0 0.0
        %1525 = vmatprep.subr.mxu0 0.0
        %1526 = vmatpush1.msra.mxu0 0.0
        %1527 = vmatprep.subr.mxu0 0.0
        %1528 = vmatpush1.msra.mxu0 0.0
        %1529 = vmatprep.subr.mxu0 0.0
        %1530 = vmatpush1.msra.mxu0 0.0
        %1531 = vmatprep.subr.mxu0 0.0
        %1532 = vmatpush1.msra.mxu0 0.0
        %1533 = vmatprep.subr.mxu0 0.0
        %1534 = vmatpush1.msra.mxu0 0.0
        %1535 = vmatprep.subr.mxu0 0.0
        %1536 = vmatpush1.msra.mxu0 0.0
        %1537 = vmatprep.subr.mxu0 0.0
        %1538 = vmatpush1.msra.mxu0 0.0
        %1539 = vmatprep.subr.mxu0 0.0
        %1540 = vmatpush1.msra.mxu0 0.0
        %1541 = vmatprep.subr.mxu0 0.0
        %1542 = vmatpush1.msra.mxu0 0.0
        %1543 = vmatprep.subr.mxu0 0.0
        %1544 = vmatpush1.msra.mxu0 0.0
        %1545 = vmatprep.subr.mxu0 0.0
        %1546 = vmatpush1.msra.mxu0 0.0
        %1547 = vmatprep.subr.mxu0 0.0
        %1548 = vmatpush1.msra.mxu0 0.0
        %1549 = vmatprep.subr.mxu0 0.0
        %1550 = vmatpush1.msra.mxu0 0.0
        %1551 = vmatprep.subr.mxu0 0.0
        %1552 = vmatpush1.msra.mxu0 0.0
        %1553 = vmatprep.subr.mxu0 0.0
        %1554 = vmatpush1.msra.mxu0 0.0
        %1555 = vmatprep.mubr.f32.mxu0 0.0
        %1556 = vmatmul.mubr.f32.gmra.mrb[0].mxu0 %v1344
        %v1557 = vpop.f32.mrb[0].mxu0
        %v1558 = vadd.f32 %v1340, %v1557
        %v1559 = vpop.f32.mrb[0].mxu0
        %1560 = vmatprep.mubr.f32.mxu0 0.0
        %1561 = vmatmul.mubr.f32.gmra.mrb[0].mxu0 %v1347
        %v1562 = vpop.f32.mrb[0].mxu0
        %v1563 = vadd.f32 %v1340, %v1562
        %v1564 = vpop.f32.mrb[0].mxu0
        %1565 = vmatprep.mubr.f32.mxu0 0.0
        %1566 = vmatmul.mubr.f32.gmra.mrb[0].mxu0 %v1350
        %v1567 = vpop.f32.mrb[0].mxu0
        %v1568 = vadd.f32 %v1340, %v1567
        %v1569 = vpop.f32.mrb[0].mxu0
        %1570 = vmatprep.mubr.f32.mxu0 0.0
        %1571 = vmatmul.mubr.f32.gmra.mrb[0].mxu0 %v1353
        %v1572 = vpop.f32.mrb[0].mxu0
        %v1573 = vadd.f32 %v1340, %v1572
        %v1574 = vpop.f32.mrb[0].mxu0
        %1575 = vmatprep.mubr.f32.mxu0 0.0
        %1576 = vmatmul.mubr.f32.gmra.mrb[0].mxu0 %v1356
        %v1577 = vpop.f32.mrb[0].mxu0
        %v1578 = vadd.f32 %v1340, %v1577
        %v1579 = vpop.f32.mrb[0].mxu0
        %1580 = vmatprep.mubr.f32.mxu0 0.0
        %1581 = vmatmul.mubr.f32.gmra.mrb[0].mxu0 %v1359
        %v1582 = vpop.f32.mrb[0].mxu0
        %v1583 = vadd.f32 %v1340, %v1582
        %v1584 = vpop.f32.mrb[0].mxu0
        %1585 = vmatprep.mubr.f32.mxu0 0.0
        %1586 = vmatmul.mubr.f32.gmra.mrb[0].mxu0 %v1362
        %v1587 = vpop.f32.mrb[0].mxu0
        %v1588 = vadd.f32 %v1340, %v1587
        %v1589 = vpop.f32.mrb[0].mxu0
        %1590 = vmatprep.mubr.f32.mxu0 0.0
        %1591 = vmatmul.mubr.f32.gmra.mrb[0].mxu0 %v1365
        %v1592 = vpop.f32.mrb[0].mxu0
        %v1593 = vadd.f32 %v1340, %v1592
        %v1594 = vpop.f32.mrb[0].mxu0
        %1595 = vmatprep.mubr.f32.mxu0 0.0
        %1596 = vmatmul.mubr.f32.gmra.mrb[0].mxu0 %v1368
        %v1597 = vpop.f32.mrb[0].mxu0
        %v1598 = vadd.f32 %v1340, %v1597
        %v1599 = vpop.f32.mrb[0].mxu0
        %1600 = vmatprep.mubr.f32.mxu0 0.0
        %1601 = vmatmul.mubr.f32.gmra.mrb[0].mxu0 %v1371
        %v1602 = vpop.f32.mrb[0].mxu0
        %v1603 = vadd.f32 %v1340, %v1602
        %v1604 = vpop.f32.mrb[0].mxu0
        %1605 = vmatprep.mubr.f32.mxu0 0.0
        %1606 = vmatmul.mubr.f32.gmra.mrb[0].mxu0 %v1374
        %v1607 = vpop.f32.mrb[0].mxu0
        %v1608 = vadd.f32 %v1340, %v1607
        %v1609 = vpop.f32.mrb[0].mxu0
        %1610 = vmatprep.mubr.f32.mxu0 0.0
        %1611 = vmatmul.mubr.f32.gmra.mrb[0].mxu0 %v1377
        %v1612 = vpop.f32.mrb[0].mxu0
        %v1613 = vadd.f32 %v1340, %v1612
        %v1614 = vpop.f32.mrb[0].mxu0
        %1615 = vmatprep.mubr.f32.mxu0 0.0
        %1616 = vmatmul.mubr.f32.gmra.mrb[0].mxu0 %v1380
        %v1617 = vpop.f32.mrb[0].mxu0
        %v1618 = vadd.f32 %v1340, %v1617
        %v1619 = vpop.f32.mrb[0].mxu0
        %1620 = vmatprep.mubr.f32.mxu0 0.0
        %1621 = vmatmul.mubr.f32.gmra.mrb[0].mxu0 %v1383
        %v1622 = vpop.f32.mrb[0].mxu0
        %v1623 = vadd.f32 %v1340, %v1622
        %v1624 = vpop.f32.mrb[0].mxu0
        %1625 = vmatprep.mubr.f32.mxu0 0.0
        %1626 = vmatmul.mubr.f32.gmra.mrb[0].mxu0 %v1386
        %v1627 = vpop.f32.mrb[0].mxu0
        %v1628 = vadd.f32 %v1340, %v1627
        %v1629 = vpop.f32.mrb[0].mxu0
        %1630 = vmatprep.mubr.f32.mxu0 0.0
        %1631 = vmatmul.mubr.f32.gmra.mrb[0].mxu0 %v1389
        %v1632 = vpop.f32.mrb[0].mxu0
        %v1633 = vadd.f32 %v1340, %v1632
        %v1634 = vpop.f32.mrb[0].mxu0
        %1635 = vmatprep.mubr.f32.mxu0 0.0
        %1636 = vmatmul.mubr.f32.gmra.mrb[0].mxu0 %v1392
        %v1637 = vpop.f32.mrb[0].mxu0
        %v1638 = vadd.f32 %v1340, %v1637
        %v1639 = vpop.f32.mrb[0].mxu0
        %1640 = vmatprep.mubr.f32.mxu0 0.0
        %1641 = vmatmul.mubr.f32.gmra.mrb[0].mxu0 %v1395
        %v1642 = vpop.f32.mrb[0].mxu0
        %v1643 = vadd.f32 %v1340, %v1642
        %v1644 = vpop.f32.mrb[0].mxu0
        %1645 = vmatprep.mubr.f32.mxu0 0.0
        %1646 = vmatmul.mubr.f32.gmra.mrb[0].mxu0 %v1398
        %v1647 = vpop.f32.mrb[0].mxu0
        %v1648 = vadd.f32 %v1340, %v1647
        %v1649 = vpop.f32.mrb[0].mxu0
        %1650 = vmatprep.mubr.f32.mxu0 0.0
        %1651 = vmatmul.mubr.f32.gmra.mrb[0].mxu0 %v1401
        %v1652 = vpop.f32.mrb[0].mxu0
        %v1653 = vadd.f32 %v1340, %v1652
        %v1654 = vpop.f32.mrb[0].mxu0
        %1655 = vmatprep.mubr.f32.mxu0 0.0
        %1656 = vmatmul.mubr.f32.gmra.mrb[0].mxu0 %v1404
        %v1657 = vpop.f32.mrb[0].mxu0
        %v1658 = vadd.f32 %v1340, %v1657
        %v1659 = vpop.f32.mrb[0].mxu0
        %1660 = vmatprep.mubr.f32.mxu0 0.0
        %1661 = vmatmul.mubr.f32.gmra.mrb[0].mxu0 %v1407
        %v1662 = vpop.f32.mrb[0].mxu0
        %v1663 = vadd.f32 %v1340, %v1662
        %v1664 = vpop.f32.mrb[0].mxu0
        %1665 = vmatprep.mubr.f32.mxu0 0.0
        %1666 = vmatmul.mubr.f32.gmra.mrb[0].mxu0 %v1410
        %v1667 = vpop.f32.mrb[0].mxu0
        %v1668 = vadd.f32 %v1340, %v1667
        %v1669 = vpop.f32.mrb[0].mxu0
        %1670 = vmatprep.mubr.f32.mxu0 0.0
        %1671 = vmatmul.mubr.f32.gmra.mrb[0].mxu0 %v1413
        %v1672 = vpop.f32.mrb[0].mxu0
        %v1673 = vadd.f32 %v1340, %v1672
        %v1674 = vpop.f32.mrb[0].mxu0
        %1675 = vmatprep.mubr.f32.mxu0 0.0
        %1676 = vmatmul.mubr.f32.gmra.mrb[0].mxu0 %v1416
        %v1677 = vpop.f32.mrb[0].mxu0
        %v1678 = vadd.f32 %v1340, %v1677
        %v1679 = vpop.f32.mrb[0].mxu0
        %1680 = vmatprep.mubr.f32.mxu0 0.0
        %1681 = vmatmul.mubr.f32.gmra.mrb[0].mxu0 %v1419
        %v1682 = vpop.f32.mrb[0].mxu0
        %v1683 = vadd.f32 %v1340, %v1682
        %v1684 = vpop.f32.mrb[0].mxu0
        %1685 = vmatprep.mubr.f32.mxu0 0.0
        %1686 = vmatmul.mubr.f32.gmra.mrb[0].mxu0 %v1422
        %v1687 = vpop.f32.mrb[0].mxu0
        %v1688 = vadd.f32 %v1340, %v1687
        %v1689 = vpop.f32.mrb[0].mxu0
        %1690 = vmatprep.mubr.f32.mxu0 0.0
        %1691 = vmatmul.mubr.f32.gmra.mrb[0].mxu0 %v1425
        %v1692 = vpop.f32.mrb[0].mxu0
        %v1693 = vadd.f32 %v1340, %v1692
        %v1694 = vpop.f32.mrb[0].mxu0
        %1695 = vmatprep.mubr.f32.mxu0 0.0
        %1696 = vmatmul.mubr.f32.gmra.mrb[0].mxu0 %v1428
        %v1697 = vpop.f32.mrb[0].mxu0
        %v1698 = vadd.f32 %v1340, %v1697
        %v1699 = vpop.f32.mrb[0].mxu0
        %1700 = vmatprep.mubr.f32.mxu0 0.0
        %1701 = vmatmul.mubr.f32.gmra.mrb[0].mxu0 %v1431
        %v1702 = vpop.f32.mrb[0].mxu0
        %v1703 = vadd.f32 %v1340, %v1702
        %v1704 = vpop.f32.mrb[0].mxu0
        %1705 = vmatprep.mubr.f32.mxu0 0.0
        %1706 = vmatmul.mubr.f32.gmra.mrb[0].mxu0 %v1434
        %v1707 = vpop.f32.mrb[0].mxu0
        %v1708 = vadd.f32 %v1340, %v1707
        %v1709 = vpop.f32.mrb[0].mxu0
        %1710 = vmatprep.mubr.f32.mxu0 0.0
        %1711 = vmatmul.mubr.f32.gmra.mrb[0].mxu0 %v1437
        %v1712 = vpop.f32.mrb[0].mxu0
        %v1713 = vadd.f32 %v1340, %v1712
        %v1714 = vpop.f32.mrb[0].mxu0
        %1715 = vmatprep.mubr.f32.mxu0 0.0
        %1716 = vmatmul.mubr.f32.gmra.mrb[0].mxu0 %v1440
        %v1717 = vpop.f32.mrb[0].mxu0
        %v1718 = vadd.f32 %v1340, %v1717
        %v1719 = vpop.f32.mrb[0].mxu0
        %1720 = vmatprep.mubr.f32.mxu0 0.0
        %1721 = vmatmul.mubr.f32.gmra.mrb[0].mxu0 %v1443
        %v1722 = vpop.f32.mrb[0].mxu0
        %v1723 = vadd.f32 %v1340, %v1722
        %v1724 = vpop.f32.mrb[0].mxu0
        %1725 = vmatprep.mubr.f32.mxu0 0.0
        %1726 = vmatmul.mubr.f32.gmra.mrb[0].mxu0 %v1446
        %v1727 = vpop.f32.mrb[0].mxu0
        %v1728 = vadd.f32 %v1340, %v1727
        %v1729 = vpop.f32.mrb[0].mxu0
        %1730 = vmatprep.mubr.f32.mxu0 0.0
        %1731 = vmatmul.mubr.f32.gmra.mrb[0].mxu0 %v1449
        %v1732 = vpop.f32.mrb[0].mxu0
        %v1733 = vadd.f32 %v1340, %v1732
        %v1734 = vpop.f32.mrb[0].mxu0
        %1735 = vmatprep.mubr.f32.mxu0 0.0
        %1736 = vmatmul.mubr.f32.gmra.mrb[0].mxu0 %v1452
        %v1737 = vpop.f32.mrb[0].mxu0
        %v1738 = vadd.f32 %v1340, %v1737
        %v1739 = vpop.f32.mrb[0].mxu0
        %1740 = vmatprep.mubr.f32.mxu0 0.0
        %1741 = vmatmul.mubr.f32.gmra.mrb[0].mxu0 %v1455
        %v1742 = vpop.f32.mrb[0].mxu0
        %v1743 = vadd.f32 %v1340, %v1742
        %v1744 = vpop.f32.mrb[0].mxu0
        %1745 = vmatprep.mubr.f32.mxu0 0.0
        %1746 = vmatmul.mubr.f32.gmra.mrb[0].mxu0 %v1458
        %v1747 = vpop.f32.mrb[0].mxu0
        %v1748 = vadd.f32 %v1340, %v1747
        %v1749 = vpop.f32.mrb[0].mxu0
        %1750 = vmatprep.mubr.f32.mxu0 0.0
        %1751 = vmatmul.mubr.f32.gmra.mrb[0].mxu0 %v1461
        %v1752 = vpop.f32.mrb[0].mxu0
        %v1753 = vadd.f32 %v1340, %v1752
        %v1754 = vpop.f32.mrb[0].mxu0
        %1755 = vmatprep.mubr.f32.mxu0 0.0
        %1756 = vmatmul.mubr.f32.gmra.mrb[0].mxu0 %v1464
        %v1757 = vpop.f32.mrb[0].mxu0
        %v1758 = vadd.f32 %v1340, %v1757
        %v1759 = vpop.f32.mrb[0].mxu0
        %1760 = vmatprep.mubr.f32.mxu0 0.0
        %1761 = vmatmul.mubr.f32.gmra.mrb[0].mxu0 %v1467
        %v1762 = vpop.f32.mrb[0].mxu0
        %v1763 = vadd.f32 %v1340, %v1762
        %v1764 = vpop.f32.mrb[0].mxu0
        %1765 = vmatprep.mubr.f32.mxu0 0.0
        %1766 = vmatmul.mubr.f32.gmra.mrb[0].mxu0 %v1470
        %v1767 = vpop.f32.mrb[0].mxu0
        %v1768 = vadd.f32 %v1340, %v1767
        %v1769 = vpop.f32.mrb[0].mxu0
        %1770 = vmatprep.mubr.f32.mxu0 0.0
        %1771 = vmatmul.mubr.f32.gmra.mrb[0].mxu0 %v1473
        %v1772 = vpop.f32.mrb[0].mxu0
        %v1773 = vadd.f32 %v1340, %v1772
        %v1774 = vpop.f32.mrb[0].mxu0
        %1775 = vmatprep.mubr.f32.mxu0 0.0
        %1776 = vmatmul.mubr.f32.gmra.mrb[0].mxu0 %v1476
        %v1777 = vpop.f32.mrb[0].mxu0
        %v1778 = vadd.f32 %v1340, %v1777
        %v1779 = vpop.f32.mrb[0].mxu0
        %1780 = vmatprep.mubr.f32.mxu0 0.0
        %1781 = vmatmul.mubr.f32.gmra.mrb[0].mxu0 %v1479
        %v1782 = vpop.f32.mrb[0].mxu0
        %v1783 = vadd.f32 %v1340, %v1782
        %v1784 = vpop.f32.mrb[0].mxu0
        %1785 = vmatprep.mubr.f32.mxu0 0.0
        %1786 = vmatmul.mubr.f32.gmra.mrb[0].mxu0 %v1482
        %v1787 = vpop.f32.mrb[0].mxu0
        %v1788 = vadd.f32 %v1340, %v1787
        %v1789 = vpop.f32.mrb[0].mxu0
        %1790 = vmatprep.mubr.f32.mxu0 0.0
        %1791 = vmatmul.mubr.f32.gmra.mrb[0].mxu0 %v1485
        %v1792 = vpop.f32.mrb[0].mxu0
        %v1793 = vadd.f32 %v1340, %v1792
        %v1794 = vpop.f32.mrb[0].mxu0
        %1795 = vdwg.mxu0
        %v1796 = vmax.f32 %v1558, 0.0
        %v1797 = vmax.f32 %v1563, 0.0
        %v1798 = vmax.f32 %v1568, 0.0
        %v1799 = vmax.f32 %v1573, 0.0
        %v1800 = vmax.f32 %v1578, 0.0
        %v1801 = vmax.f32 %v1583, 0.0
        %v1802 = vmax.f32 %v1588, 0.0
        %v1803 = vmax.f32 %v1593, 0.0
        %v1804 = vmax.f32 %v1598, 0.0
        %v1805 = vmax.f32 %v1603, 0.0
        %v1806 = vmax.f32 %v1608, 0.0
        %v1807 = vmax.f32 %v1613, 0.0
        %v1808 = vmax.f32 %v1618, 0.0
        %v1809 = vmax.f32 %v1623, 0.0
        %v1810 = vmax.f32 %v1628, 0.0
        %v1811 = vmax.f32 %v1633, 0.0
        %v1812 = vmax.f32 %v1638, 0.0
        %v1813 = vmax.f32 %v1643, 0.0
        %v1814 = vmax.f32 %v1648, 0.0
        %v1815 = vmax.f32 %v1653, 0.0
        %v1816 = vmax.f32 %v1658, 0.0
        %v1817 = vmax.f32 %v1663, 0.0
        %v1818 = vmax.f32 %v1668, 0.0
        %v1819 = vmax.f32 %v1673, 0.0
        %v1820 = vmax.f32 %v1678, 0.0
        %v1821 = vmax.f32 %v1683, 0.0
        %v1822 = vmax.f32 %v1688, 0.0
        %v1823 = vmax.f32 %v1693, 0.0
        %v1824 = vmax.f32 %v1698, 0.0
        %v1825 = vmax.f32 %v1703, 0.0
        %v1826 = vmax.f32 %v1708, 0.0
        %v1827 = vmax.f32 %v1713, 0.0
        %v1828 = vmax.f32 %v1718, 0.0
        %v1829 = vmax.f32 %v1723, 0.0
        %v1830 = vmax.f32 %v1728, 0.0
        %v1831 = vmax.f32 %v1733, 0.0
        %v1832 = vmax.f32 %v1738, 0.0
        %v1833 = vmax.f32 %v1743, 0.0
        %v1834 = vmax.f32 %v1748, 0.0
        %v1835 = vmax.f32 %v1753, 0.0
        %v1836 = vmax.f32 %v1758, 0.0
        %v1837 = vmax.f32 %v1763, 0.0
        %v1838 = vmax.f32 %v1768, 0.0
        %v1839 = vmax.f32 %v1773, 0.0
        %v1840 = vmax.f32 %v1778, 0.0
        %v1841 = vmax.f32 %v1783, 0.0
        %v1842 = vmax.f32 %v1788, 0.0
        %v1843 = vmax.f32 %v1793, 0.0
        %vm1844 = vcmp.ge.s32.totalorder %v949, 64
        %vm1845 = vcmp.ge.s32.totalorder %v950, 64
        %vm1846 = vcmp.ge.s32.totalorder %v951, 64
        %vm1847 = vcmp.ge.s32.totalorder %v952, 64
        %vm1848 = vcmp.ge.s32.totalorder %v953, 64
        %vm1849 = vcmp.ge.s32.totalorder %v954, 64
        %vm1850 = vcmp.ge.s32.totalorder %v955, 64
        %vm1851 = vcmp.ge.s32.totalorder %v956, 64
        %vm1852 = vcmp.ge.s32.totalorder %v957, 64
        %vm1853 = vcmp.ge.s32.totalorder %v958, 64
        %vm1854 = vcmp.ge.s32.totalorder %v959, 64
        %vm1855 = vcmp.ge.s32.totalorder %v960, 64
        %vm1856 = vcmp.ge.s32.totalorder %v961, 64
        %vm1857 = vcmp.ge.s32.totalorder %v962, 64
        %vm1858 = vcmp.ge.s32.totalorder %v963, 64
        %vm1859 = vcmp.ge.s32.totalorder %v964, 64
        %vm1860 = vcmp.ge.s32.totalorder %v965, 64
        %vm1861 = vcmp.ge.s32.totalorder %v966, 64
        %vm1862 = vcmp.ge.s32.totalorder %v967, 64
        %vm1863 = vcmp.ge.s32.totalorder %v968, 64
        %vm1864 = vcmp.ge.s32.totalorder %v969, 64
        %vm1865 = vcmp.ge.s32.totalorder %v970, 64
        %vm1866 = vcmp.ge.s32.totalorder %v971, 64
        %vm1867 = vcmp.ge.s32.totalorder %v972, 64
        %vm1868 = vcmp.ge.s32.totalorder %v973, 64
        %vm1869 = vcmp.ge.s32.totalorder %v974, 64
        %vm1870 = vcmp.ge.s32.totalorder %v975, 64
        %vm1871 = vcmp.ge.s32.totalorder %v976, 64
        %vm1872 = vcmp.ge.s32.totalorder %v977, 64
        %vm1873 = vcmp.ge.s32.totalorder %v978, 64
        %vm1874 = vcmp.ge.s32.totalorder %v979, 64
        %vm1875 = vcmp.ge.s32.totalorder %v980, 64
        %vm1876 = vcmp.ge.s32.totalorder %v981, 64
        %vm1877 = vcmp.ge.s32.totalorder %v982, 64
        %vm1878 = vcmp.ge.s32.totalorder %v983, 64
        %vm1879 = vcmp.ge.s32.totalorder %v984, 64
        %vm1880 = vcmp.ge.s32.totalorder %v985, 64
        %vm1881 = vcmp.ge.s32.totalorder %v986, 64
        %vm1882 = vcmp.ge.s32.totalorder %v987, 64
        %vm1883 = vcmp.ge.s32.totalorder %v988, 64
        %vm1884 = vcmp.ge.s32.totalorder %v989, 64
        %vm1885 = vcmp.ge.s32.totalorder %v990, 64
        %vm1886 = vcmp.ge.s32.totalorder %v991, 64
        %vm1887 = vcmp.ge.s32.totalorder %v992, 64
        %vm1888 = vcmp.ge.s32.totalorder %v993, 64
        %vm1889 = vcmp.ge.s32.totalorder %v994, 64
        %vm1890 = vcmp.ge.s32.totalorder %v995, 64
        %vm1891 = vcmp.ge.s32.totalorder %v996, 64
        %v1892 = vsel %vm1844, %v1836, 0.0
        %v1893 = vsel %vm1845, %v1837, 0.0
        %v1894 = vsel %vm1846, %v1838, 0.0
        %v1895 = vsel %vm1847, %v1839, 0.0
        %v1896 = vsel %vm1848, %v1840, 0.0
        %v1897 = vsel %vm1849, %v1841, 0.0
        %v1898 = vsel %vm1850, %v1842, 0.0
        %v1899 = vsel %vm1851, %v1843, 0.0
        %v1900 = vsel %vm1852, %v1796, 0.0
        %v1901 = vsel %vm1853, %v1797, 0.0
        %v1902 = vsel %vm1854, %v1798, 0.0
        %v1903 = vsel %vm1855, %v1799, 0.0
        %v1904 = vsel %vm1856, %v1800, 0.0
        %v1905 = vsel %vm1857, %v1801, 0.0
        %v1906 = vsel %vm1858, %v1802, 0.0
        %v1907 = vsel %vm1859, %v1803, 0.0
        %v1908 = vsel %vm1860, %v1804, 0.0
        %v1909 = vsel %vm1861, %v1805, 0.0
        %v1910 = vsel %vm1862, %v1806, 0.0
        %v1911 = vsel %vm1863, %v1807, 0.0
        %v1912 = vsel %vm1864, %v1808, 0.0
        %v1913 = vsel %vm1865, %v1809, 0.0
        %v1914 = vsel %vm1866, %v1810, 0.0
        %v1915 = vsel %vm1867, %v1811, 0.0
        %v1916 = vsel %vm1868, %v1812, 0.0
        %v1917 = vsel %vm1869, %v1813, 0.0
        %v1918 = vsel %vm1870, %v1814, 0.0
        %v1919 = vsel %vm1871, %v1815, 0.0
        %v1920 = vsel %vm1872, %v1816, 0.0
        %v1921 = vsel %vm1873, %v1817, 0.0
        %v1922 = vsel %vm1874, %v1818, 0.0
        %v1923 = vsel %vm1875, %v1819, 0.0
        %v1924 = vsel %vm1876, %v1820, 0.0
        %v1925 = vsel %vm1877, %v1821, 0.0
        %v1926 = vsel %vm1878, %v1822, 0.0
        %v1927 = vsel %vm1879, %v1823, 0.0
        %v1928 = vsel %vm1880, %v1824, 0.0
        %v1929 = vsel %vm1881, %v1825, 0.0
        %v1930 = vsel %vm1882, %v1826, 0.0
        %v1931 = vsel %vm1883, %v1827, 0.0
        %v1932 = vsel %vm1884, %v1828, 0.0
        %v1933 = vsel %vm1885, %v1829, 0.0
        %v1934 = vsel %vm1886, %v1830, 0.0
        %v1935 = vsel %vm1887, %v1831, 0.0
        %v1936 = vsel %vm1888, %v1832, 0.0
        %v1937 = vsel %vm1889, %v1833, 0.0
        %v1938 = vsel %vm1890, %v1834, 0.0
        %v1939 = vsel %vm1891, %v1835, 0.0
        %v1940 = vld [vmem:[%s894] sm:$0xff]
        %v1941 = vld [vmem:[%s894 + $0x8] sm:$0xff]
        %v1942 = vld [vmem:[%s894 + $0x10] sm:$0xff]
        %v1943 = vld [vmem:[%s894 + $0x18] sm:$0xff]
        %v1944 = vld [vmem:[%s894 + $0x20] sm:$0xff]
        %v1945 = vld [vmem:[%s894 + $0x28] sm:$0xff]
        %v1946 = vld [vmem:[%s894 + $0x30] sm:$0xff]
        %v1947 = vld [vmem:[%s894 + $0x38] sm:$0xff]
        %v1948 = vld [vmem:[%s899] sm:$0xff]
        %v1949 = vld [vmem:[%s899 + $0x8] sm:$0xff]
        %v1950 = vld [vmem:[%s899 + $0x10] sm:$0xff]
        %v1951 = vld [vmem:[%s899 + $0x18] sm:$0xff]
        %v1952 = vld [vmem:[%s899 + $0x20] sm:$0xff]
        %v1953 = vld [vmem:[%s899 + $0x28] sm:$0xff]
        %v1954 = vld [vmem:[%s899 + $0x30] sm:$0xff]
        %v1955 = vld [vmem:[%s899 + $0x38] sm:$0xff]
        %vm1956 = vcmask 523264
        %v1958 = vsel %vm1956, %v1796, 0
        %v1961 = vsel %vm1956, %v1797, 0
        %v1964 = vsel %vm1956, %v1798, 0
        %v1967 = vsel %vm1956, %v1799, 0
        %v1970 = vsel %vm1956, %v1800, 0
        %v1973 = vsel %vm1956, %v1801, 0
        %v1976 = vsel %vm1956, %v1802, 0
        %v1979 = vsel %vm1956, %v1803, 0
        %v1982 = vsel %vm1956, %v1804, 0
        %v1985 = vsel %vm1956, %v1805, 0
        %v1988 = vsel %vm1956, %v1806, 0
        %v1991 = vsel %vm1956, %v1807, 0
        %v1994 = vsel %vm1956, %v1808, 0
        %v1997 = vsel %vm1956, %v1809, 0
        %v2000 = vsel %vm1956, %v1810, 0
        %v2003 = vsel %vm1956, %v1811, 0
        %v2006 = vsel %vm1956, %v1812, 0
        %v2009 = vsel %vm1956, %v1813, 0
        %v2012 = vsel %vm1956, %v1814, 0
        %v2015 = vsel %vm1956, %v1815, 0
        %v2018 = vsel %vm1956, %v1816, 0
        %v2021 = vsel %vm1956, %v1817, 0
        %v2024 = vsel %vm1956, %v1818, 0
        %v2027 = vsel %vm1956, %v1819, 0
        %v2030 = vsel %vm1956, %v1820, 0
        %v2033 = vsel %vm1956, %v1821, 0
        %v2036 = vsel %vm1956, %v1822, 0
        %v2039 = vsel %vm1956, %v1823, 0
        %v2042 = vsel %vm1956, %v1824, 0
        %v2045 = vsel %vm1956, %v1825, 0
        %v2048 = vsel %vm1956, %v1826, 0
        %v2051 = vsel %vm1956, %v1827, 0
        %v2054 = vsel %vm1956, %v1828, 0
        %v2057 = vsel %vm1956, %v1829, 0
        %v2060 = vsel %vm1956, %v1830, 0
        %v2063 = vsel %vm1956, %v1831, 0
        %v2066 = vsel %vm1956, %v1832, 0
        %v2069 = vsel %vm1956, %v1833, 0
        %v2072 = vsel %vm1956, %v1834, 0
        %v2075 = vsel %vm1956, %v1835, 0
        %v2078 = vsel %vm1956, %v1836, 0
        %v2081 = vsel %vm1956, %v1837, 0
        %v2084 = vsel %vm1956, %v1838, 0
        %v2087 = vsel %vm1956, %v1839, 0
        %v2090 = vsel %vm1956, %v1840, 0
        %v2093 = vsel %vm1956, %v1841, 0
        %v2096 = vsel %vm1956, %v1842, 0
        %v2099 = vsel %vm1956, %v1843, 0
        %2101 = vmatprep.subr.mxu0 0.0
        %2102 = vmatpush1.msra.mxu0 %v1948
        %2103 = vmatprep.subr.mxu0 0.0
        %2104 = vmatpush1.msra.mxu0 %v1949
        %2105 = vmatprep.subr.mxu0 0.0
        %2106 = vmatpush1.msra.mxu0 %v1950
        %2107 = vmatprep.subr.mxu0 0.0
        %2108 = vmatpush1.msra.mxu0 %v1951
        %2109 = vmatprep.subr.mxu0 0.0
        %2110 = vmatpush1.msra.mxu0 %v1952
        %2111 = vmatprep.subr.mxu0 0.0
        %2112 = vmatpush1.msra.mxu0 %v1953
        %2113 = vmatprep.subr.mxu0 0.0
        %2114 = vmatpush1.msra.mxu0 %v1954
        %2115 = vmatprep.subr.mxu0 0.0
        %2116 = vmatpush1.msra.mxu0 %v1955
        %2117 = vmatprep.subr.mxu0 0.0
        %2118 = vmatpush1.msra.mxu0 0.0
        %2119 = vmatprep.subr.mxu0 0.0
        %2120 = vmatpush1.msra.mxu0 0.0
        %2121 = vmatprep.subr.mxu0 0.0
        %2122 = vmatpush1.msra.mxu0 0.0
        %2123 = vmatprep.subr.mxu0 0.0
        %2124 = vmatpush1.msra.mxu0 0.0
        %2125 = vmatprep.subr.mxu0 0.0
        %2126 = vmatpush1.msra.mxu0 0.0
        %2127 = vmatprep.subr.mxu0 0.0
        %2128 = vmatpush1.msra.mxu0 0.0
        %2129 = vmatprep.subr.mxu0 0.0
        %2130 = vmatpush1.msra.mxu0 0.0
        %2131 = vmatprep.subr.mxu0 0.0
        %2132 = vmatpush1.msra.mxu0 0.0
        %2133 = vmatprep.subr.mxu0 0.0
        %2134 = vmatpush1.msra.mxu0 0.0
        %2135 = vmatprep.subr.mxu0 0.0
        %2136 = vmatpush1.msra.mxu0 0.0
        %2137 = vmatprep.subr.mxu0 0.0
        %2138 = vmatpush1.msra.mxu0 0.0
        %2139 = vmatprep.subr.mxu0 0.0
        %2140 = vmatpush1.msra.mxu0 0.0
        %2141 = vmatprep.subr.mxu0 0.0
        %2142 = vmatpush1.msra.mxu0 0.0
        %2143 = vmatprep.subr.mxu0 0.0
        %2144 = vmatpush1.msra.mxu0 0.0
        %2145 = vmatprep.subr.mxu0 0.0
        %2146 = vmatpush1.msra.mxu0 0.0
        %2147 = vmatprep.subr.mxu0 0.0
        %2148 = vmatpush1.msra.mxu0 0.0
        %2149 = vmatprep.subr.mxu0 0.0
        %2150 = vmatpush1.msra.mxu0 0.0
        %2151 = vmatprep.subr.mxu0 0.0
        %2152 = vmatpush1.msra.mxu0 0.0
        %2153 = vmatprep.subr.mxu0 0.0
        %2154 = vmatpush1.msra.mxu0 0.0
        %2155 = vmatprep.subr.mxu0 0.0
        %2156 = vmatpush1.msra.mxu0 0.0
        %2157 = vmatprep.subr.mxu0 0.0
        %2158 = vmatpush1.msra.mxu0 0.0
        %2159 = vmatprep.subr.mxu0 0.0
        %2160 = vmatpush1.msra.mxu0 0.0
        %2161 = vmatprep.subr.mxu0 0.0
        %2162 = vmatpush1.msra.mxu0 0.0
        %2163 = vmatprep.subr.mxu0 0.0
        %2164 = vmatpush1.msra.mxu0 0.0
        %2165 = vmatprep.mubr.f32.mxu0 0.0
        %2166 = vmatmul.mubr.f32.gmra.mrb[0].mxu0 %v1958
        %v2167 = vpop.f32.mrb[0].mxu0
        %v2168 = vadd.f32 0.0, %v2167
        %v2169 = vpop.f32.mrb[0].mxu0
        %2170 = vmatprep.mubr.f32.mxu0 0.0
        %2171 = vmatmul.mubr.f32.gmra.mrb[0].mxu0 %v1961
        %v2172 = vpop.f32.mrb[0].mxu0
        %v2173 = vadd.f32 0.0, %v2172
        %v2174 = vpop.f32.mrb[0].mxu0
        %2175 = vmatprep.mubr.f32.mxu0 0.0
        %2176 = vmatmul.mubr.f32.gmra.mrb[0].mxu0 %v1964
        %v2177 = vpop.f32.mrb[0].mxu0
        %v2178 = vadd.f32 0.0, %v2177
        %v2179 = vpop.f32.mrb[0].mxu0
        %2180 = vmatprep.mubr.f32.mxu0 0.0
        %2181 = vmatmul.mubr.f32.gmra.mrb[0].mxu0 %v1967
        %v2182 = vpop.f32.mrb[0].mxu0
        %v2183 = vadd.f32 0.0, %v2182
        %v2184 = vpop.f32.mrb[0].mxu0
        %2185 = vmatprep.mubr.f32.mxu0 0.0
        %2186 = vmatmul.mubr.f32.gmra.mrb[0].mxu0 %v1970
        %v2187 = vpop.f32.mrb[0].mxu0
        %v2188 = vadd.f32 0.0, %v2187
        %v2189 = vpop.f32.mrb[0].mxu0
        %2190 = vmatprep.mubr.f32.mxu0 0.0
        %2191 = vmatmul.mubr.f32.gmra.mrb[0].mxu0 %v1973
        %v2192 = vpop.f32.mrb[0].mxu0
        %v2193 = vadd.f32 0.0, %v2192
        %v2194 = vpop.f32.mrb[0].mxu0
        %2195 = vmatprep.mubr.f32.mxu0 0.0
        %2196 = vmatmul.mubr.f32.gmra.mrb[0].mxu0 %v1976
        %v2197 = vpop.f32.mrb[0].mxu0
        %v2198 = vadd.f32 0.0, %v2197
        %v2199 = vpop.f32.mrb[0].mxu0
        %2200 = vmatprep.mubr.f32.mxu0 0.0
        %2201 = vmatmul.mubr.f32.gmra.mrb[0].mxu0 %v1979
        %v2202 = vpop.f32.mrb[0].mxu0
        %v2203 = vadd.f32 0.0, %v2202
        %v2204 = vpop.f32.mrb[0].mxu0
        %2205 = vmatprep.mubr.f32.mxu0 0.0
        %2206 = vmatmul.mubr.f32.gmra.mrb[0].mxu0 %v1982
        %v2207 = vpop.f32.mrb[0].mxu0
        %v2208 = vadd.f32 0.0, %v2207
        %v2209 = vpop.f32.mrb[0].mxu0
        %2210 = vmatprep.mubr.f32.mxu0 0.0
        %2211 = vmatmul.mubr.f32.gmra.mrb[0].mxu0 %v1985
        %v2212 = vpop.f32.mrb[0].mxu0
        %v2213 = vadd.f32 0.0, %v2212
        %v2214 = vpop.f32.mrb[0].mxu0
        %2215 = vmatprep.mubr.f32.mxu0 0.0
        %2216 = vmatmul.mubr.f32.gmra.mrb[0].mxu0 %v1988
        %v2217 = vpop.f32.mrb[0].mxu0
        %v2218 = vadd.f32 0.0, %v2217
        %v2219 = vpop.f32.mrb[0].mxu0
        %2220 = vmatprep.mubr.f32.mxu0 0.0
        %2221 = vmatmul.mubr.f32.gmra.mrb[0].mxu0 %v1991
        %v2222 = vpop.f32.mrb[0].mxu0
        %v2223 = vadd.f32 0.0, %v2222
        %v2224 = vpop.f32.mrb[0].mxu0
        %2225 = vmatprep.mubr.f32.mxu0 0.0
        %2226 = vmatmul.mubr.f32.gmra.mrb[0].mxu0 %v1994
        %v2227 = vpop.f32.mrb[0].mxu0
        %v2228 = vadd.f32 0.0, %v2227
        %v2229 = vpop.f32.mrb[0].mxu0
        %2230 = vmatprep.mubr.f32.mxu0 0.0
        %2231 = vmatmul.mubr.f32.gmra.mrb[0].mxu0 %v1997
        %v2232 = vpop.f32.mrb[0].mxu0
        %v2233 = vadd.f32 0.0, %v2232
        %v2234 = vpop.f32.mrb[0].mxu0
        %2235 = vmatprep.mubr.f32.mxu0 0.0
        %2236 = vmatmul.mubr.f32.gmra.mrb[0].mxu0 %v2000
        %v2237 = vpop.f32.mrb[0].mxu0
        %v2238 = vadd.f32 0.0, %v2237
        %v2239 = vpop.f32.mrb[0].mxu0
        %2240 = vmatprep.mubr.f32.mxu0 0.0
        %2241 = vmatmul.mubr.f32.gmra.mrb[0].mxu0 %v2003
        %v2242 = vpop.f32.mrb[0].mxu0
        %v2243 = vadd.f32 0.0, %v2242
        %v2244 = vpop.f32.mrb[0].mxu0
        %2245 = vmatprep.mubr.f32.mxu0 0.0
        %2246 = vmatmul.mubr.f32.gmra.mrb[0].mxu0 %v2006
        %v2247 = vpop.f32.mrb[0].mxu0
        %v2248 = vadd.f32 0.0, %v2247
        %v2249 = vpop.f32.mrb[0].mxu0
        %2250 = vmatprep.mubr.f32.mxu0 0.0
        %2251 = vmatmul.mubr.f32.gmra.mrb[0].mxu0 %v2009
        %v2252 = vpop.f32.mrb[0].mxu0
        %v2253 = vadd.f32 0.0, %v2252
        %v2254 = vpop.f32.mrb[0].mxu0
        %2255 = vmatprep.mubr.f32.mxu0 0.0
        %2256 = vmatmul.mubr.f32.gmra.mrb[0].mxu0 %v2012
        %v2257 = vpop.f32.mrb[0].mxu0
        %v2258 = vadd.f32 0.0, %v2257
        %v2259 = vpop.f32.mrb[0].mxu0
        %2260 = vmatprep.mubr.f32.mxu0 0.0
        %2261 = vmatmul.mubr.f32.gmra.mrb[0].mxu0 %v2015
        %v2262 = vpop.f32.mrb[0].mxu0
        %v2263 = vadd.f32 0.0, %v2262
        %v2264 = vpop.f32.mrb[0].mxu0
        %2265 = vmatprep.mubr.f32.mxu0 0.0
        %2266 = vmatmul.mubr.f32.gmra.mrb[0].mxu0 %v2018
        %v2267 = vpop.f32.mrb[0].mxu0
        %v2268 = vadd.f32 0.0, %v2267
        %v2269 = vpop.f32.mrb[0].mxu0
        %2270 = vmatprep.mubr.f32.mxu0 0.0
        %2271 = vmatmul.mubr.f32.gmra.mrb[0].mxu0 %v2021
        %v2272 = vpop.f32.mrb[0].mxu0
        %v2273 = vadd.f32 0.0, %v2272
        %v2274 = vpop.f32.mrb[0].mxu0
        %2275 = vmatprep.mubr.f32.mxu0 0.0
        %2276 = vmatmul.mubr.f32.gmra.mrb[0].mxu0 %v2024
        %v2277 = vpop.f32.mrb[0].mxu0
        %v2278 = vadd.f32 0.0, %v2277
        %v2279 = vpop.f32.mrb[0].mxu0
        %2280 = vmatprep.mubr.f32.mxu0 0.0
        %2281 = vmatmul.mubr.f32.gmra.mrb[0].mxu0 %v2027
        %v2282 = vpop.f32.mrb[0].mxu0
        %v2283 = vadd.f32 0.0, %v2282
        %v2284 = vpop.f32.mrb[0].mxu0
        %2285 = vmatprep.mubr.f32.mxu0 0.0
        %2286 = vmatmul.mubr.f32.gmra.mrb[0].mxu0 %v2030
        %v2287 = vpop.f32.mrb[0].mxu0
        %v2288 = vadd.f32 0.0, %v2287
        %v2289 = vpop.f32.mrb[0].mxu0
        %2290 = vmatprep.mubr.f32.mxu0 0.0
        %2291 = vmatmul.mubr.f32.gmra.mrb[0].mxu0 %v2033
        %v2292 = vpop.f32.mrb[0].mxu0
        %v2293 = vadd.f32 0.0, %v2292
        %v2294 = vpop.f32.mrb[0].mxu0
        %2295 = vmatprep.mubr.f32.mxu0 0.0
        %2296 = vmatmul.mubr.f32.gmra.mrb[0].mxu0 %v2036
        %v2297 = vpop.f32.mrb[0].mxu0
        %v2298 = vadd.f32 0.0, %v2297
        %v2299 = vpop.f32.mrb[0].mxu0
        %2300 = vmatprep.mubr.f32.mxu0 0.0
        %2301 = vmatmul.mubr.f32.gmra.mrb[0].mxu0 %v2039
        %v2302 = vpop.f32.mrb[0].mxu0
        %v2303 = vadd.f32 0.0, %v2302
        %v2304 = vpop.f32.mrb[0].mxu0
        %2305 = vmatprep.mubr.f32.mxu0 0.0
        %2306 = vmatmul.mubr.f32.gmra.mrb[0].mxu0 %v2042
        %v2307 = vpop.f32.mrb[0].mxu0
        %v2308 = vadd.f32 0.0, %v2307
        %v2309 = vpop.f32.mrb[0].mxu0
        %2310 = vmatprep.mubr.f32.mxu0 0.0
        %2311 = vmatmul.mubr.f32.gmra.mrb[0].mxu0 %v2045
        %v2312 = vpop.f32.mrb[0].mxu0
        %v2313 = vadd.f32 0.0, %v2312
        %v2314 = vpop.f32.mrb[0].mxu0
        %2315 = vmatprep.mubr.f32.mxu0 0.0
        %2316 = vmatmul.mubr.f32.gmra.mrb[0].mxu0 %v2048
        %v2317 = vpop.f32.mrb[0].mxu0
        %v2318 = vadd.f32 0.0, %v2317
        %v2319 = vpop.f32.mrb[0].mxu0
        %2320 = vmatprep.mubr.f32.mxu0 0.0
        %2321 = vmatmul.mubr.f32.gmra.mrb[0].mxu0 %v2051
        %v2322 = vpop.f32.mrb[0].mxu0
        %v2323 = vadd.f32 0.0, %v2322
        %v2324 = vpop.f32.mrb[0].mxu0
        %2325 = vmatprep.mubr.f32.mxu0 0.0
        %2326 = vmatmul.mubr.f32.gmra.mrb[0].mxu0 %v2054
        %v2327 = vpop.f32.mrb[0].mxu0
        %v2328 = vadd.f32 0.0, %v2327
        %v2329 = vpop.f32.mrb[0].mxu0
        %2330 = vmatprep.mubr.f32.mxu0 0.0
        %2331 = vmatmul.mubr.f32.gmra.mrb[0].mxu0 %v2057
        %v2332 = vpop.f32.mrb[0].mxu0
        %v2333 = vadd.f32 0.0, %v2332
        %v2334 = vpop.f32.mrb[0].mxu0
        %2335 = vmatprep.mubr.f32.mxu0 0.0
        %2336 = vmatmul.mubr.f32.gmra.mrb[0].mxu0 %v2060
        %v2337 = vpop.f32.mrb[0].mxu0
        %v2338 = vadd.f32 0.0, %v2337
        %v2339 = vpop.f32.mrb[0].mxu0
        %2340 = vmatprep.mubr.f32.mxu0 0.0
        %2341 = vmatmul.mubr.f32.gmra.mrb[0].mxu0 %v2063
        %v2342 = vpop.f32.mrb[0].mxu0
        %v2343 = vadd.f32 0.0, %v2342
        %v2344 = vpop.f32.mrb[0].mxu0
        %2345 = vmatprep.mubr.f32.mxu0 0.0
        %2346 = vmatmul.mubr.f32.gmra.mrb[0].mxu0 %v2066
        %v2347 = vpop.f32.mrb[0].mxu0
        %v2348 = vadd.f32 0.0, %v2347
        %v2349 = vpop.f32.mrb[0].mxu0
        %2350 = vmatprep.mubr.f32.mxu0 0.0
        %2351 = vmatmul.mubr.f32.gmra.mrb[0].mxu0 %v2069
        %v2352 = vpop.f32.mrb[0].mxu0
        %v2353 = vadd.f32 0.0, %v2352
        %v2354 = vpop.f32.mrb[0].mxu0
        %2355 = vmatprep.mubr.f32.mxu0 0.0
        %2356 = vmatmul.mubr.f32.gmra.mrb[0].mxu0 %v2072
        %v2357 = vpop.f32.mrb[0].mxu0
        %v2358 = vadd.f32 0.0, %v2357
        %v2359 = vpop.f32.mrb[0].mxu0
        %2360 = vmatprep.mubr.f32.mxu0 0.0
        %2361 = vmatmul.mubr.f32.gmra.mrb[0].mxu0 %v2075
        %v2362 = vpop.f32.mrb[0].mxu0
        %v2363 = vadd.f32 0.0, %v2362
        %v2364 = vpop.f32.mrb[0].mxu0
        %2365 = vmatprep.mubr.f32.mxu0 0.0
        %2366 = vmatmul.mubr.f32.gmra.mrb[0].mxu0 %v2078
        %v2367 = vpop.f32.mrb[0].mxu0
        %v2368 = vadd.f32 0.0, %v2367
        %v2369 = vpop.f32.mrb[0].mxu0
        %2370 = vmatprep.mubr.f32.mxu0 0.0
        %2371 = vmatmul.mubr.f32.gmra.mrb[0].mxu0 %v2081
        %v2372 = vpop.f32.mrb[0].mxu0
        %v2373 = vadd.f32 0.0, %v2372
        %v2374 = vpop.f32.mrb[0].mxu0
        %2375 = vmatprep.mubr.f32.mxu0 0.0
        %2376 = vmatmul.mubr.f32.gmra.mrb[0].mxu0 %v2084
        %v2377 = vpop.f32.mrb[0].mxu0
        %v2378 = vadd.f32 0.0, %v2377
        %v2379 = vpop.f32.mrb[0].mxu0
        %2380 = vmatprep.mubr.f32.mxu0 0.0
        %2381 = vmatmul.mubr.f32.gmra.mrb[0].mxu0 %v2087
        %v2382 = vpop.f32.mrb[0].mxu0
        %v2383 = vadd.f32 0.0, %v2382
        %v2384 = vpop.f32.mrb[0].mxu0
        %2385 = vmatprep.mubr.f32.mxu0 0.0
        %2386 = vmatmul.mubr.f32.gmra.mrb[0].mxu0 %v2090
        %v2387 = vpop.f32.mrb[0].mxu0
        %v2388 = vadd.f32 0.0, %v2387
        %v2389 = vpop.f32.mrb[0].mxu0
        %2390 = vmatprep.mubr.f32.mxu0 0.0
        %2391 = vmatmul.mubr.f32.gmra.mrb[0].mxu0 %v2093
        %v2392 = vpop.f32.mrb[0].mxu0
        %v2393 = vadd.f32 0.0, %v2392
        %v2394 = vpop.f32.mrb[0].mxu0
        %2395 = vmatprep.mubr.f32.mxu0 0.0
        %2396 = vmatmul.mubr.f32.gmra.mrb[0].mxu0 %v2096
        %v2397 = vpop.f32.mrb[0].mxu0
        %v2398 = vadd.f32 0.0, %v2397
        %v2399 = vpop.f32.mrb[0].mxu0
        %2400 = vmatprep.mubr.f32.mxu0 0.0
        %2401 = vmatmul.mubr.f32.gmra.mrb[0].mxu0 %v2099
        %v2402 = vpop.f32.mrb[0].mxu0
        %v2403 = vadd.f32 0.0, %v2402
        %v2404 = vpop.f32.mrb[0].mxu0
        %2405 = vdwg.mxu0
        %v2407 = vsel %vm1956, %v1892, 0
        %v2410 = vsel %vm1956, %v1893, 0
        %v2413 = vsel %vm1956, %v1894, 0
        %v2416 = vsel %vm1956, %v1895, 0
        %v2419 = vsel %vm1956, %v1896, 0
        %v2422 = vsel %vm1956, %v1897, 0
        %v2425 = vsel %vm1956, %v1898, 0
        %v2428 = vsel %vm1956, %v1899, 0
        %v2431 = vsel %vm1956, %v1900, 0
        %v2434 = vsel %vm1956, %v1901, 0
        %v2437 = vsel %vm1956, %v1902, 0
        %v2440 = vsel %vm1956, %v1903, 0
        %v2443 = vsel %vm1956, %v1904, 0
        %v2446 = vsel %vm1956, %v1905, 0
        %v2449 = vsel %vm1956, %v1906, 0
        %v2452 = vsel %vm1956, %v1907, 0
        %v2455 = vsel %vm1956, %v1908, 0
        %v2458 = vsel %vm1956, %v1909, 0
        %v2461 = vsel %vm1956, %v1910, 0
        %v2464 = vsel %vm1956, %v1911, 0
        %v2467 = vsel %vm1956, %v1912, 0
        %v2470 = vsel %vm1956, %v1913, 0
        %v2473 = vsel %vm1956, %v1914, 0
        %v2476 = vsel %vm1956, %v1915, 0
        %v2479 = vsel %vm1956, %v1916, 0
        %v2482 = vsel %vm1956, %v1917, 0
        %v2485 = vsel %vm1956, %v1918, 0
        %v2488 = vsel %vm1956, %v1919, 0
        %v2491 = vsel %vm1956, %v1920, 0
        %v2494 = vsel %vm1956, %v1921, 0
        %v2497 = vsel %vm1956, %v1922, 0
        %v2500 = vsel %vm1956, %v1923, 0
        %v2503 = vsel %vm1956, %v1924, 0
        %v2506 = vsel %vm1956, %v1925, 0
        %v2509 = vsel %vm1956, %v1926, 0
        %v2512 = vsel %vm1956, %v1927, 0
        %v2515 = vsel %vm1956, %v1928, 0
        %v2518 = vsel %vm1956, %v1929, 0
        %v2521 = vsel %vm1956, %v1930, 0
        %v2524 = vsel %vm1956, %v1931, 0
        %v2527 = vsel %vm1956, %v1932, 0
        %v2530 = vsel %vm1956, %v1933, 0
        %v2533 = vsel %vm1956, %v1934, 0
        %v2536 = vsel %vm1956, %v1935, 0
        %v2539 = vsel %vm1956, %v1936, 0
        %v2542 = vsel %vm1956, %v1937, 0
        %v2545 = vsel %vm1956, %v1938, 0
        %v2548 = vsel %vm1956, %v1939, 0
        %2550 = vmatprep.subr.mxu0 0.0
        %2551 = vmatpush1.msra.mxu0 %v1940
        %2552 = vmatprep.subr.mxu0 0.0
        %2553 = vmatpush1.msra.mxu0 %v1941
        %2554 = vmatprep.subr.mxu0 0.0
        %2555 = vmatpush1.msra.mxu0 %v1942
        %2556 = vmatprep.subr.mxu0 0.0
        %2557 = vmatpush1.msra.mxu0 %v1943
        %2558 = vmatprep.subr.mxu0 0.0
        %2559 = vmatpush1.msra.mxu0 %v1944
        %2560 = vmatprep.subr.mxu0 0.0
        %2561 = vmatpush1.msra.mxu0 %v1945
        %2562 = vmatprep.subr.mxu0 0.0
        %2563 = vmatpush1.msra.mxu0 %v1946
        %2564 = vmatprep.subr.mxu0 0.0
        %2565 = vmatpush1.msra.mxu0 %v1947
        %2566 = vmatprep.subr.mxu0 0.0
        %2567 = vmatpush1.msra.mxu0 0.0
        %2568 = vmatprep.subr.mxu0 0.0
        %2569 = vmatpush1.msra.mxu0 0.0
        %2570 = vmatprep.subr.mxu0 0.0
        %2571 = vmatpush1.msra.mxu0 0.0
        %2572 = vmatprep.subr.mxu0 0.0
        %2573 = vmatpush1.msra.mxu0 0.0
        %2574 = vmatprep.subr.mxu0 0.0
        %2575 = vmatpush1.msra.mxu0 0.0
        %2576 = vmatprep.subr.mxu0 0.0
        %2577 = vmatpush1.msra.mxu0 0.0
        %2578 = vmatprep.subr.mxu0 0.0
        %2579 = vmatpush1.msra.mxu0 0.0
        %2580 = vmatprep.subr.mxu0 0.0
        %2581 = vmatpush1.msra.mxu0 0.0
        %2582 = vmatprep.subr.mxu0 0.0
        %2583 = vmatpush1.msra.mxu0 0.0
        %2584 = vmatprep.subr.mxu0 0.0
        %2585 = vmatpush1.msra.mxu0 0.0
        %2586 = vmatprep.subr.mxu0 0.0
        %2587 = vmatpush1.msra.mxu0 0.0
        %2588 = vmatprep.subr.mxu0 0.0
        %2589 = vmatpush1.msra.mxu0 0.0
        %2590 = vmatprep.subr.mxu0 0.0
        %2591 = vmatpush1.msra.mxu0 0.0
        %2592 = vmatprep.subr.mxu0 0.0
        %2593 = vmatpush1.msra.mxu0 0.0
        %2594 = vmatprep.subr.mxu0 0.0
        %2595 = vmatpush1.msra.mxu0 0.0
        %2596 = vmatprep.subr.mxu0 0.0
        %2597 = vmatpush1.msra.mxu0 0.0
        %2598 = vmatprep.subr.mxu0 0.0
        %2599 = vmatpush1.msra.mxu0 0.0
        %2600 = vmatprep.subr.mxu0 0.0
        %2601 = vmatpush1.msra.mxu0 0.0
        %2602 = vmatprep.subr.mxu0 0.0
        %2603 = vmatpush1.msra.mxu0 0.0
        %2604 = vmatprep.subr.mxu0 0.0
        %2605 = vmatpush1.msra.mxu0 0.0
        %2606 = vmatprep.subr.mxu0 0.0
        %2607 = vmatpush1.msra.mxu0 0.0
        %2608 = vmatprep.subr.mxu0 0.0
        %2609 = vmatpush1.msra.mxu0 0.0
        %2610 = vmatprep.subr.mxu0 0.0
        %2611 = vmatpush1.msra.mxu0 0.0
        %2612 = vmatprep.subr.mxu0 0.0
        %2613 = vmatpush1.msra.mxu0 0.0
        %2614 = vmatprep.mubr.f32.mxu0 0.0
        %2615 = vmatmul.mubr.f32.gmra.mrb[0].mxu0 %v2407
        %v2616 = vpop.f32.mrb[0].mxu0
        %v2617 = vadd.f32 %v2168, %v2616
        %v2618 = vpop.f32.mrb[0].mxu0
        %2619 = vmatprep.mubr.f32.mxu0 0.0
        %2620 = vmatmul.mubr.f32.gmra.mrb[0].mxu0 %v2410
        %v2621 = vpop.f32.mrb[0].mxu0
        %v2622 = vadd.f32 %v2173, %v2621
        %v2623 = vpop.f32.mrb[0].mxu0
        %2624 = vmatprep.mubr.f32.mxu0 0.0
        %2625 = vmatmul.mubr.f32.gmra.mrb[0].mxu0 %v2413
        %v2626 = vpop.f32.mrb[0].mxu0
        %v2627 = vadd.f32 %v2178, %v2626
        %v2628 = vpop.f32.mrb[0].mxu0
        %2629 = vmatprep.mubr.f32.mxu0 0.0
        %2630 = vmatmul.mubr.f32.gmra.mrb[0].mxu0 %v2416
        %v2631 = vpop.f32.mrb[0].mxu0
        %v2632 = vadd.f32 %v2183, %v2631
        %v2633 = vpop.f32.mrb[0].mxu0
        %2634 = vmatprep.mubr.f32.mxu0 0.0
        %2635 = vmatmul.mubr.f32.gmra.mrb[0].mxu0 %v2419
        %v2636 = vpop.f32.mrb[0].mxu0
        %v2637 = vadd.f32 %v2188, %v2636
        %v2638 = vpop.f32.mrb[0].mxu0
        %2639 = vmatprep.mubr.f32.mxu0 0.0
        %2640 = vmatmul.mubr.f32.gmra.mrb[0].mxu0 %v2422
        %v2641 = vpop.f32.mrb[0].mxu0
        %v2642 = vadd.f32 %v2193, %v2641
        %v2643 = vpop.f32.mrb[0].mxu0
        %2644 = vmatprep.mubr.f32.mxu0 0.0
        %2645 = vmatmul.mubr.f32.gmra.mrb[0].mxu0 %v2425
        %v2646 = vpop.f32.mrb[0].mxu0
        %v2647 = vadd.f32 %v2198, %v2646
        %v2648 = vpop.f32.mrb[0].mxu0
        %2649 = vmatprep.mubr.f32.mxu0 0.0
        %2650 = vmatmul.mubr.f32.gmra.mrb[0].mxu0 %v2428
        %v2651 = vpop.f32.mrb[0].mxu0
        %v2652 = vadd.f32 %v2203, %v2651
        %v2653 = vpop.f32.mrb[0].mxu0
        %2654 = vmatprep.mubr.f32.mxu0 0.0
        %2655 = vmatmul.mubr.f32.gmra.mrb[0].mxu0 %v2431
        %v2656 = vpop.f32.mrb[0].mxu0
        %v2657 = vadd.f32 %v2208, %v2656
        %v2658 = vpop.f32.mrb[0].mxu0
        %2659 = vmatprep.mubr.f32.mxu0 0.0
        %2660 = vmatmul.mubr.f32.gmra.mrb[0].mxu0 %v2434
        %v2661 = vpop.f32.mrb[0].mxu0
        %v2662 = vadd.f32 %v2213, %v2661
        %v2663 = vpop.f32.mrb[0].mxu0
        %2664 = vmatprep.mubr.f32.mxu0 0.0
        %2665 = vmatmul.mubr.f32.gmra.mrb[0].mxu0 %v2437
        %v2666 = vpop.f32.mrb[0].mxu0
        %v2667 = vadd.f32 %v2218, %v2666
        %v2668 = vpop.f32.mrb[0].mxu0
        %2669 = vmatprep.mubr.f32.mxu0 0.0
        %2670 = vmatmul.mubr.f32.gmra.mrb[0].mxu0 %v2440
        %v2671 = vpop.f32.mrb[0].mxu0
        %v2672 = vadd.f32 %v2223, %v2671
        %v2673 = vpop.f32.mrb[0].mxu0
        %2674 = vmatprep.mubr.f32.mxu0 0.0
        %2675 = vmatmul.mubr.f32.gmra.mrb[0].mxu0 %v2443
        %v2676 = vpop.f32.mrb[0].mxu0
        %v2677 = vadd.f32 %v2228, %v2676
        %v2678 = vpop.f32.mrb[0].mxu0
        %2679 = vmatprep.mubr.f32.mxu0 0.0
        %2680 = vmatmul.mubr.f32.gmra.mrb[0].mxu0 %v2446
        %v2681 = vpop.f32.mrb[0].mxu0
        %v2682 = vadd.f32 %v2233, %v2681
        %v2683 = vpop.f32.mrb[0].mxu0
        %2684 = vmatprep.mubr.f32.mxu0 0.0
        %2685 = vmatmul.mubr.f32.gmra.mrb[0].mxu0 %v2449
        %v2686 = vpop.f32.mrb[0].mxu0
        %v2687 = vadd.f32 %v2238, %v2686
        %v2688 = vpop.f32.mrb[0].mxu0
        %2689 = vmatprep.mubr.f32.mxu0 0.0
        %2690 = vmatmul.mubr.f32.gmra.mrb[0].mxu0 %v2452
        %v2691 = vpop.f32.mrb[0].mxu0
        %v2692 = vadd.f32 %v2243, %v2691
        %v2693 = vpop.f32.mrb[0].mxu0
        %2694 = vmatprep.mubr.f32.mxu0 0.0
        %2695 = vmatmul.mubr.f32.gmra.mrb[0].mxu0 %v2455
        %v2696 = vpop.f32.mrb[0].mxu0
        %v2697 = vadd.f32 %v2248, %v2696
        %v2698 = vpop.f32.mrb[0].mxu0
        %2699 = vmatprep.mubr.f32.mxu0 0.0
        %2700 = vmatmul.mubr.f32.gmra.mrb[0].mxu0 %v2458
        %v2701 = vpop.f32.mrb[0].mxu0
        %v2702 = vadd.f32 %v2253, %v2701
        %v2703 = vpop.f32.mrb[0].mxu0
        %2704 = vmatprep.mubr.f32.mxu0 0.0
        %2705 = vmatmul.mubr.f32.gmra.mrb[0].mxu0 %v2461
        %v2706 = vpop.f32.mrb[0].mxu0
        %v2707 = vadd.f32 %v2258, %v2706
        %v2708 = vpop.f32.mrb[0].mxu0
        %2709 = vmatprep.mubr.f32.mxu0 0.0
        %2710 = vmatmul.mubr.f32.gmra.mrb[0].mxu0 %v2464
        %v2711 = vpop.f32.mrb[0].mxu0
        %v2712 = vadd.f32 %v2263, %v2711
        %v2713 = vpop.f32.mrb[0].mxu0
        %2714 = vmatprep.mubr.f32.mxu0 0.0
        %2715 = vmatmul.mubr.f32.gmra.mrb[0].mxu0 %v2467
        %v2716 = vpop.f32.mrb[0].mxu0
        %v2717 = vadd.f32 %v2268, %v2716
        %v2718 = vpop.f32.mrb[0].mxu0
        %2719 = vmatprep.mubr.f32.mxu0 0.0
        %2720 = vmatmul.mubr.f32.gmra.mrb[0].mxu0 %v2470
        %v2721 = vpop.f32.mrb[0].mxu0
        %v2722 = vadd.f32 %v2273, %v2721
        %v2723 = vpop.f32.mrb[0].mxu0
        %2724 = vmatprep.mubr.f32.mxu0 0.0
        %2725 = vmatmul.mubr.f32.gmra.mrb[0].mxu0 %v2473
        %v2726 = vpop.f32.mrb[0].mxu0
        %v2727 = vadd.f32 %v2278, %v2726
        %v2728 = vpop.f32.mrb[0].mxu0
        %2729 = vmatprep.mubr.f32.mxu0 0.0
        %2730 = vmatmul.mubr.f32.gmra.mrb[0].mxu0 %v2476
        %v2731 = vpop.f32.mrb[0].mxu0
        %v2732 = vadd.f32 %v2283, %v2731
        %v2733 = vpop.f32.mrb[0].mxu0
        %2734 = vmatprep.mubr.f32.mxu0 0.0
        %2735 = vmatmul.mubr.f32.gmra.mrb[0].mxu0 %v2479
        %v2736 = vpop.f32.mrb[0].mxu0
        %v2737 = vadd.f32 %v2288, %v2736
        %v2738 = vpop.f32.mrb[0].mxu0
        %2739 = vmatprep.mubr.f32.mxu0 0.0
        %2740 = vmatmul.mubr.f32.gmra.mrb[0].mxu0 %v2482
        %v2741 = vpop.f32.mrb[0].mxu0
        %v2742 = vadd.f32 %v2293, %v2741
        %v2743 = vpop.f32.mrb[0].mxu0
        %2744 = vmatprep.mubr.f32.mxu0 0.0
        %2745 = vmatmul.mubr.f32.gmra.mrb[0].mxu0 %v2485
        %v2746 = vpop.f32.mrb[0].mxu0
        %v2747 = vadd.f32 %v2298, %v2746
        %v2748 = vpop.f32.mrb[0].mxu0
        %2749 = vmatprep.mubr.f32.mxu0 0.0
        %2750 = vmatmul.mubr.f32.gmra.mrb[0].mxu0 %v2488
        %v2751 = vpop.f32.mrb[0].mxu0
        %v2752 = vadd.f32 %v2303, %v2751
        %v2753 = vpop.f32.mrb[0].mxu0
        %2754 = vmatprep.mubr.f32.mxu0 0.0
        %2755 = vmatmul.mubr.f32.gmra.mrb[0].mxu0 %v2491
        %v2756 = vpop.f32.mrb[0].mxu0
        %v2757 = vadd.f32 %v2308, %v2756
        %v2758 = vpop.f32.mrb[0].mxu0
        %2759 = vmatprep.mubr.f32.mxu0 0.0
        %2760 = vmatmul.mubr.f32.gmra.mrb[0].mxu0 %v2494
        %v2761 = vpop.f32.mrb[0].mxu0
        %v2762 = vadd.f32 %v2313, %v2761
        %v2763 = vpop.f32.mrb[0].mxu0
        %2764 = vmatprep.mubr.f32.mxu0 0.0
        %2765 = vmatmul.mubr.f32.gmra.mrb[0].mxu0 %v2497
        %v2766 = vpop.f32.mrb[0].mxu0
        %v2767 = vadd.f32 %v2318, %v2766
        %v2768 = vpop.f32.mrb[0].mxu0
        %2769 = vmatprep.mubr.f32.mxu0 0.0
        %2770 = vmatmul.mubr.f32.gmra.mrb[0].mxu0 %v2500
        %v2771 = vpop.f32.mrb[0].mxu0
        %v2772 = vadd.f32 %v2323, %v2771
        %v2773 = vpop.f32.mrb[0].mxu0
        %2774 = vmatprep.mubr.f32.mxu0 0.0
        %2775 = vmatmul.mubr.f32.gmra.mrb[0].mxu0 %v2503
        %v2776 = vpop.f32.mrb[0].mxu0
        %v2777 = vadd.f32 %v2328, %v2776
        %v2778 = vpop.f32.mrb[0].mxu0
        %2779 = vmatprep.mubr.f32.mxu0 0.0
        %2780 = vmatmul.mubr.f32.gmra.mrb[0].mxu0 %v2506
        %v2781 = vpop.f32.mrb[0].mxu0
        %v2782 = vadd.f32 %v2333, %v2781
        %v2783 = vpop.f32.mrb[0].mxu0
        %2784 = vmatprep.mubr.f32.mxu0 0.0
        %2785 = vmatmul.mubr.f32.gmra.mrb[0].mxu0 %v2509
        %v2786 = vpop.f32.mrb[0].mxu0
        %v2787 = vadd.f32 %v2338, %v2786
        %v2788 = vpop.f32.mrb[0].mxu0
        %2789 = vmatprep.mubr.f32.mxu0 0.0
        %2790 = vmatmul.mubr.f32.gmra.mrb[0].mxu0 %v2512
        %v2791 = vpop.f32.mrb[0].mxu0
        %v2792 = vadd.f32 %v2343, %v2791
        %v2793 = vpop.f32.mrb[0].mxu0
        %2794 = vmatprep.mubr.f32.mxu0 0.0
        %2795 = vmatmul.mubr.f32.gmra.mrb[0].mxu0 %v2515
        %v2796 = vpop.f32.mrb[0].mxu0
        %v2797 = vadd.f32 %v2348, %v2796
        %v2798 = vpop.f32.mrb[0].mxu0
        %2799 = vmatprep.mubr.f32.mxu0 0.0
        %2800 = vmatmul.mubr.f32.gmra.mrb[0].mxu0 %v2518
        %v2801 = vpop.f32.mrb[0].mxu0
        %v2802 = vadd.f32 %v2353, %v2801
        %v2803 = vpop.f32.mrb[0].mxu0
        %2804 = vmatprep.mubr.f32.mxu0 0.0
        %2805 = vmatmul.mubr.f32.gmra.mrb[0].mxu0 %v2521
        %v2806 = vpop.f32.mrb[0].mxu0
        %v2807 = vadd.f32 %v2358, %v2806
        %v2808 = vpop.f32.mrb[0].mxu0
        %2809 = vmatprep.mubr.f32.mxu0 0.0
        %2810 = vmatmul.mubr.f32.gmra.mrb[0].mxu0 %v2524
        %v2811 = vpop.f32.mrb[0].mxu0
        %v2812 = vadd.f32 %v2363, %v2811
        %v2813 = vpop.f32.mrb[0].mxu0
        %2814 = vmatprep.mubr.f32.mxu0 0.0
        %2815 = vmatmul.mubr.f32.gmra.mrb[0].mxu0 %v2527
        %v2816 = vpop.f32.mrb[0].mxu0
        %v2817 = vadd.f32 %v2368, %v2816
        %v2818 = vpop.f32.mrb[0].mxu0
        %2819 = vmatprep.mubr.f32.mxu0 0.0
        %2820 = vmatmul.mubr.f32.gmra.mrb[0].mxu0 %v2530
        %v2821 = vpop.f32.mrb[0].mxu0
        %v2822 = vadd.f32 %v2373, %v2821
        %v2823 = vpop.f32.mrb[0].mxu0
        %2824 = vmatprep.mubr.f32.mxu0 0.0
        %2825 = vmatmul.mubr.f32.gmra.mrb[0].mxu0 %v2533
        %v2826 = vpop.f32.mrb[0].mxu0
        %v2827 = vadd.f32 %v2378, %v2826
        %v2828 = vpop.f32.mrb[0].mxu0
        %2829 = vmatprep.mubr.f32.mxu0 0.0
        %2830 = vmatmul.mubr.f32.gmra.mrb[0].mxu0 %v2536
        %v2831 = vpop.f32.mrb[0].mxu0
        %v2832 = vadd.f32 %v2383, %v2831
        %v2833 = vpop.f32.mrb[0].mxu0
        %2834 = vmatprep.mubr.f32.mxu0 0.0
        %2835 = vmatmul.mubr.f32.gmra.mrb[0].mxu0 %v2539
        %v2836 = vpop.f32.mrb[0].mxu0
        %v2837 = vadd.f32 %v2388, %v2836
        %v2838 = vpop.f32.mrb[0].mxu0
        %2839 = vmatprep.mubr.f32.mxu0 0.0
        %2840 = vmatmul.mubr.f32.gmra.mrb[0].mxu0 %v2542
        %v2841 = vpop.f32.mrb[0].mxu0
        %v2842 = vadd.f32 %v2393, %v2841
        %v2843 = vpop.f32.mrb[0].mxu0
        %2844 = vmatprep.mubr.f32.mxu0 0.0
        %2845 = vmatmul.mubr.f32.gmra.mrb[0].mxu0 %v2545
        %v2846 = vpop.f32.mrb[0].mxu0
        %v2847 = vadd.f32 %v2398, %v2846
        %v2848 = vpop.f32.mrb[0].mxu0
        %2849 = vmatprep.mubr.f32.mxu0 0.0
        %2850 = vmatmul.mubr.f32.gmra.mrb[0].mxu0 %v2548
        %v2851 = vpop.f32.mrb[0].mxu0
        %v2852 = vadd.f32 %v2403, %v2851
        %v2853 = vpop.f32.mrb[0].mxu0
        %2854 = vdwg.mxu0
        %v2855 = vld [vmem:[%s750] sm:$0x1]
        %v2857 = vlaneseq
        %v2858 = vshrl.u32 %v2857, 7
        %v2859 = vsub.s32 0, %v2858
        %v2860 = vrot.slane %v2855, %v2859
        %v2862 = vadd.f32 %v2617, %v2860
        %v2863 = vadd.f32 %v2622, %v2860
        %v2864 = vadd.f32 %v2627, %v2860
        %v2865 = vadd.f32 %v2632, %v2860
        %v2866 = vadd.f32 %v2637, %v2860
        %v2867 = vadd.f32 %v2642, %v2860
        %v2868 = vadd.f32 %v2647, %v2860
        %v2869 = vadd.f32 %v2652, %v2860
        %v2870 = vadd.f32 %v2657, %v2860
        %v2871 = vadd.f32 %v2662, %v2860
        %v2872 = vadd.f32 %v2667, %v2860
        %v2873 = vadd.f32 %v2672, %v2860
        %v2874 = vadd.f32 %v2677, %v2860
        %v2875 = vadd.f32 %v2682, %v2860
        %v2876 = vadd.f32 %v2687, %v2860
        %v2877 = vadd.f32 %v2692, %v2860
        %v2878 = vadd.f32 %v2697, %v2860
        %v2879 = vadd.f32 %v2702, %v2860
        %v2880 = vadd.f32 %v2707, %v2860
        %v2881 = vadd.f32 %v2712, %v2860
        %v2882 = vadd.f32 %v2717, %v2860
        %v2883 = vadd.f32 %v2722, %v2860
        %v2884 = vadd.f32 %v2727, %v2860
        %v2885 = vadd.f32 %v2732, %v2860
        %v2886 = vadd.f32 %v2737, %v2860
        %v2887 = vadd.f32 %v2742, %v2860
        %v2888 = vadd.f32 %v2747, %v2860
        %v2889 = vadd.f32 %v2752, %v2860
        %v2890 = vadd.f32 %v2757, %v2860
        %v2891 = vadd.f32 %v2762, %v2860
        %v2892 = vadd.f32 %v2767, %v2860
        %v2893 = vadd.f32 %v2772, %v2860
        %v2894 = vadd.f32 %v2777, %v2860
        %v2895 = vadd.f32 %v2782, %v2860
        %v2896 = vadd.f32 %v2787, %v2860
        %v2897 = vadd.f32 %v2792, %v2860
        %v2898 = vadd.f32 %v2797, %v2860
        %v2899 = vadd.f32 %v2802, %v2860
        %v2900 = vadd.f32 %v2807, %v2860
        %v2901 = vadd.f32 %v2812, %v2860
        %v2902 = vadd.f32 %v2817, %v2860
        %v2903 = vadd.f32 %v2822, %v2860
        %v2904 = vadd.f32 %v2827, %v2860
        %v2905 = vadd.f32 %v2832, %v2860
        %v2906 = vadd.f32 %v2837, %v2860
        %v2907 = vadd.f32 %v2842, %v2860
        %v2908 = vadd.f32 %v2847, %v2860
        %v2909 = vadd.f32 %v2852, %v2860
        %v2910 = vmax.f32 %v2862, 0.0
        %v2911 = vmax.f32 %v2863, 0.0
        %v2912 = vmax.f32 %v2864, 0.0
        %v2913 = vmax.f32 %v2865, 0.0
        %v2914 = vmax.f32 %v2866, 0.0
        %v2915 = vmax.f32 %v2867, 0.0
        %v2916 = vmax.f32 %v2868, 0.0
        %v2917 = vmax.f32 %v2869, 0.0
        %v2918 = vmax.f32 %v2870, 0.0
        %v2919 = vmax.f32 %v2871, 0.0
        %v2920 = vmax.f32 %v2872, 0.0
        %v2921 = vmax.f32 %v2873, 0.0
        %v2922 = vmax.f32 %v2874, 0.0
        %v2923 = vmax.f32 %v2875, 0.0
        %v2924 = vmax.f32 %v2876, 0.0
        %v2925 = vmax.f32 %v2877, 0.0
        %v2926 = vmax.f32 %v2878, 0.0
        %v2927 = vmax.f32 %v2879, 0.0
        %v2928 = vmax.f32 %v2880, 0.0
        %v2929 = vmax.f32 %v2881, 0.0
        %v2930 = vmax.f32 %v2882, 0.0
        %v2931 = vmax.f32 %v2883, 0.0
        %v2932 = vmax.f32 %v2884, 0.0
        %v2933 = vmax.f32 %v2885, 0.0
        %v2934 = vmax.f32 %v2886, 0.0
        %v2935 = vmax.f32 %v2887, 0.0
        %v2936 = vmax.f32 %v2888, 0.0
        %v2937 = vmax.f32 %v2889, 0.0
        %v2938 = vmax.f32 %v2890, 0.0
        %v2939 = vmax.f32 %v2891, 0.0
        %v2940 = vmax.f32 %v2892, 0.0
        %v2941 = vmax.f32 %v2893, 0.0
        %v2942 = vmax.f32 %v2894, 0.0
        %v2943 = vmax.f32 %v2895, 0.0
        %v2944 = vmax.f32 %v2896, 0.0
        %v2945 = vmax.f32 %v2897, 0.0
        %v2946 = vmax.f32 %v2898, 0.0
        %v2947 = vmax.f32 %v2899, 0.0
        %v2948 = vmax.f32 %v2900, 0.0
        %v2949 = vmax.f32 %v2901, 0.0
        %v2950 = vmax.f32 %v2902, 0.0
        %v2951 = vmax.f32 %v2903, 0.0
        %v2952 = vmax.f32 %v2904, 0.0
        %v2953 = vmax.f32 %v2905, 0.0
        %v2954 = vmax.f32 %v2906, 0.0
        %v2955 = vmax.f32 %v2907, 0.0
        %v2956 = vmax.f32 %v2908, 0.0
        %v2957 = vmax.f32 %v2909, 0.0
        %vm2958 = vcmp.ge.s32.totalorder %v949, 128
        %vm2959 = vcmp.ge.s32.totalorder %v950, 128
        %vm2960 = vcmp.ge.s32.totalorder %v951, 128
        %vm2961 = vcmp.ge.s32.totalorder %v952, 128
        %vm2962 = vcmp.ge.s32.totalorder %v953, 128
        %vm2963 = vcmp.ge.s32.totalorder %v954, 128
        %vm2964 = vcmp.ge.s32.totalorder %v955, 128
        %vm2965 = vcmp.ge.s32.totalorder %v956, 128
        %vm2966 = vcmp.ge.s32.totalorder %v957, 128
        %vm2967 = vcmp.ge.s32.totalorder %v958, 128
        %vm2968 = vcmp.ge.s32.totalorder %v959, 128
        %vm2969 = vcmp.ge.s32.totalorder %v960, 128
        %vm2970 = vcmp.ge.s32.totalorder %v961, 128
        %vm2971 = vcmp.ge.s32.totalorder %v962, 128
        %vm2972 = vcmp.ge.s32.totalorder %v963, 128
        %vm2973 = vcmp.ge.s32.totalorder %v964, 128
        %vm2974 = vcmp.ge.s32.totalorder %v965, 128
        %vm2975 = vcmp.ge.s32.totalorder %v966, 128
        %vm2976 = vcmp.ge.s32.totalorder %v967, 128
        %vm2977 = vcmp.ge.s32.totalorder %v968, 128
        %vm2978 = vcmp.ge.s32.totalorder %v969, 128
        %vm2979 = vcmp.ge.s32.totalorder %v970, 128
        %vm2980 = vcmp.ge.s32.totalorder %v971, 128
        %vm2981 = vcmp.ge.s32.totalorder %v972, 128
        %vm2982 = vcmp.ge.s32.totalorder %v973, 128
        %vm2983 = vcmp.ge.s32.totalorder %v974, 128
        %vm2984 = vcmp.ge.s32.totalorder %v975, 128
        %vm2985 = vcmp.ge.s32.totalorder %v976, 128
        %vm2986 = vcmp.ge.s32.totalorder %v977, 128
        %vm2987 = vcmp.ge.s32.totalorder %v978, 128
        %vm2988 = vcmp.ge.s32.totalorder %v979, 128
        %vm2989 = vcmp.ge.s32.totalorder %v980, 128
        %vm2990 = vcmp.ge.s32.totalorder %v981, 128
        %vm2991 = vcmp.ge.s32.totalorder %v982, 128
        %vm2992 = vcmp.ge.s32.totalorder %v983, 128
        %vm2993 = vcmp.ge.s32.totalorder %v984, 128
        %vm2994 = vcmp.ge.s32.totalorder %v985, 128
        %vm2995 = vcmp.ge.s32.totalorder %v986, 128
        %vm2996 = vcmp.ge.s32.totalorder %v987, 128
        %vm2997 = vcmp.ge.s32.totalorder %v988, 128
        %vm2998 = vcmp.ge.s32.totalorder %v989, 128
        %vm2999 = vcmp.ge.s32.totalorder %v990, 128
        %vm3000 = vcmp.ge.s32.totalorder %v991, 128
        %vm3001 = vcmp.ge.s32.totalorder %v992, 128
        %vm3002 = vcmp.ge.s32.totalorder %v993, 128
        %vm3003 = vcmp.ge.s32.totalorder %v994, 128
        %vm3004 = vcmp.ge.s32.totalorder %v995, 128
        %vm3005 = vcmp.ge.s32.totalorder %v996, 128
        %v3006 = vsel %vm2958, %v2942, 0.0
        %v3007 = vsel %vm2959, %v2943, 0.0
        %v3008 = vsel %vm2960, %v2944, 0.0
        %v3009 = vsel %vm2961, %v2945, 0.0
        %v3010 = vsel %vm2962, %v2946, 0.0
        %v3011 = vsel %vm2963, %v2947, 0.0
        %v3012 = vsel %vm2964, %v2948, 0.0
        %v3013 = vsel %vm2965, %v2949, 0.0
        %v3014 = vsel %vm2966, %v2950, 0.0
        %v3015 = vsel %vm2967, %v2951, 0.0
        %v3016 = vsel %vm2968, %v2952, 0.0
        %v3017 = vsel %vm2969, %v2953, 0.0
        %v3018 = vsel %vm2970, %v2954, 0.0
        %v3019 = vsel %vm2971, %v2955, 0.0
        %v3020 = vsel %vm2972, %v2956, 0.0
        %v3021 = vsel %vm2973, %v2957, 0.0
        %v3022 = vsel %vm2974, %v2910, 0.0
        %v3023 = vsel %vm2975, %v2911, 0.0
        %v3024 = vsel %vm2976, %v2912, 0.0
        %v3025 = vsel %vm2977, %v2913, 0.0
        %v3026 = vsel %vm2978, %v2914, 0.0
        %v3027 = vsel %vm2979, %v2915, 0.0
        %v3028 = vsel %vm2980, %v2916, 0.0
        %v3029 = vsel %vm2981, %v2917, 0.0
        %v3030 = vsel %vm2982, %v2918, 0.0
        %v3031 = vsel %vm2983, %v2919, 0.0
        %v3032 = vsel %vm2984, %v2920, 0.0
        %v3033 = vsel %vm2985, %v2921, 0.0
        %v3034 = vsel %vm2986, %v2922, 0.0
        %v3035 = vsel %vm2987, %v2923, 0.0
        %v3036 = vsel %vm2988, %v2924, 0.0
        %v3037 = vsel %vm2989, %v2925, 0.0
        %v3038 = vsel %vm2990, %v2926, 0.0
        %v3039 = vsel %vm2991, %v2927, 0.0
        %v3040 = vsel %vm2992, %v2928, 0.0
        %v3041 = vsel %vm2993, %v2929, 0.0
        %v3042 = vsel %vm2994, %v2930, 0.0
        %v3043 = vsel %vm2995, %v2931, 0.0
        %v3044 = vsel %vm2996, %v2932, 0.0
        %v3045 = vsel %vm2997, %v2933, 0.0
        %v3046 = vsel %vm2998, %v2934, 0.0
        %v3047 = vsel %vm2999, %v2935, 0.0
        %v3048 = vsel %vm3000, %v2936, 0.0
        %v3049 = vsel %vm3001, %v2937, 0.0
        %v3050 = vsel %vm3002, %v2938, 0.0
        %v3051 = vsel %vm3003, %v2939, 0.0
        %v3052 = vsel %vm3004, %v2940, 0.0
        %v3053 = vsel %vm3005, %v2941, 0.0
        %v3054 = vld [vmem:[%s759] sm:$0xff]
        %v3055 = vld [vmem:[%s759 + $0x8] sm:$0xff]
        %v3056 = vld [vmem:[%s759 + $0x10] sm:$0xff]
        %v3057 = vld [vmem:[%s759 + $0x18] sm:$0xff]
        %v3058 = vld [vmem:[%s768] sm:$0xff]
        %v3059 = vld [vmem:[%s768 + $0x8] sm:$0xff]
        %v3060 = vld [vmem:[%s768 + $0x10] sm:$0xff]
        %v3061 = vld [vmem:[%s768 + $0x18] sm:$0xff]
        %vm3062 = vcmask 261120
        %v3064 = vsel %vm3062, %v2910, 0
        %v3067 = vsel %vm3062, %v2911, 0
        %v3070 = vsel %vm3062, %v2912, 0
        %v3073 = vsel %vm3062, %v2913, 0
        %v3076 = vsel %vm3062, %v2914, 0
        %v3079 = vsel %vm3062, %v2915, 0
        %v3082 = vsel %vm3062, %v2916, 0
        %v3085 = vsel %vm3062, %v2917, 0
        %v3088 = vsel %vm3062, %v2918, 0
        %v3091 = vsel %vm3062, %v2919, 0
        %v3094 = vsel %vm3062, %v2920, 0
        %v3097 = vsel %vm3062, %v2921, 0
        %v3100 = vsel %vm3062, %v2922, 0
        %v3103 = vsel %vm3062, %v2923, 0
        %v3106 = vsel %vm3062, %v2924, 0
        %v3109 = vsel %vm3062, %v2925, 0
        %v3112 = vsel %vm3062, %v2926, 0
        %v3115 = vsel %vm3062, %v2927, 0
        %v3118 = vsel %vm3062, %v2928, 0
        %v3121 = vsel %vm3062, %v2929, 0
        %v3124 = vsel %vm3062, %v2930, 0
        %v3127 = vsel %vm3062, %v2931, 0
        %v3130 = vsel %vm3062, %v2932, 0
        %v3133 = vsel %vm3062, %v2933, 0
        %v3136 = vsel %vm3062, %v2934, 0
        %v3139 = vsel %vm3062, %v2935, 0
        %v3142 = vsel %vm3062, %v2936, 0
        %v3145 = vsel %vm3062, %v2937, 0
        %v3148 = vsel %vm3062, %v2938, 0
        %v3151 = vsel %vm3062, %v2939, 0
        %v3154 = vsel %vm3062, %v2940, 0
        %v3157 = vsel %vm3062, %v2941, 0
        %v3160 = vsel %vm3062, %v2942, 0
        %v3163 = vsel %vm3062, %v2943, 0
        %v3166 = vsel %vm3062, %v2944, 0
        %v3169 = vsel %vm3062, %v2945, 0
        %v3172 = vsel %vm3062, %v2946, 0
        %v3175 = vsel %vm3062, %v2947, 0
        %v3178 = vsel %vm3062, %v2948, 0
        %v3181 = vsel %vm3062, %v2949, 0
        %v3184 = vsel %vm3062, %v2950, 0
        %v3187 = vsel %vm3062, %v2951, 0
        %v3190 = vsel %vm3062, %v2952, 0
        %v3193 = vsel %vm3062, %v2953, 0
        %v3196 = vsel %vm3062, %v2954, 0
        %v3199 = vsel %vm3062, %v2955, 0
        %v3202 = vsel %vm3062, %v2956, 0
        %v3205 = vsel %vm3062, %v2957, 0
        %3207 = vmatprep.subr.mxu0 0.0
        %3208 = vmatpush1.msra.mxu0 %v3058
        %3209 = vmatprep.subr.mxu0 0.0
        %3210 = vmatpush1.msra.mxu0 %v3059
        %3211 = vmatprep.subr.mxu0 0.0
        %3212 = vmatpush1.msra.mxu0 %v3060
        %3213 = vmatprep.subr.mxu0 0.0
        %3214 = vmatpush1.msra.mxu0 %v3061
        %3215 = vmatprep.subr.mxu0 0.0
        %3216 = vmatpush1.msra.mxu0 0.0
        %3217 = vmatprep.subr.mxu0 0.0
        %3218 = vmatpush1.msra.mxu0 0.0
        %3219 = vmatprep.subr.mxu0 0.0
        %3220 = vmatpush1.msra.mxu0 0.0
        %3221 = vmatprep.subr.mxu0 0.0
        %3222 = vmatpush1.msra.mxu0 0.0
        %3223 = vmatprep.subr.mxu0 0.0
        %3224 = vmatpush1.msra.mxu0 0.0
        %3225 = vmatprep.subr.mxu0 0.0
        %3226 = vmatpush1.msra.mxu0 0.0
        %3227 = vmatprep.subr.mxu0 0.0
        %3228 = vmatpush1.msra.mxu0 0.0
        %3229 = vmatprep.subr.mxu0 0.0
        %3230 = vmatpush1.msra.mxu0 0.0
        %3231 = vmatprep.subr.mxu0 0.0
        %3232 = vmatpush1.msra.mxu0 0.0
        %3233 = vmatprep.subr.mxu0 0.0
        %3234 = vmatpush1.msra.mxu0 0.0
        %3235 = vmatprep.subr.mxu0 0.0
        %3236 = vmatpush1.msra.mxu0 0.0
        %3237 = vmatprep.subr.mxu0 0.0
        %3238 = vmatpush1.msra.mxu0 0.0
        %3239 = vmatprep.subr.mxu0 0.0
        %3240 = vmatpush1.msra.mxu0 0.0
        %3241 = vmatprep.subr.mxu0 0.0
        %3242 = vmatpush1.msra.mxu0 0.0
        %3243 = vmatprep.subr.mxu0 0.0
        %3244 = vmatpush1.msra.mxu0 0.0
        %3245 = vmatprep.subr.mxu0 0.0
        %3246 = vmatpush1.msra.mxu0 0.0
        %3247 = vmatprep.subr.mxu0 0.0
        %3248 = vmatpush1.msra.mxu0 0.0
        %3249 = vmatprep.subr.mxu0 0.0
        %3250 = vmatpush1.msra.mxu0 0.0
        %3251 = vmatprep.subr.mxu0 0.0
        %3252 = vmatpush1.msra.mxu0 0.0
        %3253 = vmatprep.subr.mxu0 0.0
        %3254 = vmatpush1.msra.mxu0 0.0
        %3255 = vmatprep.subr.mxu0 0.0
        %3256 = vmatpush1.msra.mxu0 0.0
        %3257 = vmatprep.subr.mxu0 0.0
        %3258 = vmatpush1.msra.mxu0 0.0
        %3259 = vmatprep.subr.mxu0 0.0
        %3260 = vmatpush1.msra.mxu0 0.0
        %3261 = vmatprep.subr.mxu0 0.0
        %3262 = vmatpush1.msra.mxu0 0.0
        %3263 = vmatprep.subr.mxu0 0.0
        %3264 = vmatpush1.msra.mxu0 0.0
        %3265 = vmatprep.subr.mxu0 0.0
        %3266 = vmatpush1.msra.mxu0 0.0
        %3267 = vmatprep.subr.mxu0 0.0
        %3268 = vmatpush1.msra.mxu0 0.0
        %3269 = vmatprep.subr.mxu0 0.0
        %3270 = vmatpush1.msra.mxu0 0.0
        %3271 = vmatprep.mubr.f32.mxu0 0.0
        %3272 = vmatmul.mubr.f32.gmra.mrb[0].mxu0 %v3064
        %v3273 = vpop.f32.mrb[0].mxu0
        %v3274 = vadd.f32 0.0, %v3273
        %v3275 = vpop.f32.mrb[0].mxu0
        %3276 = vmatprep.mubr.f32.mxu0 0.0
        %3277 = vmatmul.mubr.f32.gmra.mrb[0].mxu0 %v3067
        %v3278 = vpop.f32.mrb[0].mxu0
        %v3279 = vadd.f32 0.0, %v3278
        %v3280 = vpop.f32.mrb[0].mxu0
        %3281 = vmatprep.mubr.f32.mxu0 0.0
        %3282 = vmatmul.mubr.f32.gmra.mrb[0].mxu0 %v3070
        %v3283 = vpop.f32.mrb[0].mxu0
        %v3284 = vadd.f32 0.0, %v3283
        %v3285 = vpop.f32.mrb[0].mxu0
        %3286 = vmatprep.mubr.f32.mxu0 0.0
        %3287 = vmatmul.mubr.f32.gmra.mrb[0].mxu0 %v3073
        %v3288 = vpop.f32.mrb[0].mxu0
        %v3289 = vadd.f32 0.0, %v3288
        %v3290 = vpop.f32.mrb[0].mxu0
        %3291 = vmatprep.mubr.f32.mxu0 0.0
        %3292 = vmatmul.mubr.f32.gmra.mrb[0].mxu0 %v3076
        %v3293 = vpop.f32.mrb[0].mxu0
        %v3294 = vadd.f32 0.0, %v3293
        %v3295 = vpop.f32.mrb[0].mxu0
        %3296 = vmatprep.mubr.f32.mxu0 0.0
        %3297 = vmatmul.mubr.f32.gmra.mrb[0].mxu0 %v3079
        %v3298 = vpop.f32.mrb[0].mxu0
        %v3299 = vadd.f32 0.0, %v3298
        %v3300 = vpop.f32.mrb[0].mxu0
        %3301 = vmatprep.mubr.f32.mxu0 0.0
        %3302 = vmatmul.mubr.f32.gmra.mrb[0].mxu0 %v3082
        %v3303 = vpop.f32.mrb[0].mxu0
        %v3304 = vadd.f32 0.0, %v3303
        %v3305 = vpop.f32.mrb[0].mxu0
        %3306 = vmatprep.mubr.f32.mxu0 0.0
        %3307 = vmatmul.mubr.f32.gmra.mrb[0].mxu0 %v3085
        %v3308 = vpop.f32.mrb[0].mxu0
        %v3309 = vadd.f32 0.0, %v3308
        %v3310 = vpop.f32.mrb[0].mxu0
        %3311 = vmatprep.mubr.f32.mxu0 0.0
        %3312 = vmatmul.mubr.f32.gmra.mrb[0].mxu0 %v3088
        %v3313 = vpop.f32.mrb[0].mxu0
        %v3314 = vadd.f32 0.0, %v3313
        %v3315 = vpop.f32.mrb[0].mxu0
        %3316 = vmatprep.mubr.f32.mxu0 0.0
        %3317 = vmatmul.mubr.f32.gmra.mrb[0].mxu0 %v3091
        %v3318 = vpop.f32.mrb[0].mxu0
        %v3319 = vadd.f32 0.0, %v3318
        %v3320 = vpop.f32.mrb[0].mxu0
        %3321 = vmatprep.mubr.f32.mxu0 0.0
        %3322 = vmatmul.mubr.f32.gmra.mrb[0].mxu0 %v3094
        %v3323 = vpop.f32.mrb[0].mxu0
        %v3324 = vadd.f32 0.0, %v3323
        %v3325 = vpop.f32.mrb[0].mxu0
        %3326 = vmatprep.mubr.f32.mxu0 0.0
        %3327 = vmatmul.mubr.f32.gmra.mrb[0].mxu0 %v3097
        %v3328 = vpop.f32.mrb[0].mxu0
        %v3329 = vadd.f32 0.0, %v3328
        %v3330 = vpop.f32.mrb[0].mxu0
        %3331 = vmatprep.mubr.f32.mxu0 0.0
        %3332 = vmatmul.mubr.f32.gmra.mrb[0].mxu0 %v3100
        %v3333 = vpop.f32.mrb[0].mxu0
        %v3334 = vadd.f32 0.0, %v3333
        %v3335 = vpop.f32.mrb[0].mxu0
        %3336 = vmatprep.mubr.f32.mxu0 0.0
        %3337 = vmatmul.mubr.f32.gmra.mrb[0].mxu0 %v3103
        %v3338 = vpop.f32.mrb[0].mxu0
        %v3339 = vadd.f32 0.0, %v3338
        %v3340 = vpop.f32.mrb[0].mxu0
        %3341 = vmatprep.mubr.f32.mxu0 0.0
        %3342 = vmatmul.mubr.f32.gmra.mrb[0].mxu0 %v3106
        %v3343 = vpop.f32.mrb[0].mxu0
        %v3344 = vadd.f32 0.0, %v3343
        %v3345 = vpop.f32.mrb[0].mxu0
        %3346 = vmatprep.mubr.f32.mxu0 0.0
        %3347 = vmatmul.mubr.f32.gmra.mrb[0].mxu0 %v3109
        %v3348 = vpop.f32.mrb[0].mxu0
        %v3349 = vadd.f32 0.0, %v3348
        %v3350 = vpop.f32.mrb[0].mxu0
        %3351 = vmatprep.mubr.f32.mxu0 0.0
        %3352 = vmatmul.mubr.f32.gmra.mrb[0].mxu0 %v3112
        %v3353 = vpop.f32.mrb[0].mxu0
        %v3354 = vadd.f32 0.0, %v3353
        %v3355 = vpop.f32.mrb[0].mxu0
        %3356 = vmatprep.mubr.f32.mxu0 0.0
        %3357 = vmatmul.mubr.f32.gmra.mrb[0].mxu0 %v3115
        %v3358 = vpop.f32.mrb[0].mxu0
        %v3359 = vadd.f32 0.0, %v3358
        %v3360 = vpop.f32.mrb[0].mxu0
        %3361 = vmatprep.mubr.f32.mxu0 0.0
        %3362 = vmatmul.mubr.f32.gmra.mrb[0].mxu0 %v3118
        %v3363 = vpop.f32.mrb[0].mxu0
        %v3364 = vadd.f32 0.0, %v3363
        %v3365 = vpop.f32.mrb[0].mxu0
        %3366 = vmatprep.mubr.f32.mxu0 0.0
        %3367 = vmatmul.mubr.f32.gmra.mrb[0].mxu0 %v3121
        %v3368 = vpop.f32.mrb[0].mxu0
        %v3369 = vadd.f32 0.0, %v3368
        %v3370 = vpop.f32.mrb[0].mxu0
        %3371 = vmatprep.mubr.f32.mxu0 0.0
        %3372 = vmatmul.mubr.f32.gmra.mrb[0].mxu0 %v3124
        %v3373 = vpop.f32.mrb[0].mxu0
        %v3374 = vadd.f32 0.0, %v3373
        %v3375 = vpop.f32.mrb[0].mxu0
        %3376 = vmatprep.mubr.f32.mxu0 0.0
        %3377 = vmatmul.mubr.f32.gmra.mrb[0].mxu0 %v3127
        %v3378 = vpop.f32.mrb[0].mxu0
        %v3379 = vadd.f32 0.0, %v3378
        %v3380 = vpop.f32.mrb[0].mxu0
        %3381 = vmatprep.mubr.f32.mxu0 0.0
        %3382 = vmatmul.mubr.f32.gmra.mrb[0].mxu0 %v3130
        %v3383 = vpop.f32.mrb[0].mxu0
        %v3384 = vadd.f32 0.0, %v3383
        %v3385 = vpop.f32.mrb[0].mxu0
        %3386 = vmatprep.mubr.f32.mxu0 0.0
        %3387 = vmatmul.mubr.f32.gmra.mrb[0].mxu0 %v3133
        %v3388 = vpop.f32.mrb[0].mxu0
        %v3389 = vadd.f32 0.0, %v3388
        %v3390 = vpop.f32.mrb[0].mxu0
        %3391 = vmatprep.mubr.f32.mxu0 0.0
        %3392 = vmatmul.mubr.f32.gmra.mrb[0].mxu0 %v3136
        %v3393 = vpop.f32.mrb[0].mxu0
        %v3394 = vadd.f32 0.0, %v3393
        %v3395 = vpop.f32.mrb[0].mxu0
        %3396 = vmatprep.mubr.f32.mxu0 0.0
        %3397 = vmatmul.mubr.f32.gmra.mrb[0].mxu0 %v3139
        %v3398 = vpop.f32.mrb[0].mxu0
        %v3399 = vadd.f32 0.0, %v3398
        %v3400 = vpop.f32.mrb[0].mxu0
        %3401 = vmatprep.mubr.f32.mxu0 0.0
        %3402 = vmatmul.mubr.f32.gmra.mrb[0].mxu0 %v3142
        %v3403 = vpop.f32.mrb[0].mxu0
        %v3404 = vadd.f32 0.0, %v3403
        %v3405 = vpop.f32.mrb[0].mxu0
        %3406 = vmatprep.mubr.f32.mxu0 0.0
        %3407 = vmatmul.mubr.f32.gmra.mrb[0].mxu0 %v3145
        %v3408 = vpop.f32.mrb[0].mxu0
        %v3409 = vadd.f32 0.0, %v3408
        %v3410 = vpop.f32.mrb[0].mxu0
        %3411 = vmatprep.mubr.f32.mxu0 0.0
        %3412 = vmatmul.mubr.f32.gmra.mrb[0].mxu0 %v3148
        %v3413 = vpop.f32.mrb[0].mxu0
        %v3414 = vadd.f32 0.0, %v3413
        %v3415 = vpop.f32.mrb[0].mxu0
        %3416 = vmatprep.mubr.f32.mxu0 0.0
        %3417 = vmatmul.mubr.f32.gmra.mrb[0].mxu0 %v3151
        %v3418 = vpop.f32.mrb[0].mxu0
        %v3419 = vadd.f32 0.0, %v3418
        %v3420 = vpop.f32.mrb[0].mxu0
        %3421 = vmatprep.mubr.f32.mxu0 0.0
        %3422 = vmatmul.mubr.f32.gmra.mrb[0].mxu0 %v3154
        %v3423 = vpop.f32.mrb[0].mxu0
        %v3424 = vadd.f32 0.0, %v3423
        %v3425 = vpop.f32.mrb[0].mxu0
        %3426 = vmatprep.mubr.f32.mxu0 0.0
        %3427 = vmatmul.mubr.f32.gmra.mrb[0].mxu0 %v3157
        %v3428 = vpop.f32.mrb[0].mxu0
        %v3429 = vadd.f32 0.0, %v3428
        %v3430 = vpop.f32.mrb[0].mxu0
        %3431 = vmatprep.mubr.f32.mxu0 0.0
        %3432 = vmatmul.mubr.f32.gmra.mrb[0].mxu0 %v3160
        %v3433 = vpop.f32.mrb[0].mxu0
        %v3434 = vadd.f32 0.0, %v3433
        %v3435 = vpop.f32.mrb[0].mxu0
        %3436 = vmatprep.mubr.f32.mxu0 0.0
        %3437 = vmatmul.mubr.f32.gmra.mrb[0].mxu0 %v3163
        %v3438 = vpop.f32.mrb[0].mxu0
        %v3439 = vadd.f32 0.0, %v3438
        %v3440 = vpop.f32.mrb[0].mxu0
        %3441 = vmatprep.mubr.f32.mxu0 0.0
        %3442 = vmatmul.mubr.f32.gmra.mrb[0].mxu0 %v3166
        %v3443 = vpop.f32.mrb[0].mxu0
        %v3444 = vadd.f32 0.0, %v3443
        %v3445 = vpop.f32.mrb[0].mxu0
        %3446 = vmatprep.mubr.f32.mxu0 0.0
        %3447 = vmatmul.mubr.f32.gmra.mrb[0].mxu0 %v3169
        %v3448 = vpop.f32.mrb[0].mxu0
        %v3449 = vadd.f32 0.0, %v3448
        %v3450 = vpop.f32.mrb[0].mxu0
        %3451 = vmatprep.mubr.f32.mxu0 0.0
        %3452 = vmatmul.mubr.f32.gmra.mrb[0].mxu0 %v3172
        %v3453 = vpop.f32.mrb[0].mxu0
        %v3454 = vadd.f32 0.0, %v3453
        %v3455 = vpop.f32.mrb[0].mxu0
        %3456 = vmatprep.mubr.f32.mxu0 0.0
        %3457 = vmatmul.mubr.f32.gmra.mrb[0].mxu0 %v3175
        %v3458 = vpop.f32.mrb[0].mxu0
        %v3459 = vadd.f32 0.0, %v3458
        %v3460 = vpop.f32.mrb[0].mxu0
        %3461 = vmatprep.mubr.f32.mxu0 0.0
        %3462 = vmatmul.mubr.f32.gmra.mrb[0].mxu0 %v3178
        %v3463 = vpop.f32.mrb[0].mxu0
        %v3464 = vadd.f32 0.0, %v3463
        %v3465 = vpop.f32.mrb[0].mxu0
        %3466 = vmatprep.mubr.f32.mxu0 0.0
        %3467 = vmatmul.mubr.f32.gmra.mrb[0].mxu0 %v3181
        %v3468 = vpop.f32.mrb[0].mxu0
        %v3469 = vadd.f32 0.0, %v3468
        %v3470 = vpop.f32.mrb[0].mxu0
        %3471 = vmatprep.mubr.f32.mxu0 0.0
        %3472 = vmatmul.mubr.f32.gmra.mrb[0].mxu0 %v3184
        %v3473 = vpop.f32.mrb[0].mxu0
        %v3474 = vadd.f32 0.0, %v3473
        %v3475 = vpop.f32.mrb[0].mxu0
        %3476 = vmatprep.mubr.f32.mxu0 0.0
        %3477 = vmatmul.mubr.f32.gmra.mrb[0].mxu0 %v3187
        %v3478 = vpop.f32.mrb[0].mxu0
        %v3479 = vadd.f32 0.0, %v3478
        %v3480 = vpop.f32.mrb[0].mxu0
        %3481 = vmatprep.mubr.f32.mxu0 0.0
        %3482 = vmatmul.mubr.f32.gmra.mrb[0].mxu0 %v3190
        %v3483 = vpop.f32.mrb[0].mxu0
        %v3484 = vadd.f32 0.0, %v3483
        %v3485 = vpop.f32.mrb[0].mxu0
        %3486 = vmatprep.mubr.f32.mxu0 0.0
        %3487 = vmatmul.mubr.f32.gmra.mrb[0].mxu0 %v3193
        %v3488 = vpop.f32.mrb[0].mxu0
        %v3489 = vadd.f32 0.0, %v3488
        %v3490 = vpop.f32.mrb[0].mxu0
        %3491 = vmatprep.mubr.f32.mxu0 0.0
        %3492 = vmatmul.mubr.f32.gmra.mrb[0].mxu0 %v3196
        %v3493 = vpop.f32.mrb[0].mxu0
        %v3494 = vadd.f32 0.0, %v3493
        %v3495 = vpop.f32.mrb[0].mxu0
        %3496 = vmatprep.mubr.f32.mxu0 0.0
        %3497 = vmatmul.mubr.f32.gmra.mrb[0].mxu0 %v3199
        %v3498 = vpop.f32.mrb[0].mxu0
        %v3499 = vadd.f32 0.0, %v3498
        %v3500 = vpop.f32.mrb[0].mxu0
        %3501 = vmatprep.mubr.f32.mxu0 0.0
        %3502 = vmatmul.mubr.f32.gmra.mrb[0].mxu0 %v3202
        %v3503 = vpop.f32.mrb[0].mxu0
        %v3504 = vadd.f32 0.0, %v3503
        %v3505 = vpop.f32.mrb[0].mxu0
        %3506 = vmatprep.mubr.f32.mxu0 0.0
        %3507 = vmatmul.mubr.f32.gmra.mrb[0].mxu0 %v3205
        %v3508 = vpop.f32.mrb[0].mxu0
        %v3509 = vadd.f32 0.0, %v3508
        %v3510 = vpop.f32.mrb[0].mxu0
        %3511 = vdwg.mxu0
        %v3513 = vsel %vm3062, %v3006, 0
        %v3516 = vsel %vm3062, %v3007, 0
        %v3519 = vsel %vm3062, %v3008, 0
        %v3522 = vsel %vm3062, %v3009, 0
        %v3525 = vsel %vm3062, %v3010, 0
        %v3528 = vsel %vm3062, %v3011, 0
        %v3531 = vsel %vm3062, %v3012, 0
        %v3534 = vsel %vm3062, %v3013, 0
        %v3537 = vsel %vm3062, %v3014, 0
        %v3540 = vsel %vm3062, %v3015, 0
        %v3543 = vsel %vm3062, %v3016, 0
        %v3546 = vsel %vm3062, %v3017, 0
        %v3549 = vsel %vm3062, %v3018, 0
        %v3552 = vsel %vm3062, %v3019, 0
        %v3555 = vsel %vm3062, %v3020, 0
        %v3558 = vsel %vm3062, %v3021, 0
        %v3561 = vsel %vm3062, %v3022, 0
        %v3564 = vsel %vm3062, %v3023, 0
        %v3567 = vsel %vm3062, %v3024, 0
        %v3570 = vsel %vm3062, %v3025, 0
        %v3573 = vsel %vm3062, %v3026, 0
        %v3576 = vsel %vm3062, %v3027, 0
        %v3579 = vsel %vm3062, %v3028, 0
        %v3582 = vsel %vm3062, %v3029, 0
        %v3585 = vsel %vm3062, %v3030, 0
        %v3588 = vsel %vm3062, %v3031, 0
        %v3591 = vsel %vm3062, %v3032, 0
        %v3594 = vsel %vm3062, %v3033, 0
        %v3597 = vsel %vm3062, %v3034, 0
        %v3600 = vsel %vm3062, %v3035, 0
        %v3603 = vsel %vm3062, %v3036, 0
        %v3606 = vsel %vm3062, %v3037, 0
        %v3609 = vsel %vm3062, %v3038, 0
        %v3612 = vsel %vm3062, %v3039, 0
        %v3615 = vsel %vm3062, %v3040, 0
        %v3618 = vsel %vm3062, %v3041, 0
        %v3621 = vsel %vm3062, %v3042, 0
        %v3624 = vsel %vm3062, %v3043, 0
        %v3627 = vsel %vm3062, %v3044, 0
        %v3630 = vsel %vm3062, %v3045, 0
        %v3633 = vsel %vm3062, %v3046, 0
        %v3636 = vsel %vm3062, %v3047, 0
        %v3639 = vsel %vm3062, %v3048, 0
        %v3642 = vsel %vm3062, %v3049, 0
        %v3645 = vsel %vm3062, %v3050, 0
        %v3648 = vsel %vm3062, %v3051, 0
        %v3651 = vsel %vm3062, %v3052, 0
        %v3654 = vsel %vm3062, %v3053, 0
        %3656 = vmatprep.subr.mxu0 0.0
        %3657 = vmatpush1.msra.mxu0 %v3054
        %3658 = vmatprep.subr.mxu0 0.0
        %3659 = vmatpush1.msra.mxu0 %v3055
        %3660 = vmatprep.subr.mxu0 0.0
        %3661 = vmatpush1.msra.mxu0 %v3056
        %3662 = vmatprep.subr.mxu0 0.0
        %3663 = vmatpush1.msra.mxu0 %v3057
        %3664 = vmatprep.subr.mxu0 0.0
        %3665 = vmatpush1.msra.mxu0 0.0
        %3666 = vmatprep.subr.mxu0 0.0
        %3667 = vmatpush1.msra.mxu0 0.0
        %3668 = vmatprep.subr.mxu0 0.0
        %3669 = vmatpush1.msra.mxu0 0.0
        %3670 = vmatprep.subr.mxu0 0.0
        %3671 = vmatpush1.msra.mxu0 0.0
        %3672 = vmatprep.subr.mxu0 0.0
        %3673 = vmatpush1.msra.mxu0 0.0
        %3674 = vmatprep.subr.mxu0 0.0
        %3675 = vmatpush1.msra.mxu0 0.0
        %3676 = vmatprep.subr.mxu0 0.0
        %3677 = vmatpush1.msra.mxu0 0.0
        %3678 = vmatprep.subr.mxu0 0.0
        %3679 = vmatpush1.msra.mxu0 0.0
        %3680 = vmatprep.subr.mxu0 0.0
        %3681 = vmatpush1.msra.mxu0 0.0
        %3682 = vmatprep.subr.mxu0 0.0
        %3683 = vmatpush1.msra.mxu0 0.0
        %3684 = vmatprep.subr.mxu0 0.0
        %3685 = vmatpush1.msra.mxu0 0.0
        %3686 = vmatprep.subr.mxu0 0.0
        %3687 = vmatpush1.msra.mxu0 0.0
        %3688 = vmatprep.subr.mxu0 0.0
        %3689 = vmatpush1.msra.mxu0 0.0
        %3690 = vmatprep.subr.mxu0 0.0
        %3691 = vmatpush1.msra.mxu0 0.0
        %3692 = vmatprep.subr.mxu0 0.0
        %3693 = vmatpush1.msra.mxu0 0.0
        %3694 = vmatprep.subr.mxu0 0.0
        %3695 = vmatpush1.msra.mxu0 0.0
        %3696 = vmatprep.subr.mxu0 0.0
        %3697 = vmatpush1.msra.mxu0 0.0
        %3698 = vmatprep.subr.mxu0 0.0
        %3699 = vmatpush1.msra.mxu0 0.0
        %3700 = vmatprep.subr.mxu0 0.0
        %3701 = vmatpush1.msra.mxu0 0.0
        %3702 = vmatprep.subr.mxu0 0.0
        %3703 = vmatpush1.msra.mxu0 0.0
        %3704 = vmatprep.subr.mxu0 0.0
        %3705 = vmatpush1.msra.mxu0 0.0
        %3706 = vmatprep.subr.mxu0 0.0
        %3707 = vmatpush1.msra.mxu0 0.0
        %3708 = vmatprep.subr.mxu0 0.0
        %3709 = vmatpush1.msra.mxu0 0.0
        %3710 = vmatprep.subr.mxu0 0.0
        %3711 = vmatpush1.msra.mxu0 0.0
        %3712 = vmatprep.subr.mxu0 0.0
        %3713 = vmatpush1.msra.mxu0 0.0
        %3714 = vmatprep.subr.mxu0 0.0
        %3715 = vmatpush1.msra.mxu0 0.0
        %3716 = vmatprep.subr.mxu0 0.0
        %3717 = vmatpush1.msra.mxu0 0.0
        %3718 = vmatprep.subr.mxu0 0.0
        %3719 = vmatpush1.msra.mxu0 0.0
        %3720 = vmatprep.mubr.f32.mxu0 0.0
        %3721 = vmatmul.mubr.f32.gmra.mrb[0].mxu0 %v3513
        %v3722 = vpop.f32.mrb[0].mxu0
        %v3723 = vadd.f32 %v3274, %v3722
        %v3724 = vpop.f32.mrb[0].mxu0
        %3725 = vmatprep.mubr.f32.mxu0 0.0
        %3726 = vmatmul.mubr.f32.gmra.mrb[0].mxu0 %v3516
        %v3727 = vpop.f32.mrb[0].mxu0
        %v3728 = vadd.f32 %v3279, %v3727
        %v3729 = vpop.f32.mrb[0].mxu0
        %3730 = vmatprep.mubr.f32.mxu0 0.0
        %3731 = vmatmul.mubr.f32.gmra.mrb[0].mxu0 %v3519
        %v3732 = vpop.f32.mrb[0].mxu0
        %v3733 = vadd.f32 %v3284, %v3732
        %v3734 = vpop.f32.mrb[0].mxu0
        %3735 = vmatprep.mubr.f32.mxu0 0.0
        %3736 = vmatmul.mubr.f32.gmra.mrb[0].mxu0 %v3522
        %v3737 = vpop.f32.mrb[0].mxu0
        %v3738 = vadd.f32 %v3289, %v3737
        %v3739 = vpop.f32.mrb[0].mxu0
        %3740 = vmatprep.mubr.f32.mxu0 0.0
        %3741 = vmatmul.mubr.f32.gmra.mrb[0].mxu0 %v3525
        %v3742 = vpop.f32.mrb[0].mxu0
        %v3743 = vadd.f32 %v3294, %v3742
        %v3744 = vpop.f32.mrb[0].mxu0
        %3745 = vmatprep.mubr.f32.mxu0 0.0
        %3746 = vmatmul.mubr.f32.gmra.mrb[0].mxu0 %v3528
        %v3747 = vpop.f32.mrb[0].mxu0
        %v3748 = vadd.f32 %v3299, %v3747
        %v3749 = vpop.f32.mrb[0].mxu0
        %3750 = vmatprep.mubr.f32.mxu0 0.0
        %3751 = vmatmul.mubr.f32.gmra.mrb[0].mxu0 %v3531
        %v3752 = vpop.f32.mrb[0].mxu0
        %v3753 = vadd.f32 %v3304, %v3752
        %v3754 = vpop.f32.mrb[0].mxu0
        %3755 = vmatprep.mubr.f32.mxu0 0.0
        %3756 = vmatmul.mubr.f32.gmra.mrb[0].mxu0 %v3534
        %v3757 = vpop.f32.mrb[0].mxu0
        %v3758 = vadd.f32 %v3309, %v3757
        %v3759 = vpop.f32.mrb[0].mxu0
        %3760 = vmatprep.mubr.f32.mxu0 0.0
        %3761 = vmatmul.mubr.f32.gmra.mrb[0].mxu0 %v3537
        %v3762 = vpop.f32.mrb[0].mxu0
        %v3763 = vadd.f32 %v3314, %v3762
        %v3764 = vpop.f32.mrb[0].mxu0
        %3765 = vmatprep.mubr.f32.mxu0 0.0
        %3766 = vmatmul.mubr.f32.gmra.mrb[0].mxu0 %v3540
        %v3767 = vpop.f32.mrb[0].mxu0
        %v3768 = vadd.f32 %v3319, %v3767
        %v3769 = vpop.f32.mrb[0].mxu0
        %3770 = vmatprep.mubr.f32.mxu0 0.0
        %3771 = vmatmul.mubr.f32.gmra.mrb[0].mxu0 %v3543
        %v3772 = vpop.f32.mrb[0].mxu0
        %v3773 = vadd.f32 %v3324, %v3772
        %v3774 = vpop.f32.mrb[0].mxu0
        %3775 = vmatprep.mubr.f32.mxu0 0.0
        %3776 = vmatmul.mubr.f32.gmra.mrb[0].mxu0 %v3546
        %v3777 = vpop.f32.mrb[0].mxu0
        %v3778 = vadd.f32 %v3329, %v3777
        %v3779 = vpop.f32.mrb[0].mxu0
        %3780 = vmatprep.mubr.f32.mxu0 0.0
        %3781 = vmatmul.mubr.f32.gmra.mrb[0].mxu0 %v3549
        %v3782 = vpop.f32.mrb[0].mxu0
        %v3783 = vadd.f32 %v3334, %v3782
        %v3784 = vpop.f32.mrb[0].mxu0
        %3785 = vmatprep.mubr.f32.mxu0 0.0
        %3786 = vmatmul.mubr.f32.gmra.mrb[0].mxu0 %v3552
        %v3787 = vpop.f32.mrb[0].mxu0
        %v3788 = vadd.f32 %v3339, %v3787
        %v3789 = vpop.f32.mrb[0].mxu0
        %3790 = vmatprep.mubr.f32.mxu0 0.0
        %3791 = vmatmul.mubr.f32.gmra.mrb[0].mxu0 %v3555
        %v3792 = vpop.f32.mrb[0].mxu0
        %v3793 = vadd.f32 %v3344, %v3792
        %v3794 = vpop.f32.mrb[0].mxu0
        %3795 = vmatprep.mubr.f32.mxu0 0.0
        %3796 = vmatmul.mubr.f32.gmra.mrb[0].mxu0 %v3558
        %v3797 = vpop.f32.mrb[0].mxu0
        %v3798 = vadd.f32 %v3349, %v3797
        %v3799 = vpop.f32.mrb[0].mxu0
        %3800 = vmatprep.mubr.f32.mxu0 0.0
        %3801 = vmatmul.mubr.f32.gmra.mrb[0].mxu0 %v3561
        %v3802 = vpop.f32.mrb[0].mxu0
        %v3803 = vadd.f32 %v3354, %v3802
        %v3804 = vpop.f32.mrb[0].mxu0
        %3805 = vmatprep.mubr.f32.mxu0 0.0
        %3806 = vmatmul.mubr.f32.gmra.mrb[0].mxu0 %v3564
        %v3807 = vpop.f32.mrb[0].mxu0
        %v3808 = vadd.f32 %v3359, %v3807
        %v3809 = vpop.f32.mrb[0].mxu0
        %3810 = vmatprep.mubr.f32.mxu0 0.0
        %3811 = vmatmul.mubr.f32.gmra.mrb[0].mxu0 %v3567
        %v3812 = vpop.f32.mrb[0].mxu0
        %v3813 = vadd.f32 %v3364, %v3812
        %v3814 = vpop.f32.mrb[0].mxu0
        %3815 = vmatprep.mubr.f32.mxu0 0.0
        %3816 = vmatmul.mubr.f32.gmra.mrb[0].mxu0 %v3570
        %v3817 = vpop.f32.mrb[0].mxu0
        %v3818 = vadd.f32 %v3369, %v3817
        %v3819 = vpop.f32.mrb[0].mxu0
        %3820 = vmatprep.mubr.f32.mxu0 0.0
        %3821 = vmatmul.mubr.f32.gmra.mrb[0].mxu0 %v3573
        %v3822 = vpop.f32.mrb[0].mxu0
        %v3823 = vadd.f32 %v3374, %v3822
        %v3824 = vpop.f32.mrb[0].mxu0
        %3825 = vmatprep.mubr.f32.mxu0 0.0
        %3826 = vmatmul.mubr.f32.gmra.mrb[0].mxu0 %v3576
        %v3827 = vpop.f32.mrb[0].mxu0
        %v3828 = vadd.f32 %v3379, %v3827
        %v3829 = vpop.f32.mrb[0].mxu0
        %3830 = vmatprep.mubr.f32.mxu0 0.0
        %3831 = vmatmul.mubr.f32.gmra.mrb[0].mxu0 %v3579
        %v3832 = vpop.f32.mrb[0].mxu0
        %v3833 = vadd.f32 %v3384, %v3832
        %v3834 = vpop.f32.mrb[0].mxu0
        %3835 = vmatprep.mubr.f32.mxu0 0.0
        %3836 = vmatmul.mubr.f32.gmra.mrb[0].mxu0 %v3582
        %v3837 = vpop.f32.mrb[0].mxu0
        %v3838 = vadd.f32 %v3389, %v3837
        %v3839 = vpop.f32.mrb[0].mxu0
        %3840 = vmatprep.mubr.f32.mxu0 0.0
        %3841 = vmatmul.mubr.f32.gmra.mrb[0].mxu0 %v3585
        %v3842 = vpop.f32.mrb[0].mxu0
        %v3843 = vadd.f32 %v3394, %v3842
        %v3844 = vpop.f32.mrb[0].mxu0
        %3845 = vmatprep.mubr.f32.mxu0 0.0
        %3846 = vmatmul.mubr.f32.gmra.mrb[0].mxu0 %v3588
        %v3847 = vpop.f32.mrb[0].mxu0
        %v3848 = vadd.f32 %v3399, %v3847
        %v3849 = vpop.f32.mrb[0].mxu0
        %3850 = vmatprep.mubr.f32.mxu0 0.0
        %3851 = vmatmul.mubr.f32.gmra.mrb[0].mxu0 %v3591
        %v3852 = vpop.f32.mrb[0].mxu0
        %v3853 = vadd.f32 %v3404, %v3852
        %v3854 = vpop.f32.mrb[0].mxu0
        %3855 = vmatprep.mubr.f32.mxu0 0.0
        %3856 = vmatmul.mubr.f32.gmra.mrb[0].mxu0 %v3594
        %v3857 = vpop.f32.mrb[0].mxu0
        %v3858 = vadd.f32 %v3409, %v3857
        %v3859 = vpop.f32.mrb[0].mxu0
        %3860 = vmatprep.mubr.f32.mxu0 0.0
        %3861 = vmatmul.mubr.f32.gmra.mrb[0].mxu0 %v3597
        %v3862 = vpop.f32.mrb[0].mxu0
        %v3863 = vadd.f32 %v3414, %v3862
        %v3864 = vpop.f32.mrb[0].mxu0
        %3865 = vmatprep.mubr.f32.mxu0 0.0
        %3866 = vmatmul.mubr.f32.gmra.mrb[0].mxu0 %v3600
        %v3867 = vpop.f32.mrb[0].mxu0
        %v3868 = vadd.f32 %v3419, %v3867
        %v3869 = vpop.f32.mrb[0].mxu0
        %3870 = vmatprep.mubr.f32.mxu0 0.0
        %3871 = vmatmul.mubr.f32.gmra.mrb[0].mxu0 %v3603
        %v3872 = vpop.f32.mrb[0].mxu0
        %v3873 = vadd.f32 %v3424, %v3872
        %v3874 = vpop.f32.mrb[0].mxu0
        %3875 = vmatprep.mubr.f32.mxu0 0.0
        %3876 = vmatmul.mubr.f32.gmra.mrb[0].mxu0 %v3606
        %v3877 = vpop.f32.mrb[0].mxu0
        %v3878 = vadd.f32 %v3429, %v3877
        %v3879 = vpop.f32.mrb[0].mxu0
        %3880 = vmatprep.mubr.f32.mxu0 0.0
        %3881 = vmatmul.mubr.f32.gmra.mrb[0].mxu0 %v3609
        %v3882 = vpop.f32.mrb[0].mxu0
        %v3883 = vadd.f32 %v3434, %v3882
        %v3884 = vpop.f32.mrb[0].mxu0
        %3885 = vmatprep.mubr.f32.mxu0 0.0
        %3886 = vmatmul.mubr.f32.gmra.mrb[0].mxu0 %v3612
        %v3887 = vpop.f32.mrb[0].mxu0
        %v3888 = vadd.f32 %v3439, %v3887
        %v3889 = vpop.f32.mrb[0].mxu0
        %3890 = vmatprep.mubr.f32.mxu0 0.0
        %3891 = vmatmul.mubr.f32.gmra.mrb[0].mxu0 %v3615
        %v3892 = vpop.f32.mrb[0].mxu0
        %v3893 = vadd.f32 %v3444, %v3892
        %v3894 = vpop.f32.mrb[0].mxu0
        %3895 = vmatprep.mubr.f32.mxu0 0.0
        %3896 = vmatmul.mubr.f32.gmra.mrb[0].mxu0 %v3618
        %v3897 = vpop.f32.mrb[0].mxu0
        %v3898 = vadd.f32 %v3449, %v3897
        %v3899 = vpop.f32.mrb[0].mxu0
        %3900 = vmatprep.mubr.f32.mxu0 0.0
        %3901 = vmatmul.mubr.f32.gmra.mrb[0].mxu0 %v3621
        %v3902 = vpop.f32.mrb[0].mxu0
        %v3903 = vadd.f32 %v3454, %v3902
        %v3904 = vpop.f32.mrb[0].mxu0
        %3905 = vmatprep.mubr.f32.mxu0 0.0
        %3906 = vmatmul.mubr.f32.gmra.mrb[0].mxu0 %v3624
        %v3907 = vpop.f32.mrb[0].mxu0
        %v3908 = vadd.f32 %v3459, %v3907
        %v3909 = vpop.f32.mrb[0].mxu0
        %3910 = vmatprep.mubr.f32.mxu0 0.0
        %3911 = vmatmul.mubr.f32.gmra.mrb[0].mxu0 %v3627
        %v3912 = vpop.f32.mrb[0].mxu0
        %v3913 = vadd.f32 %v3464, %v3912
        %v3914 = vpop.f32.mrb[0].mxu0
        %3915 = vmatprep.mubr.f32.mxu0 0.0
        %3916 = vmatmul.mubr.f32.gmra.mrb[0].mxu0 %v3630
        %v3917 = vpop.f32.mrb[0].mxu0
        %v3918 = vadd.f32 %v3469, %v3917
        %v3919 = vpop.f32.mrb[0].mxu0
        %3920 = vmatprep.mubr.f32.mxu0 0.0
        %3921 = vmatmul.mubr.f32.gmra.mrb[0].mxu0 %v3633
        %v3922 = vpop.f32.mrb[0].mxu0
        %v3923 = vadd.f32 %v3474, %v3922
        %v3924 = vpop.f32.mrb[0].mxu0
        %3925 = vmatprep.mubr.f32.mxu0 0.0
        %3926 = vmatmul.mubr.f32.gmra.mrb[0].mxu0 %v3636
        %v3927 = vpop.f32.mrb[0].mxu0
        %v3928 = vadd.f32 %v3479, %v3927
        %v3929 = vpop.f32.mrb[0].mxu0
        %3930 = vmatprep.mubr.f32.mxu0 0.0
        %3931 = vmatmul.mubr.f32.gmra.mrb[0].mxu0 %v3639
        %v3932 = vpop.f32.mrb[0].mxu0
        %v3933 = vadd.f32 %v3484, %v3932
        %v3934 = vpop.f32.mrb[0].mxu0
        %3935 = vmatprep.mubr.f32.mxu0 0.0
        %3936 = vmatmul.mubr.f32.gmra.mrb[0].mxu0 %v3642
        %v3937 = vpop.f32.mrb[0].mxu0
        %v3938 = vadd.f32 %v3489, %v3937
        %v3939 = vpop.f32.mrb[0].mxu0
        %3940 = vmatprep.mubr.f32.mxu0 0.0
        %3941 = vmatmul.mubr.f32.gmra.mrb[0].mxu0 %v3645
        %v3942 = vpop.f32.mrb[0].mxu0
        %v3943 = vadd.f32 %v3494, %v3942
        %v3944 = vpop.f32.mrb[0].mxu0
        %3945 = vmatprep.mubr.f32.mxu0 0.0
        %3946 = vmatmul.mubr.f32.gmra.mrb[0].mxu0 %v3648
        %v3947 = vpop.f32.mrb[0].mxu0
        %v3948 = vadd.f32 %v3499, %v3947
        %v3949 = vpop.f32.mrb[0].mxu0
        %3950 = vmatprep.mubr.f32.mxu0 0.0
        %3951 = vmatmul.mubr.f32.gmra.mrb[0].mxu0 %v3651
        %v3952 = vpop.f32.mrb[0].mxu0
        %v3953 = vadd.f32 %v3504, %v3952
        %v3954 = vpop.f32.mrb[0].mxu0
        %3955 = vmatprep.mubr.f32.mxu0 0.0
        %3956 = vmatmul.mubr.f32.gmra.mrb[0].mxu0 %v3654
        %v3957 = vpop.f32.mrb[0].mxu0
        %v3958 = vadd.f32 %v3509, %v3957
        %v3959 = vpop.f32.mrb[0].mxu0
        %3960 = vdwg.mxu0
        %v3961 = vld [vmem:[%s776] sm:$0x1]
        %v3963 = vlaneseq
        %v3964 = vshrl.u32 %v3963, 7
        %v3965 = vsub.s32 0, %v3964
        %v3966 = vrot.slane %v3961, %v3965
        %v3968 = vadd.f32 %v3723, %v3966
        %v3969 = vadd.f32 %v3728, %v3966
        %v3970 = vadd.f32 %v3733, %v3966
        %v3971 = vadd.f32 %v3738, %v3966
        %v3972 = vadd.f32 %v3743, %v3966
        %v3973 = vadd.f32 %v3748, %v3966
        %v3974 = vadd.f32 %v3753, %v3966
        %v3975 = vadd.f32 %v3758, %v3966
        %v3976 = vadd.f32 %v3763, %v3966
        %v3977 = vadd.f32 %v3768, %v3966
        %v3978 = vadd.f32 %v3773, %v3966
        %v3979 = vadd.f32 %v3778, %v3966
        %v3980 = vadd.f32 %v3783, %v3966
        %v3981 = vadd.f32 %v3788, %v3966
        %v3982 = vadd.f32 %v3793, %v3966
        %v3983 = vadd.f32 %v3798, %v3966
        %v3984 = vadd.f32 %v3803, %v3966
        %v3985 = vadd.f32 %v3808, %v3966
        %v3986 = vadd.f32 %v3813, %v3966
        %v3987 = vadd.f32 %v3818, %v3966
        %v3988 = vadd.f32 %v3823, %v3966
        %v3989 = vadd.f32 %v3828, %v3966
        %v3990 = vadd.f32 %v3833, %v3966
        %v3991 = vadd.f32 %v3838, %v3966
        %v3992 = vadd.f32 %v3843, %v3966
        %v3993 = vadd.f32 %v3848, %v3966
        %v3994 = vadd.f32 %v3853, %v3966
        %v3995 = vadd.f32 %v3858, %v3966
        %v3996 = vadd.f32 %v3863, %v3966
        %v3997 = vadd.f32 %v3868, %v3966
        %v3998 = vadd.f32 %v3873, %v3966
        %v3999 = vadd.f32 %v3878, %v3966
        %v4000 = vadd.f32 %v3883, %v3966
        %v4001 = vadd.f32 %v3888, %v3966
        %v4002 = vadd.f32 %v3893, %v3966
        %v4003 = vadd.f32 %v3898, %v3966
        %v4004 = vadd.f32 %v3903, %v3966
        %v4005 = vadd.f32 %v3908, %v3966
        %v4006 = vadd.f32 %v3913, %v3966
        %v4007 = vadd.f32 %v3918, %v3966
        %v4008 = vadd.f32 %v3923, %v3966
        %v4009 = vadd.f32 %v3928, %v3966
        %v4010 = vadd.f32 %v3933, %v3966
        %v4011 = vadd.f32 %v3938, %v3966
        %v4012 = vadd.f32 %v3943, %v3966
        %v4013 = vadd.f32 %v3948, %v3966
        %v4014 = vadd.f32 %v3953, %v3966
        %v4015 = vadd.f32 %v3958, %v3966
        %v4016 = vmax.f32 %v3968, 0.0
        %v4017 = vmax.f32 %v3969, 0.0
        %v4018 = vmax.f32 %v3970, 0.0
        %v4019 = vmax.f32 %v3971, 0.0
        %v4020 = vmax.f32 %v3972, 0.0
        %v4021 = vmax.f32 %v3973, 0.0
        %v4022 = vmax.f32 %v3974, 0.0
        %v4023 = vmax.f32 %v3975, 0.0
        %v4024 = vmax.f32 %v3976, 0.0
        %v4025 = vmax.f32 %v3977, 0.0
        %v4026 = vmax.f32 %v3978, 0.0
        %v4027 = vmax.f32 %v3979, 0.0
        %v4028 = vmax.f32 %v3980, 0.0
        %v4029 = vmax.f32 %v3981, 0.0
        %v4030 = vmax.f32 %v3982, 0.0
        %v4031 = vmax.f32 %v3983, 0.0
        %v4032 = vmax.f32 %v3984, 0.0
        %v4033 = vmax.f32 %v3985, 0.0
        %v4034 = vmax.f32 %v3986, 0.0
        %v4035 = vmax.f32 %v3987, 0.0
        %v4036 = vmax.f32 %v3988, 0.0
        %v4037 = vmax.f32 %v3989, 0.0
        %v4038 = vmax.f32 %v3990, 0.0
        %v4039 = vmax.f32 %v3991, 0.0
        %v4040 = vmax.f32 %v3992, 0.0
        %v4041 = vmax.f32 %v3993, 0.0
        %v4042 = vmax.f32 %v3994, 0.0
        %v4043 = vmax.f32 %v3995, 0.0
        %v4044 = vmax.f32 %v3996, 0.0
        %v4045 = vmax.f32 %v3997, 0.0
        %v4046 = vmax.f32 %v3998, 0.0
        %v4047 = vmax.f32 %v3999, 0.0
        %v4048 = vmax.f32 %v4000, 0.0
        %v4049 = vmax.f32 %v4001, 0.0
        %v4050 = vmax.f32 %v4002, 0.0
        %v4051 = vmax.f32 %v4003, 0.0
        %v4052 = vmax.f32 %v4004, 0.0
        %v4053 = vmax.f32 %v4005, 0.0
        %v4054 = vmax.f32 %v4006, 0.0
        %v4055 = vmax.f32 %v4007, 0.0
        %v4056 = vmax.f32 %v4008, 0.0
        %v4057 = vmax.f32 %v4009, 0.0
        %v4058 = vmax.f32 %v4010, 0.0
        %v4059 = vmax.f32 %v4011, 0.0
        %v4060 = vmax.f32 %v4012, 0.0
        %v4061 = vmax.f32 %v4013, 0.0
        %v4062 = vmax.f32 %v4014, 0.0
        %v4063 = vmax.f32 %v4015, 0.0
        %4112 = vrot.lane.b32.xlu0 %v1558, 64
        %v4113 = vpop.permute.xlu0 %4112
        %4114 = vrot.lane.b32.xlu0 %v1563, 64
        %v4115 = vpop.permute.xlu0 %4114
        %4116 = vrot.lane.b32.xlu0 %v1568, 64
        %v4117 = vpop.permute.xlu0 %4116
        %4118 = vrot.lane.b32.xlu0 %v1573, 64
        %v4119 = vpop.permute.xlu0 %4118
        %4120 = vrot.lane.b32.xlu0 %v1578, 64
        %v4121 = vpop.permute.xlu0 %4120
        %4122 = vrot.lane.b32.xlu0 %v1583, 64
        %v4123 = vpop.permute.xlu0 %4122
        %4124 = vrot.lane.b32.xlu0 %v1588, 64
        %v4125 = vpop.permute.xlu0 %4124
        %4126 = vrot.lane.b32.xlu0 %v1593, 64
        %v4127 = vpop.permute.xlu0 %4126
        %4128 = vrot.lane.b32.xlu0 %v1598, 64
        %v4129 = vpop.permute.xlu0 %4128
        %4130 = vrot.lane.b32.xlu0 %v1603, 64
        %v4131 = vpop.permute.xlu0 %4130
        %4132 = vrot.lane.b32.xlu0 %v1608, 64
        %v4133 = vpop.permute.xlu0 %4132
        %4134 = vrot.lane.b32.xlu0 %v1613, 64
        %v4135 = vpop.permute.xlu0 %4134
        %4136 = vrot.lane.b32.xlu0 %v1618, 64
        %v4137 = vpop.permute.xlu0 %4136
        %4138 = vrot.lane.b32.xlu0 %v1623, 64
        %v4139 = vpop.permute.xlu0 %4138
        %4140 = vrot.lane.b32.xlu0 %v1628, 64
        %v4141 = vpop.permute.xlu0 %4140
        %4142 = vrot.lane.b32.xlu0 %v1633, 64
        %v4143 = vpop.permute.xlu0 %4142
        %4144 = vrot.lane.b32.xlu0 %v1638, 64
        %v4145 = vpop.permute.xlu0 %4144
        %4146 = vrot.lane.b32.xlu0 %v1643, 64
        %v4147 = vpop.permute.xlu0 %4146
        %4148 = vrot.lane.b32.xlu0 %v1648, 64
        %v4149 = vpop.permute.xlu0 %4148
        %4150 = vrot.lane.b32.xlu0 %v1653, 64
        %v4151 = vpop.permute.xlu0 %4150
        %4152 = vrot.lane.b32.xlu0 %v1658, 64
        %v4153 = vpop.permute.xlu0 %4152
        %4154 = vrot.lane.b32.xlu0 %v1663, 64
        %v4155 = vpop.permute.xlu0 %4154
        %4156 = vrot.lane.b32.xlu0 %v1668, 64
        %v4157 = vpop.permute.xlu0 %4156
        %4158 = vrot.lane.b32.xlu0 %v1673, 64
        %v4159 = vpop.permute.xlu0 %4158
        %4160 = vrot.lane.b32.xlu0 %v1678, 64
        %v4161 = vpop.permute.xlu0 %4160
        %4162 = vrot.lane.b32.xlu0 %v1683, 64
        %v4163 = vpop.permute.xlu0 %4162
        %4164 = vrot.lane.b32.xlu0 %v1688, 64
        %v4165 = vpop.permute.xlu0 %4164
        %4166 = vrot.lane.b32.xlu0 %v1693, 64
        %v4167 = vpop.permute.xlu0 %4166
        %4168 = vrot.lane.b32.xlu0 %v1698, 64
        %v4169 = vpop.permute.xlu0 %4168
        %4170 = vrot.lane.b32.xlu0 %v1703, 64
        %v4171 = vpop.permute.xlu0 %4170
        %4172 = vrot.lane.b32.xlu0 %v1708, 64
        %v4173 = vpop.permute.xlu0 %4172
        %4174 = vrot.lane.b32.xlu0 %v1713, 64
        %v4175 = vpop.permute.xlu0 %4174
        %4176 = vrot.lane.b32.xlu0 %v1718, 64
        %v4177 = vpop.permute.xlu0 %4176
        %4178 = vrot.lane.b32.xlu0 %v1723, 64
        %v4179 = vpop.permute.xlu0 %4178
        %4180 = vrot.lane.b32.xlu0 %v1728, 64
        %v4181 = vpop.permute.xlu0 %4180
        %4182 = vrot.lane.b32.xlu0 %v1733, 64
        %v4183 = vpop.permute.xlu0 %4182
        %4184 = vrot.lane.b32.xlu0 %v1738, 64
        %v4185 = vpop.permute.xlu0 %4184
        %4186 = vrot.lane.b32.xlu0 %v1743, 64
        %v4187 = vpop.permute.xlu0 %4186
        %4188 = vrot.lane.b32.xlu0 %v1748, 64
        %v4189 = vpop.permute.xlu0 %4188
        %4190 = vrot.lane.b32.xlu0 %v1753, 64
        %v4191 = vpop.permute.xlu0 %4190
        %4192 = vrot.lane.b32.xlu0 %v1758, 64
        %v4193 = vpop.permute.xlu0 %4192
        %4194 = vrot.lane.b32.xlu0 %v1763, 64
        %v4195 = vpop.permute.xlu0 %4194
        %4196 = vrot.lane.b32.xlu0 %v1768, 64
        %v4197 = vpop.permute.xlu0 %4196
        %4198 = vrot.lane.b32.xlu0 %v1773, 64
        %v4199 = vpop.permute.xlu0 %4198
        %4200 = vrot.lane.b32.xlu0 %v1778, 64
        %v4201 = vpop.permute.xlu0 %4200
        %4202 = vrot.lane.b32.xlu0 %v1783, 64
        %v4203 = vpop.permute.xlu0 %4202
        %4204 = vrot.lane.b32.xlu0 %v1788, 64
        %v4205 = vpop.permute.xlu0 %4204
        %4206 = vrot.lane.b32.xlu0 %v1793, 64
        %v4207 = vpop.permute.xlu0 %4206
        %v4256 = vadd.f32 %v4016, %v4113
        %v4257 = vadd.f32 %v4017, %v4115
        %v4258 = vadd.f32 %v4018, %v4117
        %v4259 = vadd.f32 %v4019, %v4119
        %v4260 = vadd.f32 %v4020, %v4121
        %v4261 = vadd.f32 %v4021, %v4123
        %v4262 = vadd.f32 %v4022, %v4125
        %v4263 = vadd.f32 %v4023, %v4127
        %v4264 = vadd.f32 %v4024, %v4129
        %v4265 = vadd.f32 %v4025, %v4131
        %v4266 = vadd.f32 %v4026, %v4133
        %v4267 = vadd.f32 %v4027, %v4135
        %v4268 = vadd.f32 %v4028, %v4137
        %v4269 = vadd.f32 %v4029, %v4139
        %v4270 = vadd.f32 %v4030, %v4141
        %v4271 = vadd.f32 %v4031, %v4143
        %v4272 = vadd.f32 %v4032, %v4145
        %v4273 = vadd.f32 %v4033, %v4147
        %v4274 = vadd.f32 %v4034, %v4149
        %v4275 = vadd.f32 %v4035, %v4151
        %v4276 = vadd.f32 %v4036, %v4153
        %v4277 = vadd.f32 %v4037, %v4155
        %v4278 = vadd.f32 %v4038, %v4157
        %v4279 = vadd.f32 %v4039, %v4159
        %v4280 = vadd.f32 %v4040, %v4161
        %v4281 = vadd.f32 %v4041, %v4163
        %v4282 = vadd.f32 %v4042, %v4165
        %v4283 = vadd.f32 %v4043, %v4167
        %v4284 = vadd.f32 %v4044, %v4169
        %v4285 = vadd.f32 %v4045, %v4171
        %v4286 = vadd.f32 %v4046, %v4173
        %v4287 = vadd.f32 %v4047, %v4175
        %v4288 = vadd.f32 %v4048, %v4177
        %v4289 = vadd.f32 %v4049, %v4179
        %v4290 = vadd.f32 %v4050, %v4181
        %v4291 = vadd.f32 %v4051, %v4183
        %v4292 = vadd.f32 %v4052, %v4185
        %v4293 = vadd.f32 %v4053, %v4187
        %v4294 = vadd.f32 %v4054, %v4189
        %v4295 = vadd.f32 %v4055, %v4191
        %v4296 = vadd.f32 %v4056, %v4193
        %v4297 = vadd.f32 %v4057, %v4195
        %v4298 = vadd.f32 %v4058, %v4197
        %v4299 = vadd.f32 %v4059, %v4199
        %v4300 = vadd.f32 %v4060, %v4201
        %v4301 = vadd.f32 %v4061, %v4203
        %v4302 = vadd.f32 %v4062, %v4205
        %v4303 = vadd.f32 %v4063, %v4207
        %v4304 = vmax.f32 %v4256, 0.0
        %v4305 = vmax.f32 %v4257, 0.0
        %v4306 = vmax.f32 %v4258, 0.0
        %v4307 = vmax.f32 %v4259, 0.0
        %v4308 = vmax.f32 %v4260, 0.0
        %v4309 = vmax.f32 %v4261, 0.0
        %v4310 = vmax.f32 %v4262, 0.0
        %v4311 = vmax.f32 %v4263, 0.0
        %v4312 = vmax.f32 %v4264, 0.0
        %v4313 = vmax.f32 %v4265, 0.0
        %v4314 = vmax.f32 %v4266, 0.0
        %v4315 = vmax.f32 %v4267, 0.0
        %v4316 = vmax.f32 %v4268, 0.0
        %v4317 = vmax.f32 %v4269, 0.0
        %v4318 = vmax.f32 %v4270, 0.0
        %v4319 = vmax.f32 %v4271, 0.0
        %v4320 = vmax.f32 %v4272, 0.0
        %v4321 = vmax.f32 %v4273, 0.0
        %v4322 = vmax.f32 %v4274, 0.0
        %v4323 = vmax.f32 %v4275, 0.0
        %v4324 = vmax.f32 %v4276, 0.0
        %v4325 = vmax.f32 %v4277, 0.0
        %v4326 = vmax.f32 %v4278, 0.0
        %v4327 = vmax.f32 %v4279, 0.0
        %v4328 = vmax.f32 %v4280, 0.0
        %v4329 = vmax.f32 %v4281, 0.0
        %v4330 = vmax.f32 %v4282, 0.0
        %v4331 = vmax.f32 %v4283, 0.0
        %v4332 = vmax.f32 %v4284, 0.0
        %v4333 = vmax.f32 %v4285, 0.0
        %v4334 = vmax.f32 %v4286, 0.0
        %v4335 = vmax.f32 %v4287, 0.0
        %v4336 = vmax.f32 %v4288, 0.0
        %v4337 = vmax.f32 %v4289, 0.0
        %v4338 = vmax.f32 %v4290, 0.0
        %v4339 = vmax.f32 %v4291, 0.0
        %v4340 = vmax.f32 %v4292, 0.0
        %v4341 = vmax.f32 %v4293, 0.0
        %v4342 = vmax.f32 %v4294, 0.0
        %v4343 = vmax.f32 %v4295, 0.0
        %v4344 = vmax.f32 %v4296, 0.0
        %v4345 = vmax.f32 %v4297, 0.0
        %v4346 = vmax.f32 %v4298, 0.0
        %v4347 = vmax.f32 %v4299, 0.0
        %v4348 = vmax.f32 %v4300, 0.0
        %v4349 = vmax.f32 %v4301, 0.0
        %v4350 = vmax.f32 %v4302, 0.0
        %v4351 = vmax.f32 %v4303, 0.0
        %4356 = vrot.lane.b32.xlu0 %v4308, 64
        %v4357 = vpop.permute.xlu0 %4356
        %4358 = vrot.lane.b32.xlu0 %v4309, 64
        %v4359 = vpop.permute.xlu0 %4358
        %4360 = vrot.lane.b32.xlu0 %v4310, 64
        %v4361 = vpop.permute.xlu0 %4360
        %4362 = vrot.lane.b32.xlu0 %v4311, 64
        %v4363 = vpop.permute.xlu0 %4362
        %4372 = vrot.lane.b32.xlu0 %v4316, 64
        %v4373 = vpop.permute.xlu0 %4372
        %4374 = vrot.lane.b32.xlu0 %v4317, 64
        %v4375 = vpop.permute.xlu0 %4374
        %4376 = vrot.lane.b32.xlu0 %v4318, 64
        %v4377 = vpop.permute.xlu0 %4376
        %4378 = vrot.lane.b32.xlu0 %v4319, 64
        %v4379 = vpop.permute.xlu0 %4378
        %4388 = vrot.lane.b32.xlu0 %v4324, 64
        %v4389 = vpop.permute.xlu0 %4388
        %4390 = vrot.lane.b32.xlu0 %v4325, 64
        %v4391 = vpop.permute.xlu0 %4390
        %4392 = vrot.lane.b32.xlu0 %v4326, 64
        %v4393 = vpop.permute.xlu0 %4392
        %4394 = vrot.lane.b32.xlu0 %v4327, 64
        %v4395 = vpop.permute.xlu0 %4394
        %4404 = vrot.lane.b32.xlu0 %v4332, 64
        %v4405 = vpop.permute.xlu0 %4404
        %4406 = vrot.lane.b32.xlu0 %v4333, 64
        %v4407 = vpop.permute.xlu0 %4406
        %4408 = vrot.lane.b32.xlu0 %v4334, 64
        %v4409 = vpop.permute.xlu0 %4408
        %4410 = vrot.lane.b32.xlu0 %v4335, 64
        %v4411 = vpop.permute.xlu0 %4410
        %4420 = vrot.lane.b32.xlu0 %v4340, 64
        %v4421 = vpop.permute.xlu0 %4420
        %4422 = vrot.lane.b32.xlu0 %v4341, 64
        %v4423 = vpop.permute.xlu0 %4422
        %4424 = vrot.lane.b32.xlu0 %v4342, 64
        %v4425 = vpop.permute.xlu0 %4424
        %4426 = vrot.lane.b32.xlu0 %v4343, 64
        %v4427 = vpop.permute.xlu0 %4426
        %4436 = vrot.lane.b32.xlu0 %v4348, 64
        %v4437 = vpop.permute.xlu0 %4436
        %4438 = vrot.lane.b32.xlu0 %v4349, 64
        %v4439 = vpop.permute.xlu0 %4438
        %4440 = vrot.lane.b32.xlu0 %v4350, 64
        %v4441 = vpop.permute.xlu0 %4440
        %4442 = vrot.lane.b32.xlu0 %v4351, 64
        %v4443 = vpop.permute.xlu0 %4442
        %v4448 = vsel %vm1956, %v4304, %v4357
        %v4449 = vsel %vm1956, %v4305, %v4359
        %v4450 = vsel %vm1956, %v4306, %v4361
        %v4451 = vsel %vm1956, %v4307, %v4363
        %v4452 = vsel %vm1956, %v4312, %v4373
        %v4453 = vsel %vm1956, %v4313, %v4375
        %v4454 = vsel %vm1956, %v4314, %v4377
        %v4455 = vsel %vm1956, %v4315, %v4379
        %v4456 = vsel %vm1956, %v4320, %v4389
        %v4457 = vsel %vm1956, %v4321, %v4391
        %v4458 = vsel %vm1956, %v4322, %v4393
        %v4459 = vsel %vm1956, %v4323, %v4395
        %v4460 = vsel %vm1956, %v4328, %v4405
        %v4461 = vsel %vm1956, %v4329, %v4407
        %v4462 = vsel %vm1956, %v4330, %v4409
        %v4463 = vsel %vm1956, %v4331, %v4411
        %v4464 = vsel %vm1956, %v4336, %v4421
        %v4465 = vsel %vm1956, %v4337, %v4423
        %v4466 = vsel %vm1956, %v4338, %v4425
        %v4467 = vsel %vm1956, %v4339, %v4427
        %v4468 = vsel %vm1956, %v4344, %v4437
        %v4469 = vsel %vm1956, %v4345, %v4439
        %v4470 = vsel %vm1956, %v4346, %v4441
        %v4471 = vsel %vm1956, %v4347, %v4443
        %v4472 = vld [vmem:[%s785] sm:$0xff]
        %v4473 = vld [vmem:[%s785 + $0x8] sm:$0xff]
        %v4474 = vld [vmem:[%s785 + $0x10] sm:$0xff]
        %v4475 = vld [vmem:[%s785 + $0x18] sm:$0xff]
        %v4476 = vld [vmem:[%s10] sm:$0xff]
        %v4477 = vld [vmem:[%s10 + $0x8] sm:$0xff]
        %v4478 = vld [vmem:[%s10 + $0x10] sm:$0xff]
        %v4479 = vld [vmem:[%s10 + $0x18] sm:$0xff]
        %v4480 = vld [vmem:[#allocation14] sm:$0xff]
        %v4481 = vld [vmem:[#allocation14 + $0x8] sm:$0xff]
        %v4482 = vld [vmem:[#allocation14 + $0x10] sm:$0xff]
        %v4483 = vld [vmem:[#allocation14 + $0x18] sm:$0xff]
        %v4484 = vld [vmem:[#allocation14 + $0x20] sm:$0xff]
        %v4485 = vld [vmem:[#allocation14 + $0x28] sm:$0xff]
        %v4486 = vld [vmem:[#allocation14 + $0x30] sm:$0xff]
        %v4487 = vld [vmem:[#allocation14 + $0x38] sm:$0xff]
        %v4488 = vld [vmem:[#allocation14 + $0x40] sm:$0xff]
        %v4489 = vld [vmem:[#allocation14 + $0x48] sm:$0xff]
        %v4490 = vld [vmem:[#allocation14 + $0x50] sm:$0xff]
        %v4491 = vld [vmem:[#allocation14 + $0x58] sm:$0xff]
        %v4492 = vld [vmem:[#allocation14 + $0x60] sm:$0xff]
        %v4493 = vld [vmem:[#allocation14 + $0x68] sm:$0xff]
        %v4494 = vld [vmem:[#allocation14 + $0x70] sm:$0xff]
        %v4495 = vld [vmem:[#allocation14 + $0x78] sm:$0xff]
        %v4496 = vld [vmem:[#allocation14 + $0x80] sm:$0xff]
        %v4497 = vld [vmem:[#allocation14 + $0x88] sm:$0xff]
        %v4498 = vld [vmem:[#allocation14 + $0x90] sm:$0xff]
        %v4499 = vld [vmem:[#allocation14 + $0x98] sm:$0xff]
        %v4500 = vld [vmem:[#allocation14 + $0xa0] sm:$0xff]
        %v4501 = vld [vmem:[#allocation14 + $0xa8] sm:$0xff]
        %v4502 = vld [vmem:[#allocation14 + $0xb0] sm:$0xff]
        %v4503 = vld [vmem:[#allocation14 + $0xb8] sm:$0xff]
        %v4504 = vld [vmem:[#allocation14 + $0xc0] sm:$0xff]
        %v4505 = vld [vmem:[#allocation14 + $0xc8] sm:$0xff]
        %v4506 = vld [vmem:[#allocation14 + $0xd0] sm:$0xff]
        %v4507 = vld [vmem:[#allocation14 + $0xd8] sm:$0xff]
        %v4508 = vld [vmem:[#allocation14 + $0xe0] sm:$0xff]
        %v4509 = vld [vmem:[#allocation14 + $0xe8] sm:$0xff]
        %v4510 = vld [vmem:[#allocation14 + $0xf0] sm:$0xff]
        %v4511 = vld [vmem:[#allocation14 + $0xf8] sm:$0xff]
        %v4512 = vld [vmem:[#allocation14 + $0x100] sm:$0xff]
        %v4513 = vld [vmem:[#allocation14 + $0x108] sm:$0xff]
        %v4514 = vld [vmem:[#allocation14 + $0x110] sm:$0xff]
        %v4515 = vld [vmem:[#allocation14 + $0x118] sm:$0xff]
        %v4516 = vld [vmem:[#allocation14 + $0x120] sm:$0xff]
        %v4517 = vld [vmem:[#allocation14 + $0x128] sm:$0xff]
        %v4518 = vld [vmem:[#allocation14 + $0x130] sm:$0xff]
        %v4519 = vld [vmem:[#allocation14 + $0x138] sm:$0xff]
        %v4520 = vld [vmem:[#allocation14 + $0x140] sm:$0xff]
        %v4521 = vld [vmem:[#allocation14 + $0x148] sm:$0xff]
        %v4522 = vld [vmem:[#allocation14 + $0x150] sm:$0xff]
        %v4523 = vld [vmem:[#allocation14 + $0x158] sm:$0xff]
        %v4524 = vld [vmem:[#allocation14 + $0x160] sm:$0xff]
        %v4525 = vld [vmem:[#allocation14 + $0x168] sm:$0xff]
        %v4526 = vld [vmem:[#allocation14 + $0x170] sm:$0xff]
        %v4527 = vld [vmem:[#allocation14 + $0x178] sm:$0xff]
        %v4528 = vld [vmem:[#allocation14 + $0x180] sm:$0xff]
        %v4529 = vld [vmem:[#allocation14 + $0x188] sm:$0xff]
        %v4530 = vld [vmem:[#allocation14 + $0x190] sm:$0xff]
        %v4531 = vld [vmem:[#allocation14 + $0x198] sm:$0xff]
        %v4532 = vld [vmem:[#allocation14 + $0x1a0] sm:$0xff]
        %v4533 = vld [vmem:[#allocation14 + $0x1a8] sm:$0xff]
        %v4534 = vld [vmem:[#allocation14 + $0x1b0] sm:$0xff]
        %v4535 = vld [vmem:[#allocation14 + $0x1b8] sm:$0xff]
        %v4536 = vld [vmem:[#allocation14 + $0x1c0] sm:$0xff]
        %v4537 = vld [vmem:[#allocation14 + $0x1c8] sm:$0xff]
        %v4538 = vld [vmem:[#allocation14 + $0x1d0] sm:$0xff]
        %v4539 = vld [vmem:[#allocation14 + $0x1d8] sm:$0xff]
        %v4540 = vld [vmem:[#allocation14 + $0x1e0] sm:$0xff]
        %v4541 = vld [vmem:[#allocation14 + $0x1e8] sm:$0xff]
        %v4542 = vld [vmem:[#allocation14 + $0x1f0] sm:$0xff]
        %v4543 = vld [vmem:[#allocation14 + $0x1f8] sm:$0xff]
        %v4544 = vld [vmem:[#allocation14 + $0x200] sm:$0xff]
        %v4545 = vld [vmem:[#allocation14 + $0x208] sm:$0xff]
        %v4546 = vld [vmem:[#allocation14 + $0x210] sm:$0xff]
        %v4547 = vld [vmem:[#allocation14 + $0x218] sm:$0xff]
        %v4548 = vld [vmem:[#allocation14 + $0x220] sm:$0xff]
        %v4549 = vld [vmem:[#allocation14 + $0x228] sm:$0xff]
        %v4550 = vld [vmem:[#allocation14 + $0x230] sm:$0xff]
        %v4551 = vld [vmem:[#allocation14 + $0x238] sm:$0xff]
        %v4552 = vld [vmem:[#allocation14 + $0x240] sm:$0xff]
        %v4553 = vld [vmem:[#allocation14 + $0x248] sm:$0xff]
        %v4554 = vld [vmem:[#allocation14 + $0x250] sm:$0xff]
        %v4555 = vld [vmem:[#allocation14 + $0x258] sm:$0xff]
        %v4556 = vld [vmem:[#allocation14 + $0x260] sm:$0xff]
        %v4557 = vld [vmem:[#allocation14 + $0x268] sm:$0xff]
        %v4558 = vld [vmem:[#allocation14 + $0x270] sm:$0xff]
        %v4559 = vld [vmem:[#allocation14 + $0x278] sm:$0xff]
        %v4560 = vld [vmem:[#allocation14 + $0x280] sm:$0xff]
        %v4561 = vld [vmem:[#allocation14 + $0x288] sm:$0xff]
        %v4562 = vld [vmem:[#allocation14 + $0x290] sm:$0xff]
        %v4563 = vld [vmem:[#allocation14 + $0x298] sm:$0xff]
        %v4564 = vld [vmem:[#allocation14 + $0x2a0] sm:$0xff]
        %v4565 = vld [vmem:[#allocation14 + $0x2a8] sm:$0xff]
        %v4566 = vld [vmem:[#allocation14 + $0x2b0] sm:$0xff]
        %v4567 = vld [vmem:[#allocation14 + $0x2b8] sm:$0xff]
        %v4568 = vld [vmem:[#allocation14 + $0x2c0] sm:$0xff]
        %v4569 = vld [vmem:[#allocation14 + $0x2c8] sm:$0xff]
        %v4570 = vld [vmem:[#allocation14 + $0x2d0] sm:$0xff]
        %v4571 = vld [vmem:[#allocation14 + $0x2d8] sm:$0xff]
        %v4572 = vld [vmem:[#allocation14 + $0x2e0] sm:$0xff]
        %v4573 = vld [vmem:[#allocation14 + $0x2e8] sm:$0xff]
        %v4574 = vld [vmem:[#allocation14 + $0x2f0] sm:$0xff]
        %v4575 = vld [vmem:[#allocation14 + $0x2f8] sm:$0xff]
        %v4576 = vld [vmem:[#allocation14 + $0x300] sm:$0xff]
        %v4577 = vld [vmem:[#allocation14 + $0x308] sm:$0xff]
        %v4578 = vld [vmem:[#allocation14 + $0x310] sm:$0xff]
        %v4579 = vld [vmem:[#allocation14 + $0x318] sm:$0xff]
        %v4580 = vld [vmem:[#allocation14 + $0x320] sm:$0xff]
        %v4581 = vld [vmem:[#allocation14 + $0x328] sm:$0xff]
        %v4582 = vld [vmem:[#allocation14 + $0x330] sm:$0xff]
        %v4583 = vld [vmem:[#allocation14 + $0x338] sm:$0xff]
        %v4584 = vld [vmem:[#allocation14 + $0x340] sm:$0xff]
        %v4585 = vld [vmem:[#allocation14 + $0x348] sm:$0xff]
        %v4586 = vld [vmem:[#allocation14 + $0x350] sm:$0xff]
        %v4587 = vld [vmem:[#allocation14 + $0x358] sm:$0xff]
        %v4588 = vld [vmem:[#allocation14 + $0x360] sm:$0xff]
        %v4589 = vld [vmem:[#allocation14 + $0x368] sm:$0xff]
        %v4590 = vld [vmem:[#allocation14 + $0x370] sm:$0xff]
        %v4591 = vld [vmem:[#allocation14 + $0x378] sm:$0xff]
        %v4592 = vld [vmem:[#allocation14 + $0x380] sm:$0xff]
        %v4593 = vld [vmem:[#allocation14 + $0x388] sm:$0xff]
        %v4594 = vld [vmem:[#allocation14 + $0x390] sm:$0xff]
        %v4595 = vld [vmem:[#allocation14 + $0x398] sm:$0xff]
        %v4596 = vld [vmem:[#allocation14 + $0x3a0] sm:$0xff]
        %v4597 = vld [vmem:[#allocation14 + $0x3a8] sm:$0xff]
        %v4598 = vld [vmem:[#allocation14 + $0x3b0] sm:$0xff]
        %v4599 = vld [vmem:[#allocation14 + $0x3b8] sm:$0xff]
        %v4600 = vld [vmem:[#allocation14 + $0x3c0] sm:$0xff]
        %v4601 = vld [vmem:[#allocation14 + $0x3c8] sm:$0xff]
        %v4602 = vld [vmem:[#allocation14 + $0x3d0] sm:$0xff]
        %v4603 = vld [vmem:[#allocation14 + $0x3d8] sm:$0xff]
        %v4604 = vld [vmem:[#allocation14 + $0x3e0] sm:$0xff]
        %v4605 = vld [vmem:[#allocation14 + $0x3e8] sm:$0xff]
        %v4606 = vld [vmem:[#allocation14 + $0x3f0] sm:$0xff]
        %v4607 = vld [vmem:[#allocation14 + $0x3f8] sm:$0xff]
        %v4608 = vld [vmem:[#allocation14 + $0x400] sm:$0xff]
        %v4609 = vld [vmem:[#allocation14 + $0x408] sm:$0xff]
        %v4610 = vld [vmem:[#allocation14 + $0x410] sm:$0xff]
        %v4611 = vld [vmem:[#allocation14 + $0x418] sm:$0xff]
        %v4612 = vld [vmem:[#allocation14 + $0x420] sm:$0xff]
        %v4613 = vld [vmem:[#allocation14 + $0x428] sm:$0xff]
        %v4614 = vld [vmem:[#allocation14 + $0x430] sm:$0xff]
        %v4615 = vld [vmem:[#allocation14 + $0x438] sm:$0xff]
        %v4616 = vld [vmem:[#allocation14 + $0x440] sm:$0xff]
        %v4617 = vld [vmem:[#allocation14 + $0x448] sm:$0xff]
        %v4618 = vld [vmem:[#allocation14 + $0x450] sm:$0xff]
        %v4619 = vld [vmem:[#allocation14 + $0x458] sm:$0xff]
        %v4620 = vld [vmem:[#allocation14 + $0x460] sm:$0xff]
        %v4621 = vld [vmem:[#allocation14 + $0x468] sm:$0xff]
        %v4622 = vld [vmem:[#allocation14 + $0x470] sm:$0xff]
        %v4623 = vld [vmem:[#allocation14 + $0x478] sm:$0xff]
        %v4624 = vld [vmem:[#allocation14 + $0x480] sm:$0xff]
        %v4625 = vld [vmem:[#allocation14 + $0x488] sm:$0xff]
        %v4626 = vld [vmem:[#allocation14 + $0x490] sm:$0xff]
        %v4627 = vld [vmem:[#allocation14 + $0x498] sm:$0xff]
        %v4628 = vld [vmem:[#allocation14 + $0x4a0] sm:$0xff]
        %v4629 = vld [vmem:[#allocation14 + $0x4a8] sm:$0xff]
        %v4630 = vld [vmem:[#allocation14 + $0x4b0] sm:$0xff]
        %v4631 = vld [vmem:[#allocation14 + $0x4b8] sm:$0xff]
        %v4632 = vld [vmem:[#allocation14 + $0x4c0] sm:$0xff]
        %v4633 = vld [vmem:[#allocation14 + $0x4c8] sm:$0xff]
        %v4634 = vld [vmem:[#allocation14 + $0x4d0] sm:$0xff]
        %v4635 = vld [vmem:[#allocation14 + $0x4d8] sm:$0xff]
        %v4636 = vld [vmem:[#allocation14 + $0x4e0] sm:$0xff]
        %v4637 = vld [vmem:[#allocation14 + $0x4e8] sm:$0xff]
        %v4638 = vld [vmem:[#allocation14 + $0x4f0] sm:$0xff]
        %v4639 = vld [vmem:[#allocation14 + $0x4f8] sm:$0xff]
        %v4640 = vld [vmem:[#allocation14 + $0x500] sm:$0xff]
        %v4641 = vld [vmem:[#allocation14 + $0x508] sm:$0xff]
        %v4642 = vld [vmem:[#allocation14 + $0x510] sm:$0xff]
        %v4643 = vld [vmem:[#allocation14 + $0x518] sm:$0xff]
        %v4644 = vld [vmem:[#allocation14 + $0x520] sm:$0xff]
        %v4645 = vld [vmem:[#allocation14 + $0x528] sm:$0xff]
        %v4646 = vld [vmem:[#allocation14 + $0x530] sm:$0xff]
        %v4647 = vld [vmem:[#allocation14 + $0x538] sm:$0xff]
        %v4648 = vld [vmem:[#allocation14 + $0x540] sm:$0xff]
        %v4649 = vld [vmem:[#allocation14 + $0x548] sm:$0xff]
        %v4650 = vld [vmem:[#allocation14 + $0x550] sm:$0xff]
        %v4651 = vld [vmem:[#allocation14 + $0x558] sm:$0xff]
        %v4652 = vld [vmem:[#allocation14 + $0x560] sm:$0xff]
        %v4653 = vld [vmem:[#allocation14 + $0x568] sm:$0xff]
        %v4654 = vld [vmem:[#allocation14 + $0x570] sm:$0xff]
        %v4655 = vld [vmem:[#allocation14 + $0x578] sm:$0xff]
        %v4656 = vld [vmem:[#allocation14 + $0x580] sm:$0xff]
        %v4657 = vld [vmem:[#allocation14 + $0x588] sm:$0xff]
        %v4658 = vld [vmem:[#allocation14 + $0x590] sm:$0xff]
        %v4659 = vld [vmem:[#allocation14 + $0x598] sm:$0xff]
        %v4660 = vld [vmem:[#allocation14 + $0x5a0] sm:$0xff]
        %v4661 = vld [vmem:[#allocation14 + $0x5a8] sm:$0xff]
        %v4662 = vld [vmem:[#allocation14 + $0x5b0] sm:$0xff]
        %v4663 = vld [vmem:[#allocation14 + $0x5b8] sm:$0xff]
        %v4664 = vld [vmem:[#allocation14 + $0x5c0] sm:$0xff]
        %v4665 = vld [vmem:[#allocation14 + $0x5c8] sm:$0xff]
        %v4666 = vld [vmem:[#allocation14 + $0x5d0] sm:$0xff]
        %v4667 = vld [vmem:[#allocation14 + $0x5d8] sm:$0xff]
        %v4668 = vld [vmem:[#allocation14 + $0x5e0] sm:$0xff]
        %v4669 = vld [vmem:[#allocation14 + $0x5e8] sm:$0xff]
        %v4670 = vld [vmem:[#allocation14 + $0x5f0] sm:$0xff]
        %v4671 = vld [vmem:[#allocation14 + $0x5f8] sm:$0xff]
        %v4672 = vld [vmem:[#allocation14 + $0x600] sm:$0xff]
        %v4673 = vld [vmem:[#allocation14 + $0x608] sm:$0xff]
        %v4674 = vld [vmem:[#allocation14 + $0x610] sm:$0xff]
        %v4675 = vld [vmem:[#allocation14 + $0x618] sm:$0xff]
        %v4676 = vld [vmem:[#allocation14 + $0x620] sm:$0xff]
        %v4677 = vld [vmem:[#allocation14 + $0x628] sm:$0xff]
        %v4678 = vld [vmem:[#allocation14 + $0x630] sm:$0xff]
        %v4679 = vld [vmem:[#allocation14 + $0x638] sm:$0xff]
        %v4680 = vld [vmem:[#allocation14 + $0x640] sm:$0xff]
        %v4681 = vld [vmem:[#allocation14 + $0x648] sm:$0xff]
        %v4682 = vld [vmem:[#allocation14 + $0x650] sm:$0xff]
        %v4683 = vld [vmem:[#allocation14 + $0x658] sm:$0xff]
        %v4684 = vld [vmem:[#allocation14 + $0x660] sm:$0xff]
        %v4685 = vld [vmem:[#allocation14 + $0x668] sm:$0xff]
        %v4686 = vld [vmem:[#allocation14 + $0x670] sm:$0xff]
        %v4687 = vld [vmem:[#allocation14 + $0x678] sm:$0xff]
        %v4688 = vld [vmem:[#allocation14 + $0x680] sm:$0xff]
        %v4689 = vld [vmem:[#allocation14 + $0x688] sm:$0xff]
        %v4690 = vld [vmem:[#allocation14 + $0x690] sm:$0xff]
        %v4691 = vld [vmem:[#allocation14 + $0x698] sm:$0xff]
        %v4692 = vld [vmem:[#allocation14 + $0x6a0] sm:$0xff]
        %v4693 = vld [vmem:[#allocation14 + $0x6a8] sm:$0xff]
        %v4694 = vld [vmem:[#allocation14 + $0x6b0] sm:$0xff]
        %v4695 = vld [vmem:[#allocation14 + $0x6b8] sm:$0xff]
        %v4696 = vld [vmem:[#allocation14 + $0x6c0] sm:$0xff]
        %v4697 = vld [vmem:[#allocation14 + $0x6c8] sm:$0xff]
        %v4698 = vld [vmem:[#allocation14 + $0x6d0] sm:$0xff]
        %v4699 = vld [vmem:[#allocation14 + $0x6d8] sm:$0xff]
        %v4700 = vld [vmem:[#allocation14 + $0x6e0] sm:$0xff]
        %v4701 = vld [vmem:[#allocation14 + $0x6e8] sm:$0xff]
        %v4702 = vld [vmem:[#allocation14 + $0x6f0] sm:$0xff]
        %v4703 = vld [vmem:[#allocation14 + $0x6f8] sm:$0xff]
        %v4704 = vld [vmem:[#allocation14 + $0x700] sm:$0xff]
        %v4705 = vld [vmem:[#allocation14 + $0x708] sm:$0xff]
        %v4706 = vld [vmem:[#allocation14 + $0x710] sm:$0xff]
        %v4707 = vld [vmem:[#allocation14 + $0x718] sm:$0xff]
        %v4708 = vld [vmem:[#allocation14 + $0x720] sm:$0xff]
        %v4709 = vld [vmem:[#allocation14 + $0x728] sm:$0xff]
        %v4710 = vld [vmem:[#allocation14 + $0x730] sm:$0xff]
        %v4711 = vld [vmem:[#allocation14 + $0x738] sm:$0xff]
        %v4712 = vld [vmem:[#allocation14 + $0x740] sm:$0xff]
        %v4713 = vld [vmem:[#allocation14 + $0x748] sm:$0xff]
        %v4714 = vld [vmem:[#allocation14 + $0x750] sm:$0xff]
        %v4715 = vld [vmem:[#allocation14 + $0x758] sm:$0xff]
        %v4716 = vld [vmem:[#allocation14 + $0x760] sm:$0xff]
        %v4717 = vld [vmem:[#allocation14 + $0x768] sm:$0xff]
        %v4718 = vld [vmem:[#allocation14 + $0x770] sm:$0xff]
        %v4719 = vld [vmem:[#allocation14 + $0x778] sm:$0xff]
        %v4720 = vld [vmem:[#allocation14 + $0x780] sm:$0xff]
        %v4721 = vld [vmem:[#allocation14 + $0x788] sm:$0xff]
        %v4722 = vld [vmem:[#allocation14 + $0x790] sm:$0xff]
        %v4723 = vld [vmem:[#allocation14 + $0x798] sm:$0xff]
        %v4724 = vld [vmem:[#allocation14 + $0x7a0] sm:$0xff]
        %v4725 = vld [vmem:[#allocation14 + $0x7a8] sm:$0xff]
        %v4726 = vld [vmem:[#allocation14 + $0x7b0] sm:$0xff]
        %v4727 = vld [vmem:[#allocation14 + $0x7b8] sm:$0xff]
        %v4728 = vld [vmem:[#allocation14 + $0x7c0] sm:$0xff]
        %v4729 = vld [vmem:[#allocation14 + $0x7c8] sm:$0xff]
        %v4730 = vld [vmem:[#allocation14 + $0x7d0] sm:$0xff]
        %v4731 = vld [vmem:[#allocation14 + $0x7d8] sm:$0xff]
        %v4732 = vld [vmem:[#allocation14 + $0x7e0] sm:$0xff]
        %v4733 = vld [vmem:[#allocation14 + $0x7e8] sm:$0xff]
        %v4734 = vld [vmem:[#allocation14 + $0x7f0] sm:$0xff]
        %v4735 = vld [vmem:[#allocation14 + $0x7f8] sm:$0xff]
        %v4736 = vld [vmem:[#allocation14 + $0x800] sm:$0xff]
        %v4737 = vld [vmem:[#allocation14 + $0x808] sm:$0xff]
        %v4738 = vld [vmem:[#allocation14 + $0x810] sm:$0xff]
        %v4739 = vld [vmem:[#allocation14 + $0x818] sm:$0xff]
        %v4740 = vld [vmem:[#allocation14 + $0x820] sm:$0xff]
        %v4741 = vld [vmem:[#allocation14 + $0x828] sm:$0xff]
        %v4742 = vld [vmem:[#allocation14 + $0x830] sm:$0xff]
        %v4743 = vld [vmem:[#allocation14 + $0x838] sm:$0xff]
        %v4744 = vld [vmem:[#allocation14 + $0x840] sm:$0xff]
        %v4745 = vld [vmem:[#allocation14 + $0x848] sm:$0xff]
        %v4746 = vld [vmem:[#allocation14 + $0x850] sm:$0xff]
        %v4747 = vld [vmem:[#allocation14 + $0x858] sm:$0xff]
        %v4748 = vld [vmem:[#allocation14 + $0x860] sm:$0xff]
        %v4749 = vld [vmem:[#allocation14 + $0x868] sm:$0xff]
        %v4750 = vld [vmem:[#allocation14 + $0x870] sm:$0xff]
        %v4751 = vld [vmem:[#allocation14 + $0x878] sm:$0xff]
        %v4752 = vld [vmem:[#allocation14 + $0x880] sm:$0xff]
        %v4753 = vld [vmem:[#allocation14 + $0x888] sm:$0xff]
        %v4754 = vld [vmem:[#allocation14 + $0x890] sm:$0xff]
        %v4755 = vld [vmem:[#allocation14 + $0x898] sm:$0xff]
        %v4756 = vld [vmem:[#allocation14 + $0x8a0] sm:$0xff]
        %v4757 = vld [vmem:[#allocation14 + $0x8a8] sm:$0xff]
        %v4758 = vld [vmem:[#allocation14 + $0x8b0] sm:$0xff]
        %v4759 = vld [vmem:[#allocation14 + $0x8b8] sm:$0xff]
        %v4760 = vld [vmem:[#allocation14 + $0x8c0] sm:$0xff]
        %v4761 = vld [vmem:[#allocation14 + $0x8c8] sm:$0xff]
        %v4762 = vld [vmem:[#allocation14 + $0x8d0] sm:$0xff]
        %v4763 = vld [vmem:[#allocation14 + $0x8d8] sm:$0xff]
        %v4764 = vld [vmem:[#allocation14 + $0x8e0] sm:$0xff]
        %v4765 = vld [vmem:[#allocation14 + $0x8e8] sm:$0xff]
        %v4766 = vld [vmem:[#allocation14 + $0x8f0] sm:$0xff]
        %v4767 = vld [vmem:[#allocation14 + $0x8f8] sm:$0xff]
        %v4768 = vld [vmem:[#allocation14 + $0x900] sm:$0xff]
        %v4769 = vld [vmem:[#allocation14 + $0x908] sm:$0xff]
        %v4770 = vld [vmem:[#allocation14 + $0x910] sm:$0xff]
        %v4771 = vld [vmem:[#allocation14 + $0x918] sm:$0xff]
        %v4772 = vld [vmem:[#allocation14 + $0x920] sm:$0xff]
        %v4773 = vld [vmem:[#allocation14 + $0x928] sm:$0xff]
        %v4774 = vld [vmem:[#allocation14 + $0x930] sm:$0xff]
        %v4775 = vld [vmem:[#allocation14 + $0x938] sm:$0xff]
        %v4776 = vld [vmem:[#allocation14 + $0x940] sm:$0xff]
        %v4777 = vld [vmem:[#allocation14 + $0x948] sm:$0xff]
        %v4778 = vld [vmem:[#allocation14 + $0x950] sm:$0xff]
        %v4779 = vld [vmem:[#allocation14 + $0x958] sm:$0xff]
        %v4780 = vld [vmem:[#allocation14 + $0x960] sm:$0xff]
        %v4781 = vld [vmem:[#allocation14 + $0x968] sm:$0xff]
        %v4782 = vld [vmem:[#allocation14 + $0x970] sm:$0xff]
        %v4783 = vld [vmem:[#allocation14 + $0x978] sm:$0xff]
        %v4784 = vld [vmem:[#allocation14 + $0x980] sm:$0xff]
        %v4785 = vld [vmem:[#allocation14 + $0x988] sm:$0xff]
        %v4786 = vld [vmem:[#allocation14 + $0x990] sm:$0xff]
        %v4787 = vld [vmem:[#allocation14 + $0x998] sm:$0xff]
        %v4788 = vld [vmem:[#allocation14 + $0x9a0] sm:$0xff]
        %v4789 = vld [vmem:[#allocation14 + $0x9a8] sm:$0xff]
        %v4790 = vld [vmem:[#allocation14 + $0x9b0] sm:$0xff]
        %v4791 = vld [vmem:[#allocation14 + $0x9b8] sm:$0xff]
        %v4792 = vld [vmem:[#allocation14 + $0x9c0] sm:$0xff]
        %v4793 = vld [vmem:[#allocation14 + $0x9c8] sm:$0xff]
        %v4794 = vld [vmem:[#allocation14 + $0x9d0] sm:$0xff]
        %v4795 = vld [vmem:[#allocation14 + $0x9d8] sm:$0xff]
        %v4796 = vld [vmem:[#allocation14 + $0x9e0] sm:$0xff]
        %v4797 = vld [vmem:[#allocation14 + $0x9e8] sm:$0xff]
        %v4798 = vld [vmem:[#allocation14 + $0x9f0] sm:$0xff]
        %v4799 = vld [vmem:[#allocation14 + $0x9f8] sm:$0xff]
        %v4800 = vld [vmem:[#allocation14 + $0xa00] sm:$0xff]
        %v4801 = vld [vmem:[#allocation14 + $0xa08] sm:$0xff]
        %v4802 = vld [vmem:[#allocation14 + $0xa10] sm:$0xff]
        %v4803 = vld [vmem:[#allocation14 + $0xa18] sm:$0xff]
        %v4804 = vld [vmem:[#allocation14 + $0xa20] sm:$0xff]
        %v4805 = vld [vmem:[#allocation14 + $0xa28] sm:$0xff]
        %v4806 = vld [vmem:[#allocation14 + $0xa30] sm:$0xff]
        %v4807 = vld [vmem:[#allocation14 + $0xa38] sm:$0xff]
        %v4808 = vld [vmem:[#allocation14 + $0xa40] sm:$0xff]
        %v4809 = vld [vmem:[#allocation14 + $0xa48] sm:$0xff]
        %v4810 = vld [vmem:[#allocation14 + $0xa50] sm:$0xff]
        %v4811 = vld [vmem:[#allocation14 + $0xa58] sm:$0xff]
        %v4812 = vld [vmem:[#allocation14 + $0xa60] sm:$0xff]
        %v4813 = vld [vmem:[#allocation14 + $0xa68] sm:$0xff]
        %v4814 = vld [vmem:[#allocation14 + $0xa70] sm:$0xff]
        %v4815 = vld [vmem:[#allocation14 + $0xa78] sm:$0xff]
        %v4816 = vld [vmem:[#allocation14 + $0xa80] sm:$0xff]
        %v4817 = vld [vmem:[#allocation14 + $0xa88] sm:$0xff]
        %v4818 = vld [vmem:[#allocation14 + $0xa90] sm:$0xff]
        %v4819 = vld [vmem:[#allocation14 + $0xa98] sm:$0xff]
        %v4820 = vld [vmem:[#allocation14 + $0xaa0] sm:$0xff]
        %v4821 = vld [vmem:[#allocation14 + $0xaa8] sm:$0xff]
        %v4822 = vld [vmem:[#allocation14 + $0xab0] sm:$0xff]
        %v4823 = vld [vmem:[#allocation14 + $0xab8] sm:$0xff]
        %v4824 = vld [vmem:[#allocation14 + $0xac0] sm:$0xff]
        %v4825 = vld [vmem:[#allocation14 + $0xac8] sm:$0xff]
        %v4826 = vld [vmem:[#allocation14 + $0xad0] sm:$0xff]
        %v4827 = vld [vmem:[#allocation14 + $0xad8] sm:$0xff]
        %v4828 = vld [vmem:[#allocation14 + $0xae0] sm:$0xff]
        %v4829 = vld [vmem:[#allocation14 + $0xae8] sm:$0xff]
        %v4830 = vld [vmem:[#allocation14 + $0xaf0] sm:$0xff]
        %v4831 = vld [vmem:[#allocation14 + $0xaf8] sm:$0xff]
        %v4832 = vld [vmem:[#allocation14 + $0xb00] sm:$0xff]
        %v4833 = vld [vmem:[#allocation14 + $0xb08] sm:$0xff]
        %v4834 = vld [vmem:[#allocation14 + $0xb10] sm:$0xff]
        %v4835 = vld [vmem:[#allocation14 + $0xb18] sm:$0xff]
        %v4836 = vld [vmem:[#allocation14 + $0xb20] sm:$0xff]
        %v4837 = vld [vmem:[#allocation14 + $0xb28] sm:$0xff]
        %v4838 = vld [vmem:[#allocation14 + $0xb30] sm:$0xff]
        %v4839 = vld [vmem:[#allocation14 + $0xb38] sm:$0xff]
        %v4840 = vld [vmem:[#allocation14 + $0xb40] sm:$0xff]
        %v4841 = vld [vmem:[#allocation14 + $0xb48] sm:$0xff]
        %v4842 = vld [vmem:[#allocation14 + $0xb50] sm:$0xff]
        %v4843 = vld [vmem:[#allocation14 + $0xb58] sm:$0xff]
        %v4844 = vld [vmem:[#allocation14 + $0xb60] sm:$0xff]
        %v4845 = vld [vmem:[#allocation14 + $0xb68] sm:$0xff]
        %v4846 = vld [vmem:[#allocation14 + $0xb70] sm:$0xff]
        %v4847 = vld [vmem:[#allocation14 + $0xb78] sm:$0xff]
        %v4848 = vld [vmem:[#allocation14 + $0xb80] sm:$0xff]
        %v4849 = vld [vmem:[#allocation14 + $0xb88] sm:$0xff]
        %v4850 = vld [vmem:[#allocation14 + $0xb90] sm:$0xff]
        %v4851 = vld [vmem:[#allocation14 + $0xb98] sm:$0xff]
        %v4852 = vld [vmem:[#allocation14 + $0xba0] sm:$0xff]
        %v4853 = vld [vmem:[#allocation14 + $0xba8] sm:$0xff]
        %v4854 = vld [vmem:[#allocation14 + $0xbb0] sm:$0xff]
        %v4855 = vld [vmem:[#allocation14 + $0xbb8] sm:$0xff]
        %v4856 = vld [vmem:[#allocation14 + $0xbc0] sm:$0xff]
        %v4857 = vld [vmem:[#allocation14 + $0xbc8] sm:$0xff]
        %v4858 = vld [vmem:[#allocation14 + $0xbd0] sm:$0xff]
        %v4859 = vld [vmem:[#allocation14 + $0xbd8] sm:$0xff]
        %v4860 = vld [vmem:[#allocation14 + $0xbe0] sm:$0xff]
        %v4861 = vld [vmem:[#allocation14 + $0xbe8] sm:$0xff]
        %v4862 = vld [vmem:[#allocation14 + $0xbf0] sm:$0xff]
        %v4863 = vld [vmem:[#allocation14 + $0xbf8] sm:$0xff]
        %v4864 = vld [vmem:[#allocation14 + $0xc00] sm:$0xff]
        %v4865 = vld [vmem:[#allocation14 + $0xc08] sm:$0xff]
        %v4866 = vld [vmem:[#allocation14 + $0xc10] sm:$0xff]
        %v4867 = vld [vmem:[#allocation14 + $0xc18] sm:$0xff]
        %v4868 = vld [vmem:[#allocation14 + $0xc20] sm:$0xff]
        %v4869 = vld [vmem:[#allocation14 + $0xc28] sm:$0xff]
        %v4870 = vld [vmem:[#allocation14 + $0xc30] sm:$0xff]
        %v4871 = vld [vmem:[#allocation14 + $0xc38] sm:$0xff]
        %v4872 = vld [vmem:[#allocation14 + $0xc40] sm:$0xff]
        %v4873 = vld [vmem:[#allocation14 + $0xc48] sm:$0xff]
        %v4874 = vld [vmem:[#allocation14 + $0xc50] sm:$0xff]
        %v4875 = vld [vmem:[#allocation14 + $0xc58] sm:$0xff]
        %v4876 = vld [vmem:[#allocation14 + $0xc60] sm:$0xff]
        %v4877 = vld [vmem:[#allocation14 + $0xc68] sm:$0xff]
        %v4878 = vld [vmem:[#allocation14 + $0xc70] sm:$0xff]
        %v4879 = vld [vmem:[#allocation14 + $0xc78] sm:$0xff]
        %v4880 = vld [vmem:[#allocation14 + $0xc80] sm:$0xff]
        %v4881 = vld [vmem:[#allocation14 + $0xc88] sm:$0xff]
        %v4882 = vld [vmem:[#allocation14 + $0xc90] sm:$0xff]
        %v4883 = vld [vmem:[#allocation14 + $0xc98] sm:$0xff]
        %v4884 = vld [vmem:[#allocation14 + $0xca0] sm:$0xff]
        %v4885 = vld [vmem:[#allocation14 + $0xca8] sm:$0xff]
        %v4886 = vld [vmem:[#allocation14 + $0xcb0] sm:$0xff]
        %v4887 = vld [vmem:[#allocation14 + $0xcb8] sm:$0xff]
        %v4888 = vld [vmem:[#allocation14 + $0xcc0] sm:$0xff]
        %v4889 = vld [vmem:[#allocation14 + $0xcc8] sm:$0xff]
        %v4890 = vld [vmem:[#allocation14 + $0xcd0] sm:$0xff]
        %v4891 = vld [vmem:[#allocation14 + $0xcd8] sm:$0xff]
        %v4892 = vld [vmem:[#allocation14 + $0xce0] sm:$0xff]
        %v4893 = vld [vmem:[#allocation14 + $0xce8] sm:$0xff]
        %v4894 = vld [vmem:[#allocation14 + $0xcf0] sm:$0xff]
        %v4895 = vld [vmem:[#allocation14 + $0xcf8] sm:$0xff]
        %v4896 = vld [vmem:[#allocation14 + $0xd00] sm:$0xff]
        %v4897 = vld [vmem:[#allocation14 + $0xd08] sm:$0xff]
        %v4898 = vld [vmem:[#allocation14 + $0xd10] sm:$0xff]
        %v4899 = vld [vmem:[#allocation14 + $0xd18] sm:$0xff]
        %v4900 = vld [vmem:[#allocation14 + $0xd20] sm:$0xff]
        %v4901 = vld [vmem:[#allocation14 + $0xd28] sm:$0xff]
        %v4902 = vld [vmem:[#allocation14 + $0xd30] sm:$0xff]
        %v4903 = vld [vmem:[#allocation14 + $0xd38] sm:$0xff]
        %v4904 = vld [vmem:[#allocation14 + $0xd40] sm:$0xff]
        %v4905 = vld [vmem:[#allocation14 + $0xd48] sm:$0xff]
        %v4906 = vld [vmem:[#allocation14 + $0xd50] sm:$0xff]
        %v4907 = vld [vmem:[#allocation14 + $0xd58] sm:$0xff]
        %v4908 = vld [vmem:[#allocation14 + $0xd60] sm:$0xff]
        %v4909 = vld [vmem:[#allocation14 + $0xd68] sm:$0xff]
        %v4910 = vld [vmem:[#allocation14 + $0xd70] sm:$0xff]
        %v4911 = vld [vmem:[#allocation14 + $0xd78] sm:$0xff]
        %v4912 = vld [vmem:[#allocation14 + $0xd80] sm:$0xff]
        %v4913 = vld [vmem:[#allocation14 + $0xd88] sm:$0xff]
        %v4914 = vld [vmem:[#allocation14 + $0xd90] sm:$0xff]
        %v4915 = vld [vmem:[#allocation14 + $0xd98] sm:$0xff]
        %v4916 = vld [vmem:[#allocation14 + $0xda0] sm:$0xff]
        %v4917 = vld [vmem:[#allocation14 + $0xda8] sm:$0xff]
        %v4918 = vld [vmem:[#allocation14 + $0xdb0] sm:$0xff]
        %v4919 = vld [vmem:[#allocation14 + $0xdb8] sm:$0xff]
        %v4920 = vld [vmem:[#allocation14 + $0xdc0] sm:$0xff]
        %v4921 = vld [vmem:[#allocation14 + $0xdc8] sm:$0xff]
        %v4922 = vld [vmem:[#allocation14 + $0xdd0] sm:$0xff]
        %v4923 = vld [vmem:[#allocation14 + $0xdd8] sm:$0xff]
        %v4924 = vld [vmem:[#allocation14 + $0xde0] sm:$0xff]
        %v4925 = vld [vmem:[#allocation14 + $0xde8] sm:$0xff]
        %v4926 = vld [vmem:[#allocation14 + $0xdf0] sm:$0xff]
        %v4927 = vld [vmem:[#allocation14 + $0xdf8] sm:$0xff]
        %v4928 = vld [vmem:[#allocation14 + $0xe00] sm:$0xff]
        %v4929 = vld [vmem:[#allocation14 + $0xe08] sm:$0xff]
        %v4930 = vld [vmem:[#allocation14 + $0xe10] sm:$0xff]
        %v4931 = vld [vmem:[#allocation14 + $0xe18] sm:$0xff]
        %v4932 = vld [vmem:[#allocation14 + $0xe20] sm:$0xff]
        %v4933 = vld [vmem:[#allocation14 + $0xe28] sm:$0xff]
        %v4934 = vld [vmem:[#allocation14 + $0xe30] sm:$0xff]
        %v4935 = vld [vmem:[#allocation14 + $0xe38] sm:$0xff]
        %v4936 = vld [vmem:[#allocation14 + $0xe40] sm:$0xff]
        %v4937 = vld [vmem:[#allocation14 + $0xe48] sm:$0xff]
        %v4938 = vld [vmem:[#allocation14 + $0xe50] sm:$0xff]
        %v4939 = vld [vmem:[#allocation14 + $0xe58] sm:$0xff]
        %v4940 = vld [vmem:[#allocation14 + $0xe60] sm:$0xff]
        %v4941 = vld [vmem:[#allocation14 + $0xe68] sm:$0xff]
        %v4942 = vld [vmem:[#allocation14 + $0xe70] sm:$0xff]
        %v4943 = vld [vmem:[#allocation14 + $0xe78] sm:$0xff]
        %v4944 = vld [vmem:[#allocation14 + $0xe80] sm:$0xff]
        %v4945 = vld [vmem:[#allocation14 + $0xe88] sm:$0xff]
        %v4946 = vld [vmem:[#allocation14 + $0xe90] sm:$0xff]
        %v4947 = vld [vmem:[#allocation14 + $0xe98] sm:$0xff]
        %v4948 = vld [vmem:[#allocation14 + $0xea0] sm:$0xff]
        %v4949 = vld [vmem:[#allocation14 + $0xea8] sm:$0xff]
        %v4950 = vld [vmem:[#allocation14 + $0xeb0] sm:$0xff]
        %v4951 = vld [vmem:[#allocation14 + $0xeb8] sm:$0xff]
        %v4952 = vld [vmem:[#allocation14 + $0xec0] sm:$0xff]
        %v4953 = vld [vmem:[#allocation14 + $0xec8] sm:$0xff]
        %v4954 = vld [vmem:[#allocation14 + $0xed0] sm:$0xff]
        %v4955 = vld [vmem:[#allocation14 + $0xed8] sm:$0xff]
        %v4956 = vld [vmem:[#allocation14 + $0xee0] sm:$0xff]
        %v4957 = vld [vmem:[#allocation14 + $0xee8] sm:$0xff]
        %v4958 = vld [vmem:[#allocation14 + $0xef0] sm:$0xff]
        %v4959 = vld [vmem:[#allocation14 + $0xef8] sm:$0xff]
        %v4960 = vld [vmem:[#allocation14 + $0xf00] sm:$0xff]
        %v4961 = vld [vmem:[#allocation14 + $0xf08] sm:$0xff]
        %v4962 = vld [vmem:[#allocation14 + $0xf10] sm:$0xff]
        %v4963 = vld [vmem:[#allocation14 + $0xf18] sm:$0xff]
        %v4964 = vld [vmem:[#allocation14 + $0xf20] sm:$0xff]
        %v4965 = vld [vmem:[#allocation14 + $0xf28] sm:$0xff]
        %v4966 = vld [vmem:[#allocation14 + $0xf30] sm:$0xff]
        %v4967 = vld [vmem:[#allocation14 + $0xf38] sm:$0xff]
        %v4968 = vld [vmem:[#allocation14 + $0xf40] sm:$0xff]
        %v4969 = vld [vmem:[#allocation14 + $0xf48] sm:$0xff]
        %v4970 = vld [vmem:[#allocation14 + $0xf50] sm:$0xff]
        %v4971 = vld [vmem:[#allocation14 + $0xf58] sm:$0xff]
        %v4972 = vld [vmem:[#allocation14 + $0xf60] sm:$0xff]
        %v4973 = vld [vmem:[#allocation14 + $0xf68] sm:$0xff]
        %v4974 = vld [vmem:[#allocation14 + $0xf70] sm:$0xff]
        %v4975 = vld [vmem:[#allocation14 + $0xf78] sm:$0xff]
        %v4976 = vld [vmem:[#allocation14 + $0xf80] sm:$0xff]
        %v4977 = vld [vmem:[#allocation14 + $0xf88] sm:$0xff]
        %v4978 = vld [vmem:[#allocation14 + $0xf90] sm:$0xff]
        %v4979 = vld [vmem:[#allocation14 + $0xf98] sm:$0xff]
        %v4980 = vld [vmem:[#allocation14 + $0xfa0] sm:$0xff]
        %v4981 = vld [vmem:[#allocation14 + $0xfa8] sm:$0xff]
        %v4982 = vld [vmem:[#allocation14 + $0xfb0] sm:$0xff]
        %v4983 = vld [vmem:[#allocation14 + $0xfb8] sm:$0xff]
        %v4984 = vld [vmem:[#allocation14 + $0xfc0] sm:$0xff]
        %v4985 = vld [vmem:[#allocation14 + $0xfc8] sm:$0xff]
        %v4986 = vld [vmem:[#allocation14 + $0xfd0] sm:$0xff]
        %v4987 = vld [vmem:[#allocation14 + $0xfd8] sm:$0xff]
        %v4988 = vld [vmem:[#allocation14 + $0xfe0] sm:$0xff]
        %v4989 = vld [vmem:[#allocation14 + $0xfe8] sm:$0xff]
        %v4990 = vld [vmem:[#allocation14 + $0xff0] sm:$0xff]
        %v4991 = vld [vmem:[#allocation14 + $0xff8] sm:$0xff]
        %v4992 = vld [vmem:[#allocation14 + $0x1000] sm:$0xff]
        %v4993 = vld [vmem:[#allocation14 + $0x1008] sm:$0xff]
        %v4994 = vld [vmem:[#allocation14 + $0x1010] sm:$0xff]
        %v4995 = vld [vmem:[#allocation14 + $0x1018] sm:$0xff]
        %v4996 = vld [vmem:[#allocation14 + $0x1020] sm:$0xff]
        %v4997 = vld [vmem:[#allocation14 + $0x1028] sm:$0xff]
        %v4998 = vld [vmem:[#allocation14 + $0x1030] sm:$0xff]
        %v4999 = vld [vmem:[#allocation14 + $0x1038] sm:$0xff]
        %v5000 = vld [vmem:[#allocation14 + $0x1040] sm:$0xff]
        %v5001 = vld [vmem:[#allocation14 + $0x1048] sm:$0xff]
        %v5002 = vld [vmem:[#allocation14 + $0x1050] sm:$0xff]
        %v5003 = vld [vmem:[#allocation14 + $0x1058] sm:$0xff]
        %v5004 = vld [vmem:[#allocation14 + $0x1060] sm:$0xff]
        %v5005 = vld [vmem:[#allocation14 + $0x1068] sm:$0xff]
        %v5006 = vld [vmem:[#allocation14 + $0x1070] sm:$0xff]
        %v5007 = vld [vmem:[#allocation14 + $0x1078] sm:$0xff]
        %v5008 = vld [vmem:[#allocation14 + $0x1080] sm:$0xff]
        %v5009 = vld [vmem:[#allocation14 + $0x1088] sm:$0xff]
        %v5010 = vld [vmem:[#allocation14 + $0x1090] sm:$0xff]
        %v5011 = vld [vmem:[#allocation14 + $0x1098] sm:$0xff]
        %v5012 = vld [vmem:[#allocation14 + $0x10a0] sm:$0xff]
        %v5013 = vld [vmem:[#allocation14 + $0x10a8] sm:$0xff]
        %v5014 = vld [vmem:[#allocation14 + $0x10b0] sm:$0xff]
        %v5015 = vld [vmem:[#allocation14 + $0x10b8] sm:$0xff]
        %v5016 = vld [vmem:[#allocation14 + $0x10c0] sm:$0xff]
        %v5017 = vld [vmem:[#allocation14 + $0x10c8] sm:$0xff]
        %v5018 = vld [vmem:[#allocation14 + $0x10d0] sm:$0xff]
        %v5019 = vld [vmem:[#allocation14 + $0x10d8] sm:$0xff]
        %v5020 = vld [vmem:[#allocation14 + $0x10e0] sm:$0xff]
        %v5021 = vld [vmem:[#allocation14 + $0x10e8] sm:$0xff]
        %v5022 = vld [vmem:[#allocation14 + $0x10f0] sm:$0xff]
        %v5023 = vld [vmem:[#allocation14 + $0x10f8] sm:$0xff]
        %v5024 = vld [vmem:[#allocation14 + $0x1100] sm:$0xff]
        %v5025 = vld [vmem:[#allocation14 + $0x1108] sm:$0xff]
        %v5026 = vld [vmem:[#allocation14 + $0x1110] sm:$0xff]
        %v5027 = vld [vmem:[#allocation14 + $0x1118] sm:$0xff]
        %v5028 = vld [vmem:[#allocation14 + $0x1120] sm:$0xff]
        %v5029 = vld [vmem:[#allocation14 + $0x1128] sm:$0xff]
        %v5030 = vld [vmem:[#allocation14 + $0x1130] sm:$0xff]
        %v5031 = vld [vmem:[#allocation14 + $0x1138] sm:$0xff]
        %v5032 = vld [vmem:[#allocation14 + $0x1140] sm:$0xff]
        %v5033 = vld [vmem:[#allocation14 + $0x1148] sm:$0xff]
        %v5034 = vld [vmem:[#allocation14 + $0x1150] sm:$0xff]
        %v5035 = vld [vmem:[#allocation14 + $0x1158] sm:$0xff]
        %v5036 = vld [vmem:[#allocation14 + $0x1160] sm:$0xff]
        %v5037 = vld [vmem:[#allocation14 + $0x1168] sm:$0xff]
        %v5038 = vld [vmem:[#allocation14 + $0x1170] sm:$0xff]
        %v5039 = vld [vmem:[#allocation14 + $0x1178] sm:$0xff]
        %v5040 = vld [vmem:[#allocation14 + $0x1180] sm:$0xff]
        %v5041 = vld [vmem:[#allocation14 + $0x1188] sm:$0xff]
        %v5042 = vld [vmem:[#allocation14 + $0x1190] sm:$0xff]
        %v5043 = vld [vmem:[#allocation14 + $0x1198] sm:$0xff]
        %v5044 = vld [vmem:[#allocation14 + $0x11a0] sm:$0xff]
        %v5045 = vld [vmem:[#allocation14 + $0x11a8] sm:$0xff]
        %v5046 = vld [vmem:[#allocation14 + $0x11b0] sm:$0xff]
        %v5047 = vld [vmem:[#allocation14 + $0x11b8] sm:$0xff]
        %v5048 = vld [vmem:[#allocation14 + $0x11c0] sm:$0xff]
        %v5049 = vld [vmem:[#allocation14 + $0x11c8] sm:$0xff]
        %v5050 = vld [vmem:[#allocation14 + $0x11d0] sm:$0xff]
        %v5051 = vld [vmem:[#allocation14 + $0x11d8] sm:$0xff]
        %v5052 = vld [vmem:[#allocation14 + $0x11e0] sm:$0xff]
        %v5053 = vld [vmem:[#allocation14 + $0x11e8] sm:$0xff]
        %v5054 = vld [vmem:[#allocation14 + $0x11f0] sm:$0xff]
        %v5055 = vld [vmem:[#allocation14 + $0x11f8] sm:$0xff]
        %v5057 = vsel %vm3062, %v4472, 0
        %v5060 = vsel %vm3062, %v4473, 0
        %v5063 = vsel %vm3062, %v4474, 0
        %v5066 = vsel %vm3062, %v4475, 0
        %5068 = vmatprep.subr.mxu0 %v4452
        %5069 = vmatpush1.msra.mxu0 %v4448
        %5070 = vmatprep.subr.mxu0 %v4453
        %5071 = vmatpush1.msra.mxu0 %v4449
        %5072 = vmatprep.subr.mxu0 %v4454
        %5073 = vmatpush1.msra.mxu0 %v4450
        %5074 = vmatprep.subr.mxu0 %v4455
        %5075 = vmatpush1.msra.mxu0 %v4451
        %5076 = vmatprep.subr.mxu0 0.0
        %5077 = vmatpush1.msra.mxu0 0.0
        %5078 = vmatprep.subr.mxu0 0.0
        %5079 = vmatpush1.msra.mxu0 0.0
        %5080 = vmatprep.subr.mxu0 0.0
        %5081 = vmatpush1.msra.mxu0 0.0
        %5082 = vmatprep.subr.mxu0 0.0
        %5083 = vmatpush1.msra.mxu0 0.0
        %5084 = vmatprep.subr.mxu0 0.0
        %5085 = vmatpush1.msra.mxu0 0.0
        %5086 = vmatprep.subr.mxu0 0.0
        %5087 = vmatpush1.msra.mxu0 0.0
        %5088 = vmatprep.subr.mxu0 0.0
        %5089 = vmatpush1.msra.mxu0 0.0
        %5090 = vmatprep.subr.mxu0 0.0
        %5091 = vmatpush1.msra.mxu0 0.0
        %5092 = vmatprep.subr.mxu0 0.0
        %5093 = vmatpush1.msra.mxu0 0.0
        %5094 = vmatprep.subr.mxu0 0.0
        %5095 = vmatpush1.msra.mxu0 0.0
        %5096 = vmatprep.subr.mxu0 0.0
        %5097 = vmatpush1.msra.mxu0 0.0
        %5098 = vmatprep.subr.mxu0 0.0
        %5099 = vmatpush1.msra.mxu0 0.0
        %5100 = vmatprep.subr.mxu0 0.0
        %5101 = vmatpush1.msra.mxu0 0.0
        %5102 = vmatprep.subr.mxu0 0.0
        %5103 = vmatpush1.msra.mxu0 0.0
        %5104 = vmatprep.subr.mxu0 0.0
        %5105 = vmatpush1.msra.mxu0 0.0
        %5106 = vmatprep.subr.mxu0 0.0
        %5107 = vmatpush1.msra.mxu0 0.0
        %5108 = vmatprep.subr.mxu0 0.0
        %5109 = vmatpush1.msra.mxu0 0.0
        %5110 = vmatprep.subr.mxu0 0.0
        %5111 = vmatpush1.msra.mxu0 0.0
        %5112 = vmatprep.subr.mxu0 0.0
        %5113 = vmatpush1.msra.mxu0 0.0
        %5114 = vmatprep.subr.mxu0 0.0
        %5115 = vmatpush1.msra.mxu0 0.0
        %5116 = vmatprep.subr.mxu0 0.0
        %5117 = vmatpush1.msra.mxu0 0.0
        %5118 = vmatprep.subr.mxu0 0.0
        %5119 = vmatpush1.msra.mxu0 0.0
        %5120 = vmatprep.subr.mxu0 0.0
        %5121 = vmatpush1.msra.mxu0 0.0
        %5122 = vmatprep.subr.mxu0 0.0
        %5123 = vmatpush1.msra.mxu0 0.0
        %5124 = vmatprep.subr.mxu0 0.0
        %5125 = vmatpush1.msra.mxu0 0.0
        %5126 = vmatprep.subr.mxu0 0.0
        %5127 = vmatpush1.msra.mxu0 0.0
        %5128 = vmatprep.subr.mxu0 0.0
        %5129 = vmatpush1.msra.mxu0 0.0
        %5130 = vmatprep.subr.mxu0 0.0
        %5131 = vmatpush1.msra.mxu0 0.0
        %5132 = vmatprep.mubr.f32.mxu0 0.0
        %5133 = vmatmul.mubr.f32.gmra.mrb[0].mxu0 %v5057
        %v5134 = vpop.f32.mrb[0].mxu0
        %v5135 = vadd.f32 0.0, %v5134
        %v5136 = vpop.f32.mrb[0].mxu0
        %v5137 = vadd.f32 0.0, %v5136
        %5138 = vmatprep.mubr.f32.mxu0 0.0
        %5139 = vmatmul.mubr.f32.gmra.mrb[0].mxu0 %v5060
        %v5140 = vpop.f32.mrb[0].mxu0
        %v5141 = vadd.f32 0.0, %v5140
        %v5142 = vpop.f32.mrb[0].mxu0
        %v5143 = vadd.f32 0.0, %v5142
        %5144 = vmatprep.mubr.f32.mxu0 0.0
        %5145 = vmatmul.mubr.f32.gmra.mrb[0].mxu0 %v5063
        %v5146 = vpop.f32.mrb[0].mxu0
        %v5147 = vadd.f32 0.0, %v5146
        %v5148 = vpop.f32.mrb[0].mxu0
        %v5149 = vadd.f32 0.0, %v5148
        %5150 = vmatprep.mubr.f32.mxu0 0.0
        %5151 = vmatmul.mubr.f32.gmra.mrb[0].mxu0 %v5066
        %v5152 = vpop.f32.mrb[0].mxu0
        %v5153 = vadd.f32 0.0, %v5152
        %v5154 = vpop.f32.mrb[0].mxu0
        %v5155 = vadd.f32 0.0, %v5154
        %5156 = vdwg.mxu0
        %5157 = vmatprep.subr.mxu0 %v4460
        %5158 = vmatpush1.msra.mxu0 %v4456
        %5159 = vmatprep.subr.mxu0 %v4461
        %5160 = vmatpush1.msra.mxu0 %v4457
        %5161 = vmatprep.subr.mxu0 %v4462
        %5162 = vmatpush1.msra.mxu0 %v4458
        %5163 = vmatprep.subr.mxu0 %v4463
        %5164 = vmatpush1.msra.mxu0 %v4459
        %5165 = vmatprep.subr.mxu0 0.0
        %5166 = vmatpush1.msra.mxu0 0.0
        %5167 = vmatprep.subr.mxu0 0.0
        %5168 = vmatpush1.msra.mxu0 0.0
        %5169 = vmatprep.subr.mxu0 0.0
        %5170 = vmatpush1.msra.mxu0 0.0
        %5171 = vmatprep.subr.mxu0 0.0
        %5172 = vmatpush1.msra.mxu0 0.0
        %5173 = vmatprep.subr.mxu0 0.0
        %5174 = vmatpush1.msra.mxu0 0.0
        %5175 = vmatprep.subr.mxu0 0.0
        %5176 = vmatpush1.msra.mxu0 0.0
        %5177 = vmatprep.subr.mxu0 0.0
        %5178 = vmatpush1.msra.mxu0 0.0
        %5179 = vmatprep.subr.mxu0 0.0
        %5180 = vmatpush1.msra.mxu0 0.0
        %5181 = vmatprep.subr.mxu0 0.0
        %5182 = vmatpush1.msra.mxu0 0.0
        %5183 = vmatprep.subr.mxu0 0.0
        %5184 = vmatpush1.msra.mxu0 0.0
        %5185 = vmatprep.subr.mxu0 0.0
        %5186 = vmatpush1.msra.mxu0 0.0
        %5187 = vmatprep.subr.mxu0 0.0
        %5188 = vmatpush1.msra.mxu0 0.0
        %5189 = vmatprep.subr.mxu0 0.0
        %5190 = vmatpush1.msra.mxu0 0.0
        %5191 = vmatprep.subr.mxu0 0.0
        %5192 = vmatpush1.msra.mxu0 0.0
        %5193 = vmatprep.subr.mxu0 0.0
        %5194 = vmatpush1.msra.mxu0 0.0
        %5195 = vmatprep.subr.mxu0 0.0
        %5196 = vmatpush1.msra.mxu0 0.0
        %5197 = vmatprep.subr.mxu0 0.0
        %5198 = vmatpush1.msra.mxu0 0.0
        %5199 = vmatprep.subr.mxu0 0.0
        %5200 = vmatpush1.msra.mxu0 0.0
        %5201 = vmatprep.subr.mxu0 0.0
        %5202 = vmatpush1.msra.mxu0 0.0
        %5203 = vmatprep.subr.mxu0 0.0
        %5204 = vmatpush1.msra.mxu0 0.0
        %5205 = vmatprep.subr.mxu0 0.0
        %5206 = vmatpush1.msra.mxu0 0.0
        %5207 = vmatprep.subr.mxu0 0.0
        %5208 = vmatpush1.msra.mxu0 0.0
        %5209 = vmatprep.subr.mxu0 0.0
        %5210 = vmatpush1.msra.mxu0 0.0
        %5211 = vmatprep.subr.mxu0 0.0
        %5212 = vmatpush1.msra.mxu0 0.0
        %5213 = vmatprep.subr.mxu0 0.0
        %5214 = vmatpush1.msra.mxu0 0.0
        %5215 = vmatprep.subr.mxu0 0.0
        %5216 = vmatpush1.msra.mxu0 0.0
        %5217 = vmatprep.subr.mxu0 0.0
        %5218 = vmatpush1.msra.mxu0 0.0
        %5219 = vmatprep.subr.mxu0 0.0
        %5220 = vmatpush1.msra.mxu0 0.0
        %5221 = vmatprep.mubr.f32.mxu0 0.0
        %5222 = vmatmul.mubr.f32.gmra.mrb[0].mxu0 %v5057
        %v5223 = vpop.f32.mrb[0].mxu0
        %v5224 = vadd.f32 0.0, %v5223
        %v5225 = vpop.f32.mrb[0].mxu0
        %v5226 = vadd.f32 0.0, %v5225
        %5227 = vmatprep.mubr.f32.mxu0 0.0
        %5228 = vmatmul.mubr.f32.gmra.mrb[0].mxu0 %v5060
        %v5229 = vpop.f32.mrb[0].mxu0
        %v5230 = vadd.f32 0.0, %v5229
        %v5231 = vpop.f32.mrb[0].mxu0
        %v5232 = vadd.f32 0.0, %v5231
        %5233 = vmatprep.mubr.f32.mxu0 0.0
        %5234 = vmatmul.mubr.f32.gmra.mrb[0].mxu0 %v5063
        %v5235 = vpop.f32.mrb[0].mxu0
        %v5236 = vadd.f32 0.0, %v5235
        %v5237 = vpop.f32.mrb[0].mxu0
        %v5238 = vadd.f32 0.0, %v5237
        %5239 = vmatprep.mubr.f32.mxu0 0.0
        %5240 = vmatmul.mubr.f32.gmra.mrb[0].mxu0 %v5066
        %v5241 = vpop.f32.mrb[0].mxu0
        %v5242 = vadd.f32 0.0, %v5241
        %v5243 = vpop.f32.mrb[0].mxu0
        %v5244 = vadd.f32 0.0, %v5243
        %5245 = vdwg.mxu0
        %5246 = vmatprep.subr.mxu0 %v4468
        %5247 = vmatpush1.msra.mxu0 %v4464
        %5248 = vmatprep.subr.mxu0 %v4469
        %5249 = vmatpush1.msra.mxu0 %v4465
        %5250 = vmatprep.subr.mxu0 %v4470
        %5251 = vmatpush1.msra.mxu0 %v4466
        %5252 = vmatprep.subr.mxu0 %v4471
        %5253 = vmatpush1.msra.mxu0 %v4467
        %5254 = vmatprep.subr.mxu0 0.0
        %5255 = vmatpush1.msra.mxu0 0.0
        %5256 = vmatprep.subr.mxu0 0.0
        %5257 = vmatpush1.msra.mxu0 0.0
        %5258 = vmatprep.subr.mxu0 0.0
        %5259 = vmatpush1.msra.mxu0 0.0
        %5260 = vmatprep.subr.mxu0 0.0
        %5261 = vmatpush1.msra.mxu0 0.0
        %5262 = vmatprep.subr.mxu0 0.0
        %5263 = vmatpush1.msra.mxu0 0.0
        %5264 = vmatprep.subr.mxu0 0.0
        %5265 = vmatpush1.msra.mxu0 0.0
        %5266 = vmatprep.subr.mxu0 0.0
        %5267 = vmatpush1.msra.mxu0 0.0
        %5268 = vmatprep.subr.mxu0 0.0
        %5269 = vmatpush1.msra.mxu0 0.0
        %5270 = vmatprep.subr.mxu0 0.0
        %5271 = vmatpush1.msra.mxu0 0.0
        %5272 = vmatprep.subr.mxu0 0.0
        %5273 = vmatpush1.msra.mxu0 0.0
        %5274 = vmatprep.subr.mxu0 0.0
        %5275 = vmatpush1.msra.mxu0 0.0
        %5276 = vmatprep.subr.mxu0 0.0
        %5277 = vmatpush1.msra.mxu0 0.0
        %5278 = vmatprep.subr.mxu0 0.0
        %5279 = vmatpush1.msra.mxu0 0.0
        %5280 = vmatprep.subr.mxu0 0.0
        %5281 = vmatpush1.msra.mxu0 0.0
        %5282 = vmatprep.subr.mxu0 0.0
        %5283 = vmatpush1.msra.mxu0 0.0
        %5284 = vmatprep.subr.mxu0 0.0
        %5285 = vmatpush1.msra.mxu0 0.0
        %5286 = vmatprep.subr.mxu0 0.0
        %5287 = vmatpush1.msra.mxu0 0.0
        %5288 = vmatprep.subr.mxu0 0.0
        %5289 = vmatpush1.msra.mxu0 0.0
        %5290 = vmatprep.subr.mxu0 0.0
        %5291 = vmatpush1.msra.mxu0 0.0
        %5292 = vmatprep.subr.mxu0 0.0
        %5293 = vmatpush1.msra.mxu0 0.0
        %5294 = vmatprep.subr.mxu0 0.0
        %5295 = vmatpush1.msra.mxu0 0.0
        %5296 = vmatprep.subr.mxu0 0.0
        %5297 = vmatpush1.msra.mxu0 0.0
        %5298 = vmatprep.subr.mxu0 0.0
        %5299 = vmatpush1.msra.mxu0 0.0
        %5300 = vmatprep.subr.mxu0 0.0
        %5301 = vmatpush1.msra.mxu0 0.0
        %5302 = vmatprep.subr.mxu0 0.0
        %5303 = vmatpush1.msra.mxu0 0.0
        %5304 = vmatprep.subr.mxu0 0.0
        %5305 = vmatpush1.msra.mxu0 0.0
        %5306 = vmatprep.subr.mxu0 0.0
        %5307 = vmatpush1.msra.mxu0 0.0
        %5308 = vmatprep.subr.mxu0 0.0
        %5309 = vmatpush1.msra.mxu0 0.0
        %5310 = vmatprep.mubr.f32.mxu0 0.0
        %5311 = vmatmul.mubr.f32.gmra.mrb[0].mxu0 %v5057
        %v5312 = vpop.f32.mrb[0].mxu0
        %v5313 = vadd.f32 0.0, %v5312
        %v5314 = vpop.f32.mrb[0].mxu0
        %v5315 = vadd.f32 0.0, %v5314
        %5316 = vmatprep.mubr.f32.mxu0 0.0
        %5317 = vmatmul.mubr.f32.gmra.mrb[0].mxu0 %v5060
        %v5318 = vpop.f32.mrb[0].mxu0
        %v5319 = vadd.f32 0.0, %v5318
        %v5320 = vpop.f32.mrb[0].mxu0
        %v5321 = vadd.f32 0.0, %v5320
        %5322 = vmatprep.mubr.f32.mxu0 0.0
        %5323 = vmatmul.mubr.f32.gmra.mrb[0].mxu0 %v5063
        %v5324 = vpop.f32.mrb[0].mxu0
        %v5325 = vadd.f32 0.0, %v5324
        %v5326 = vpop.f32.mrb[0].mxu0
        %v5327 = vadd.f32 0.0, %v5326
        %5328 = vmatprep.mubr.f32.mxu0 0.0
        %5329 = vmatmul.mubr.f32.gmra.mrb[0].mxu0 %v5066
        %v5330 = vpop.f32.mrb[0].mxu0
        %v5331 = vadd.f32 0.0, %v5330
        %v5332 = vpop.f32.mrb[0].mxu0
        %v5333 = vadd.f32 0.0, %v5332
        %5334 = vdwg.mxu0
        %5336 = vset.pattern.permute.xlu0 0
        %5337 = vperm.xlu0 %5336, %v4476
        %v5338 = vpop.permute.xlu0 %5337
        %5341 = vset.pattern.permute.xlu0 0
        %5342 = vperm.xlu0 %5341, %v4477
        %v5343 = vpop.permute.xlu0 %5342
        %5346 = vset.pattern.permute.xlu0 0
        %5347 = vperm.xlu0 %5346, %v4478
        %v5348 = vpop.permute.xlu0 %5347
        %5351 = vset.pattern.permute.xlu0 0
        %5352 = vperm.xlu0 %5351, %v4479
        %v5353 = vpop.permute.xlu0 %5352
        %v5355 = vmul.f32 %v5338, %v5135
        %v5356 = vmul.f32 %v5338, %v5137
        %v5357 = vmul.f32 %v5338, %v5224
        %v5358 = vmul.f32 %v5338, %v5226
        %v5359 = vmul.f32 %v5338, %v5313
        %v5360 = vmul.f32 %v5338, %v5315
        %v5361 = vmul.f32 %v5343, %v5141
        %v5362 = vmul.f32 %v5343, %v5143
        %v5363 = vmul.f32 %v5343, %v5230
        %v5364 = vmul.f32 %v5343, %v5232
        %v5365 = vmul.f32 %v5343, %v5319
        %v5366 = vmul.f32 %v5343, %v5321
        %v5367 = vmul.f32 %v5348, %v5147
        %v5368 = vmul.f32 %v5348, %v5149
        %v5369 = vmul.f32 %v5348, %v5236
        %v5370 = vmul.f32 %v5348, %v5238
        %v5371 = vmul.f32 %v5348, %v5325
        %v5372 = vmul.f32 %v5348, %v5327
        %v5373 = vmul.f32 %v5353, %v5153
        %v5374 = vmul.f32 %v5353, %v5155
        %v5375 = vmul.f32 %v5353, %v5242
        %v5376 = vmul.f32 %v5353, %v5244
        %v5377 = vmul.f32 %v5353, %v5331
        %v5378 = vmul.f32 %v5353, %v5333
        %5379 = vmatprep.subr.mxu0 %v4481
        %5380 = vmatpush1.msra.mxu0 %v4480
        %5381 = vmatprep.subr.mxu0 %v4487
        %5382 = vmatpush1.msra.mxu0 %v4486
        %5383 = vmatprep.subr.mxu0 %v4493
        %5384 = vmatpush1.msra.mxu0 %v4492
        %5385 = vmatprep.subr.mxu0 %v4499
        %5386 = vmatpush1.msra.mxu0 %v4498
        %5387 = vmatprep.subr.mxu0 %v4505
        %5388 = vmatpush1.msra.mxu0 %v4504
        %5389 = vmatprep.subr.mxu0 %v4511
        %5390 = vmatpush1.msra.mxu0 %v4510
        %5391 = vmatprep.subr.mxu0 %v4517
        %5392 = vmatpush1.msra.mxu0 %v4516
        %5393 = vmatprep.subr.mxu0 %v4523
        %5394 = vmatpush1.msra.mxu0 %v4522
        %5395 = vmatprep.subr.mxu0 %v4529
        %5396 = vmatpush1.msra.mxu0 %v4528
        %5397 = vmatprep.subr.mxu0 %v4535
        %5398 = vmatpush1.msra.mxu0 %v4534
        %5399 = vmatprep.subr.mxu0 %v4541
        %5400 = vmatpush1.msra.mxu0 %v4540
        %5401 = vmatprep.subr.mxu0 %v4547
        %5402 = vmatpush1.msra.mxu0 %v4546
        %5403 = vmatprep.subr.mxu0 %v4553
        %5404 = vmatpush1.msra.mxu0 %v4552
        %5405 = vmatprep.subr.mxu0 %v4559
        %5406 = vmatpush1.msra.mxu0 %v4558
        %5407 = vmatprep.subr.mxu0 %v4565
        %5408 = vmatpush1.msra.mxu0 %v4564
        %5409 = vmatprep.subr.mxu0 %v4571
        %5410 = vmatpush1.msra.mxu0 %v4570
        %5411 = vmatprep.subr.mxu0 %v4577
        %5412 = vmatpush1.msra.mxu0 %v4576
        %5413 = vmatprep.subr.mxu0 %v4583
        %5414 = vmatpush1.msra.mxu0 %v4582
        %5415 = vmatprep.subr.mxu0 %v4589
        %5416 = vmatpush1.msra.mxu0 %v4588
        %5417 = vmatprep.subr.mxu0 %v4595
        %5418 = vmatpush1.msra.mxu0 %v4594
        %5419 = vmatprep.subr.mxu0 %v4601
        %5420 = vmatpush1.msra.mxu0 %v4600
        %5421 = vmatprep.subr.mxu0 %v4607
        %5422 = vmatpush1.msra.mxu0 %v4606
        %5423 = vmatprep.subr.mxu0 %v4613
        %5424 = vmatpush1.msra.mxu0 %v4612
        %5425 = vmatprep.subr.mxu0 %v4619
        %5426 = vmatpush1.msra.mxu0 %v4618
        %5427 = vmatprep.subr.mxu0 %v4625
        %5428 = vmatpush1.msra.mxu0 %v4624
        %5429 = vmatprep.subr.mxu0 %v4631
        %5430 = vmatpush1.msra.mxu0 %v4630
        %5431 = vmatprep.subr.mxu0 %v4637
        %5432 = vmatpush1.msra.mxu0 %v4636
        %5433 = vmatprep.subr.mxu0 %v4643
        %5434 = vmatpush1.msra.mxu0 %v4642
        %5435 = vmatprep.subr.mxu0 %v4649
        %5436 = vmatpush1.msra.mxu0 %v4648
        %5437 = vmatprep.subr.mxu0 %v4655
        %5438 = vmatpush1.msra.mxu0 %v4654
        %5439 = vmatprep.subr.mxu0 %v4661
        %5440 = vmatpush1.msra.mxu0 %v4660
        %5441 = vmatprep.subr.mxu0 %v4667
        %5442 = vmatpush1.msra.mxu0 %v4666
        %5443 = vmatprep.mubr.f32.mxu0 %v4452
        %5444 = vmatmul.mubr.f32.gmra.mrb[0].mxu0 %v4448
        %v5445 = vpop.f32.mrb[0].mxu0
        %v5446 = vadd.f32 0.0, %v5445
        %v5447 = vpop.f32.mrb[0].mxu0
        %v5448 = vadd.f32 0.0, %v5447
        %5449 = vmatprep.mubr.f32.mxu0 %v4453
        %5450 = vmatmul.mubr.f32.gmra.mrb[0].mxu0 %v4449
        %v5451 = vpop.f32.mrb[0].mxu0
        %v5452 = vadd.f32 0.0, %v5451
        %v5453 = vpop.f32.mrb[0].mxu0
        %v5454 = vadd.f32 0.0, %v5453
        %5455 = vmatprep.mubr.f32.mxu0 %v4454
        %5456 = vmatmul.mubr.f32.gmra.mrb[0].mxu0 %v4450
        %v5457 = vpop.f32.mrb[0].mxu0
        %v5458 = vadd.f32 0.0, %v5457
        %v5459 = vpop.f32.mrb[0].mxu0
        %v5460 = vadd.f32 0.0, %v5459
        %5461 = vmatprep.mubr.f32.mxu0 %v4455
        %5462 = vmatmul.mubr.f32.gmra.mrb[0].mxu0 %v4451
        %v5463 = vpop.f32.mrb[0].mxu0
        %v5464 = vadd.f32 0.0, %v5463
        %v5465 = vpop.f32.mrb[0].mxu0
        %v5466 = vadd.f32 0.0, %v5465
        %5467 = vdwg.mxu0
        %5468 = vmatprep.subr.mxu0 %v4673
        %5469 = vmatpush1.msra.mxu0 %v4672
        %5470 = vmatprep.subr.mxu0 %v4679
        %5471 = vmatpush1.msra.mxu0 %v4678
        %5472 = vmatprep.subr.mxu0 %v4685
        %5473 = vmatpush1.msra.mxu0 %v4684
        %5474 = vmatprep.subr.mxu0 %v4691
        %5475 = vmatpush1.msra.mxu0 %v4690
        %5476 = vmatprep.subr.mxu0 %v4697
        %5477 = vmatpush1.msra.mxu0 %v4696
        %5478 = vmatprep.subr.mxu0 %v4703
        %5479 = vmatpush1.msra.mxu0 %v4702
        %5480 = vmatprep.subr.mxu0 %v4709
        %5481 = vmatpush1.msra.mxu0 %v4708
        %5482 = vmatprep.subr.mxu0 %v4715
        %5483 = vmatpush1.msra.mxu0 %v4714
        %5484 = vmatprep.subr.mxu0 %v4721
        %5485 = vmatpush1.msra.mxu0 %v4720
        %5486 = vmatprep.subr.mxu0 %v4727
        %5487 = vmatpush1.msra.mxu0 %v4726
        %5488 = vmatprep.subr.mxu0 %v4733
        %5489 = vmatpush1.msra.mxu0 %v4732
        %5490 = vmatprep.subr.mxu0 %v4739
        %5491 = vmatpush1.msra.mxu0 %v4738
        %5492 = vmatprep.subr.mxu0 %v4745
        %5493 = vmatpush1.msra.mxu0 %v4744
        %5494 = vmatprep.subr.mxu0 %v4751
        %5495 = vmatpush1.msra.mxu0 %v4750
        %5496 = vmatprep.subr.mxu0 %v4757
        %5497 = vmatpush1.msra.mxu0 %v4756
        %5498 = vmatprep.subr.mxu0 %v4763
        %5499 = vmatpush1.msra.mxu0 %v4762
        %5500 = vmatprep.subr.mxu0 %v4769
        %5501 = vmatpush1.msra.mxu0 %v4768
        %5502 = vmatprep.subr.mxu0 %v4775
        %5503 = vmatpush1.msra.mxu0 %v4774
        %5504 = vmatprep.subr.mxu0 %v4781
        %5505 = vmatpush1.msra.mxu0 %v4780
        %5506 = vmatprep.subr.mxu0 %v4787
        %5507 = vmatpush1.msra.mxu0 %v4786
        %5508 = vmatprep.subr.mxu0 %v4793
        %5509 = vmatpush1.msra.mxu0 %v4792
        %5510 = vmatprep.subr.mxu0 %v4799
        %5511 = vmatpush1.msra.mxu0 %v4798
        %5512 = vmatprep.subr.mxu0 %v4805
        %5513 = vmatpush1.msra.mxu0 %v4804
        %5514 = vmatprep.subr.mxu0 %v4811
        %5515 = vmatpush1.msra.mxu0 %v4810
        %5516 = vmatprep.subr.mxu0 %v4817
        %5517 = vmatpush1.msra.mxu0 %v4816
        %5518 = vmatprep.subr.mxu0 %v4823
        %5519 = vmatpush1.msra.mxu0 %v4822
        %5520 = vmatprep.subr.mxu0 %v4829
        %5521 = vmatpush1.msra.mxu0 %v4828
        %5522 = vmatprep.subr.mxu0 %v4835
        %5523 = vmatpush1.msra.mxu0 %v4834
        %5524 = vmatprep.subr.mxu0 %v4841
        %5525 = vmatpush1.msra.mxu0 %v4840
        %5526 = vmatprep.subr.mxu0 %v4847
        %5527 = vmatpush1.msra.mxu0 %v4846
        %5528 = vmatprep.subr.mxu0 %v4853
        %5529 = vmatpush1.msra.mxu0 %v4852
        %5530 = vmatprep.subr.mxu0 %v4859
        %5531 = vmatpush1.msra.mxu0 %v4858
        %5532 = vmatprep.mubr.f32.mxu0 %v4460
        %5533 = vmatmul.mubr.f32.gmra.mrb[0].mxu0 %v4456
        %v5534 = vpop.f32.mrb[0].mxu0
        %v5535 = vadd.f32 %v5446, %v5534
        %v5536 = vpop.f32.mrb[0].mxu0
        %v5537 = vadd.f32 %v5448, %v5536
        %5538 = vmatprep.mubr.f32.mxu0 %v4461
        %5539 = vmatmul.mubr.f32.gmra.mrb[0].mxu0 %v4457
        %v5540 = vpop.f32.mrb[0].mxu0
        %v5541 = vadd.f32 %v5452, %v5540
        %v5542 = vpop.f32.mrb[0].mxu0
        %v5543 = vadd.f32 %v5454, %v5542
        %5544 = vmatprep.mubr.f32.mxu0 %v4462
        %5545 = vmatmul.mubr.f32.gmra.mrb[0].mxu0 %v4458
        %v5546 = vpop.f32.mrb[0].mxu0
        %v5547 = vadd.f32 %v5458, %v5546
        %v5548 = vpop.f32.mrb[0].mxu0
        %v5549 = vadd.f32 %v5460, %v5548
        %5550 = vmatprep.mubr.f32.mxu0 %v4463
        %5551 = vmatmul.mubr.f32.gmra.mrb[0].mxu0 %v4459
        %v5552 = vpop.f32.mrb[0].mxu0
        %v5553 = vadd.f32 %v5464, %v5552
        %v5554 = vpop.f32.mrb[0].mxu0
        %v5555 = vadd.f32 %v5466, %v5554
        %5556 = vdwg.mxu0
        %5557 = vmatprep.subr.mxu0 %v4865
        %5558 = vmatpush1.msra.mxu0 %v4864
        %5559 = vmatprep.subr.mxu0 %v4871
        %5560 = vmatpush1.msra.mxu0 %v4870
        %5561 = vmatprep.subr.mxu0 %v4877
        %5562 = vmatpush1.msra.mxu0 %v4876
        %5563 = vmatprep.subr.mxu0 %v4883
        %5564 = vmatpush1.msra.mxu0 %v4882
        %5565 = vmatprep.subr.mxu0 %v4889
        %5566 = vmatpush1.msra.mxu0 %v4888
        %5567 = vmatprep.subr.mxu0 %v4895
        %5568 = vmatpush1.msra.mxu0 %v4894
        %5569 = vmatprep.subr.mxu0 %v4901
        %5570 = vmatpush1.msra.mxu0 %v4900
        %5571 = vmatprep.subr.mxu0 %v4907
        %5572 = vmatpush1.msra.mxu0 %v4906
        %5573 = vmatprep.subr.mxu0 %v4913
        %5574 = vmatpush1.msra.mxu0 %v4912
        %5575 = vmatprep.subr.mxu0 %v4919
        %5576 = vmatpush1.msra.mxu0 %v4918
        %5577 = vmatprep.subr.mxu0 %v4925
        %5578 = vmatpush1.msra.mxu0 %v4924
        %5579 = vmatprep.subr.mxu0 %v4931
        %5580 = vmatpush1.msra.mxu0 %v4930
        %5581 = vmatprep.subr.mxu0 %v4937
        %5582 = vmatpush1.msra.mxu0 %v4936
        %5583 = vmatprep.subr.mxu0 %v4943
        %5584 = vmatpush1.msra.mxu0 %v4942
        %5585 = vmatprep.subr.mxu0 %v4949
        %5586 = vmatpush1.msra.mxu0 %v4948
        %5587 = vmatprep.subr.mxu0 %v4955
        %5588 = vmatpush1.msra.mxu0 %v4954
        %5589 = vmatprep.subr.mxu0 %v4961
        %5590 = vmatpush1.msra.mxu0 %v4960
        %5591 = vmatprep.subr.mxu0 %v4967
        %5592 = vmatpush1.msra.mxu0 %v4966
        %5593 = vmatprep.subr.mxu0 %v4973
        %5594 = vmatpush1.msra.mxu0 %v4972
        %5595 = vmatprep.subr.mxu0 %v4979
        %5596 = vmatpush1.msra.mxu0 %v4978
        %5597 = vmatprep.subr.mxu0 %v4985
        %5598 = vmatpush1.msra.mxu0 %v4984
        %5599 = vmatprep.subr.mxu0 %v4991
        %5600 = vmatpush1.msra.mxu0 %v4990
        %5601 = vmatprep.subr.mxu0 %v4997
        %5602 = vmatpush1.msra.mxu0 %v4996
        %5603 = vmatprep.subr.mxu0 %v5003
        %5604 = vmatpush1.msra.mxu0 %v5002
        %5605 = vmatprep.subr.mxu0 %v5009
        %5606 = vmatpush1.msra.mxu0 %v5008
        %5607 = vmatprep.subr.mxu0 %v5015
        %5608 = vmatpush1.msra.mxu0 %v5014
        %5609 = vmatprep.subr.mxu0 %v5021
        %5610 = vmatpush1.msra.mxu0 %v5020
        %5611 = vmatprep.subr.mxu0 %v5027
        %5612 = vmatpush1.msra.mxu0 %v5026
        %5613 = vmatprep.subr.mxu0 %v5033
        %5614 = vmatpush1.msra.mxu0 %v5032
        %5615 = vmatprep.subr.mxu0 %v5039
        %5616 = vmatpush1.msra.mxu0 %v5038
        %5617 = vmatprep.subr.mxu0 %v5045
        %5618 = vmatpush1.msra.mxu0 %v5044
        %5619 = vmatprep.subr.mxu0 %v5051
        %5620 = vmatpush1.msra.mxu0 %v5050
        %5621 = vmatprep.mubr.f32.mxu0 %v4468
        %5622 = vmatmul.mubr.f32.gmra.mrb[0].mxu0 %v4464
        %v5623 = vpop.f32.mrb[0].mxu0
        %v5624 = vadd.f32 %v5535, %v5623
        %v5625 = vpop.f32.mrb[0].mxu0
        %v5626 = vadd.f32 %v5537, %v5625
        %5627 = vmatprep.mubr.f32.mxu0 %v4469
        %5628 = vmatmul.mubr.f32.gmra.mrb[0].mxu0 %v4465
        %v5629 = vpop.f32.mrb[0].mxu0
        %v5630 = vadd.f32 %v5541, %v5629
        %v5631 = vpop.f32.mrb[0].mxu0
        %v5632 = vadd.f32 %v5543, %v5631
        %5633 = vmatprep.mubr.f32.mxu0 %v4470
        %5634 = vmatmul.mubr.f32.gmra.mrb[0].mxu0 %v4466
        %v5635 = vpop.f32.mrb[0].mxu0
        %v5636 = vadd.f32 %v5547, %v5635
        %v5637 = vpop.f32.mrb[0].mxu0
        %v5638 = vadd.f32 %v5549, %v5637
        %5639 = vmatprep.mubr.f32.mxu0 %v4471
        %5640 = vmatmul.mubr.f32.gmra.mrb[0].mxu0 %v4467
        %v5641 = vpop.f32.mrb[0].mxu0
        %v5642 = vadd.f32 %v5553, %v5641
        %v5643 = vpop.f32.mrb[0].mxu0
        %v5644 = vadd.f32 %v5555, %v5643
        %5645 = vdwg.mxu0
        %5646 = vmatprep.subr.mxu0 %v4483
        %5647 = vmatpush1.msra.mxu0 %v4482
        %5648 = vmatprep.subr.mxu0 %v4489
        %5649 = vmatpush1.msra.mxu0 %v4488
        %5650 = vmatprep.subr.mxu0 %v4495
        %5651 = vmatpush1.msra.mxu0 %v4494
        %5652 = vmatprep.subr.mxu0 %v4501
        %5653 = vmatpush1.msra.mxu0 %v4500
        %5654 = vmatprep.subr.mxu0 %v4507
        %5655 = vmatpush1.msra.mxu0 %v4506
        %5656 = vmatprep.subr.mxu0 %v4513
        %5657 = vmatpush1.msra.mxu0 %v4512
        %5658 = vmatprep.subr.mxu0 %v4519
        %5659 = vmatpush1.msra.mxu0 %v4518
        %5660 = vmatprep.subr.mxu0 %v4525
        %5661 = vmatpush1.msra.mxu0 %v4524
        %5662 = vmatprep.subr.mxu0 %v4531
        %5663 = vmatpush1.msra.mxu0 %v4530
        %5664 = vmatprep.subr.mxu0 %v4537
        %5665 = vmatpush1.msra.mxu0 %v4536
        %5666 = vmatprep.subr.mxu0 %v4543
        %5667 = vmatpush1.msra.mxu0 %v4542
        %5668 = vmatprep.subr.mxu0 %v4549
        %5669 = vmatpush1.msra.mxu0 %v4548
        %5670 = vmatprep.subr.mxu0 %v4555
        %5671 = vmatpush1.msra.mxu0 %v4554
        %5672 = vmatprep.subr.mxu0 %v4561
        %5673 = vmatpush1.msra.mxu0 %v4560
        %5674 = vmatprep.subr.mxu0 %v4567
        %5675 = vmatpush1.msra.mxu0 %v4566
        %5676 = vmatprep.subr.mxu0 %v4573
        %5677 = vmatpush1.msra.mxu0 %v4572
        %5678 = vmatprep.subr.mxu0 %v4579
        %5679 = vmatpush1.msra.mxu0 %v4578
        %5680 = vmatprep.subr.mxu0 %v4585
        %5681 = vmatpush1.msra.mxu0 %v4584
        %5682 = vmatprep.subr.mxu0 %v4591
        %5683 = vmatpush1.msra.mxu0 %v4590
        %5684 = vmatprep.subr.mxu0 %v4597
        %5685 = vmatpush1.msra.mxu0 %v4596
        %5686 = vmatprep.subr.mxu0 %v4603
        %5687 = vmatpush1.msra.mxu0 %v4602
        %5688 = vmatprep.subr.mxu0 %v4609
        %5689 = vmatpush1.msra.mxu0 %v4608
        %5690 = vmatprep.subr.mxu0 %v4615
        %5691 = vmatpush1.msra.mxu0 %v4614
        %5692 = vmatprep.subr.mxu0 %v4621
        %5693 = vmatpush1.msra.mxu0 %v4620
        %5694 = vmatprep.subr.mxu0 %v4627
        %5695 = vmatpush1.msra.mxu0 %v4626
        %5696 = vmatprep.subr.mxu0 %v4633
        %5697 = vmatpush1.msra.mxu0 %v4632
        %5698 = vmatprep.subr.mxu0 %v4639
        %5699 = vmatpush1.msra.mxu0 %v4638
        %5700 = vmatprep.subr.mxu0 %v4645
        %5701 = vmatpush1.msra.mxu0 %v4644
        %5702 = vmatprep.subr.mxu0 %v4651
        %5703 = vmatpush1.msra.mxu0 %v4650
        %5704 = vmatprep.subr.mxu0 %v4657
        %5705 = vmatpush1.msra.mxu0 %v4656
        %5706 = vmatprep.subr.mxu0 %v4663
        %5707 = vmatpush1.msra.mxu0 %v4662
        %5708 = vmatprep.subr.mxu0 %v4669
        %5709 = vmatpush1.msra.mxu0 %v4668
        %5710 = vmatprep.mubr.f32.mxu0 %v4452
        %5711 = vmatmul.mubr.f32.gmra.mrb[0].mxu0 %v4448
        %v5712 = vpop.f32.mrb[0].mxu0
        %v5713 = vadd.f32 0.0, %v5712
        %v5714 = vpop.f32.mrb[0].mxu0
        %v5715 = vadd.f32 0.0, %v5714
        %5716 = vmatprep.mubr.f32.mxu0 %v4453
        %5717 = vmatmul.mubr.f32.gmra.mrb[0].mxu0 %v4449
        %v5718 = vpop.f32.mrb[0].mxu0
        %v5719 = vadd.f32 0.0, %v5718
        %v5720 = vpop.f32.mrb[0].mxu0
        %v5721 = vadd.f32 0.0, %v5720
        %5722 = vmatprep.mubr.f32.mxu0 %v4454
        %5723 = vmatmul.mubr.f32.gmra.mrb[0].mxu0 %v4450
        %v5724 = vpop.f32.mrb[0].mxu0
        %v5725 = vadd.f32 0.0, %v5724
        %v5726 = vpop.f32.mrb[0].mxu0
        %v5727 = vadd.f32 0.0, %v5726
        %5728 = vmatprep.mubr.f32.mxu0 %v4455
        %5729 = vmatmul.mubr.f32.gmra.mrb[0].mxu0 %v4451
        %v5730 = vpop.f32.mrb[0].mxu0
        %v5731 = vadd.f32 0.0, %v5730
        %v5732 = vpop.f32.mrb[0].mxu0
        %v5733 = vadd.f32 0.0, %v5732
        %5734 = vdwg.mxu0
        %5735 = vmatprep.subr.mxu0 %v4675
        %5736 = vmatpush1.msra.mxu0 %v4674
        %5737 = vmatprep.subr.mxu0 %v4681
        %5738 = vmatpush1.msra.mxu0 %v4680
        %5739 = vmatprep.subr.mxu0 %v4687
        %5740 = vmatpush1.msra.mxu0 %v4686
        %5741 = vmatprep.subr.mxu0 %v4693
        %5742 = vmatpush1.msra.mxu0 %v4692
        %5743 = vmatprep.subr.mxu0 %v4699
        %5744 = vmatpush1.msra.mxu0 %v4698
        %5745 = vmatprep.subr.mxu0 %v4705
        %5746 = vmatpush1.msra.mxu0 %v4704
        %5747 = vmatprep.subr.mxu0 %v4711
        %5748 = vmatpush1.msra.mxu0 %v4710
        %5749 = vmatprep.subr.mxu0 %v4717
        %5750 = vmatpush1.msra.mxu0 %v4716
        %5751 = vmatprep.subr.mxu0 %v4723
        %5752 = vmatpush1.msra.mxu0 %v4722
        %5753 = vmatprep.subr.mxu0 %v4729
        %5754 = vmatpush1.msra.mxu0 %v4728
        %5755 = vmatprep.subr.mxu0 %v4735
        %5756 = vmatpush1.msra.mxu0 %v4734
        %5757 = vmatprep.subr.mxu0 %v4741
        %5758 = vmatpush1.msra.mxu0 %v4740
        %5759 = vmatprep.subr.mxu0 %v4747
        %5760 = vmatpush1.msra.mxu0 %v4746
        %5761 = vmatprep.subr.mxu0 %v4753
        %5762 = vmatpush1.msra.mxu0 %v4752
        %5763 = vmatprep.subr.mxu0 %v4759
        %5764 = vmatpush1.msra.mxu0 %v4758
        %5765 = vmatprep.subr.mxu0 %v4765
        %5766 = vmatpush1.msra.mxu0 %v4764
        %5767 = vmatprep.subr.mxu0 %v4771
        %5768 = vmatpush1.msra.mxu0 %v4770
        %5769 = vmatprep.subr.mxu0 %v4777
        %5770 = vmatpush1.msra.mxu0 %v4776
        %5771 = vmatprep.subr.mxu0 %v4783
        %5772 = vmatpush1.msra.mxu0 %v4782
        %5773 = vmatprep.subr.mxu0 %v4789
        %5774 = vmatpush1.msra.mxu0 %v4788
        %5775 = vmatprep.subr.mxu0 %v4795
        %5776 = vmatpush1.msra.mxu0 %v4794
        %5777 = vmatprep.subr.mxu0 %v4801
        %5778 = vmatpush1.msra.mxu0 %v4800
        %5779 = vmatprep.subr.mxu0 %v4807
        %5780 = vmatpush1.msra.mxu0 %v4806
        %5781 = vmatprep.subr.mxu0 %v4813
        %5782 = vmatpush1.msra.mxu0 %v4812
        %5783 = vmatprep.subr.mxu0 %v4819
        %5784 = vmatpush1.msra.mxu0 %v4818
        %5785 = vmatprep.subr.mxu0 %v4825
        %5786 = vmatpush1.msra.mxu0 %v4824
        %5787 = vmatprep.subr.mxu0 %v4831
        %5788 = vmatpush1.msra.mxu0 %v4830
        %5789 = vmatprep.subr.mxu0 %v4837
        %5790 = vmatpush1.msra.mxu0 %v4836
        %5791 = vmatprep.subr.mxu0 %v4843
        %5792 = vmatpush1.msra.mxu0 %v4842
        %5793 = vmatprep.subr.mxu0 %v4849
        %5794 = vmatpush1.msra.mxu0 %v4848
        %5795 = vmatprep.subr.mxu0 %v4855
        %5796 = vmatpush1.msra.mxu0 %v4854
        %5797 = vmatprep.subr.mxu0 %v4861
        %5798 = vmatpush1.msra.mxu0 %v4860
        %5799 = vmatprep.mubr.f32.mxu0 %v4460
        %5800 = vmatmul.mubr.f32.gmra.mrb[0].mxu0 %v4456
        %v5801 = vpop.f32.mrb[0].mxu0
        %v5802 = vadd.f32 %v5713, %v5801
        %v5803 = vpop.f32.mrb[0].mxu0
        %v5804 = vadd.f32 %v5715, %v5803
        %5805 = vmatprep.mubr.f32.mxu0 %v4461
        %5806 = vmatmul.mubr.f32.gmra.mrb[0].mxu0 %v4457
        %v5807 = vpop.f32.mrb[0].mxu0
        %v5808 = vadd.f32 %v5719, %v5807
        %v5809 = vpop.f32.mrb[0].mxu0
        %v5810 = vadd.f32 %v5721, %v5809
        %5811 = vmatprep.mubr.f32.mxu0 %v4462
        %5812 = vmatmul.mubr.f32.gmra.mrb[0].mxu0 %v4458
        %v5813 = vpop.f32.mrb[0].mxu0
        %v5814 = vadd.f32 %v5725, %v5813
        %v5815 = vpop.f32.mrb[0].mxu0
        %v5816 = vadd.f32 %v5727, %v5815
        %5817 = vmatprep.mubr.f32.mxu0 %v4463
        %5818 = vmatmul.mubr.f32.gmra.mrb[0].mxu0 %v4459
        %v5819 = vpop.f32.mrb[0].mxu0
        %v5820 = vadd.f32 %v5731, %v5819
        %v5821 = vpop.f32.mrb[0].mxu0
        %v5822 = vadd.f32 %v5733, %v5821
        %5823 = vdwg.mxu0
        %5824 = vmatprep.subr.mxu0 %v4867
        %5825 = vmatpush1.msra.mxu0 %v4866
        %5826 = vmatprep.subr.mxu0 %v4873
        %5827 = vmatpush1.msra.mxu0 %v4872
        %5828 = vmatprep.subr.mxu0 %v4879
        %5829 = vmatpush1.msra.mxu0 %v4878
        %5830 = vmatprep.subr.mxu0 %v4885
        %5831 = vmatpush1.msra.mxu0 %v4884
        %5832 = vmatprep.subr.mxu0 %v4891
        %5833 = vmatpush1.msra.mxu0 %v4890
        %5834 = vmatprep.subr.mxu0 %v4897
        %5835 = vmatpush1.msra.mxu0 %v4896
        %5836 = vmatprep.subr.mxu0 %v4903
        %5837 = vmatpush1.msra.mxu0 %v4902
        %5838 = vmatprep.subr.mxu0 %v4909
        %5839 = vmatpush1.msra.mxu0 %v4908
        %5840 = vmatprep.subr.mxu0 %v4915
        %5841 = vmatpush1.msra.mxu0 %v4914
        %5842 = vmatprep.subr.mxu0 %v4921
        %5843 = vmatpush1.msra.mxu0 %v4920
        %5844 = vmatprep.subr.mxu0 %v4927
        %5845 = vmatpush1.msra.mxu0 %v4926
        %5846 = vmatprep.subr.mxu0 %v4933
        %5847 = vmatpush1.msra.mxu0 %v4932
        %5848 = vmatprep.subr.mxu0 %v4939
        %5849 = vmatpush1.msra.mxu0 %v4938
        %5850 = vmatprep.subr.mxu0 %v4945
        %5851 = vmatpush1.msra.mxu0 %v4944
        %5852 = vmatprep.subr.mxu0 %v4951
        %5853 = vmatpush1.msra.mxu0 %v4950
        %5854 = vmatprep.subr.mxu0 %v4957
        %5855 = vmatpush1.msra.mxu0 %v4956
        %5856 = vmatprep.subr.mxu0 %v4963
        %5857 = vmatpush1.msra.mxu0 %v4962
        %5858 = vmatprep.subr.mxu0 %v4969
        %5859 = vmatpush1.msra.mxu0 %v4968
        %5860 = vmatprep.subr.mxu0 %v4975
        %5861 = vmatpush1.msra.mxu0 %v4974
        %5862 = vmatprep.subr.mxu0 %v4981
        %5863 = vmatpush1.msra.mxu0 %v4980
        %5864 = vmatprep.subr.mxu0 %v4987
        %5865 = vmatpush1.msra.mxu0 %v4986
        %5866 = vmatprep.subr.mxu0 %v4993
        %5867 = vmatpush1.msra.mxu0 %v4992
        %5868 = vmatprep.subr.mxu0 %v4999
        %5869 = vmatpush1.msra.mxu0 %v4998
        %5870 = vmatprep.subr.mxu0 %v5005
        %5871 = vmatpush1.msra.mxu0 %v5004
        %5872 = vmatprep.subr.mxu0 %v5011
        %5873 = vmatpush1.msra.mxu0 %v5010
        %5874 = vmatprep.subr.mxu0 %v5017
        %5875 = vmatpush1.msra.mxu0 %v5016
        %5876 = vmatprep.subr.mxu0 %v5023
        %5877 = vmatpush1.msra.mxu0 %v5022
        %5878 = vmatprep.subr.mxu0 %v5029
        %5879 = vmatpush1.msra.mxu0 %v5028
        %5880 = vmatprep.subr.mxu0 %v5035
        %5881 = vmatpush1.msra.mxu0 %v5034
        %5882 = vmatprep.subr.mxu0 %v5041
        %5883 = vmatpush1.msra.mxu0 %v5040
        %5884 = vmatprep.subr.mxu0 %v5047
        %5885 = vmatpush1.msra.mxu0 %v5046
        %5886 = vmatprep.subr.mxu0 %v5053
        %5887 = vmatpush1.msra.mxu0 %v5052
        %5888 = vmatprep.mubr.f32.mxu0 %v4468
        %5889 = vmatmul.mubr.f32.gmra.mrb[0].mxu0 %v4464
        %v5890 = vpop.f32.mrb[0].mxu0
        %v5891 = vadd.f32 %v5802, %v5890
        %v5892 = vpop.f32.mrb[0].mxu0
        %v5893 = vadd.f32 %v5804, %v5892
        %5894 = vmatprep.mubr.f32.mxu0 %v4469
        %5895 = vmatmul.mubr.f32.gmra.mrb[0].mxu0 %v4465
        %v5896 = vpop.f32.mrb[0].mxu0
        %v5897 = vadd.f32 %v5808, %v5896
        %v5898 = vpop.f32.mrb[0].mxu0
        %v5899 = vadd.f32 %v5810, %v5898
        %5900 = vmatprep.mubr.f32.mxu0 %v4470
        %5901 = vmatmul.mubr.f32.gmra.mrb[0].mxu0 %v4466
        %v5902 = vpop.f32.mrb[0].mxu0
        %v5903 = vadd.f32 %v5814, %v5902
        %v5904 = vpop.f32.mrb[0].mxu0
        %v5905 = vadd.f32 %v5816, %v5904
        %5906 = vmatprep.mubr.f32.mxu0 %v4471
        %5907 = vmatmul.mubr.f32.gmra.mrb[0].mxu0 %v4467
        %v5908 = vpop.f32.mrb[0].mxu0
        %v5909 = vadd.f32 %v5820, %v5908
        %v5910 = vpop.f32.mrb[0].mxu0
        %v5911 = vadd.f32 %v5822, %v5910
        %5912 = vdwg.mxu0
        %5913 = vmatprep.subr.mxu0 %v4485
        %5914 = vmatpush1.msra.mxu0 %v4484
        %5915 = vmatprep.subr.mxu0 %v4491
        %5916 = vmatpush1.msra.mxu0 %v4490
        %5917 = vmatprep.subr.mxu0 %v4497
        %5918 = vmatpush1.msra.mxu0 %v4496
        %5919 = vmatprep.subr.mxu0 %v4503
        %5920 = vmatpush1.msra.mxu0 %v4502
        %5921 = vmatprep.subr.mxu0 %v4509
        %5922 = vmatpush1.msra.mxu0 %v4508
        %5923 = vmatprep.subr.mxu0 %v4515
        %5924 = vmatpush1.msra.mxu0 %v4514
        %5925 = vmatprep.subr.mxu0 %v4521
        %5926 = vmatpush1.msra.mxu0 %v4520
        %5927 = vmatprep.subr.mxu0 %v4527
        %5928 = vmatpush1.msra.mxu0 %v4526
        %5929 = vmatprep.subr.mxu0 %v4533
        %5930 = vmatpush1.msra.mxu0 %v4532
        %5931 = vmatprep.subr.mxu0 %v4539
        %5932 = vmatpush1.msra.mxu0 %v4538
        %5933 = vmatprep.subr.mxu0 %v4545
        %5934 = vmatpush1.msra.mxu0 %v4544
        %5935 = vmatprep.subr.mxu0 %v4551
        %5936 = vmatpush1.msra.mxu0 %v4550
        %5937 = vmatprep.subr.mxu0 %v4557
        %5938 = vmatpush1.msra.mxu0 %v4556
        %5939 = vmatprep.subr.mxu0 %v4563
        %5940 = vmatpush1.msra.mxu0 %v4562
        %5941 = vmatprep.subr.mxu0 %v4569
        %5942 = vmatpush1.msra.mxu0 %v4568
        %5943 = vmatprep.subr.mxu0 %v4575
        %5944 = vmatpush1.msra.mxu0 %v4574
        %5945 = vmatprep.subr.mxu0 %v4581
        %5946 = vmatpush1.msra.mxu0 %v4580
        %5947 = vmatprep.subr.mxu0 %v4587
        %5948 = vmatpush1.msra.mxu0 %v4586
        %5949 = vmatprep.subr.mxu0 %v4593
        %5950 = vmatpush1.msra.mxu0 %v4592
        %5951 = vmatprep.subr.mxu0 %v4599
        %5952 = vmatpush1.msra.mxu0 %v4598
        %5953 = vmatprep.subr.mxu0 %v4605
        %5954 = vmatpush1.msra.mxu0 %v4604
        %5955 = vmatprep.subr.mxu0 %v4611
        %5956 = vmatpush1.msra.mxu0 %v4610
        %5957 = vmatprep.subr.mxu0 %v4617
        %5958 = vmatpush1.msra.mxu0 %v4616
        %5959 = vmatprep.subr.mxu0 %v4623
        %5960 = vmatpush1.msra.mxu0 %v4622
        %5961 = vmatprep.subr.mxu0 %v4629
        %5962 = vmatpush1.msra.mxu0 %v4628
        %5963 = vmatprep.subr.mxu0 %v4635
        %5964 = vmatpush1.msra.mxu0 %v4634
        %5965 = vmatprep.subr.mxu0 %v4641
        %5966 = vmatpush1.msra.mxu0 %v4640
        %5967 = vmatprep.subr.mxu0 %v4647
        %5968 = vmatpush1.msra.mxu0 %v4646
        %5969 = vmatprep.subr.mxu0 %v4653
        %5970 = vmatpush1.msra.mxu0 %v4652
        %5971 = vmatprep.subr.mxu0 %v4659
        %5972 = vmatpush1.msra.mxu0 %v4658
        %5973 = vmatprep.subr.mxu0 %v4665
        %5974 = vmatpush1.msra.mxu0 %v4664
        %5975 = vmatprep.subr.mxu0 %v4671
        %5976 = vmatpush1.msra.mxu0 %v4670
        %5977 = vmatprep.mubr.f32.mxu0 %v4452
        %5978 = vmatmul.mubr.f32.gmra.mrb[0].mxu0 %v4448
        %v5979 = vpop.f32.mrb[0].mxu0
        %v5980 = vadd.f32 0.0, %v5979
        %v5981 = vpop.f32.mrb[0].mxu0
        %v5982 = vadd.f32 0.0, %v5981
        %5983 = vmatprep.mubr.f32.mxu0 %v4453
        %5984 = vmatmul.mubr.f32.gmra.mrb[0].mxu0 %v4449
        %v5985 = vpop.f32.mrb[0].mxu0
        %v5986 = vadd.f32 0.0, %v5985
        %v5987 = vpop.f32.mrb[0].mxu0
        %v5988 = vadd.f32 0.0, %v5987
        %5989 = vmatprep.mubr.f32.mxu0 %v4454
        %5990 = vmatmul.mubr.f32.gmra.mrb[0].mxu0 %v4450
        %v5991 = vpop.f32.mrb[0].mxu0
        %v5992 = vadd.f32 0.0, %v5991
        %v5993 = vpop.f32.mrb[0].mxu0
        %v5994 = vadd.f32 0.0, %v5993
        %5995 = vmatprep.mubr.f32.mxu0 %v4455
        %5996 = vmatmul.mubr.f32.gmra.mrb[0].mxu0 %v4451
        %v5997 = vpop.f32.mrb[0].mxu0
        %v5998 = vadd.f32 0.0, %v5997
        %v5999 = vpop.f32.mrb[0].mxu0
        %v6000 = vadd.f32 0.0, %v5999
        %6001 = vdwg.mxu0
        %6002 = vmatprep.subr.mxu0 %v4677
        %6003 = vmatpush1.msra.mxu0 %v4676
        %6004 = vmatprep.subr.mxu0 %v4683
        %6005 = vmatpush1.msra.mxu0 %v4682
        %6006 = vmatprep.subr.mxu0 %v4689
        %6007 = vmatpush1.msra.mxu0 %v4688
        %6008 = vmatprep.subr.mxu0 %v4695
        %6009 = vmatpush1.msra.mxu0 %v4694
        %6010 = vmatprep.subr.mxu0 %v4701
        %6011 = vmatpush1.msra.mxu0 %v4700
        %6012 = vmatprep.subr.mxu0 %v4707
        %6013 = vmatpush1.msra.mxu0 %v4706
        %6014 = vmatprep.subr.mxu0 %v4713
        %6015 = vmatpush1.msra.mxu0 %v4712
        %6016 = vmatprep.subr.mxu0 %v4719
        %6017 = vmatpush1.msra.mxu0 %v4718
        %6018 = vmatprep.subr.mxu0 %v4725
        %6019 = vmatpush1.msra.mxu0 %v4724
        %6020 = vmatprep.subr.mxu0 %v4731
        %6021 = vmatpush1.msra.mxu0 %v4730
        %6022 = vmatprep.subr.mxu0 %v4737
        %6023 = vmatpush1.msra.mxu0 %v4736
        %6024 = vmatprep.subr.mxu0 %v4743
        %6025 = vmatpush1.msra.mxu0 %v4742
        %6026 = vmatprep.subr.mxu0 %v4749
        %6027 = vmatpush1.msra.mxu0 %v4748
        %6028 = vmatprep.subr.mxu0 %v4755
        %6029 = vmatpush1.msra.mxu0 %v4754
        %6030 = vmatprep.subr.mxu0 %v4761
        %6031 = vmatpush1.msra.mxu0 %v4760
        %6032 = vmatprep.subr.mxu0 %v4767
        %6033 = vmatpush1.msra.mxu0 %v4766
        %6034 = vmatprep.subr.mxu0 %v4773
        %6035 = vmatpush1.msra.mxu0 %v4772
        %6036 = vmatprep.subr.mxu0 %v4779
        %6037 = vmatpush1.msra.mxu0 %v4778
        %6038 = vmatprep.subr.mxu0 %v4785
        %6039 = vmatpush1.msra.mxu0 %v4784
        %6040 = vmatprep.subr.mxu0 %v4791
        %6041 = vmatpush1.msra.mxu0 %v4790
        %6042 = vmatprep.subr.mxu0 %v4797
        %6043 = vmatpush1.msra.mxu0 %v4796
        %6044 = vmatprep.subr.mxu0 %v4803
        %6045 = vmatpush1.msra.mxu0 %v4802
        %6046 = vmatprep.subr.mxu0 %v4809
        %6047 = vmatpush1.msra.mxu0 %v4808
        %6048 = vmatprep.subr.mxu0 %v4815
        %6049 = vmatpush1.msra.mxu0 %v4814
        %6050 = vmatprep.subr.mxu0 %v4821
        %6051 = vmatpush1.msra.mxu0 %v4820
        %6052 = vmatprep.subr.mxu0 %v4827
        %6053 = vmatpush1.msra.mxu0 %v4826
        %6054 = vmatprep.subr.mxu0 %v4833
        %6055 = vmatpush1.msra.mxu0 %v4832
        %6056 = vmatprep.subr.mxu0 %v4839
        %6057 = vmatpush1.msra.mxu0 %v4838
        %6058 = vmatprep.subr.mxu0 %v4845
        %6059 = vmatpush1.msra.mxu0 %v4844
        %6060 = vmatprep.subr.mxu0 %v4851
        %6061 = vmatpush1.msra.mxu0 %v4850
        %6062 = vmatprep.subr.mxu0 %v4857
        %6063 = vmatpush1.msra.mxu0 %v4856
        %6064 = vmatprep.subr.mxu0 %v4863
        %6065 = vmatpush1.msra.mxu0 %v4862
        %6066 = vmatprep.mubr.f32.mxu0 %v4460
        %6067 = vmatmul.mubr.f32.gmra.mrb[0].mxu0 %v4456
        %v6068 = vpop.f32.mrb[0].mxu0
        %v6069 = vadd.f32 %v5980, %v6068
        %v6070 = vpop.f32.mrb[0].mxu0
        %v6071 = vadd.f32 %v5982, %v6070
        %6072 = vmatprep.mubr.f32.mxu0 %v4461
        %6073 = vmatmul.mubr.f32.gmra.mrb[0].mxu0 %v4457
        %v6074 = vpop.f32.mrb[0].mxu0
        %v6075 = vadd.f32 %v5986, %v6074
        %v6076 = vpop.f32.mrb[0].mxu0
        %v6077 = vadd.f32 %v5988, %v6076
        %6078 = vmatprep.mubr.f32.mxu0 %v4462
        %6079 = vmatmul.mubr.f32.gmra.mrb[0].mxu0 %v4458
        %v6080 = vpop.f32.mrb[0].mxu0
        %v6081 = vadd.f32 %v5992, %v6080
        %v6082 = vpop.f32.mrb[0].mxu0
        %v6083 = vadd.f32 %v5994, %v6082
        %6084 = vmatprep.mubr.f32.mxu0 %v4463
        %6085 = vmatmul.mubr.f32.gmra.mrb[0].mxu0 %v4459
        %v6086 = vpop.f32.mrb[0].mxu0
        %v6087 = vadd.f32 %v5998, %v6086
        %v6088 = vpop.f32.mrb[0].mxu0
        %v6089 = vadd.f32 %v6000, %v6088
        %6090 = vdwg.mxu0
        %6091 = vmatprep.subr.mxu0 %v4869
        %6092 = vmatpush1.msra.mxu0 %v4868
        %6093 = vmatprep.subr.mxu0 %v4875
        %6094 = vmatpush1.msra.mxu0 %v4874
        %6095 = vmatprep.subr.mxu0 %v4881
        %6096 = vmatpush1.msra.mxu0 %v4880
        %6097 = vmatprep.subr.mxu0 %v4887
        %6098 = vmatpush1.msra.mxu0 %v4886
        %6099 = vmatprep.subr.mxu0 %v4893
        %6100 = vmatpush1.msra.mxu0 %v4892
        %6101 = vmatprep.subr.mxu0 %v4899
        %6102 = vmatpush1.msra.mxu0 %v4898
        %6103 = vmatprep.subr.mxu0 %v4905
        %6104 = vmatpush1.msra.mxu0 %v4904
        %6105 = vmatprep.subr.mxu0 %v4911
        %6106 = vmatpush1.msra.mxu0 %v4910
        %6107 = vmatprep.subr.mxu0 %v4917
        %6108 = vmatpush1.msra.mxu0 %v4916
        %6109 = vmatprep.subr.mxu0 %v4923
        %6110 = vmatpush1.msra.mxu0 %v4922
        %6111 = vmatprep.subr.mxu0 %v4929
        %6112 = vmatpush1.msra.mxu0 %v4928
        %6113 = vmatprep.subr.mxu0 %v4935
        %6114 = vmatpush1.msra.mxu0 %v4934
        %6115 = vmatprep.subr.mxu0 %v4941
        %6116 = vmatpush1.msra.mxu0 %v4940
        %6117 = vmatprep.subr.mxu0 %v4947
        %6118 = vmatpush1.msra.mxu0 %v4946
        %6119 = vmatprep.subr.mxu0 %v4953
        %6120 = vmatpush1.msra.mxu0 %v4952
        %6121 = vmatprep.subr.mxu0 %v4959
        %6122 = vmatpush1.msra.mxu0 %v4958
        %6123 = vmatprep.subr.mxu0 %v4965
        %6124 = vmatpush1.msra.mxu0 %v4964
        %6125 = vmatprep.subr.mxu0 %v4971
        %6126 = vmatpush1.msra.mxu0 %v4970
        %6127 = vmatprep.subr.mxu0 %v4977
        %6128 = vmatpush1.msra.mxu0 %v4976
        %6129 = vmatprep.subr.mxu0 %v4983
        %6130 = vmatpush1.msra.mxu0 %v4982
        %6131 = vmatprep.subr.mxu0 %v4989
        %6132 = vmatpush1.msra.mxu0 %v4988
        %6133 = vmatprep.subr.mxu0 %v4995
        %6134 = vmatpush1.msra.mxu0 %v4994
        %6135 = vmatprep.subr.mxu0 %v5001
        %6136 = vmatpush1.msra.mxu0 %v5000
        %6137 = vmatprep.subr.mxu0 %v5007
        %6138 = vmatpush1.msra.mxu0 %v5006
        %6139 = vmatprep.subr.mxu0 %v5013
        %6140 = vmatpush1.msra.mxu0 %v5012
        %6141 = vmatprep.subr.mxu0 %v5019
        %6142 = vmatpush1.msra.mxu0 %v5018
        %6143 = vmatprep.subr.mxu0 %v5025
        %6144 = vmatpush1.msra.mxu0 %v5024
        %6145 = vmatprep.subr.mxu0 %v5031
        %6146 = vmatpush1.msra.mxu0 %v5030
        %6147 = vmatprep.subr.mxu0 %v5037
        %6148 = vmatpush1.msra.mxu0 %v5036
        %6149 = vmatprep.subr.mxu0 %v5043
        %6150 = vmatpush1.msra.mxu0 %v5042
        %6151 = vmatprep.subr.mxu0 %v5049
        %6152 = vmatpush1.msra.mxu0 %v5048
        %6153 = vmatprep.subr.mxu0 %v5055
        %6154 = vmatpush1.msra.mxu0 %v5054
        %6155 = vmatprep.mubr.f32.mxu0 %v4468
        %6156 = vmatmul.mubr.f32.gmra.mrb[0].mxu0 %v4464
        %v6157 = vpop.f32.mrb[0].mxu0
        %v6158 = vadd.f32 %v6069, %v6157
        %v6159 = vpop.f32.mrb[0].mxu0
        %v6160 = vadd.f32 %v6071, %v6159
        %6161 = vmatprep.mubr.f32.mxu0 %v4469
        %6162 = vmatmul.mubr.f32.gmra.mrb[0].mxu0 %v4465
        %v6163 = vpop.f32.mrb[0].mxu0
        %v6164 = vadd.f32 %v6075, %v6163
        %v6165 = vpop.f32.mrb[0].mxu0
        %v6166 = vadd.f32 %v6077, %v6165
        %6167 = vmatprep.mubr.f32.mxu0 %v4470
        %6168 = vmatmul.mubr.f32.gmra.mrb[0].mxu0 %v4466
        %v6169 = vpop.f32.mrb[0].mxu0
        %v6170 = vadd.f32 %v6081, %v6169
        %v6171 = vpop.f32.mrb[0].mxu0
        %v6172 = vadd.f32 %v6083, %v6171
        %6173 = vmatprep.mubr.f32.mxu0 %v4471
        %6174 = vmatmul.mubr.f32.gmra.mrb[0].mxu0 %v4467
        %v6175 = vpop.f32.mrb[0].mxu0
        %v6176 = vadd.f32 %v6087, %v6175
        %v6177 = vpop.f32.mrb[0].mxu0
        %v6178 = vadd.f32 %v6089, %v6177
        %6179 = vdwg.mxu0
        %v6180 = vadd.f32 %v5355, %v5624
        %v6181 = vadd.f32 %v5356, %v5626
        %v6182 = vadd.f32 %v5357, %v5891
        %v6183 = vadd.f32 %v5358, %v5893
        %v6184 = vadd.f32 %v5359, %v6158
        %v6185 = vadd.f32 %v5360, %v6160
        %v6186 = vadd.f32 %v5361, %v5630
        %v6187 = vadd.f32 %v5362, %v5632
        %v6188 = vadd.f32 %v5363, %v5897
        %v6189 = vadd.f32 %v5364, %v5899
        %v6190 = vadd.f32 %v5365, %v6164
        %v6191 = vadd.f32 %v5366, %v6166
        %v6192 = vadd.f32 %v5367, %v5636
        %v6193 = vadd.f32 %v5368, %v5638
        %v6194 = vadd.f32 %v5369, %v5903
        %v6195 = vadd.f32 %v5370, %v5905
        %v6196 = vadd.f32 %v5371, %v6170
        %v6197 = vadd.f32 %v5372, %v6172
        %v6198 = vadd.f32 %v5373, %v5642
        %v6199 = vadd.f32 %v5374, %v5644
        %v6200 = vadd.f32 %v5375, %v5909
        %v6201 = vadd.f32 %v5376, %v5911
        %v6202 = vadd.f32 %v5377, %v6176
        %v6203 = vadd.f32 %v5378, %v6178
        %v6204 = vmul.f32 %v6180, 6.0
        %v6205 = vmul.f32 %v6181, 6.0
        %v6206 = vmul.f32 %v6182, 6.0
        %v6207 = vmul.f32 %v6183, 6.0
        %v6208 = vmul.f32 %v6184, 6.0
        %v6209 = vmul.f32 %v6185, 6.0
        %v6210 = vmul.f32 %v6186, 6.0
        %v6211 = vmul.f32 %v6187, 6.0
        %v6212 = vmul.f32 %v6188, 6.0
        %v6213 = vmul.f32 %v6189, 6.0
        %v6214 = vmul.f32 %v6190, 6.0
        %v6215 = vmul.f32 %v6191, 6.0
        %v6216 = vmul.f32 %v6192, 6.0
        %v6217 = vmul.f32 %v6193, 6.0
        %v6218 = vmul.f32 %v6194, 6.0
        %v6219 = vmul.f32 %v6195, 6.0
        %v6220 = vmul.f32 %v6196, 6.0
        %v6221 = vmul.f32 %v6197, 6.0
        %v6222 = vmul.f32 %v6198, 6.0
        %v6223 = vmul.f32 %v6199, 6.0
        %v6224 = vmul.f32 %v6200, 6.0
        %v6225 = vmul.f32 %v6201, 6.0
        %v6226 = vmul.f32 %v6202, 6.0
        %v6227 = vmul.f32 %v6203, 6.0
        %v6228 = vadd.f32 %v4448, %v6204
        %v6229 = vadd.f32 %v4452, %v6205
        %v6230 = vadd.f32 %v4456, %v6206
        %v6231 = vadd.f32 %v4460, %v6207
        %v6232 = vadd.f32 %v4464, %v6208
        %v6233 = vadd.f32 %v4468, %v6209
        %v6234 = vadd.f32 %v4449, %v6210
        %v6235 = vadd.f32 %v4453, %v6211
        %v6236 = vadd.f32 %v4457, %v6212
        %v6237 = vadd.f32 %v4461, %v6213
        %v6238 = vadd.f32 %v4465, %v6214
        %v6239 = vadd.f32 %v4469, %v6215
        %v6240 = vadd.f32 %v4450, %v6216
        %v6241 = vadd.f32 %v4454, %v6217
        %v6242 = vadd.f32 %v4458, %v6218
        %v6243 = vadd.f32 %v4462, %v6219
        %v6244 = vadd.f32 %v4466, %v6220
        %v6245 = vadd.f32 %v4470, %v6221
        %v6246 = vadd.f32 %v4451, %v6222
        %v6247 = vadd.f32 %v4455, %v6223
        %v6248 = vadd.f32 %v4459, %v6224
        %v6249 = vadd.f32 %v4463, %v6225
        %v6250 = vadd.f32 %v4467, %v6226
        %v6251 = vadd.f32 %v4471, %v6227
        %v6252 = vmax.f32 %v6228, 0.0
        %v6253 = vmax.f32 %v6229, 0.0
        %v6254 = vmax.f32 %v6230, 0.0
        %v6255 = vmax.f32 %v6231, 0.0
        %v6256 = vmax.f32 %v6232, 0.0
        %v6257 = vmax.f32 %v6233, 0.0
        %v6258 = vmax.f32 %v6234, 0.0
        %v6259 = vmax.f32 %v6235, 0.0
        %v6260 = vmax.f32 %v6236, 0.0
        %v6261 = vmax.f32 %v6237, 0.0
        %v6262 = vmax.f32 %v6238, 0.0
        %v6263 = vmax.f32 %v6239, 0.0
        %v6264 = vmax.f32 %v6240, 0.0
        %v6265 = vmax.f32 %v6241, 0.0
        %v6266 = vmax.f32 %v6242, 0.0
        %v6267 = vmax.f32 %v6243, 0.0
        %v6268 = vmax.f32 %v6244, 0.0
        %v6269 = vmax.f32 %v6245, 0.0
        %v6270 = vmax.f32 %v6246, 0.0
        %v6271 = vmax.f32 %v6247, 0.0
        %v6272 = vmax.f32 %v6248, 0.0
        %v6273 = vmax.f32 %v6249, 0.0
        %v6274 = vmax.f32 %v6250, 0.0
        %v6275 = vmax.f32 %v6251, 0.0
        %v6276 = vadd.f32 %v6252, %v6253
        %v6277 = vadd.f32 %v6276, %v6254
        %v6278 = vadd.f32 %v6277, %v6255
        %v6279 = vadd.f32 %v6278, %v6256
        %v6280 = vadd.f32 %v6279, %v6257
        %6281 = vadd.xlane.f32.xlu0 %v6280
        %v6282 = vpop.xlane.xlu0 %6281
        %v6283 = vadd.f32 %v6258, %v6259
        %v6284 = vadd.f32 %v6283, %v6260
        %v6285 = vadd.f32 %v6284, %v6261
        %v6286 = vadd.f32 %v6285, %v6262
        %v6287 = vadd.f32 %v6286, %v6263
        %6288 = vadd.xlane.f32.xlu0 %v6287
        %v6289 = vpop.xlane.xlu0 %6288
        %v6290 = vadd.f32 %v6264, %v6265
        %v6291 = vadd.f32 %v6290, %v6266
        %v6292 = vadd.f32 %v6291, %v6267
        %v6293 = vadd.f32 %v6292, %v6268
        %v6294 = vadd.f32 %v6293, %v6269
        %6295 = vadd.xlane.f32.xlu0 %v6294
        %v6296 = vpop.xlane.xlu0 %6295
        %v6297 = vadd.f32 %v6270, %v6271
        %v6298 = vadd.f32 %v6297, %v6272
        %v6299 = vadd.f32 %v6298, %v6273
        %v6300 = vadd.f32 %v6299, %v6274
        %v6301 = vadd.f32 %v6300, %v6275
        %6302 = vadd.xlane.f32.xlu0 %v6301
        %v6303 = vpop.xlane.xlu0 %6302
        %v6304 = vadd.f32 %v6282, %v6296
        %v6305 = vadd.f32 %v6289, %v6303
        %v6306 = vmul.f32 %v6304, 0.0006510417
        %v6307 = vmul.f32 %v6305, 0.0006510417
        %6309 = vset.pattern.permute.xlu0 0
        %6310 = vperm.xlu0 %6309, %v6306
        %v6311 = vpop.permute.xlu0 %6310
        %6314 = vset.pattern.permute.xlu0 0
        %6315 = vperm.xlu0 %6314, %v6307
        %v6316 = vpop.permute.xlu0 %6315
        %v6318 = vsub.f32 %v6252, %v6311
        %v6319 = vsub.f32 %v6253, %v6311
        %v6320 = vsub.f32 %v6254, %v6311
        %v6321 = vsub.f32 %v6255, %v6311
        %v6322 = vsub.f32 %v6256, %v6311
        %v6323 = vsub.f32 %v6257, %v6311
        %v6324 = vsub.f32 %v6258, %v6316
        %v6325 = vsub.f32 %v6259, %v6316
        %v6326 = vsub.f32 %v6260, %v6316
        %v6327 = vsub.f32 %v6261, %v6316
        %v6328 = vsub.f32 %v6262, %v6316
        %v6329 = vsub.f32 %v6263, %v6316
        %v6330 = vsub.f32 %v6264, %v6311
        %v6331 = vsub.f32 %v6265, %v6311
        %v6332 = vsub.f32 %v6266, %v6311
        %v6333 = vsub.f32 %v6267, %v6311
        %v6334 = vsub.f32 %v6268, %v6311
        %v6335 = vsub.f32 %v6269, %v6311
        %v6336 = vsub.f32 %v6270, %v6316
        %v6337 = vsub.f32 %v6271, %v6316
        %v6338 = vsub.f32 %v6272, %v6316
        %v6339 = vsub.f32 %v6273, %v6316
        %v6340 = vsub.f32 %v6274, %v6316
        %v6341 = vsub.f32 %v6275, %v6316
        %v6342 = vmul.f32 %v6318, %v6318
        %v6343 = vmul.f32 %v6319, %v6319
        %v6344 = vmul.f32 %v6320, %v6320
        %v6345 = vmul.f32 %v6321, %v6321
        %v6346 = vmul.f32 %v6322, %v6322
        %v6347 = vmul.f32 %v6323, %v6323
        %v6348 = vmul.f32 %v6324, %v6324
        %v6349 = vmul.f32 %v6325, %v6325
        %v6350 = vmul.f32 %v6326, %v6326
        %v6351 = vmul.f32 %v6327, %v6327
        %v6352 = vmul.f32 %v6328, %v6328
        %v6353 = vmul.f32 %v6329, %v6329
        %v6354 = vmul.f32 %v6330, %v6330
        %v6355 = vmul.f32 %v6331, %v6331
        %v6356 = vmul.f32 %v6332, %v6332
        %v6357 = vmul.f32 %v6333, %v6333
        %v6358 = vmul.f32 %v6334, %v6334
        %v6359 = vmul.f32 %v6335, %v6335
        %v6360 = vmul.f32 %v6336, %v6336
        %v6361 = vmul.f32 %v6337, %v6337
        %v6362 = vmul.f32 %v6338, %v6338
        %v6363 = vmul.f32 %v6339, %v6339
        %v6364 = vmul.f32 %v6340, %v6340
        %v6365 = vmul.f32 %v6341, %v6341
        %v6366 = vadd.f32 %v6342, %v6343
        %v6367 = vadd.f32 %v6366, %v6344
        %v6368 = vadd.f32 %v6367, %v6345
        %v6369 = vadd.f32 %v6368, %v6346
        %v6370 = vadd.f32 %v6369, %v6347
        %6371 = vadd.xlane.f32.xlu0 %v6370
        %v6372 = vpop.xlane.xlu0 %6371
        %v6373 = vadd.f32 %v6348, %v6349
        %v6374 = vadd.f32 %v6373, %v6350
        %v6375 = vadd.f32 %v6374, %v6351
        %v6376 = vadd.f32 %v6375, %v6352
        %v6377 = vadd.f32 %v6376, %v6353
        %6378 = vadd.xlane.f32.xlu0 %v6377
        %v6379 = vpop.xlane.xlu0 %6378
        %v6380 = vadd.f32 %v6354, %v6355
        %v6381 = vadd.f32 %v6380, %v6356
        %v6382 = vadd.f32 %v6381, %v6357
        %v6383 = vadd.f32 %v6382, %v6358
        %v6384 = vadd.f32 %v6383, %v6359
        %6385 = vadd.xlane.f32.xlu0 %v6384
        %v6386 = vpop.xlane.xlu0 %6385
        %v6387 = vadd.f32 %v6360, %v6361
        %v6388 = vadd.f32 %v6387, %v6362
        %v6389 = vadd.f32 %v6388, %v6363
        %v6390 = vadd.f32 %v6389, %v6364
        %v6391 = vadd.f32 %v6390, %v6365
        %6392 = vadd.xlane.f32.xlu0 %v6391
        %v6393 = vpop.xlane.xlu0 %6392
        %v6394 = vadd.f32 %v6372, %v6386
        %v6395 = vadd.f32 %v6379, %v6393
        %v6396 = vmul.f32 %v6394, 0.0006510417
        %v6397 = vmul.f32 %v6395, 0.0006510417
        %v6398 = vadd.f32 %v6396, 1e-05
        %v6399 = vadd.f32 %v6397, 1e-05
        %v6400 = vrsqrt.pop %v6398
        %v6401 = vrsqrt.pop %v6399
        %v6402 = vld [vmem:[%s12] sm:$0xff]
        %v6403 = vld [vmem:[%s12 + $0x8] sm:$0xff]
        %v6404 = vld [vmem:[%s12 + $0x10] sm:$0xff]
        %v6405 = vld [vmem:[%s12 + $0x18] sm:$0xff]
        %v6406 = vmul.f32 %v6400, %v6402
        %v6407 = vmul.f32 %v6401, %v6403
        %v6408 = vmul.f32 %v6400, %v6404
        %v6409 = vmul.f32 %v6401, %v6405
        %6411 = vset.pattern.permute.xlu0 0
        %6412 = vperm.xlu0 %6411, %v6406
        %v6413 = vpop.permute.xlu0 %6412
        %6416 = vset.pattern.permute.xlu0 0
        %6417 = vperm.xlu0 %6416, %v6407
        %v6418 = vpop.permute.xlu0 %6417
        %6421 = vset.pattern.permute.xlu0 0
        %6422 = vperm.xlu0 %6421, %v6408
        %v6423 = vpop.permute.xlu0 %6422
        %6426 = vset.pattern.permute.xlu0 0
        %6427 = vperm.xlu0 %6426, %v6409
        %v6428 = vpop.permute.xlu0 %6427
        %v6430 = vmul.f32 %v6318, %v6413
        %v6431 = vmul.f32 %v6319, %v6413
        %v6432 = vmul.f32 %v6320, %v6413
        %v6433 = vmul.f32 %v6321, %v6413
        %v6434 = vmul.f32 %v6322, %v6413
        %v6435 = vmul.f32 %v6323, %v6413
        %v6436 = vmul.f32 %v6324, %v6418
        %v6437 = vmul.f32 %v6325, %v6418
        %v6438 = vmul.f32 %v6326, %v6418
        %v6439 = vmul.f32 %v6327, %v6418
        %v6440 = vmul.f32 %v6328, %v6418
        %v6441 = vmul.f32 %v6329, %v6418
        %v6442 = vmul.f32 %v6330, %v6423
        %v6443 = vmul.f32 %v6331, %v6423
        %v6444 = vmul.f32 %v6332, %v6423
        %v6445 = vmul.f32 %v6333, %v6423
        %v6446 = vmul.f32 %v6334, %v6423
        %v6447 = vmul.f32 %v6335, %v6423
        %v6448 = vmul.f32 %v6336, %v6428
        %v6449 = vmul.f32 %v6337, %v6428
        %v6450 = vmul.f32 %v6338, %v6428
        %v6451 = vmul.f32 %v6339, %v6428
        %v6452 = vmul.f32 %v6340, %v6428
        %v6453 = vmul.f32 %v6341, %v6428
        %v6454 = vld [vmem:[%s13] sm:$0xff]
        %v6455 = vld [vmem:[%s13 + $0x8] sm:$0xff]
        %v6456 = vld [vmem:[%s13 + $0x10] sm:$0xff]
        %v6457 = vld [vmem:[%s13 + $0x18] sm:$0xff]
        %6459 = vset.pattern.permute.xlu0 0
        %6460 = vperm.xlu0 %6459, %v6454
        %v6461 = vpop.permute.xlu0 %6460
        %6464 = vset.pattern.permute.xlu0 0
        %6465 = vperm.xlu0 %6464, %v6455
        %v6466 = vpop.permute.xlu0 %6465
        %6469 = vset.pattern.permute.xlu0 0
        %6470 = vperm.xlu0 %6469, %v6456
        %v6471 = vpop.permute.xlu0 %6470
        %6474 = vset.pattern.permute.xlu0 0
        %6475 = vperm.xlu0 %6474, %v6457
        %v6476 = vpop.permute.xlu0 %6475
        %v6478 = vadd.f32 %v6430, %v6461
        %v6479 = vadd.f32 %v6431, %v6461
        %v6480 = vadd.f32 %v6432, %v6461
        %v6481 = vadd.f32 %v6433, %v6461
        %v6482 = vadd.f32 %v6434, %v6461
        %v6483 = vadd.f32 %v6435, %v6461
        %v6484 = vadd.f32 %v6436, %v6466
        %v6485 = vadd.f32 %v6437, %v6466
        %v6486 = vadd.f32 %v6438, %v6466
        %v6487 = vadd.f32 %v6439, %v6466
        %v6488 = vadd.f32 %v6440, %v6466
        %v6489 = vadd.f32 %v6441, %v6466
        %v6490 = vadd.f32 %v6442, %v6471
        %v6491 = vadd.f32 %v6443, %v6471
        %v6492 = vadd.f32 %v6444, %v6471
        %v6493 = vadd.f32 %v6445, %v6471
        %v6494 = vadd.f32 %v6446, %v6471
        %v6495 = vadd.f32 %v6447, %v6471
        %v6496 = vadd.f32 %v6448, %v6476
        %v6497 = vadd.f32 %v6449, %v6476
        %v6498 = vadd.f32 %v6450, %v6476
        %v6499 = vadd.f32 %v6451, %v6476
        %v6500 = vadd.f32 %v6452, %v6476
        %v6501 = vadd.f32 %v6453, %v6476
        %v6502 = vmax.f32 %v6478, 0.0
        %v6503 = vmax.f32 %v6479, 0.0
        %v6504 = vmax.f32 %v6480, 0.0
        %v6505 = vmax.f32 %v6481, 0.0
        %v6506 = vmax.f32 %v6482, 0.0
        %v6507 = vmax.f32 %v6483, 0.0
        %v6508 = vmax.f32 %v6484, 0.0
        %v6509 = vmax.f32 %v6485, 0.0
        %v6510 = vmax.f32 %v6486, 0.0
        %v6511 = vmax.f32 %v6487, 0.0
        %v6512 = vmax.f32 %v6488, 0.0
        %v6513 = vmax.f32 %v6489, 0.0
        %v6514 = vmax.f32 %v6490, 0.0
        %v6515 = vmax.f32 %v6491, 0.0
        %v6516 = vmax.f32 %v6492, 0.0
        %v6517 = vmax.f32 %v6493, 0.0
        %v6518 = vmax.f32 %v6494, 0.0
        %v6519 = vmax.f32 %v6495, 0.0
        %v6520 = vmax.f32 %v6496, 0.0
        %v6521 = vmax.f32 %v6497, 0.0
        %v6522 = vmax.f32 %v6498, 0.0
        %v6523 = vmax.f32 %v6499, 0.0
        %v6524 = vmax.f32 %v6500, 0.0
        %v6525 = vmax.f32 %v6501, 0.0
        %6526 = vmatprep.subr.mxu0 %v6503
        %6527 = vmatpush1.msra.mxu0 %v6502
        %6528 = vmatprep.subr.mxu0 %v6509
        %6529 = vmatpush1.msra.mxu0 %v6508
        %6530 = vmatprep.subr.mxu0 %v6515
        %6531 = vmatpush1.msra.mxu0 %v6514
        %6532 = vmatprep.subr.mxu0 %v6521
        %6533 = vmatpush1.msra.mxu0 %v6520
        %6534 = vmatprep.subr.mxu0 0.0
        %6535 = vmatpush1.msra.mxu0 0.0
        %6536 = vmatprep.subr.mxu0 0.0
        %6537 = vmatpush1.msra.mxu0 0.0
        %6538 = vmatprep.subr.mxu0 0.0
        %6539 = vmatpush1.msra.mxu0 0.0
        %6540 = vmatprep.subr.mxu0 0.0
        %6541 = vmatpush1.msra.mxu0 0.0
        %6542 = vmatprep.subr.mxu0 0.0
        %6543 = vmatpush1.msra.mxu0 0.0
        %6544 = vmatprep.subr.mxu0 0.0
        %6545 = vmatpush1.msra.mxu0 0.0
        %6546 = vmatprep.subr.mxu0 0.0
        %6547 = vmatpush1.msra.mxu0 0.0
        %6548 = vmatprep.subr.mxu0 0.0
        %6549 = vmatpush1.msra.mxu0 0.0
        %6550 = vmatprep.subr.mxu0 0.0
        %6551 = vmatpush1.msra.mxu0 0.0
        %6552 = vmatprep.subr.mxu0 0.0
        %6553 = vmatpush1.msra.mxu0 0.0
        %6554 = vmatprep.subr.mxu0 0.0
        %6555 = vmatpush1.msra.mxu0 0.0
        %6556 = vmatprep.subr.mxu0 0.0
        %6557 = vmatpush1.msra.mxu0 0.0
        %6558 = vmatprep.subr.mxu0 0.0
        %6559 = vmatpush1.msra.mxu0 0.0
        %6560 = vmatprep.subr.mxu0 0.0
        %6561 = vmatpush1.msra.mxu0 0.0
        %6562 = vmatprep.subr.mxu0 0.0
        %6563 = vmatpush1.msra.mxu0 0.0
        %6564 = vmatprep.subr.mxu0 0.0
        %6565 = vmatpush1.msra.mxu0 0.0
        %6566 = vmatprep.subr.mxu0 0.0
        %6567 = vmatpush1.msra.mxu0 0.0
        %6568 = vmatprep.subr.mxu0 0.0
        %6569 = vmatpush1.msra.mxu0 0.0
        %6570 = vmatprep.subr.mxu0 0.0
        %6571 = vmatpush1.msra.mxu0 0.0
        %6572 = vmatprep.subr.mxu0 0.0
        %6573 = vmatpush1.msra.mxu0 0.0
        %6574 = vmatprep.subr.mxu0 0.0
        %6575 = vmatpush1.msra.mxu0 0.0
        %6576 = vmatprep.subr.mxu0 0.0
        %6577 = vmatpush1.msra.mxu0 0.0
        %6578 = vmatprep.subr.mxu0 0.0
        %6579 = vmatpush1.msra.mxu0 0.0
        %6580 = vmatprep.subr.mxu0 0.0
        %6581 = vmatpush1.msra.mxu0 0.0
        %6582 = vmatprep.subr.mxu0 0.0
        %6583 = vmatpush1.msra.mxu0 0.0
        %6584 = vmatprep.subr.mxu0 0.0
        %6585 = vmatpush1.msra.mxu0 0.0
        %6586 = vmatprep.subr.mxu0 0.0
        %6587 = vmatpush1.msra.mxu0 0.0
        %6588 = vmatprep.subr.mxu0 0.0
        %6589 = vmatpush1.msra.mxu0 0.0
        %6590 = vmatprep.mubr.f32.mxu0 0.0
        %6591 = vmatmul.mubr.f32.gmra.mrb[0].mxu0 %v5057
        %v6592 = vpop.f32.mrb[0].mxu0
        %v6593 = vadd.f32 0.0, %v6592
        %v6594 = vpop.f32.mrb[0].mxu0
        %v6595 = vadd.f32 0.0, %v6594
        %6596 = vmatprep.mubr.f32.mxu0 0.0
        %6597 = vmatmul.mubr.f32.gmra.mrb[0].mxu0 %v5060
        %v6598 = vpop.f32.mrb[0].mxu0
        %v6599 = vadd.f32 0.0, %v6598
        %v6600 = vpop.f32.mrb[0].mxu0
        %v6601 = vadd.f32 0.0, %v6600
        %6602 = vmatprep.mubr.f32.mxu0 0.0
        %6603 = vmatmul.mubr.f32.gmra.mrb[0].mxu0 %v5063
        %v6604 = vpop.f32.mrb[0].mxu0
        %v6605 = vadd.f32 0.0, %v6604
        %v6606 = vpop.f32.mrb[0].mxu0
        %v6607 = vadd.f32 0.0, %v6606
        %6608 = vmatprep.mubr.f32.mxu0 0.0
        %6609 = vmatmul.mubr.f32.gmra.mrb[0].mxu0 %v5066
        %v6610 = vpop.f32.mrb[0].mxu0
        %v6611 = vadd.f32 0.0, %v6610
        %v6612 = vpop.f32.mrb[0].mxu0
        %v6613 = vadd.f32 0.0, %v6612
        %6614 = vdwg.mxu0
        %6615 = vmatprep.subr.mxu0 %v6505
        %6616 = vmatpush1.msra.mxu0 %v6504
        %6617 = vmatprep.subr.mxu0 %v6511
        %6618 = vmatpush1.msra.mxu0 %v6510
        %6619 = vmatprep.subr.mxu0 %v6517
        %6620 = vmatpush1.msra.mxu0 %v6516
        %6621 = vmatprep.subr.mxu0 %v6523
        %6622 = vmatpush1.msra.mxu0 %v6522
        %6623 = vmatprep.subr.mxu0 0.0
        %6624 = vmatpush1.msra.mxu0 0.0
        %6625 = vmatprep.subr.mxu0 0.0
        %6626 = vmatpush1.msra.mxu0 0.0
        %6627 = vmatprep.subr.mxu0 0.0
        %6628 = vmatpush1.msra.mxu0 0.0
        %6629 = vmatprep.subr.mxu0 0.0
        %6630 = vmatpush1.msra.mxu0 0.0
        %6631 = vmatprep.subr.mxu0 0.0
        %6632 = vmatpush1.msra.mxu0 0.0
        %6633 = vmatprep.subr.mxu0 0.0
        %6634 = vmatpush1.msra.mxu0 0.0
        %6635 = vmatprep.subr.mxu0 0.0
        %6636 = vmatpush1.msra.mxu0 0.0
        %6637 = vmatprep.subr.mxu0 0.0
        %6638 = vmatpush1.msra.mxu0 0.0
        %6639 = vmatprep.subr.mxu0 0.0
        %6640 = vmatpush1.msra.mxu0 0.0
        %6641 = vmatprep.subr.mxu0 0.0
        %6642 = vmatpush1.msra.mxu0 0.0
        %6643 = vmatprep.subr.mxu0 0.0
        %6644 = vmatpush1.msra.mxu0 0.0
        %6645 = vmatprep.subr.mxu0 0.0
        %6646 = vmatpush1.msra.mxu0 0.0
        %6647 = vmatprep.subr.mxu0 0.0
        %6648 = vmatpush1.msra.mxu0 0.0
        %6649 = vmatprep.subr.mxu0 0.0
        %6650 = vmatpush1.msra.mxu0 0.0
        %6651 = vmatprep.subr.mxu0 0.0
        %6652 = vmatpush1.msra.mxu0 0.0
        %6653 = vmatprep.subr.mxu0 0.0
        %6654 = vmatpush1.msra.mxu0 0.0
        %6655 = vmatprep.subr.mxu0 0.0
        %6656 = vmatpush1.msra.mxu0 0.0
        %6657 = vmatprep.subr.mxu0 0.0
        %6658 = vmatpush1.msra.mxu0 0.0
        %6659 = vmatprep.subr.mxu0 0.0
        %6660 = vmatpush1.msra.mxu0 0.0
        %6661 = vmatprep.subr.mxu0 0.0
        %6662 = vmatpush1.msra.mxu0 0.0
        %6663 = vmatprep.subr.mxu0 0.0
        %6664 = vmatpush1.msra.mxu0 0.0
        %6665 = vmatprep.subr.mxu0 0.0
        %6666 = vmatpush1.msra.mxu0 0.0
        %6667 = vmatprep.subr.mxu0 0.0
        %6668 = vmatpush1.msra.mxu0 0.0
        %6669 = vmatprep.subr.mxu0 0.0
        %6670 = vmatpush1.msra.mxu0 0.0
        %6671 = vmatprep.subr.mxu0 0.0
        %6672 = vmatpush1.msra.mxu0 0.0
        %6673 = vmatprep.subr.mxu0 0.0
        %6674 = vmatpush1.msra.mxu0 0.0
        %6675 = vmatprep.subr.mxu0 0.0
        %6676 = vmatpush1.msra.mxu0 0.0
        %6677 = vmatprep.subr.mxu0 0.0
        %6678 = vmatpush1.msra.mxu0 0.0
        %6679 = vmatprep.mubr.f32.mxu0 0.0
        %6680 = vmatmul.mubr.f32.gmra.mrb[0].mxu0 %v5057
        %v6681 = vpop.f32.mrb[0].mxu0
        %v6682 = vadd.f32 0.0, %v6681
        %v6683 = vpop.f32.mrb[0].mxu0
        %v6684 = vadd.f32 0.0, %v6683
        %6685 = vmatprep.mubr.f32.mxu0 0.0
        %6686 = vmatmul.mubr.f32.gmra.mrb[0].mxu0 %v5060
        %v6687 = vpop.f32.mrb[0].mxu0
        %v6688 = vadd.f32 0.0, %v6687
        %v6689 = vpop.f32.mrb[0].mxu0
        %v6690 = vadd.f32 0.0, %v6689
        %6691 = vmatprep.mubr.f32.mxu0 0.0
        %6692 = vmatmul.mubr.f32.gmra.mrb[0].mxu0 %v5063
        %v6693 = vpop.f32.mrb[0].mxu0
        %v6694 = vadd.f32 0.0, %v6693
        %v6695 = vpop.f32.mrb[0].mxu0
        %v6696 = vadd.f32 0.0, %v6695
        %6697 = vmatprep.mubr.f32.mxu0 0.0
        %6698 = vmatmul.mubr.f32.gmra.mrb[0].mxu0 %v5066
        %v6699 = vpop.f32.mrb[0].mxu0
        %v6700 = vadd.f32 0.0, %v6699
        %v6701 = vpop.f32.mrb[0].mxu0
        %v6702 = vadd.f32 0.0, %v6701
        %6703 = vdwg.mxu0
        %6704 = vmatprep.subr.mxu0 %v6507
        %6705 = vmatpush1.msra.mxu0 %v6506
        %6706 = vmatprep.subr.mxu0 %v6513
        %6707 = vmatpush1.msra.mxu0 %v6512
        %6708 = vmatprep.subr.mxu0 %v6519
        %6709 = vmatpush1.msra.mxu0 %v6518
        %6710 = vmatprep.subr.mxu0 %v6525
        %6711 = vmatpush1.msra.mxu0 %v6524
        %6712 = vmatprep.subr.mxu0 0.0
        %6713 = vmatpush1.msra.mxu0 0.0
        %6714 = vmatprep.subr.mxu0 0.0
        %6715 = vmatpush1.msra.mxu0 0.0
        %6716 = vmatprep.subr.mxu0 0.0
        %6717 = vmatpush1.msra.mxu0 0.0
        %6718 = vmatprep.subr.mxu0 0.0
        %6719 = vmatpush1.msra.mxu0 0.0
        %6720 = vmatprep.subr.mxu0 0.0
        %6721 = vmatpush1.msra.mxu0 0.0
        %6722 = vmatprep.subr.mxu0 0.0
        %6723 = vmatpush1.msra.mxu0 0.0
        %6724 = vmatprep.subr.mxu0 0.0
        %6725 = vmatpush1.msra.mxu0 0.0
        %6726 = vmatprep.subr.mxu0 0.0
        %6727 = vmatpush1.msra.mxu0 0.0
        %6728 = vmatprep.subr.mxu0 0.0
        %6729 = vmatpush1.msra.mxu0 0.0
        %6730 = vmatprep.subr.mxu0 0.0
        %6731 = vmatpush1.msra.mxu0 0.0
        %6732 = vmatprep.subr.mxu0 0.0
        %6733 = vmatpush1.msra.mxu0 0.0
        %6734 = vmatprep.subr.mxu0 0.0
        %6735 = vmatpush1.msra.mxu0 0.0
        %6736 = vmatprep.subr.mxu0 0.0
        %6737 = vmatpush1.msra.mxu0 0.0
        %6738 = vmatprep.subr.mxu0 0.0
        %6739 = vmatpush1.msra.mxu0 0.0
        %6740 = vmatprep.subr.mxu0 0.0
        %6741 = vmatpush1.msra.mxu0 0.0
        %6742 = vmatprep.subr.mxu0 0.0
        %6743 = vmatpush1.msra.mxu0 0.0
        %6744 = vmatprep.subr.mxu0 0.0
        %6745 = vmatpush1.msra.mxu0 0.0
        %6746 = vmatprep.subr.mxu0 0.0
        %6747 = vmatpush1.msra.mxu0 0.0
        %6748 = vmatprep.subr.mxu0 0.0
        %6749 = vmatpush1.msra.mxu0 0.0
        %6750 = vmatprep.subr.mxu0 0.0
        %6751 = vmatpush1.msra.mxu0 0.0
        %6752 = vmatprep.subr.mxu0 0.0
        %6753 = vmatpush1.msra.mxu0 0.0
        %6754 = vmatprep.subr.mxu0 0.0
        %6755 = vmatpush1.msra.mxu0 0.0
        %6756 = vmatprep.subr.mxu0 0.0
        %6757 = vmatpush1.msra.mxu0 0.0
        %6758 = vmatprep.subr.mxu0 0.0
        %6759 = vmatpush1.msra.mxu0 0.0
        %6760 = vmatprep.subr.mxu0 0.0
        %6761 = vmatpush1.msra.mxu0 0.0
        %6762 = vmatprep.subr.mxu0 0.0
        %6763 = vmatpush1.msra.mxu0 0.0
        %6764 = vmatprep.subr.mxu0 0.0
        %6765 = vmatpush1.msra.mxu0 0.0
        %6766 = vmatprep.subr.mxu0 0.0
        %6767 = vmatpush1.msra.mxu0 0.0
        %6768 = vmatprep.mubr.f32.mxu0 0.0
        %6769 = vmatmul.mubr.f32.gmra.mrb[0].mxu0 %v5057
        %v6770 = vpop.f32.mrb[0].mxu0
        %v6771 = vadd.f32 0.0, %v6770
        %v6772 = vpop.f32.mrb[0].mxu0
        %v6773 = vadd.f32 0.0, %v6772
        %6774 = vmatprep.mubr.f32.mxu0 0.0
        %6775 = vmatmul.mubr.f32.gmra.mrb[0].mxu0 %v5060
        %v6776 = vpop.f32.mrb[0].mxu0
        %v6777 = vadd.f32 0.0, %v6776
        %v6778 = vpop.f32.mrb[0].mxu0
        %v6779 = vadd.f32 0.0, %v6778
        %6780 = vmatprep.mubr.f32.mxu0 0.0
        %6781 = vmatmul.mubr.f32.gmra.mrb[0].mxu0 %v5063
        %v6782 = vpop.f32.mrb[0].mxu0
        %v6783 = vadd.f32 0.0, %v6782
        %v6784 = vpop.f32.mrb[0].mxu0
        %v6785 = vadd.f32 0.0, %v6784
        %6786 = vmatprep.mubr.f32.mxu0 0.0
        %6787 = vmatmul.mubr.f32.gmra.mrb[0].mxu0 %v5066
        %v6788 = vpop.f32.mrb[0].mxu0
        %v6789 = vadd.f32 0.0, %v6788
        %v6790 = vpop.f32.mrb[0].mxu0
        %v6791 = vadd.f32 0.0, %v6790
        %6792 = vdwg.mxu0
        %v6793 = vmul.f32 %v5338, %v6593
        %v6794 = vmul.f32 %v5338, %v6595
        %v6795 = vmul.f32 %v5338, %v6682
        %v6796 = vmul.f32 %v5338, %v6684
        %v6797 = vmul.f32 %v5338, %v6771
        %v6798 = vmul.f32 %v5338, %v6773
        %v6799 = vmul.f32 %v5343, %v6599
        %v6800 = vmul.f32 %v5343, %v6601
        %v6801 = vmul.f32 %v5343, %v6688
        %v6802 = vmul.f32 %v5343, %v6690
        %v6803 = vmul.f32 %v5343, %v6777
        %v6804 = vmul.f32 %v5343, %v6779
        %v6805 = vmul.f32 %v5348, %v6605
        %v6806 = vmul.f32 %v5348, %v6607
        %v6807 = vmul.f32 %v5348, %v6694
        %v6808 = vmul.f32 %v5348, %v6696
        %v6809 = vmul.f32 %v5348, %v6783
        %v6810 = vmul.f32 %v5348, %v6785
        %v6811 = vmul.f32 %v5353, %v6611
        %v6812 = vmul.f32 %v5353, %v6613
        %v6813 = vmul.f32 %v5353, %v6700
        %v6814 = vmul.f32 %v5353, %v6702
        %v6815 = vmul.f32 %v5353, %v6789
        %v6816 = vmul.f32 %v5353, %v6791
        %6817 = vmatprep.subr.mxu0 %v4481
        %6818 = vmatpush1.msra.mxu0 %v4480
        %6819 = vmatprep.subr.mxu0 %v4487
        %6820 = vmatpush1.msra.mxu0 %v4486
        %6821 = vmatprep.subr.mxu0 %v4493
        %6822 = vmatpush1.msra.mxu0 %v4492
        %6823 = vmatprep.subr.mxu0 %v4499
        %6824 = vmatpush1.msra.mxu0 %v4498
        %6825 = vmatprep.subr.mxu0 %v4505
        %6826 = vmatpush1.msra.mxu0 %v4504
        %6827 = vmatprep.subr.mxu0 %v4511
        %6828 = vmatpush1.msra.mxu0 %v4510
        %6829 = vmatprep.subr.mxu0 %v4517
        %6830 = vmatpush1.msra.mxu0 %v4516
        %6831 = vmatprep.subr.mxu0 %v4523
        %6832 = vmatpush1.msra.mxu0 %v4522
        %6833 = vmatprep.subr.mxu0 %v4529
        %6834 = vmatpush1.msra.mxu0 %v4528
        %6835 = vmatprep.subr.mxu0 %v4535
        %6836 = vmatpush1.msra.mxu0 %v4534
        %6837 = vmatprep.subr.mxu0 %v4541
        %6838 = vmatpush1.msra.mxu0 %v4540
        %6839 = vmatprep.subr.mxu0 %v4547
        %6840 = vmatpush1.msra.mxu0 %v4546
        %6841 = vmatprep.subr.mxu0 %v4553
        %6842 = vmatpush1.msra.mxu0 %v4552
        %6843 = vmatprep.subr.mxu0 %v4559
        %6844 = vmatpush1.msra.mxu0 %v4558
        %6845 = vmatprep.subr.mxu0 %v4565
        %6846 = vmatpush1.msra.mxu0 %v4564
        %6847 = vmatprep.subr.mxu0 %v4571
        %6848 = vmatpush1.msra.mxu0 %v4570
        %6849 = vmatprep.subr.mxu0 %v4577
        %6850 = vmatpush1.msra.mxu0 %v4576
        %6851 = vmatprep.subr.mxu0 %v4583
        %6852 = vmatpush1.msra.mxu0 %v4582
        %6853 = vmatprep.subr.mxu0 %v4589
        %6854 = vmatpush1.msra.mxu0 %v4588
        %6855 = vmatprep.subr.mxu0 %v4595
        %6856 = vmatpush1.msra.mxu0 %v4594
        %6857 = vmatprep.subr.mxu0 %v4601
        %6858 = vmatpush1.msra.mxu0 %v4600
        %6859 = vmatprep.subr.mxu0 %v4607
        %6860 = vmatpush1.msra.mxu0 %v4606
        %6861 = vmatprep.subr.mxu0 %v4613
        %6862 = vmatpush1.msra.mxu0 %v4612
        %6863 = vmatprep.subr.mxu0 %v4619
        %6864 = vmatpush1.msra.mxu0 %v4618
        %6865 = vmatprep.subr.mxu0 %v4625
        %6866 = vmatpush1.msra.mxu0 %v4624
        %6867 = vmatprep.subr.mxu0 %v4631
        %6868 = vmatpush1.msra.mxu0 %v4630
        %6869 = vmatprep.subr.mxu0 %v4637
        %6870 = vmatpush1.msra.mxu0 %v4636
        %6871 = vmatprep.subr.mxu0 %v4643
        %6872 = vmatpush1.msra.mxu0 %v4642
        %6873 = vmatprep.subr.mxu0 %v4649
        %6874 = vmatpush1.msra.mxu0 %v4648
        %6875 = vmatprep.subr.mxu0 %v4655
        %6876 = vmatpush1.msra.mxu0 %v4654
        %6877 = vmatprep.subr.mxu0 %v4661
        %6878 = vmatpush1.msra.mxu0 %v4660
        %6879 = vmatprep.subr.mxu0 %v4667
        %6880 = vmatpush1.msra.mxu0 %v4666
        %6881 = vmatprep.mubr.f32.mxu0 %v6503
        %6882 = vmatmul.mubr.f32.gmra.mrb[0].mxu0 %v6502
        %v6883 = vpop.f32.mrb[0].mxu0
        %v6884 = vadd.f32 0.0, %v6883
        %v6885 = vpop.f32.mrb[0].mxu0
        %v6886 = vadd.f32 0.0, %v6885
        %6887 = vmatprep.mubr.f32.mxu0 %v6509
        %6888 = vmatmul.mubr.f32.gmra.mrb[0].mxu0 %v6508
        %v6889 = vpop.f32.mrb[0].mxu0
        %v6890 = vadd.f32 0.0, %v6889
        %v6891 = vpop.f32.mrb[0].mxu0
        %v6892 = vadd.f32 0.0, %v6891
        %6893 = vmatprep.mubr.f32.mxu0 %v6515
        %6894 = vmatmul.mubr.f32.gmra.mrb[0].mxu0 %v6514
        %v6895 = vpop.f32.mrb[0].mxu0
        %v6896 = vadd.f32 0.0, %v6895
        %v6897 = vpop.f32.mrb[0].mxu0
        %v6898 = vadd.f32 0.0, %v6897
        %6899 = vmatprep.mubr.f32.mxu0 %v6521
        %6900 = vmatmul.mubr.f32.gmra.mrb[0].mxu0 %v6520
        %v6901 = vpop.f32.mrb[0].mxu0
        %v6902 = vadd.f32 0.0, %v6901
        %v6903 = vpop.f32.mrb[0].mxu0
        %v6904 = vadd.f32 0.0, %v6903
        %6905 = vdwg.mxu0
        %6906 = vmatprep.subr.mxu0 %v4673
        %6907 = vmatpush1.msra.mxu0 %v4672
        %6908 = vmatprep.subr.mxu0 %v4679
        %6909 = vmatpush1.msra.mxu0 %v4678
        %6910 = vmatprep.subr.mxu0 %v4685
        %6911 = vmatpush1.msra.mxu0 %v4684
        %6912 = vmatprep.subr.mxu0 %v4691
        %6913 = vmatpush1.msra.mxu0 %v4690
        %6914 = vmatprep.subr.mxu0 %v4697
        %6915 = vmatpush1.msra.mxu0 %v4696
        %6916 = vmatprep.subr.mxu0 %v4703
        %6917 = vmatpush1.msra.mxu0 %v4702
        %6918 = vmatprep.subr.mxu0 %v4709
        %6919 = vmatpush1.msra.mxu0 %v4708
        %6920 = vmatprep.subr.mxu0 %v4715
        %6921 = vmatpush1.msra.mxu0 %v4714
        %6922 = vmatprep.subr.mxu0 %v4721
        %6923 = vmatpush1.msra.mxu0 %v4720
        %6924 = vmatprep.subr.mxu0 %v4727
        %6925 = vmatpush1.msra.mxu0 %v4726
        %6926 = vmatprep.subr.mxu0 %v4733
        %6927 = vmatpush1.msra.mxu0 %v4732
        %6928 = vmatprep.subr.mxu0 %v4739
        %6929 = vmatpush1.msra.mxu0 %v4738
        %6930 = vmatprep.subr.mxu0 %v4745
        %6931 = vmatpush1.msra.mxu0 %v4744
        %6932 = vmatprep.subr.mxu0 %v4751
        %6933 = vmatpush1.msra.mxu0 %v4750
        %6934 = vmatprep.subr.mxu0 %v4757
        %6935 = vmatpush1.msra.mxu0 %v4756
        %6936 = vmatprep.subr.mxu0 %v4763
        %6937 = vmatpush1.msra.mxu0 %v4762
        %6938 = vmatprep.subr.mxu0 %v4769
        %6939 = vmatpush1.msra.mxu0 %v4768
        %6940 = vmatprep.subr.mxu0 %v4775
        %6941 = vmatpush1.msra.mxu0 %v4774
        %6942 = vmatprep.subr.mxu0 %v4781
        %6943 = vmatpush1.msra.mxu0 %v4780
        %6944 = vmatprep.subr.mxu0 %v4787
        %6945 = vmatpush1.msra.mxu0 %v4786
        %6946 = vmatprep.subr.mxu0 %v4793
        %6947 = vmatpush1.msra.mxu0 %v4792
        %6948 = vmatprep.subr.mxu0 %v4799
        %6949 = vmatpush1.msra.mxu0 %v4798
        %6950 = vmatprep.subr.mxu0 %v4805
        %6951 = vmatpush1.msra.mxu0 %v4804
        %6952 = vmatprep.subr.mxu0 %v4811
        %6953 = vmatpush1.msra.mxu0 %v4810
        %6954 = vmatprep.subr.mxu0 %v4817
        %6955 = vmatpush1.msra.mxu0 %v4816
        %6956 = vmatprep.subr.mxu0 %v4823
        %6957 = vmatpush1.msra.mxu0 %v4822
        %6958 = vmatprep.subr.mxu0 %v4829
        %6959 = vmatpush1.msra.mxu0 %v4828
        %6960 = vmatprep.subr.mxu0 %v4835
        %6961 = vmatpush1.msra.mxu0 %v4834
        %6962 = vmatprep.subr.mxu0 %v4841
        %6963 = vmatpush1.msra.mxu0 %v4840
        %6964 = vmatprep.subr.mxu0 %v4847
        %6965 = vmatpush1.msra.mxu0 %v4846
        %6966 = vmatprep.subr.mxu0 %v4853
        %6967 = vmatpush1.msra.mxu0 %v4852
        %6968 = vmatprep.subr.mxu0 %v4859
        %6969 = vmatpush1.msra.mxu0 %v4858
        %6970 = vmatprep.mubr.f32.mxu0 %v6505
        %6971 = vmatmul.mubr.f32.gmra.mrb[0].mxu0 %v6504
        %v6972 = vpop.f32.mrb[0].mxu0
        %v6973 = vadd.f32 %v6884, %v6972
        %v6974 = vpop.f32.mrb[0].mxu0
        %v6975 = vadd.f32 %v6886, %v6974
        %6976 = vmatprep.mubr.f32.mxu0 %v6511
        %6977 = vmatmul.mubr.f32.gmra.mrb[0].mxu0 %v6510
        %v6978 = vpop.f32.mrb[0].mxu0
        %v6979 = vadd.f32 %v6890, %v6978
        %v6980 = vpop.f32.mrb[0].mxu0
        %v6981 = vadd.f32 %v6892, %v6980
        %6982 = vmatprep.mubr.f32.mxu0 %v6517
        %6983 = vmatmul.mubr.f32.gmra.mrb[0].mxu0 %v6516
        %v6984 = vpop.f32.mrb[0].mxu0
        %v6985 = vadd.f32 %v6896, %v6984
        %v6986 = vpop.f32.mrb[0].mxu0
        %v6987 = vadd.f32 %v6898, %v6986
        %6988 = vmatprep.mubr.f32.mxu0 %v6523
        %6989 = vmatmul.mubr.f32.gmra.mrb[0].mxu0 %v6522
        %v6990 = vpop.f32.mrb[0].mxu0
        %v6991 = vadd.f32 %v6902, %v6990
        %v6992 = vpop.f32.mrb[0].mxu0
        %v6993 = vadd.f32 %v6904, %v6992
        %6994 = vdwg.mxu0
        %6995 = vmatprep.subr.mxu0 %v4865
        %6996 = vmatpush1.msra.mxu0 %v4864
        %6997 = vmatprep.subr.mxu0 %v4871
        %6998 = vmatpush1.msra.mxu0 %v4870
        %6999 = vmatprep.subr.mxu0 %v4877
        %7000 = vmatpush1.msra.mxu0 %v4876
        %7001 = vmatprep.subr.mxu0 %v4883
        %7002 = vmatpush1.msra.mxu0 %v4882
        %7003 = vmatprep.subr.mxu0 %v4889
        %7004 = vmatpush1.msra.mxu0 %v4888
        %7005 = vmatprep.subr.mxu0 %v4895
        %7006 = vmatpush1.msra.mxu0 %v4894
        %7007 = vmatprep.subr.mxu0 %v4901
        %7008 = vmatpush1.msra.mxu0 %v4900
        %7009 = vmatprep.subr.mxu0 %v4907
        %7010 = vmatpush1.msra.mxu0 %v4906
        %7011 = vmatprep.subr.mxu0 %v4913
        %7012 = vmatpush1.msra.mxu0 %v4912
        %7013 = vmatprep.subr.mxu0 %v4919
        %7014 = vmatpush1.msra.mxu0 %v4918
        %7015 = vmatprep.subr.mxu0 %v4925
        %7016 = vmatpush1.msra.mxu0 %v4924
        %7017 = vmatprep.subr.mxu0 %v4931
        %7018 = vmatpush1.msra.mxu0 %v4930
        %7019 = vmatprep.subr.mxu0 %v4937
        %7020 = vmatpush1.msra.mxu0 %v4936
        %7021 = vmatprep.subr.mxu0 %v4943
        %7022 = vmatpush1.msra.mxu0 %v4942
        %7023 = vmatprep.subr.mxu0 %v4949
        %7024 = vmatpush1.msra.mxu0 %v4948
        %7025 = vmatprep.subr.mxu0 %v4955
        %7026 = vmatpush1.msra.mxu0 %v4954
        %7027 = vmatprep.subr.mxu0 %v4961
        %7028 = vmatpush1.msra.mxu0 %v4960
        %7029 = vmatprep.subr.mxu0 %v4967
        %7030 = vmatpush1.msra.mxu0 %v4966
        %7031 = vmatprep.subr.mxu0 %v4973
        %7032 = vmatpush1.msra.mxu0 %v4972
        %7033 = vmatprep.subr.mxu0 %v4979
        %7034 = vmatpush1.msra.mxu0 %v4978
        %7035 = vmatprep.subr.mxu0 %v4985
        %7036 = vmatpush1.msra.mxu0 %v4984
        %7037 = vmatprep.subr.mxu0 %v4991
        %7038 = vmatpush1.msra.mxu0 %v4990
        %7039 = vmatprep.subr.mxu0 %v4997
        %7040 = vmatpush1.msra.mxu0 %v4996
        %7041 = vmatprep.subr.mxu0 %v5003
        %7042 = vmatpush1.msra.mxu0 %v5002
        %7043 = vmatprep.subr.mxu0 %v5009
        %7044 = vmatpush1.msra.mxu0 %v5008
        %7045 = vmatprep.subr.mxu0 %v5015
        %7046 = vmatpush1.msra.mxu0 %v5014
        %7047 = vmatprep.subr.mxu0 %v5021
        %7048 = vmatpush1.msra.mxu0 %v5020
        %7049 = vmatprep.subr.mxu0 %v5027
        %7050 = vmatpush1.msra.mxu0 %v5026
        %7051 = vmatprep.subr.mxu0 %v5033
        %7052 = vmatpush1.msra.mxu0 %v5032
        %7053 = vmatprep.subr.mxu0 %v5039
        %7054 = vmatpush1.msra.mxu0 %v5038
        %7055 = vmatprep.subr.mxu0 %v5045
        %7056 = vmatpush1.msra.mxu0 %v5044
        %7057 = vmatprep.subr.mxu0 %v5051
        %7058 = vmatpush1.msra.mxu0 %v5050
        %7059 = vmatprep.mubr.f32.mxu0 %v6507
        %7060 = vmatmul.mubr.f32.gmra.mrb[0].mxu0 %v6506
        %v7061 = vpop.f32.mrb[0].mxu0
        %v7062 = vadd.f32 %v6973, %v7061
        %v7063 = vpop.f32.mrb[0].mxu0
        %v7064 = vadd.f32 %v6975, %v7063
        %7065 = vmatprep.mubr.f32.mxu0 %v6513
        %7066 = vmatmul.mubr.f32.gmra.mrb[0].mxu0 %v6512
        %v7067 = vpop.f32.mrb[0].mxu0
        %v7068 = vadd.f32 %v6979, %v7067
        %v7069 = vpop.f32.mrb[0].mxu0
        %v7070 = vadd.f32 %v6981, %v7069
        %7071 = vmatprep.mubr.f32.mxu0 %v6519
        %7072 = vmatmul.mubr.f32.gmra.mrb[0].mxu0 %v6518
        %v7073 = vpop.f32.mrb[0].mxu0
        %v7074 = vadd.f32 %v6985, %v7073
        %v7075 = vpop.f32.mrb[0].mxu0
        %v7076 = vadd.f32 %v6987, %v7075
        %7077 = vmatprep.mubr.f32.mxu0 %v6525
        %7078 = vmatmul.mubr.f32.gmra.mrb[0].mxu0 %v6524
        %v7079 = vpop.f32.mrb[0].mxu0
        %v7080 = vadd.f32 %v6991, %v7079
        %v7081 = vpop.f32.mrb[0].mxu0
        %v7082 = vadd.f32 %v6993, %v7081
        %7083 = vdwg.mxu0
        %7084 = vmatprep.subr.mxu0 %v4483
        %7085 = vmatpush1.msra.mxu0 %v4482
        %7086 = vmatprep.subr.mxu0 %v4489
        %7087 = vmatpush1.msra.mxu0 %v4488
        %7088 = vmatprep.subr.mxu0 %v4495
        %7089 = vmatpush1.msra.mxu0 %v4494
        %7090 = vmatprep.subr.mxu0 %v4501
        %7091 = vmatpush1.msra.mxu0 %v4500
        %7092 = vmatprep.subr.mxu0 %v4507
        %7093 = vmatpush1.msra.mxu0 %v4506
        %7094 = vmatprep.subr.mxu0 %v4513
        %7095 = vmatpush1.msra.mxu0 %v4512
        %7096 = vmatprep.subr.mxu0 %v4519
        %7097 = vmatpush1.msra.mxu0 %v4518
        %7098 = vmatprep.subr.mxu0 %v4525
        %7099 = vmatpush1.msra.mxu0 %v4524
        %7100 = vmatprep.subr.mxu0 %v4531
        %7101 = vmatpush1.msra.mxu0 %v4530
        %7102 = vmatprep.subr.mxu0 %v4537
        %7103 = vmatpush1.msra.mxu0 %v4536
        %7104 = vmatprep.subr.mxu0 %v4543
        %7105 = vmatpush1.msra.mxu0 %v4542
        %7106 = vmatprep.subr.mxu0 %v4549
        %7107 = vmatpush1.msra.mxu0 %v4548
        %7108 = vmatprep.subr.mxu0 %v4555
        %7109 = vmatpush1.msra.mxu0 %v4554
        %7110 = vmatprep.subr.mxu0 %v4561
        %7111 = vmatpush1.msra.mxu0 %v4560
        %7112 = vmatprep.subr.mxu0 %v4567
        %7113 = vmatpush1.msra.mxu0 %v4566
        %7114 = vmatprep.subr.mxu0 %v4573
        %7115 = vmatpush1.msra.mxu0 %v4572
        %7116 = vmatprep.subr.mxu0 %v4579
        %7117 = vmatpush1.msra.mxu0 %v4578
        %7118 = vmatprep.subr.mxu0 %v4585
        %7119 = vmatpush1.msra.mxu0 %v4584
        %7120 = vmatprep.subr.mxu0 %v4591
        %7121 = vmatpush1.msra.mxu0 %v4590
        %7122 = vmatprep.subr.mxu0 %v4597
        %7123 = vmatpush1.msra.mxu0 %v4596
        %7124 = vmatprep.subr.mxu0 %v4603
        %7125 = vmatpush1.msra.mxu0 %v4602
        %7126 = vmatprep.subr.mxu0 %v4609
        %7127 = vmatpush1.msra.mxu0 %v4608
        %7128 = vmatprep.subr.mxu0 %v4615
        %7129 = vmatpush1.msra.mxu0 %v4614
        %7130 = vmatprep.subr.mxu0 %v4621
        %7131 = vmatpush1.msra.mxu0 %v4620
        %7132 = vmatprep.subr.mxu0 %v4627
        %7133 = vmatpush1.msra.mxu0 %v4626
        %7134 = vmatprep.subr.mxu0 %v4633
        %7135 = vmatpush1.msra.mxu0 %v4632
        %7136 = vmatprep.subr.mxu0 %v4639
        %7137 = vmatpush1.msra.mxu0 %v4638
        %7138 = vmatprep.subr.mxu0 %v4645
        %7139 = vmatpush1.msra.mxu0 %v4644
        %7140 = vmatprep.subr.mxu0 %v4651
        %7141 = vmatpush1.msra.mxu0 %v4650
        %7142 = vmatprep.subr.mxu0 %v4657
        %7143 = vmatpush1.msra.mxu0 %v4656
        %7144 = vmatprep.subr.mxu0 %v4663
        %7145 = vmatpush1.msra.mxu0 %v4662
        %7146 = vmatprep.subr.mxu0 %v4669
        %7147 = vmatpush1.msra.mxu0 %v4668
        %7148 = vmatprep.mubr.f32.mxu0 %v6503
        %7149 = vmatmul.mubr.f32.gmra.mrb[0].mxu0 %v6502
        %v7150 = vpop.f32.mrb[0].mxu0
        %v7151 = vadd.f32 0.0, %v7150
        %v7152 = vpop.f32.mrb[0].mxu0
        %v7153 = vadd.f32 0.0, %v7152
        %7154 = vmatprep.mubr.f32.mxu0 %v6509
        %7155 = vmatmul.mubr.f32.gmra.mrb[0].mxu0 %v6508
        %v7156 = vpop.f32.mrb[0].mxu0
        %v7157 = vadd.f32 0.0, %v7156
        %v7158 = vpop.f32.mrb[0].mxu0
        %v7159 = vadd.f32 0.0, %v7158
        %7160 = vmatprep.mubr.f32.mxu0 %v6515
        %7161 = vmatmul.mubr.f32.gmra.mrb[0].mxu0 %v6514
        %v7162 = vpop.f32.mrb[0].mxu0
        %v7163 = vadd.f32 0.0, %v7162
        %v7164 = vpop.f32.mrb[0].mxu0
        %v7165 = vadd.f32 0.0, %v7164
        %7166 = vmatprep.mubr.f32.mxu0 %v6521
        %7167 = vmatmul.mubr.f32.gmra.mrb[0].mxu0 %v6520
        %v7168 = vpop.f32.mrb[0].mxu0
        %v7169 = vadd.f32 0.0, %v7168
        %v7170 = vpop.f32.mrb[0].mxu0
        %v7171 = vadd.f32 0.0, %v7170
        %7172 = vdwg.mxu0
        %7173 = vmatprep.subr.mxu0 %v4675
        %7174 = vmatpush1.msra.mxu0 %v4674
        %7175 = vmatprep.subr.mxu0 %v4681
        %7176 = vmatpush1.msra.mxu0 %v4680
        %7177 = vmatprep.subr.mxu0 %v4687
        %7178 = vmatpush1.msra.mxu0 %v4686
        %7179 = vmatprep.subr.mxu0 %v4693
        %7180 = vmatpush1.msra.mxu0 %v4692
        %7181 = vmatprep.subr.mxu0 %v4699
        %7182 = vmatpush1.msra.mxu0 %v4698
        %7183 = vmatprep.subr.mxu0 %v4705
        %7184 = vmatpush1.msra.mxu0 %v4704
        %7185 = vmatprep.subr.mxu0 %v4711
        %7186 = vmatpush1.msra.mxu0 %v4710
        %7187 = vmatprep.subr.mxu0 %v4717
        %7188 = vmatpush1.msra.mxu0 %v4716
        %7189 = vmatprep.subr.mxu0 %v4723
        %7190 = vmatpush1.msra.mxu0 %v4722
        %7191 = vmatprep.subr.mxu0 %v4729
        %7192 = vmatpush1.msra.mxu0 %v4728
        %7193 = vmatprep.subr.mxu0 %v4735
        %7194 = vmatpush1.msra.mxu0 %v4734
        %7195 = vmatprep.subr.mxu0 %v4741
        %7196 = vmatpush1.msra.mxu0 %v4740
        %7197 = vmatprep.subr.mxu0 %v4747
        %7198 = vmatpush1.msra.mxu0 %v4746
        %7199 = vmatprep.subr.mxu0 %v4753
        %7200 = vmatpush1.msra.mxu0 %v4752
        %7201 = vmatprep.subr.mxu0 %v4759
        %7202 = vmatpush1.msra.mxu0 %v4758
        %7203 = vmatprep.subr.mxu0 %v4765
        %7204 = vmatpush1.msra.mxu0 %v4764
        %7205 = vmatprep.subr.mxu0 %v4771
        %7206 = vmatpush1.msra.mxu0 %v4770
        %7207 = vmatprep.subr.mxu0 %v4777
        %7208 = vmatpush1.msra.mxu0 %v4776
        %7209 = vmatprep.subr.mxu0 %v4783
        %7210 = vmatpush1.msra.mxu0 %v4782
        %7211 = vmatprep.subr.mxu0 %v4789
        %7212 = vmatpush1.msra.mxu0 %v4788
        %7213 = vmatprep.subr.mxu0 %v4795
        %7214 = vmatpush1.msra.mxu0 %v4794
        %7215 = vmatprep.subr.mxu0 %v4801
        %7216 = vmatpush1.msra.mxu0 %v4800
        %7217 = vmatprep.subr.mxu0 %v4807
        %7218 = vmatpush1.msra.mxu0 %v4806
        %7219 = vmatprep.subr.mxu0 %v4813
        %7220 = vmatpush1.msra.mxu0 %v4812
        %7221 = vmatprep.subr.mxu0 %v4819
        %7222 = vmatpush1.msra.mxu0 %v4818
        %7223 = vmatprep.subr.mxu0 %v4825
        %7224 = vmatpush1.msra.mxu0 %v4824
        %7225 = vmatprep.subr.mxu0 %v4831
        %7226 = vmatpush1.msra.mxu0 %v4830
        %7227 = vmatprep.subr.mxu0 %v4837
        %7228 = vmatpush1.msra.mxu0 %v4836
        %7229 = vmatprep.subr.mxu0 %v4843
        %7230 = vmatpush1.msra.mxu0 %v4842
        %7231 = vmatprep.subr.mxu0 %v4849
        %7232 = vmatpush1.msra.mxu0 %v4848
        %7233 = vmatprep.subr.mxu0 %v4855
        %7234 = vmatpush1.msra.mxu0 %v4854
        %7235 = vmatprep.subr.mxu0 %v4861
        %7236 = vmatpush1.msra.mxu0 %v4860
        %7237 = vmatprep.mubr.f32.mxu0 %v6505
        %7238 = vmatmul.mubr.f32.gmra.mrb[0].mxu0 %v6504
        %v7239 = vpop.f32.mrb[0].mxu0
        %v7240 = vadd.f32 %v7151, %v7239
        %v7241 = vpop.f32.mrb[0].mxu0
        %v7242 = vadd.f32 %v7153, %v7241
        %7243 = vmatprep.mubr.f32.mxu0 %v6511
        %7244 = vmatmul.mubr.f32.gmra.mrb[0].mxu0 %v6510
        %v7245 = vpop.f32.mrb[0].mxu0
        %v7246 = vadd.f32 %v7157, %v7245
        %v7247 = vpop.f32.mrb[0].mxu0
        %v7248 = vadd.f32 %v7159, %v7247
        %7249 = vmatprep.mubr.f32.mxu0 %v6517
        %7250 = vmatmul.mubr.f32.gmra.mrb[0].mxu0 %v6516
        %v7251 = vpop.f32.mrb[0].mxu0
        %v7252 = vadd.f32 %v7163, %v7251
        %v7253 = vpop.f32.mrb[0].mxu0
        %v7254 = vadd.f32 %v7165, %v7253
        %7255 = vmatprep.mubr.f32.mxu0 %v6523
        %7256 = vmatmul.mubr.f32.gmra.mrb[0].mxu0 %v6522
        %v7257 = vpop.f32.mrb[0].mxu0
        %v7258 = vadd.f32 %v7169, %v7257
        %v7259 = vpop.f32.mrb[0].mxu0
        %v7260 = vadd.f32 %v7171, %v7259
        %7261 = vdwg.mxu0
        %7262 = vmatprep.subr.mxu0 %v4867
        %7263 = vmatpush1.msra.mxu0 %v4866
        %7264 = vmatprep.subr.mxu0 %v4873
        %7265 = vmatpush1.msra.mxu0 %v4872
        %7266 = vmatprep.subr.mxu0 %v4879
        %7267 = vmatpush1.msra.mxu0 %v4878
        %7268 = vmatprep.subr.mxu0 %v4885
        %7269 = vmatpush1.msra.mxu0 %v4884
        %7270 = vmatprep.subr.mxu0 %v4891
        %7271 = vmatpush1.msra.mxu0 %v4890
        %7272 = vmatprep.subr.mxu0 %v4897
        %7273 = vmatpush1.msra.mxu0 %v4896
        %7274 = vmatprep.subr.mxu0 %v4903
        %7275 = vmatpush1.msra.mxu0 %v4902
        %7276 = vmatprep.subr.mxu0 %v4909
        %7277 = vmatpush1.msra.mxu0 %v4908
        %7278 = vmatprep.subr.mxu0 %v4915
        %7279 = vmatpush1.msra.mxu0 %v4914
        %7280 = vmatprep.subr.mxu0 %v4921
        %7281 = vmatpush1.msra.mxu0 %v4920
        %7282 = vmatprep.subr.mxu0 %v4927
        %7283 = vmatpush1.msra.mxu0 %v4926
        %7284 = vmatprep.subr.mxu0 %v4933
        %7285 = vmatpush1.msra.mxu0 %v4932
        %7286 = vmatprep.subr.mxu0 %v4939
        %7287 = vmatpush1.msra.mxu0 %v4938
        %7288 = vmatprep.subr.mxu0 %v4945
        %7289 = vmatpush1.msra.mxu0 %v4944
        %7290 = vmatprep.subr.mxu0 %v4951
        %7291 = vmatpush1.msra.mxu0 %v4950
        %7292 = vmatprep.subr.mxu0 %v4957
        %7293 = vmatpush1.msra.mxu0 %v4956
        %7294 = vmatprep.subr.mxu0 %v4963
        %7295 = vmatpush1.msra.mxu0 %v4962
        %7296 = vmatprep.subr.mxu0 %v4969
        %7297 = vmatpush1.msra.mxu0 %v4968
        %7298 = vmatprep.subr.mxu0 %v4975
        %7299 = vmatpush1.msra.mxu0 %v4974
        %7300 = vmatprep.subr.mxu0 %v4981
        %7301 = vmatpush1.msra.mxu0 %v4980
        %7302 = vmatprep.subr.mxu0 %v4987
        %7303 = vmatpush1.msra.mxu0 %v4986
        %7304 = vmatprep.subr.mxu0 %v4993
        %7305 = vmatpush1.msra.mxu0 %v4992
        %7306 = vmatprep.subr.mxu0 %v4999
        %7307 = vmatpush1.msra.mxu0 %v4998
        %7308 = vmatprep.subr.mxu0 %v5005
        %7309 = vmatpush1.msra.mxu0 %v5004
        %7310 = vmatprep.subr.mxu0 %v5011
        %7311 = vmatpush1.msra.mxu0 %v5010
        %7312 = vmatprep.subr.mxu0 %v5017
        %7313 = vmatpush1.msra.mxu0 %v5016
        %7314 = vmatprep.subr.mxu0 %v5023
        %7315 = vmatpush1.msra.mxu0 %v5022
        %7316 = vmatprep.subr.mxu0 %v5029
        %7317 = vmatpush1.msra.mxu0 %v5028
        %7318 = vmatprep.subr.mxu0 %v5035
        %7319 = vmatpush1.msra.mxu0 %v5034
        %7320 = vmatprep.subr.mxu0 %v5041
        %7321 = vmatpush1.msra.mxu0 %v5040
        %7322 = vmatprep.subr.mxu0 %v5047
        %7323 = vmatpush1.msra.mxu0 %v5046
        %7324 = vmatprep.subr.mxu0 %v5053
        %7325 = vmatpush1.msra.mxu0 %v5052
        %7326 = vmatprep.mubr.f32.mxu0 %v6507
        %7327 = vmatmul.mubr.f32.gmra.mrb[0].mxu0 %v6506
        %v7328 = vpop.f32.mrb[0].mxu0
        %v7329 = vadd.f32 %v7240, %v7328
        %v7330 = vpop.f32.mrb[0].mxu0
        %v7331 = vadd.f32 %v7242, %v7330
        %7332 = vmatprep.mubr.f32.mxu0 %v6513
        %7333 = vmatmul.mubr.f32.gmra.mrb[0].mxu0 %v6512
        %v7334 = vpop.f32.mrb[0].mxu0
        %v7335 = vadd.f32 %v7246, %v7334
        %v7336 = vpop.f32.mrb[0].mxu0
        %v7337 = vadd.f32 %v7248, %v7336
        %7338 = vmatprep.mubr.f32.mxu0 %v6519
        %7339 = vmatmul.mubr.f32.gmra.mrb[0].mxu0 %v6518
        %v7340 = vpop.f32.mrb[0].mxu0
        %v7341 = vadd.f32 %v7252, %v7340
        %v7342 = vpop.f32.mrb[0].mxu0
        %v7343 = vadd.f32 %v7254, %v7342
        %7344 = vmatprep.mubr.f32.mxu0 %v6525
        %7345 = vmatmul.mubr.f32.gmra.mrb[0].mxu0 %v6524
        %v7346 = vpop.f32.mrb[0].mxu0
        %v7347 = vadd.f32 %v7258, %v7346
        %v7348 = vpop.f32.mrb[0].mxu0
        %v7349 = vadd.f32 %v7260, %v7348
        %7350 = vdwg.mxu0
        %7351 = vmatprep.subr.mxu0 %v4485
        %7352 = vmatpush1.msra.mxu0 %v4484
        %7353 = vmatprep.subr.mxu0 %v4491
        %7354 = vmatpush1.msra.mxu0 %v4490
        %7355 = vmatprep.subr.mxu0 %v4497
        %7356 = vmatpush1.msra.mxu0 %v4496
        %7357 = vmatprep.subr.mxu0 %v4503
        %7358 = vmatpush1.msra.mxu0 %v4502
        %7359 = vmatprep.subr.mxu0 %v4509
        %7360 = vmatpush1.msra.mxu0 %v4508
        %7361 = vmatprep.subr.mxu0 %v4515
        %7362 = vmatpush1.msra.mxu0 %v4514
        %7363 = vmatprep.subr.mxu0 %v4521
        %7364 = vmatpush1.msra.mxu0 %v4520
        %7365 = vmatprep.subr.mxu0 %v4527
        %7366 = vmatpush1.msra.mxu0 %v4526
        %7367 = vmatprep.subr.mxu0 %v4533
        %7368 = vmatpush1.msra.mxu0 %v4532
        %7369 = vmatprep.subr.mxu0 %v4539
        %7370 = vmatpush1.msra.mxu0 %v4538
        %7371 = vmatprep.subr.mxu0 %v4545
        %7372 = vmatpush1.msra.mxu0 %v4544
        %7373 = vmatprep.subr.mxu0 %v4551
        %7374 = vmatpush1.msra.mxu0 %v4550
        %7375 = vmatprep.subr.mxu0 %v4557
        %7376 = vmatpush1.msra.mxu0 %v4556
        %7377 = vmatprep.subr.mxu0 %v4563
        %7378 = vmatpush1.msra.mxu0 %v4562
        %7379 = vmatprep.subr.mxu0 %v4569
        %7380 = vmatpush1.msra.mxu0 %v4568
        %7381 = vmatprep.subr.mxu0 %v4575
        %7382 = vmatpush1.msra.mxu0 %v4574
        %7383 = vmatprep.subr.mxu0 %v4581
        %7384 = vmatpush1.msra.mxu0 %v4580
        %7385 = vmatprep.subr.mxu0 %v4587
        %7386 = vmatpush1.msra.mxu0 %v4586
        %7387 = vmatprep.subr.mxu0 %v4593
        %7388 = vmatpush1.msra.mxu0 %v4592
        %7389 = vmatprep.subr.mxu0 %v4599
        %7390 = vmatpush1.msra.mxu0 %v4598
        %7391 = vmatprep.subr.mxu0 %v4605
        %7392 = vmatpush1.msra.mxu0 %v4604
        %7393 = vmatprep.subr.mxu0 %v4611
        %7394 = vmatpush1.msra.mxu0 %v4610
        %7395 = vmatprep.subr.mxu0 %v4617
        %7396 = vmatpush1.msra.mxu0 %v4616
        %7397 = vmatprep.subr.mxu0 %v4623
        %7398 = vmatpush1.msra.mxu0 %v4622
        %7399 = vmatprep.subr.mxu0 %v4629
        %7400 = vmatpush1.msra.mxu0 %v4628
        %7401 = vmatprep.subr.mxu0 %v4635
        %7402 = vmatpush1.msra.mxu0 %v4634
        %7403 = vmatprep.subr.mxu0 %v4641
        %7404 = vmatpush1.msra.mxu0 %v4640
        %7405 = vmatprep.subr.mxu0 %v4647
        %7406 = vmatpush1.msra.mxu0 %v4646
        %7407 = vmatprep.subr.mxu0 %v4653
        %7408 = vmatpush1.msra.mxu0 %v4652
        %7409 = vmatprep.subr.mxu0 %v4659
        %7410 = vmatpush1.msra.mxu0 %v4658
        %7411 = vmatprep.subr.mxu0 %v4665
        %7412 = vmatpush1.msra.mxu0 %v4664
        %7413 = vmatprep.subr.mxu0 %v4671
        %7414 = vmatpush1.msra.mxu0 %v4670
        %7415 = vmatprep.mubr.f32.mxu0 %v6503
        %7416 = vmatmul.mubr.f32.gmra.mrb[0].mxu0 %v6502
        %v7417 = vpop.f32.mrb[0].mxu0
        %v7418 = vadd.f32 0.0, %v7417
        %v7419 = vpop.f32.mrb[0].mxu0
        %v7420 = vadd.f32 0.0, %v7419
        %7421 = vmatprep.mubr.f32.mxu0 %v6509
        %7422 = vmatmul.mubr.f32.gmra.mrb[0].mxu0 %v6508
        %v7423 = vpop.f32.mrb[0].mxu0
        %v7424 = vadd.f32 0.0, %v7423
        %v7425 = vpop.f32.mrb[0].mxu0
        %v7426 = vadd.f32 0.0, %v7425
        %7427 = vmatprep.mubr.f32.mxu0 %v6515
        %7428 = vmatmul.mubr.f32.gmra.mrb[0].mxu0 %v6514
        %v7429 = vpop.f32.mrb[0].mxu0
        %v7430 = vadd.f32 0.0, %v7429
        %v7431 = vpop.f32.mrb[0].mxu0
        %v7432 = vadd.f32 0.0, %v7431
        %7433 = vmatprep.mubr.f32.mxu0 %v6521
        %7434 = vmatmul.mubr.f32.gmra.mrb[0].mxu0 %v6520
        %v7435 = vpop.f32.mrb[0].mxu0
        %v7436 = vadd.f32 0.0, %v7435
        %v7437 = vpop.f32.mrb[0].mxu0
        %v7438 = vadd.f32 0.0, %v7437
        %7439 = vdwg.mxu0
        %7440 = vmatprep.subr.mxu0 %v4677
        %7441 = vmatpush1.msra.mxu0 %v4676
        %7442 = vmatprep.subr.mxu0 %v4683
        %7443 = vmatpush1.msra.mxu0 %v4682
        %7444 = vmatprep.subr.mxu0 %v4689
        %7445 = vmatpush1.msra.mxu0 %v4688
        %7446 = vmatprep.subr.mxu0 %v4695
        %7447 = vmatpush1.msra.mxu0 %v4694
        %7448 = vmatprep.subr.mxu0 %v4701
        %7449 = vmatpush1.msra.mxu0 %v4700
        %7450 = vmatprep.subr.mxu0 %v4707
        %7451 = vmatpush1.msra.mxu0 %v4706
        %7452 = vmatprep.subr.mxu0 %v4713
        %7453 = vmatpush1.msra.mxu0 %v4712
        %7454 = vmatprep.subr.mxu0 %v4719
        %7455 = vmatpush1.msra.mxu0 %v4718
        %7456 = vmatprep.subr.mxu0 %v4725
        %7457 = vmatpush1.msra.mxu0 %v4724
        %7458 = vmatprep.subr.mxu0 %v4731
        %7459 = vmatpush1.msra.mxu0 %v4730
        %7460 = vmatprep.subr.mxu0 %v4737
        %7461 = vmatpush1.msra.mxu0 %v4736
        %7462 = vmatprep.subr.mxu0 %v4743
        %7463 = vmatpush1.msra.mxu0 %v4742
        %7464 = vmatprep.subr.mxu0 %v4749
        %7465 = vmatpush1.msra.mxu0 %v4748
        %7466 = vmatprep.subr.mxu0 %v4755
        %7467 = vmatpush1.msra.mxu0 %v4754
        %7468 = vmatprep.subr.mxu0 %v4761
        %7469 = vmatpush1.msra.mxu0 %v4760
        %7470 = vmatprep.subr.mxu0 %v4767
        %7471 = vmatpush1.msra.mxu0 %v4766
        %7472 = vmatprep.subr.mxu0 %v4773
        %7473 = vmatpush1.msra.mxu0 %v4772
        %7474 = vmatprep.subr.mxu0 %v4779
        %7475 = vmatpush1.msra.mxu0 %v4778
        %7476 = vmatprep.subr.mxu0 %v4785
        %7477 = vmatpush1.msra.mxu0 %v4784
        %7478 = vmatprep.subr.mxu0 %v4791
        %7479 = vmatpush1.msra.mxu0 %v4790
        %7480 = vmatprep.subr.mxu0 %v4797
        %7481 = vmatpush1.msra.mxu0 %v4796
        %7482 = vmatprep.subr.mxu0 %v4803
        %7483 = vmatpush1.msra.mxu0 %v4802
        %7484 = vmatprep.subr.mxu0 %v4809
        %7485 = vmatpush1.msra.mxu0 %v4808
        %7486 = vmatprep.subr.mxu0 %v4815
        %7487 = vmatpush1.msra.mxu0 %v4814
        %7488 = vmatprep.subr.mxu0 %v4821
        %7489 = vmatpush1.msra.mxu0 %v4820
        %7490 = vmatprep.subr.mxu0 %v4827
        %7491 = vmatpush1.msra.mxu0 %v4826
        %7492 = vmatprep.subr.mxu0 %v4833
        %7493 = vmatpush1.msra.mxu0 %v4832
        %7494 = vmatprep.subr.mxu0 %v4839
        %7495 = vmatpush1.msra.mxu0 %v4838
        %7496 = vmatprep.subr.mxu0 %v4845
        %7497 = vmatpush1.msra.mxu0 %v4844
        %7498 = vmatprep.subr.mxu0 %v4851
        %7499 = vmatpush1.msra.mxu0 %v4850
        %7500 = vmatprep.subr.mxu0 %v4857
        %7501 = vmatpush1.msra.mxu0 %v4856
        %7502 = vmatprep.subr.mxu0 %v4863
        %7503 = vmatpush1.msra.mxu0 %v4862
        %7504 = vmatprep.mubr.f32.mxu0 %v6505
        %7505 = vmatmul.mubr.f32.gmra.mrb[0].mxu0 %v6504
        %v7506 = vpop.f32.mrb[0].mxu0
        %v7507 = vadd.f32 %v7418, %v7506
        %v7508 = vpop.f32.mrb[0].mxu0
        %v7509 = vadd.f32 %v7420, %v7508
        %7510 = vmatprep.mubr.f32.mxu0 %v6511
        %7511 = vmatmul.mubr.f32.gmra.mrb[0].mxu0 %v6510
        %v7512 = vpop.f32.mrb[0].mxu0
        %v7513 = vadd.f32 %v7424, %v7512
        %v7514 = vpop.f32.mrb[0].mxu0
        %v7515 = vadd.f32 %v7426, %v7514
        %7516 = vmatprep.mubr.f32.mxu0 %v6517
        %7517 = vmatmul.mubr.f32.gmra.mrb[0].mxu0 %v6516
        %v7518 = vpop.f32.mrb[0].mxu0
        %v7519 = vadd.f32 %v7430, %v7518
        %v7520 = vpop.f32.mrb[0].mxu0
        %v7521 = vadd.f32 %v7432, %v7520
        %7522 = vmatprep.mubr.f32.mxu0 %v6523
        %7523 = vmatmul.mubr.f32.gmra.mrb[0].mxu0 %v6522
        %v7524 = vpop.f32.mrb[0].mxu0
        %v7525 = vadd.f32 %v7436, %v7524
        %v7526 = vpop.f32.mrb[0].mxu0
        %v7527 = vadd.f32 %v7438, %v7526
        %7528 = vdwg.mxu0
        %7529 = vmatprep.subr.mxu0 %v4869
        %7530 = vmatpush1.msra.mxu0 %v4868
        %7531 = vmatprep.subr.mxu0 %v4875
        %7532 = vmatpush1.msra.mxu0 %v4874
        %7533 = vmatprep.subr.mxu0 %v4881
        %7534 = vmatpush1.msra.mxu0 %v4880
        %7535 = vmatprep.subr.mxu0 %v4887
        %7536 = vmatpush1.msra.mxu0 %v4886
        %7537 = vmatprep.subr.mxu0 %v4893
        %7538 = vmatpush1.msra.mxu0 %v4892
        %7539 = vmatprep.subr.mxu0 %v4899
        %7540 = vmatpush1.msra.mxu0 %v4898
        %7541 = vmatprep.subr.mxu0 %v4905
        %7542 = vmatpush1.msra.mxu0 %v4904
        %7543 = vmatprep.subr.mxu0 %v4911
        %7544 = vmatpush1.msra.mxu0 %v4910
        %7545 = vmatprep.subr.mxu0 %v4917
        %7546 = vmatpush1.msra.mxu0 %v4916
        %7547 = vmatprep.subr.mxu0 %v4923
        %7548 = vmatpush1.msra.mxu0 %v4922
        %7549 = vmatprep.subr.mxu0 %v4929
        %7550 = vmatpush1.msra.mxu0 %v4928
        %7551 = vmatprep.subr.mxu0 %v4935
        %7552 = vmatpush1.msra.mxu0 %v4934
        %7553 = vmatprep.subr.mxu0 %v4941
        %7554 = vmatpush1.msra.mxu0 %v4940
        %7555 = vmatprep.subr.mxu0 %v4947
        %7556 = vmatpush1.msra.mxu0 %v4946
        %7557 = vmatprep.subr.mxu0 %v4953
        %7558 = vmatpush1.msra.mxu0 %v4952
        %7559 = vmatprep.subr.mxu0 %v4959
        %7560 = vmatpush1.msra.mxu0 %v4958
        %7561 = vmatprep.subr.mxu0 %v4965
        %7562 = vmatpush1.msra.mxu0 %v4964
        %7563 = vmatprep.subr.mxu0 %v4971
        %7564 = vmatpush1.msra.mxu0 %v4970
        %7565 = vmatprep.subr.mxu0 %v4977
        %7566 = vmatpush1.msra.mxu0 %v4976
        %7567 = vmatprep.subr.mxu0 %v4983
        %7568 = vmatpush1.msra.mxu0 %v4982
        %7569 = vmatprep.subr.mxu0 %v4989
        %7570 = vmatpush1.msra.mxu0 %v4988
        %7571 = vmatprep.subr.mxu0 %v4995
        %7572 = vmatpush1.msra.mxu0 %v4994
        %7573 = vmatprep.subr.mxu0 %v5001
        %7574 = vmatpush1.msra.mxu0 %v5000
        %7575 = vmatprep.subr.mxu0 %v5007
        %7576 = vmatpush1.msra.mxu0 %v5006
        %7577 = vmatprep.subr.mxu0 %v5013
        %7578 = vmatpush1.msra.mxu0 %v5012
        %7579 = vmatprep.subr.mxu0 %v5019
        %7580 = vmatpush1.msra.mxu0 %v5018
        %7581 = vmatprep.subr.mxu0 %v5025
        %7582 = vmatpush1.msra.mxu0 %v5024
        %7583 = vmatprep.subr.mxu0 %v5031
        %7584 = vmatpush1.msra.mxu0 %v5030
        %7585 = vmatprep.subr.mxu0 %v5037
        %7586 = vmatpush1.msra.mxu0 %v5036
        %7587 = vmatprep.subr.mxu0 %v5043
        %7588 = vmatpush1.msra.mxu0 %v5042
        %7589 = vmatprep.subr.mxu0 %v5049
        %7590 = vmatpush1.msra.mxu0 %v5048
        %7591 = vmatprep.subr.mxu0 %v5055
        %7592 = vmatpush1.msra.mxu0 %v5054
        %7593 = vmatprep.mubr.f32.mxu0 %v6507
        %7594 = vmatmul.mubr.f32.gmra.mrb[0].mxu0 %v6506
        %v7595 = vpop.f32.mrb[0].mxu0
        %v7596 = vadd.f32 %v7507, %v7595
        %v7597 = vpop.f32.mrb[0].mxu0
        %v7598 = vadd.f32 %v7509, %v7597
        %7599 = vmatprep.mubr.f32.mxu0 %v6513
        %7600 = vmatmul.mubr.f32.gmra.mrb[0].mxu0 %v6512
        %v7601 = vpop.f32.mrb[0].mxu0
        %v7602 = vadd.f32 %v7513, %v7601
        %v7603 = vpop.f32.mrb[0].mxu0
        %v7604 = vadd.f32 %v7515, %v7603
        %7605 = vmatprep.mubr.f32.mxu0 %v6519
        %7606 = vmatmul.mubr.f32.gmra.mrb[0].mxu0 %v6518
        %v7607 = vpop.f32.mrb[0].mxu0
        %v7608 = vadd.f32 %v7519, %v7607
        %v7609 = vpop.f32.mrb[0].mxu0
        %v7610 = vadd.f32 %v7521, %v7609
        %7611 = vmatprep.mubr.f32.mxu0 %v6525
        %7612 = vmatmul.mubr.f32.gmra.mrb[0].mxu0 %v6524
        %v7613 = vpop.f32.mrb[0].mxu0
        %v7614 = vadd.f32 %v7525, %v7613
        %v7615 = vpop.f32.mrb[0].mxu0
        %v7616 = vadd.f32 %v7527, %v7615
        %7617 = vdwg.mxu0
        %v7618 = vadd.f32 %v6793, %v7062
        %v7619 = vadd.f32 %v6794, %v7064
        %v7620 = vadd.f32 %v6795, %v7329
        %v7621 = vadd.f32 %v6796, %v7331
        %v7622 = vadd.f32 %v6797, %v7596
        %v7623 = vadd.f32 %v6798, %v7598
        %v7624 = vadd.f32 %v6799, %v7068
        %v7625 = vadd.f32 %v6800, %v7070
        %v7626 = vadd.f32 %v6801, %v7335
        %v7627 = vadd.f32 %v6802, %v7337
        %v7628 = vadd.f32 %v6803, %v7602
        %v7629 = vadd.f32 %v6804, %v7604
        %v7630 = vadd.f32 %v6805, %v7074
        %v7631 = vadd.f32 %v6806, %v7076
        %v7632 = vadd.f32 %v6807, %v7341
        %v7633 = vadd.f32 %v6808, %v7343
        %v7634 = vadd.f32 %v6809, %v7608
        %v7635 = vadd.f32 %v6810, %v7610
        %v7636 = vadd.f32 %v6811, %v7080
        %v7637 = vadd.f32 %v6812, %v7082
        %v7638 = vadd.f32 %v6813, %v7347
        %v7639 = vadd.f32 %v6814, %v7349
        %v7640 = vadd.f32 %v6815, %v7614
        %v7641 = vadd.f32 %v6816, %v7616
        %v7642 = vmul.f32 %v7618, 6.0
        %v7643 = vmul.f32 %v7619, 6.0
        %v7644 = vmul.f32 %v7620, 6.0
        %v7645 = vmul.f32 %v7621, 6.0
        %v7646 = vmul.f32 %v7622, 6.0
        %v7647 = vmul.f32 %v7623, 6.0
        %v7648 = vmul.f32 %v7624, 6.0
        %v7649 = vmul.f32 %v7625, 6.0
        %v7650 = vmul.f32 %v7626, 6.0
        %v7651 = vmul.f32 %v7627, 6.0
        %v7652 = vmul.f32 %v7628, 6.0
        %v7653 = vmul.f32 %v7629, 6.0
        %v7654 = vmul.f32 %v7630, 6.0
        %v7655 = vmul.f32 %v7631, 6.0
        %v7656 = vmul.f32 %v7632, 6.0
        %v7657 = vmul.f32 %v7633, 6.0
        %v7658 = vmul.f32 %v7634, 6.0
        %v7659 = vmul.f32 %v7635, 6.0
        %v7660 = vmul.f32 %v7636, 6.0
        %v7661 = vmul.f32 %v7637, 6.0
        %v7662 = vmul.f32 %v7638, 6.0
        %v7663 = vmul.f32 %v7639, 6.0
        %v7664 = vmul.f32 %v7640, 6.0
        %v7665 = vmul.f32 %v7641, 6.0
        %v7666 = vadd.f32 %v6502, %v7642
        %v7667 = vadd.f32 %v6503, %v7643
        %v7668 = vadd.f32 %v6504, %v7644
        %v7669 = vadd.f32 %v6505, %v7645
        %v7670 = vadd.f32 %v6506, %v7646
        %v7671 = vadd.f32 %v6507, %v7647
        %v7672 = vadd.f32 %v6508, %v7648
        %v7673 = vadd.f32 %v6509, %v7649
        %v7674 = vadd.f32 %v6510, %v7650
        %v7675 = vadd.f32 %v6511, %v7651
        %v7676 = vadd.f32 %v6512, %v7652
        %v7677 = vadd.f32 %v6513, %v7653
        %v7678 = vadd.f32 %v6514, %v7654
        %v7679 = vadd.f32 %v6515, %v7655
        %v7680 = vadd.f32 %v6516, %v7656
        %v7681 = vadd.f32 %v6517, %v7657
        %v7682 = vadd.f32 %v6518, %v7658
        %v7683 = vadd.f32 %v6519, %v7659
        %v7684 = vadd.f32 %v6520, %v7660
        %v7685 = vadd.f32 %v6521, %v7661
        %v7686 = vadd.f32 %v6522, %v7662
        %v7687 = vadd.f32 %v6523, %v7663
        %v7688 = vadd.f32 %v6524, %v7664
        %v7689 = vadd.f32 %v6525, %v7665
        %v7690 = vmax.f32 %v7666, 0.0
        %v7691 = vmax.f32 %v7667, 0.0
        %v7692 = vmax.f32 %v7668, 0.0
        %v7693 = vmax.f32 %v7669, 0.0
        %v7694 = vmax.f32 %v7670, 0.0
        %v7695 = vmax.f32 %v7671, 0.0
        %v7696 = vmax.f32 %v7672, 0.0
        %v7697 = vmax.f32 %v7673, 0.0
        %v7698 = vmax.f32 %v7674, 0.0
        %v7699 = vmax.f32 %v7675, 0.0
        %v7700 = vmax.f32 %v7676, 0.0
        %v7701 = vmax.f32 %v7677, 0.0
        %v7702 = vmax.f32 %v7678, 0.0
        %v7703 = vmax.f32 %v7679, 0.0
        %v7704 = vmax.f32 %v7680, 0.0
        %v7705 = vmax.f32 %v7681, 0.0
        %v7706 = vmax.f32 %v7682, 0.0
        %v7707 = vmax.f32 %v7683, 0.0
        %v7708 = vmax.f32 %v7684, 0.0
        %v7709 = vmax.f32 %v7685, 0.0
        %v7710 = vmax.f32 %v7686, 0.0
        %v7711 = vmax.f32 %v7687, 0.0
        %v7712 = vmax.f32 %v7688, 0.0
        %v7713 = vmax.f32 %v7689, 0.0
        %v7714 = vadd.f32 %v7690, %v7691
        %v7715 = vadd.f32 %v7714, %v7692
        %v7716 = vadd.f32 %v7715, %v7693
        %v7717 = vadd.f32 %v7716, %v7694
        %v7718 = vadd.f32 %v7717, %v7695
        %7719 = vadd.xlane.f32.xlu0 %v7718
        %v7720 = vpop.xlane.xlu0 %7719
        %v7721 = vadd.f32 %v7696, %v7697
        %v7722 = vadd.f32 %v7721, %v7698
        %v7723 = vadd.f32 %v7722, %v7699
        %v7724 = vadd.f32 %v7723, %v7700
        %v7725 = vadd.f32 %v7724, %v7701
        %7726 = vadd.xlane.f32.xlu0 %v7725
        %v7727 = vpop.xlane.xlu0 %7726
        %v7728 = vadd.f32 %v7702, %v7703
        %v7729 = vadd.f32 %v7728, %v7704
        %v7730 = vadd.f32 %v7729, %v7705
        %v7731 = vadd.f32 %v7730, %v7706
        %v7732 = vadd.f32 %v7731, %v7707
        %7733 = vadd.xlane.f32.xlu0 %v7732
        %v7734 = vpop.xlane.xlu0 %7733
        %v7735 = vadd.f32 %v7708, %v7709
        %v7736 = vadd.f32 %v7735, %v7710
        %v7737 = vadd.f32 %v7736, %v7711
        %v7738 = vadd.f32 %v7737, %v7712
        %v7739 = vadd.f32 %v7738, %v7713
        %7740 = vadd.xlane.f32.xlu0 %v7739
        %v7741 = vpop.xlane.xlu0 %7740
        %v7742 = vadd.f32 %v7720, %v7734
        %v7743 = vadd.f32 %v7727, %v7741
        %v7744 = vmul.f32 %v7742, 0.0006510417
        %v7745 = vmul.f32 %v7743, 0.0006510417
        %7747 = vset.pattern.permute.xlu0 0
        %7748 = vperm.xlu0 %7747, %v7744
        %v7749 = vpop.permute.xlu0 %7748
        %7752 = vset.pattern.permute.xlu0 0
        %7753 = vperm.xlu0 %7752, %v7745
        %v7754 = vpop.permute.xlu0 %7753
        %v7756 = vsub.f32 %v7690, %v7749
        %v7757 = vsub.f32 %v7691, %v7749
        %v7758 = vsub.f32 %v7692, %v7749
        %v7759 = vsub.f32 %v7693, %v7749
        %v7760 = vsub.f32 %v7694, %v7749
        %v7761 = vsub.f32 %v7695, %v7749
        %v7762 = vsub.f32 %v7696, %v7754
        %v7763 = vsub.f32 %v7697, %v7754
        %v7764 = vsub.f32 %v7698, %v7754
        %v7765 = vsub.f32 %v7699, %v7754
        %v7766 = vsub.f32 %v7700, %v7754
        %v7767 = vsub.f32 %v7701, %v7754
        %v7768 = vsub.f32 %v7702, %v7749
        %v7769 = vsub.f32 %v7703, %v7749
        %v7770 = vsub.f32 %v7704, %v7749
        %v7771 = vsub.f32 %v7705, %v7749
        %v7772 = vsub.f32 %v7706, %v7749
        %v7773 = vsub.f32 %v7707, %v7749
        %v7774 = vsub.f32 %v7708, %v7754
        %v7775 = vsub.f32 %v7709, %v7754
        %v7776 = vsub.f32 %v7710, %v7754
        %v7777 = vsub.f32 %v7711, %v7754
        %v7778 = vsub.f32 %v7712, %v7754
        %v7779 = vsub.f32 %v7713, %v7754
        %v7780 = vmul.f32 %v7756, %v7756
        %v7781 = vmul.f32 %v7757, %v7757
        %v7782 = vmul.f32 %v7758, %v7758
        %v7783 = vmul.f32 %v7759, %v7759
        %v7784 = vmul.f32 %v7760, %v7760
        %v7785 = vmul.f32 %v7761, %v7761
        %v7786 = vmul.f32 %v7762, %v7762
        %v7787 = vmul.f32 %v7763, %v7763
        %v7788 = vmul.f32 %v7764, %v7764
        %v7789 = vmul.f32 %v7765, %v7765
        %v7790 = vmul.f32 %v7766, %v7766
        %v7791 = vmul.f32 %v7767, %v7767
        %v7792 = vmul.f32 %v7768, %v7768
        %v7793 = vmul.f32 %v7769, %v7769
        %v7794 = vmul.f32 %v7770, %v7770
        %v7795 = vmul.f32 %v7771, %v7771
        %v7796 = vmul.f32 %v7772, %v7772
        %v7797 = vmul.f32 %v7773, %v7773
        %v7798 = vmul.f32 %v7774, %v7774
        %v7799 = vmul.f32 %v7775, %v7775
        %v7800 = vmul.f32 %v7776, %v7776
        %v7801 = vmul.f32 %v7777, %v7777
        %v7802 = vmul.f32 %v7778, %v7778
        %v7803 = vmul.f32 %v7779, %v7779
        %v7804 = vadd.f32 %v7780, %v7781
        %v7805 = vadd.f32 %v7804, %v7782
        %v7806 = vadd.f32 %v7805, %v7783
        %v7807 = vadd.f32 %v7806, %v7784
        %v7808 = vadd.f32 %v7807, %v7785
        %7809 = vadd.xlane.f32.xlu0 %v7808
        %v7810 = vpop.xlane.xlu0 %7809
        %v7811 = vadd.f32 %v7786, %v7787
        %v7812 = vadd.f32 %v7811, %v7788
        %v7813 = vadd.f32 %v7812, %v7789
        %v7814 = vadd.f32 %v7813, %v7790
        %v7815 = vadd.f32 %v7814, %v7791
        %7816 = vadd.xlane.f32.xlu0 %v7815
        %v7817 = vpop.xlane.xlu0 %7816
        %v7818 = vadd.f32 %v7792, %v7793
        %v7819 = vadd.f32 %v7818, %v7794
        %v7820 = vadd.f32 %v7819, %v7795
        %v7821 = vadd.f32 %v7820, %v7796
        %v7822 = vadd.f32 %v7821, %v7797
        %7823 = vadd.xlane.f32.xlu0 %v7822
        %v7824 = vpop.xlane.xlu0 %7823
        %v7825 = vadd.f32 %v7798, %v7799
        %v7826 = vadd.f32 %v7825, %v7800
        %v7827 = vadd.f32 %v7826, %v7801
        %v7828 = vadd.f32 %v7827, %v7802
        %v7829 = vadd.f32 %v7828, %v7803
        %7830 = vadd.xlane.f32.xlu0 %v7829
        %v7831 = vpop.xlane.xlu0 %7830
        %v7832 = vadd.f32 %v7810, %v7824
        %v7833 = vadd.f32 %v7817, %v7831
        %v7834 = vmul.f32 %v7832, 0.0006510417
        %v7835 = vmul.f32 %v7833, 0.0006510417
        %v7836 = vadd.f32 %v7834, 1e-05
        %v7837 = vadd.f32 %v7835, 1e-05
        %v7838 = vrsqrt.pop %v7836
        %v7839 = vrsqrt.pop %v7837
        %v7840 = vmul.f32 %v7838, %v6402
        %v7841 = vmul.f32 %v7839, %v6403
        %v7842 = vmul.f32 %v7838, %v6404
        %v7843 = vmul.f32 %v7839, %v6405
        %7845 = vset.pattern.permute.xlu0 0
        %7846 = vperm.xlu0 %7845, %v7840
        %v7847 = vpop.permute.xlu0 %7846
        %7850 = vset.pattern.permute.xlu0 0
        %7851 = vperm.xlu0 %7850, %v7841
        %v7852 = vpop.permute.xlu0 %7851
        %7855 = vset.pattern.permute.xlu0 0
        %7856 = vperm.xlu0 %7855, %v7842
        %v7857 = vpop.permute.xlu0 %7856
        %7860 = vset.pattern.permute.xlu0 0
        %7861 = vperm.xlu0 %7860, %v7843
        %v7862 = vpop.permute.xlu0 %7861
        %v7864 = vmul.f32 %v7756, %v7847
        %v7865 = vmul.f32 %v7757, %v7847
        %v7866 = vmul.f32 %v7758, %v7847
        %v7867 = vmul.f32 %v7759, %v7847
        %v7868 = vmul.f32 %v7760, %v7847
        %v7869 = vmul.f32 %v7761, %v7847
        %v7870 = vmul.f32 %v7762, %v7852
        %v7871 = vmul.f32 %v7763, %v7852
        %v7872 = vmul.f32 %v7764, %v7852
        %v7873 = vmul.f32 %v7765, %v7852
        %v7874 = vmul.f32 %v7766, %v7852
        %v7875 = vmul.f32 %v7767, %v7852
        %v7876 = vmul.f32 %v7768, %v7857
        %v7877 = vmul.f32 %v7769, %v7857
        %v7878 = vmul.f32 %v7770, %v7857
        %v7879 = vmul.f32 %v7771, %v7857
        %v7880 = vmul.f32 %v7772, %v7857
        %v7881 = vmul.f32 %v7773, %v7857
        %v7882 = vmul.f32 %v7774, %v7862
        %v7883 = vmul.f32 %v7775, %v7862
        %v7884 = vmul.f32 %v7776, %v7862
        %v7885 = vmul.f32 %v7777, %v7862
        %v7886 = vmul.f32 %v7778, %v7862
        %v7887 = vmul.f32 %v7779, %v7862
        %v7888 = vadd.f32 %v7864, %v6461
        %v7889 = vadd.f32 %v7865, %v6461
        %v7890 = vadd.f32 %v7866, %v6461
        %v7891 = vadd.f32 %v7867, %v6461
        %v7892 = vadd.f32 %v7868, %v6461
        %v7893 = vadd.f32 %v7869, %v6461
        %v7894 = vadd.f32 %v7870, %v6466
        %v7895 = vadd.f32 %v7871, %v6466
        %v7896 = vadd.f32 %v7872, %v6466
        %v7897 = vadd.f32 %v7873, %v6466
        %v7898 = vadd.f32 %v7874, %v6466
        %v7899 = vadd.f32 %v7875, %v6466
        %v7900 = vadd.f32 %v7876, %v6471
        %v7901 = vadd.f32 %v7877, %v6471
        %v7902 = vadd.f32 %v7878, %v6471
        %v7903 = vadd.f32 %v7879, %v6471
        %v7904 = vadd.f32 %v7880, %v6471
        %v7905 = vadd.f32 %v7881, %v6471
        %v7906 = vadd.f32 %v7882, %v6476
        %v7907 = vadd.f32 %v7883, %v6476
        %v7908 = vadd.f32 %v7884, %v6476
        %v7909 = vadd.f32 %v7885, %v6476
        %v7910 = vadd.f32 %v7886, %v6476
        %v7911 = vadd.f32 %v7887, %v6476
        %p7912 = scmp.eq.s32.totalorder %s44, 0
        // Predicated region
        $region141: #{stgode_forward.1} parent=91 // pred_check
          %p7913 = pneg %p7912
        $region142: #{stgode_forward.1} parent=91 // pred_check_branch
          %7915 = sbr.rel (%p7913) target = $region144
        $region143: #{stgode_forward.1} parent=91 // pred_region
          %7916 = vst [vmem:[#allocation2] sm:$0xff] %v7888
          %7917 = vst [vmem:[#allocation2 + $0x8] sm:$0xff] %v7889
          %7918 = vst [vmem:[#allocation2 + $0x10] sm:$0xff] %v7890
          %7919 = vst [vmem:[#allocation2 + $0x18] sm:$0xff] %v7891
          %7920 = vst [vmem:[#allocation2 + $0x20] sm:$0xff] %v7892
          %7921 = vst [vmem:[#allocation2 + $0x28] sm:$0xff] %v7893
          %7922 = vst [vmem:[#allocation2 + $0x30] sm:$0xff] %v7894
          %7923 = vst [vmem:[#allocation2 + $0x38] sm:$0xff] %v7895
          %7924 = vst [vmem:[#allocation2 + $0x40] sm:$0xff] %v7896
          %7925 = vst [vmem:[#allocation2 + $0x48] sm:$0xff] %v7897
          %7926 = vst [vmem:[#allocation2 + $0x50] sm:$0xff] %v7898
          %7927 = vst [vmem:[#allocation2 + $0x58] sm:$0xff] %v7899
          %7928 = vst [vmem:[#allocation2 + $0x60] sm:$0xff] %v7900
          %7929 = vst [vmem:[#allocation2 + $0x68] sm:$0xff] %v7901
          %7930 = vst [vmem:[#allocation2 + $0x70] sm:$0xff] %v7902
          %7931 = vst [vmem:[#allocation2 + $0x78] sm:$0xff] %v7903
          %7932 = vst [vmem:[#allocation2 + $0x80] sm:$0xff] %v7904
          %7933 = vst [vmem:[#allocation2 + $0x88] sm:$0xff] %v7905
          %7934 = vst [vmem:[#allocation2 + $0x90] sm:$0xff] %v7906
          %7935 = vst [vmem:[#allocation2 + $0x98] sm:$0xff] %v7907
          %7936 = vst [vmem:[#allocation2 + $0xa0] sm:$0xff] %v7908
          %7937 = vst [vmem:[#allocation2 + $0xa8] sm:$0xff] %v7909
          %7938 = vst [vmem:[#allocation2 + $0xb0] sm:$0xff] %v7910
          %7939 = vst [vmem:[#allocation2 + $0xb8] sm:$0xff] %v7911
        $region144: #{stgode_forward.1} parent=91 // pred_fallthru
          _
        %p7940 = scmp.gt.s32.totalorder %s44, 0
        // Predicated region
        $region145: #{stgode_forward.1} parent=91 // pred_check
          %p7941 = pneg %p7940
        $region146: #{stgode_forward.1} parent=91 // pred_check_branch
          %7943 = sbr.rel (%p7941) target = $region148
        $region147: #{stgode_forward.1} parent=91 // pred_region
          %v7944 = vld [vmem:[#allocation2] sm:$0xff]
          %v7945 = vld [vmem:[#allocation2 + $0x8] sm:$0xff]
          %v7946 = vld [vmem:[#allocation2 + $0x10] sm:$0xff]
          %v7947 = vld [vmem:[#allocation2 + $0x18] sm:$0xff]
          %v7948 = vld [vmem:[#allocation2 + $0x20] sm:$0xff]
          %v7949 = vld [vmem:[#allocation2 + $0x28] sm:$0xff]
          %v7950 = vld [vmem:[#allocation2 + $0x30] sm:$0xff]
          %v7951 = vld [vmem:[#allocation2 + $0x38] sm:$0xff]
          %v7952 = vld [vmem:[#allocation2 + $0x40] sm:$0xff]
          %v7953 = vld [vmem:[#allocation2 + $0x48] sm:$0xff]
          %v7954 = vld [vmem:[#allocation2 + $0x50] sm:$0xff]
          %v7955 = vld [vmem:[#allocation2 + $0x58] sm:$0xff]
          %v7956 = vld [vmem:[#allocation2 + $0x60] sm:$0xff]
          %v7957 = vld [vmem:[#allocation2 + $0x68] sm:$0xff]
          %v7958 = vld [vmem:[#allocation2 + $0x70] sm:$0xff]
          %v7959 = vld [vmem:[#allocation2 + $0x78] sm:$0xff]
          %v7960 = vld [vmem:[#allocation2 + $0x80] sm:$0xff]
          %v7961 = vld [vmem:[#allocation2 + $0x88] sm:$0xff]
          %v7962 = vld [vmem:[#allocation2 + $0x90] sm:$0xff]
          %v7963 = vld [vmem:[#allocation2 + $0x98] sm:$0xff]
          %v7964 = vld [vmem:[#allocation2 + $0xa0] sm:$0xff]
          %v7965 = vld [vmem:[#allocation2 + $0xa8] sm:$0xff]
          %v7966 = vld [vmem:[#allocation2 + $0xb0] sm:$0xff]
          %v7967 = vld [vmem:[#allocation2 + $0xb8] sm:$0xff]
          %v7968 = vmax.f32 %v7944, %v7888
          %v7969 = vmax.f32 %v7945, %v7889
          %v7970 = vmax.f32 %v7946, %v7890
          %v7971 = vmax.f32 %v7947, %v7891
          %v7972 = vmax.f32 %v7948, %v7892
          %v7973 = vmax.f32 %v7949, %v7893
          %v7974 = vmax.f32 %v7950, %v7894
          %v7975 = vmax.f32 %v7951, %v7895
          %v7976 = vmax.f32 %v7952, %v7896
          %v7977 = vmax.f32 %v7953, %v7897
          %v7978 = vmax.f32 %v7954, %v7898
          %v7979 = vmax.f32 %v7955, %v7899
          %v7980 = vmax.f32 %v7956, %v7900
          %v7981 = vmax.f32 %v7957, %v7901
          %v7982 = vmax.f32 %v7958, %v7902
          %v7983 = vmax.f32 %v7959, %v7903
          %v7984 = vmax.f32 %v7960, %v7904
          %v7985 = vmax.f32 %v7961, %v7905
          %v7986 = vmax.f32 %v7962, %v7906
          %v7987 = vmax.f32 %v7963, %v7907
          %v7988 = vmax.f32 %v7964, %v7908
          %v7989 = vmax.f32 %v7965, %v7909
          %v7990 = vmax.f32 %v7966, %v7910
          %v7991 = vmax.f32 %v7967, %v7911
          %7992 = vst [vmem:[#allocation2] sm:$0xff] %v7968
          %7993 = vst [vmem:[#allocation2 + $0x8] sm:$0xff] %v7969
          %7994 = vst [vmem:[#allocation2 + $0x10] sm:$0xff] %v7970
          %7995 = vst [vmem:[#allocation2 + $0x18] sm:$0xff] %v7971
          %7996 = vst [vmem:[#allocation2 + $0x20] sm:$0xff] %v7972
          %7997 = vst [vmem:[#allocation2 + $0x28] sm:$0xff] %v7973
          %7998 = vst [vmem:[#allocation2 + $0x30] sm:$0xff] %v7974
          %7999 = vst [vmem:[#allocation2 + $0x38] sm:$0xff] %v7975
          %8000 = vst [vmem:[#allocation2 + $0x40] sm:$0xff] %v7976
          %8001 = vst [vmem:[#allocation2 + $0x48] sm:$0xff] %v7977
          %8002 = vst [vmem:[#allocation2 + $0x50] sm:$0xff] %v7978
          %8003 = vst [vmem:[#allocation2 + $0x58] sm:$0xff] %v7979
          %8004 = vst [vmem:[#allocation2 + $0x60] sm:$0xff] %v7980
          %8005 = vst [vmem:[#allocation2 + $0x68] sm:$0xff] %v7981
          %8006 = vst [vmem:[#allocation2 + $0x70] sm:$0xff] %v7982
          %8007 = vst [vmem:[#allocation2 + $0x78] sm:$0xff] %v7983
          %8008 = vst [vmem:[#allocation2 + $0x80] sm:$0xff] %v7984
          %8009 = vst [vmem:[#allocation2 + $0x88] sm:$0xff] %v7985
          %8010 = vst [vmem:[#allocation2 + $0x90] sm:$0xff] %v7986
          %8011 = vst [vmem:[#allocation2 + $0x98] sm:$0xff] %v7987
          %8012 = vst [vmem:[#allocation2 + $0xa0] sm:$0xff] %v7988
          %8013 = vst [vmem:[#allocation2 + $0xa8] sm:$0xff] %v7989
          %8014 = vst [vmem:[#allocation2 + $0xb0] sm:$0xff] %v7990
          %8015 = vst [vmem:[#allocation2 + $0xb8] sm:$0xff] %v7991
        $region148: #{stgode_forward.1} parent=91 // pred_fallthru
          _
        %p8016 = scmp.eq.s32.totalorder %s44, 5
        // Predicated region
        $region149: #{stgode_forward.1} parent=91 // pred_check
          %p8017 = pneg %p8016
        $region150: #{stgode_forward.1} parent=91 // pred_check_branch
          %8019 = sbr.rel (%p8017) target = $region152
        $region151: #{stgode_forward.1} parent=91 // pred_region
          %v8020 = vld [vmem:[#allocation2] sm:$0xff]
          %v8021 = vld [vmem:[#allocation2 + $0x8] sm:$0xff]
          %v8022 = vld [vmem:[#allocation2 + $0x10] sm:$0xff]
          %v8023 = vld [vmem:[#allocation2 + $0x18] sm:$0xff]
          %v8024 = vld [vmem:[#allocation2 + $0x20] sm:$0xff]
          %v8025 = vld [vmem:[#allocation2 + $0x28] sm:$0xff]
          %v8026 = vld [vmem:[#allocation2 + $0x30] sm:$0xff]
          %v8027 = vld [vmem:[#allocation2 + $0x38] sm:$0xff]
          %v8028 = vld [vmem:[#allocation2 + $0x40] sm:$0xff]
          %v8029 = vld [vmem:[#allocation2 + $0x48] sm:$0xff]
          %v8030 = vld [vmem:[#allocation2 + $0x50] sm:$0xff]
          %v8031 = vld [vmem:[#allocation2 + $0x58] sm:$0xff]
          %v8032 = vld [vmem:[#allocation2 + $0x60] sm:$0xff]
          %v8033 = vld [vmem:[#allocation2 + $0x68] sm:$0xff]
          %v8034 = vld [vmem:[#allocation2 + $0x70] sm:$0xff]
          %v8035 = vld [vmem:[#allocation2 + $0x78] sm:$0xff]
          %v8036 = vld [vmem:[#allocation2 + $0x80] sm:$0xff]
          %v8037 = vld [vmem:[#allocation2 + $0x88] sm:$0xff]
          %v8038 = vld [vmem:[#allocation2 + $0x90] sm:$0xff]
          %v8039 = vld [vmem:[#allocation2 + $0x98] sm:$0xff]
          %v8040 = vld [vmem:[#allocation2 + $0xa0] sm:$0xff]
          %v8041 = vld [vmem:[#allocation2 + $0xa8] sm:$0xff]
          %v8042 = vld [vmem:[#allocation2 + $0xb0] sm:$0xff]
          %v8043 = vld [vmem:[#allocation2 + $0xb8] sm:$0xff]
          %v8044 = vld [vmem:[#allocation16] sm:$0xff]
          %v8045 = vld [vmem:[#allocation16 + $0x8] sm:$0xff]
          %v8046 = vld [vmem:[#allocation16 + $0x10] sm:$0xff]
          %v8047 = vld [vmem:[#allocation16 + $0x18] sm:$0xff]
          %v8048 = vld [vmem:[#allocation16 + $0x20] sm:$0xff]
          %v8049 = vld [vmem:[#allocation16 + $0x28] sm:$0xff]
          %v8050 = vld [vmem:[#allocation16 + $0x30] sm:$0xff]
          %v8051 = vld [vmem:[#allocation16 + $0x38] sm:$0xff]
          %v8052 = vld [vmem:[#allocation16 + $0x40] sm:$0xff]
          %v8053 = vld [vmem:[#allocation16 + $0x48] sm:$0xff]
          %v8054 = vld [vmem:[#allocation16 + $0x50] sm:$0xff]
          %v8055 = vld [vmem:[#allocation16 + $0x58] sm:$0xff]
          %v8056 = vld [vmem:[#allocation16 + $0x60] sm:$0xff]
          %v8057 = vld [vmem:[#allocation16 + $0x68] sm:$0xff]
          %v8058 = vld [vmem:[#allocation16 + $0x70] sm:$0xff]
          %v8059 = vld [vmem:[#allocation16 + $0x78] sm:$0xff]
          %v8060 = vld [vmem:[#allocation16 + $0x80] sm:$0xff]
          %v8061 = vld [vmem:[#allocation16 + $0x88] sm:$0xff]
          %v8062 = vld [vmem:[#allocation16 + $0x90] sm:$0xff]
          %v8063 = vld [vmem:[#allocation16 + $0x98] sm:$0xff]
          %v8064 = vld [vmem:[#allocation16 + $0xa0] sm:$0xff]
          %v8065 = vld [vmem:[#allocation16 + $0xa8] sm:$0xff]
          %v8066 = vld [vmem:[#allocation16 + $0xb0] sm:$0xff]
          %v8067 = vld [vmem:[#allocation16 + $0xb8] sm:$0xff]
          %v8068 = vld [vmem:[#allocation16 + $0xc0] sm:$0xff]
          %v8069 = vld [vmem:[#allocation16 + $0xc8] sm:$0xff]
          %v8070 = vld [vmem:[#allocation16 + $0xd0] sm:$0xff]
          %v8071 = vld [vmem:[#allocation16 + $0xd8] sm:$0xff]
          %v8072 = vld [vmem:[#allocation16 + $0xe0] sm:$0xff]
          %v8073 = vld [vmem:[#allocation16 + $0xe8] sm:$0xff]
          %v8074 = vld [vmem:[#allocation16 + $0xf0] sm:$0xff]
          %v8075 = vld [vmem:[#allocation16 + $0xf8] sm:$0xff]
          %v8076 = vld [vmem:[#allocation16 + $0x100] sm:$0xff]
          %v8077 = vld [vmem:[#allocation16 + $0x108] sm:$0xff]
          %v8078 = vld [vmem:[#allocation16 + $0x110] sm:$0xff]
          %v8079 = vld [vmem:[#allocation16 + $0x118] sm:$0xff]
          %v8080 = vld [vmem:[#allocation16 + $0x120] sm:$0xff]
          %v8081 = vld [vmem:[#allocation16 + $0x128] sm:$0xff]
          %v8082 = vld [vmem:[#allocation16 + $0x130] sm:$0xff]
          %v8083 = vld [vmem:[#allocation16 + $0x138] sm:$0xff]
          %v8084 = vld [vmem:[#allocation16 + $0x140] sm:$0xff]
          %v8085 = vld [vmem:[#allocation16 + $0x148] sm:$0xff]
          %v8086 = vld [vmem:[#allocation16 + $0x150] sm:$0xff]
          %v8087 = vld [vmem:[#allocation16 + $0x158] sm:$0xff]
          %v8088 = vld [vmem:[#allocation16 + $0x160] sm:$0xff]
          %v8089 = vld [vmem:[#allocation16 + $0x168] sm:$0xff]
          %v8090 = vld [vmem:[#allocation16 + $0x170] sm:$0xff]
          %v8091 = vld [vmem:[#allocation16 + $0x178] sm:$0xff]
          %v8092 = vld [vmem:[#allocation16 + $0x180] sm:$0xff]
          %v8093 = vld [vmem:[#allocation16 + $0x188] sm:$0xff]
          %v8094 = vld [vmem:[#allocation16 + $0x190] sm:$0xff]
          %v8095 = vld [vmem:[#allocation16 + $0x198] sm:$0xff]
          %v8096 = vld [vmem:[#allocation16 + $0x1a0] sm:$0xff]
          %v8097 = vld [vmem:[#allocation16 + $0x1a8] sm:$0xff]
          %v8098 = vld [vmem:[#allocation16 + $0x1b0] sm:$0xff]
          %v8099 = vld [vmem:[#allocation16 + $0x1b8] sm:$0xff]
          %v8100 = vld [vmem:[#allocation16 + $0x1c0] sm:$0xff]
          %v8101 = vld [vmem:[#allocation16 + $0x1c8] sm:$0xff]
          %v8102 = vld [vmem:[#allocation16 + $0x1d0] sm:$0xff]
          %v8103 = vld [vmem:[#allocation16 + $0x1d8] sm:$0xff]
          %v8104 = vld [vmem:[#allocation16 + $0x1e0] sm:$0xff]
          %v8105 = vld [vmem:[#allocation16 + $0x1e8] sm:$0xff]
          %v8106 = vld [vmem:[#allocation16 + $0x1f0] sm:$0xff]
          %v8107 = vld [vmem:[#allocation16 + $0x1f8] sm:$0xff]
          %v8108 = vld [vmem:[#allocation16 + $0x200] sm:$0xff]
          %v8109 = vld [vmem:[#allocation16 + $0x208] sm:$0xff]
          %v8110 = vld [vmem:[#allocation16 + $0x210] sm:$0xff]
          %v8111 = vld [vmem:[#allocation16 + $0x218] sm:$0xff]
          %v8112 = vld [vmem:[#allocation16 + $0x220] sm:$0xff]
          %v8113 = vld [vmem:[#allocation16 + $0x228] sm:$0xff]
          %v8114 = vld [vmem:[#allocation16 + $0x230] sm:$0xff]
          %v8115 = vld [vmem:[#allocation16 + $0x238] sm:$0xff]
          %v8116 = vld [vmem:[#allocation16 + $0x240] sm:$0xff]
          %v8117 = vld [vmem:[#allocation16 + $0x248] sm:$0xff]
          %v8118 = vld [vmem:[#allocation16 + $0x250] sm:$0xff]
          %v8119 = vld [vmem:[#allocation16 + $0x258] sm:$0xff]
          %v8120 = vld [vmem:[#allocation16 + $0x260] sm:$0xff]
          %v8121 = vld [vmem:[#allocation16 + $0x268] sm:$0xff]
          %v8122 = vld [vmem:[#allocation16 + $0x270] sm:$0xff]
          %v8123 = vld [vmem:[#allocation16 + $0x278] sm:$0xff]
          %v8124 = vld [vmem:[#allocation16 + $0x280] sm:$0xff]
          %v8125 = vld [vmem:[#allocation16 + $0x288] sm:$0xff]
          %v8126 = vld [vmem:[#allocation16 + $0x290] sm:$0xff]
          %v8127 = vld [vmem:[#allocation16 + $0x298] sm:$0xff]
          %v8128 = vld [vmem:[#allocation16 + $0x2a0] sm:$0xff]
          %v8129 = vld [vmem:[#allocation16 + $0x2a8] sm:$0xff]
          %v8130 = vld [vmem:[#allocation16 + $0x2b0] sm:$0xff]
          %v8131 = vld [vmem:[#allocation16 + $0x2b8] sm:$0xff]
          %v8132 = vld [vmem:[#allocation16 + $0x2c0] sm:$0xff]
          %v8133 = vld [vmem:[#allocation16 + $0x2c8] sm:$0xff]
          %v8134 = vld [vmem:[#allocation16 + $0x2d0] sm:$0xff]
          %v8135 = vld [vmem:[#allocation16 + $0x2d8] sm:$0xff]
          %v8136 = vld [vmem:[#allocation16 + $0x2e0] sm:$0xff]
          %v8137 = vld [vmem:[#allocation16 + $0x2e8] sm:$0xff]
          %v8138 = vld [vmem:[#allocation16 + $0x2f0] sm:$0xff]
          %v8139 = vld [vmem:[#allocation16 + $0x2f8] sm:$0xff]
          %v8140 = vld [vmem:[#allocation17] sm:$0x1]
          %v8142 = vlaneseq
          %v8143 = vshrl.u32 %v8142, 7
          %v8144 = vsub.s32 0, %v8143
          %v8145 = vrot.slane %v8140, %v8144
          %8147 = vmatprep.subr.mxu0 0.0
          %8148 = vmatpush1.msra.mxu0 %v8044
          %8149 = vmatprep.subr.mxu0 0.0
          %8150 = vmatpush1.msra.mxu0 %v8045
          %8151 = vmatprep.subr.mxu0 0.0
          %8152 = vmatpush1.msra.mxu0 %v8046
          %8153 = vmatprep.subr.mxu0 0.0
          %8154 = vmatpush1.msra.mxu0 %v8047
          %8155 = vmatprep.subr.mxu0 0.0
          %8156 = vmatpush1.msra.mxu0 %v8048
          %8157 = vmatprep.subr.mxu0 0.0
          %8158 = vmatpush1.msra.mxu0 %v8049
          %8159 = vmatprep.subr.mxu0 0.0
          %8160 = vmatpush1.msra.mxu0 %v8050
          %8161 = vmatprep.subr.mxu0 0.0
          %8162 = vmatpush1.msra.mxu0 %v8051
          %8163 = vmatprep.subr.mxu0 0.0
          %8164 = vmatpush1.msra.mxu0 %v8052
          %8165 = vmatprep.subr.mxu0 0.0
          %8166 = vmatpush1.msra.mxu0 %v8053
          %8167 = vmatprep.subr.mxu0 0.0
          %8168 = vmatpush1.msra.mxu0 %v8054
          %8169 = vmatprep.subr.mxu0 0.0
          %8170 = vmatpush1.msra.mxu0 %v8055
          %8171 = vmatprep.subr.mxu0 0.0
          %8172 = vmatpush1.msra.mxu0 %v8056
          %8173 = vmatprep.subr.mxu0 0.0
          %8174 = vmatpush1.msra.mxu0 %v8057
          %8175 = vmatprep.subr.mxu0 0.0
          %8176 = vmatpush1.msra.mxu0 %v8058
          %8177 = vmatprep.subr.mxu0 0.0
          %8178 = vmatpush1.msra.mxu0 %v8059
          %8179 = vmatprep.subr.mxu0 0.0
          %8180 = vmatpush1.msra.mxu0 %v8060
          %8181 = vmatprep.subr.mxu0 0.0
          %8182 = vmatpush1.msra.mxu0 %v8061
          %8183 = vmatprep.subr.mxu0 0.0
          %8184 = vmatpush1.msra.mxu0 %v8062
          %8185 = vmatprep.subr.mxu0 0.0
          %8186 = vmatpush1.msra.mxu0 %v8063
          %8187 = vmatprep.subr.mxu0 0.0
          %8188 = vmatpush1.msra.mxu0 %v8064
          %8189 = vmatprep.subr.mxu0 0.0
          %8190 = vmatpush1.msra.mxu0 %v8065
          %8191 = vmatprep.subr.mxu0 0.0
          %8192 = vmatpush1.msra.mxu0 %v8066
          %8193 = vmatprep.subr.mxu0 0.0
          %8194 = vmatpush1.msra.mxu0 %v8067
          %8195 = vmatprep.subr.mxu0 0.0
          %8196 = vmatpush1.msra.mxu0 %v8068
          %8197 = vmatprep.subr.mxu0 0.0
          %8198 = vmatpush1.msra.mxu0 %v8069
          %8199 = vmatprep.subr.mxu0 0.0
          %8200 = vmatpush1.msra.mxu0 %v8070
          %8201 = vmatprep.subr.mxu0 0.0
          %8202 = vmatpush1.msra.mxu0 %v8071
          %8203 = vmatprep.subr.mxu0 0.0
          %8204 = vmatpush1.msra.mxu0 %v8072
          %8205 = vmatprep.subr.mxu0 0.0
          %8206 = vmatpush1.msra.mxu0 %v8073
          %8207 = vmatprep.subr.mxu0 0.0
          %8208 = vmatpush1.msra.mxu0 %v8074
          %8209 = vmatprep.subr.mxu0 0.0
          %8210 = vmatpush1.msra.mxu0 %v8075
          %8211 = vmatprep.mubr.f32.mxu0 %v8021
          %8212 = vmatmul.mubr.f32.gmra.mrb[0].mxu0 %v8020
          %v8213 = vpop.f32.mrb[0].mxu0
          %v8214 = vadd.f32 %v8145, %v8213
          %v8215 = vpop.f32.mrb[0].mxu0
          %8216 = vmatprep.mubr.f32.mxu0 %v8027
          %8217 = vmatmul.mubr.f32.gmra.mrb[0].mxu0 %v8026
          %v8218 = vpop.f32.mrb[0].mxu0
          %v8219 = vadd.f32 %v8145, %v8218
          %v8220 = vpop.f32.mrb[0].mxu0
          %8221 = vmatprep.mubr.f32.mxu0 %v8033
          %8222 = vmatmul.mubr.f32.gmra.mrb[0].mxu0 %v8032
          %v8223 = vpop.f32.mrb[0].mxu0
          %v8224 = vadd.f32 %v8145, %v8223
          %v8225 = vpop.f32.mrb[0].mxu0
          %8226 = vmatprep.mubr.f32.mxu0 %v8039
          %8227 = vmatmul.mubr.f32.gmra.mrb[0].mxu0 %v8038
          %v8228 = vpop.f32.mrb[0].mxu0
          %v8229 = vadd.f32 %v8145, %v8228
          %v8230 = vpop.f32.mrb[0].mxu0
          %8231 = vdwg.mxu0
          %8232 = vmatprep.subr.mxu0 0.0
          %8233 = vmatpush1.msra.mxu0 %v8076
          %8234 = vmatprep.subr.mxu0 0.0
          %8235 = vmatpush1.msra.mxu0 %v8077
          %8236 = vmatprep.subr.mxu0 0.0
          %8237 = vmatpush1.msra.mxu0 %v8078
          %8238 = vmatprep.subr.mxu0 0.0
          %8239 = vmatpush1.msra.mxu0 %v8079
          %8240 = vmatprep.subr.mxu0 0.0
          %8241 = vmatpush1.msra.mxu0 %v8080
          %8242 = vmatprep.subr.mxu0 0.0
          %8243 = vmatpush1.msra.mxu0 %v8081
          %8244 = vmatprep.subr.mxu0 0.0
          %8245 = vmatpush1.msra.mxu0 %v8082
          %8246 = vmatprep.subr.mxu0 0.0
          %8247 = vmatpush1.msra.mxu0 %v8083
          %8248 = vmatprep.subr.mxu0 0.0
          %8249 = vmatpush1.msra.mxu0 %v8084
          %8250 = vmatprep.subr.mxu0 0.0
          %8251 = vmatpush1.msra.mxu0 %v8085
          %8252 = vmatprep.subr.mxu0 0.0
          %8253 = vmatpush1.msra.mxu0 %v8086
          %8254 = vmatprep.subr.mxu0 0.0
          %8255 = vmatpush1.msra.mxu0 %v8087
          %8256 = vmatprep.subr.mxu0 0.0
          %8257 = vmatpush1.msra.mxu0 %v8088
          %8258 = vmatprep.subr.mxu0 0.0
          %8259 = vmatpush1.msra.mxu0 %v8089
          %8260 = vmatprep.subr.mxu0 0.0
          %8261 = vmatpush1.msra.mxu0 %v8090
          %8262 = vmatprep.subr.mxu0 0.0
          %8263 = vmatpush1.msra.mxu0 %v8091
          %8264 = vmatprep.subr.mxu0 0.0
          %8265 = vmatpush1.msra.mxu0 %v8092
          %8266 = vmatprep.subr.mxu0 0.0
          %8267 = vmatpush1.msra.mxu0 %v8093
          %8268 = vmatprep.subr.mxu0 0.0
          %8269 = vmatpush1.msra.mxu0 %v8094
          %8270 = vmatprep.subr.mxu0 0.0
          %8271 = vmatpush1.msra.mxu0 %v8095
          %8272 = vmatprep.subr.mxu0 0.0
          %8273 = vmatpush1.msra.mxu0 %v8096
          %8274 = vmatprep.subr.mxu0 0.0
          %8275 = vmatpush1.msra.mxu0 %v8097
          %8276 = vmatprep.subr.mxu0 0.0
          %8277 = vmatpush1.msra.mxu0 %v8098
          %8278 = vmatprep.subr.mxu0 0.0
          %8279 = vmatpush1.msra.mxu0 %v8099
          %8280 = vmatprep.subr.mxu0 0.0
          %8281 = vmatpush1.msra.mxu0 %v8100
          %8282 = vmatprep.subr.mxu0 0.0
          %8283 = vmatpush1.msra.mxu0 %v8101
          %8284 = vmatprep.subr.mxu0 0.0
          %8285 = vmatpush1.msra.mxu0 %v8102
          %8286 = vmatprep.subr.mxu0 0.0
          %8287 = vmatpush1.msra.mxu0 %v8103
          %8288 = vmatprep.subr.mxu0 0.0
          %8289 = vmatpush1.msra.mxu0 %v8104
          %8290 = vmatprep.subr.mxu0 0.0
          %8291 = vmatpush1.msra.mxu0 %v8105
          %8292 = vmatprep.subr.mxu0 0.0
          %8293 = vmatpush1.msra.mxu0 %v8106
          %8294 = vmatprep.subr.mxu0 0.0
          %8295 = vmatpush1.msra.mxu0 %v8107
          %8296 = vmatprep.mubr.f32.mxu0 %v8023
          %8297 = vmatmul.mubr.f32.gmra.mrb[0].mxu0 %v8022
          %v8298 = vpop.f32.mrb[0].mxu0
          %v8299 = vadd.f32 %v8214, %v8298
          %v8300 = vpop.f32.mrb[0].mxu0
          %8301 = vmatprep.mubr.f32.mxu0 %v8029
          %8302 = vmatmul.mubr.f32.gmra.mrb[0].mxu0 %v8028
          %v8303 = vpop.f32.mrb[0].mxu0
          %v8304 = vadd.f32 %v8219, %v8303
          %v8305 = vpop.f32.mrb[0].mxu0
          %8306 = vmatprep.mubr.f32.mxu0 %v8035
          %8307 = vmatmul.mubr.f32.gmra.mrb[0].mxu0 %v8034
          %v8308 = vpop.f32.mrb[0].mxu0
          %v8309 = vadd.f32 %v8224, %v8308
          %v8310 = vpop.f32.mrb[0].mxu0
          %8311 = vmatprep.mubr.f32.mxu0 %v8041
          %8312 = vmatmul.mubr.f32.gmra.mrb[0].mxu0 %v8040
          %v8313 = vpop.f32.mrb[0].mxu0
          %v8314 = vadd.f32 %v8229, %v8313
          %v8315 = vpop.f32.mrb[0].mxu0
          %8316 = vdwg.mxu0
          %8317 = vmatprep.subr.mxu0 0.0
          %8318 = vmatpush1.msra.mxu0 %v8108
          %8319 = vmatprep.subr.mxu0 0.0
          %8320 = vmatpush1.msra.mxu0 %v8109
          %8321 = vmatprep.subr.mxu0 0.0
          %8322 = vmatpush1.msra.mxu0 %v8110
          %8323 = vmatprep.subr.mxu0 0.0
          %8324 = vmatpush1.msra.mxu0 %v8111
          %8325 = vmatprep.subr.mxu0 0.0
          %8326 = vmatpush1.msra.mxu0 %v8112
          %8327 = vmatprep.subr.mxu0 0.0
          %8328 = vmatpush1.msra.mxu0 %v8113
          %8329 = vmatprep.subr.mxu0 0.0
          %8330 = vmatpush1.msra.mxu0 %v8114
          %8331 = vmatprep.subr.mxu0 0.0
          %8332 = vmatpush1.msra.mxu0 %v8115
          %8333 = vmatprep.subr.mxu0 0.0
          %8334 = vmatpush1.msra.mxu0 %v8116
          %8335 = vmatprep.subr.mxu0 0.0
          %8336 = vmatpush1.msra.mxu0 %v8117
          %8337 = vmatprep.subr.mxu0 0.0
          %8338 = vmatpush1.msra.mxu0 %v8118
          %8339 = vmatprep.subr.mxu0 0.0
          %8340 = vmatpush1.msra.mxu0 %v8119
          %8341 = vmatprep.subr.mxu0 0.0
          %8342 = vmatpush1.msra.mxu0 %v8120
          %8343 = vmatprep.subr.mxu0 0.0
          %8344 = vmatpush1.msra.mxu0 %v8121
          %8345 = vmatprep.subr.mxu0 0.0
          %8346 = vmatpush1.msra.mxu0 %v8122
          %8347 = vmatprep.subr.mxu0 0.0
          %8348 = vmatpush1.msra.mxu0 %v8123
          %8349 = vmatprep.subr.mxu0 0.0
          %8350 = vmatpush1.msra.mxu0 %v8124
          %8351 = vmatprep.subr.mxu0 0.0
          %8352 = vmatpush1.msra.mxu0 %v8125
          %8353 = vmatprep.subr.mxu0 0.0
          %8354 = vmatpush1.msra.mxu0 %v8126
          %8355 = vmatprep.subr.mxu0 0.0
          %8356 = vmatpush1.msra.mxu0 %v8127
          %8357 = vmatprep.subr.mxu0 0.0
          %8358 = vmatpush1.msra.mxu0 %v8128
          %8359 = vmatprep.subr.mxu0 0.0
          %8360 = vmatpush1.msra.mxu0 %v8129
          %8361 = vmatprep.subr.mxu0 0.0
          %8362 = vmatpush1.msra.mxu0 %v8130
          %8363 = vmatprep.subr.mxu0 0.0
          %8364 = vmatpush1.msra.mxu0 %v8131
          %8365 = vmatprep.subr.mxu0 0.0
          %8366 = vmatpush1.msra.mxu0 %v8132
          %8367 = vmatprep.subr.mxu0 0.0
          %8368 = vmatpush1.msra.mxu0 %v8133
          %8369 = vmatprep.subr.mxu0 0.0
          %8370 = vmatpush1.msra.mxu0 %v8134
          %8371 = vmatprep.subr.mxu0 0.0
          %8372 = vmatpush1.msra.mxu0 %v8135
          %8373 = vmatprep.subr.mxu0 0.0
          %8374 = vmatpush1.msra.mxu0 %v8136
          %8375 = vmatprep.subr.mxu0 0.0
          %8376 = vmatpush1.msra.mxu0 %v8137
          %8377 = vmatprep.subr.mxu0 0.0
          %8378 = vmatpush1.msra.mxu0 %v8138
          %8379 = vmatprep.subr.mxu0 0.0
          %8380 = vmatpush1.msra.mxu0 %v8139
          %8381 = vmatprep.mubr.f32.mxu0 %v8025
          %8382 = vmatmul.mubr.f32.gmra.mrb[0].mxu0 %v8024
          %v8383 = vpop.f32.mrb[0].mxu0
          %v8384 = vadd.f32 %v8299, %v8383
          %v8385 = vpop.f32.mrb[0].mxu0
          %8386 = vmatprep.mubr.f32.mxu0 %v8031
          %8387 = vmatmul.mubr.f32.gmra.mrb[0].mxu0 %v8030
          %v8388 = vpop.f32.mrb[0].mxu0
          %v8389 = vadd.f32 %v8304, %v8388
          %v8390 = vpop.f32.mrb[0].mxu0
          %8391 = vmatprep.mubr.f32.mxu0 %v8037
          %8392 = vmatmul.mubr.f32.gmra.mrb[0].mxu0 %v8036
          %v8393 = vpop.f32.mrb[0].mxu0
          %v8394 = vadd.f32 %v8309, %v8393
          %v8395 = vpop.f32.mrb[0].mxu0
          %8396 = vmatprep.mubr.f32.mxu0 %v8043
          %8397 = vmatmul.mubr.f32.gmra.mrb[0].mxu0 %v8042
          %v8398 = vpop.f32.mrb[0].mxu0
          %v8399 = vadd.f32 %v8314, %v8398
          %v8400 = vpop.f32.mrb[0].mxu0
          %8401 = vdwg.mxu0
          %v8402 = vmax.f32 %v8384, 0.0
          %v8403 = vmax.f32 %v8389, 0.0
          %v8404 = vmax.f32 %v8394, 0.0
          %v8405 = vmax.f32 %v8399, 0.0
          %v8406 = vld [vmem:[#allocation19] sm:$0xff]
          %v8407 = vld [vmem:[#allocation19 + $0x8] sm:$0xff]
          %v8408 = vld [vmem:[#allocation19 + $0x10] sm:$0xff]
          %v8409 = vld [vmem:[#allocation19 + $0x18] sm:$0xff]
          %v8410 = vld [vmem:[#allocation19 + $0x20] sm:$0xff]
          %v8411 = vld [vmem:[#allocation19 + $0x28] sm:$0xff]
          %v8412 = vld [vmem:[#allocation19 + $0x30] sm:$0xff]
          %v8413 = vld [vmem:[#allocation19 + $0x38] sm:$0xff]
          %v8414 = vld [vmem:[#allocation19 + $0x40] sm:$0xff]
          %v8415 = vld [vmem:[#allocation19 + $0x48] sm:$0xff]
          %v8416 = vld [vmem:[#allocation19 + $0x50] sm:$0xff]
          %v8417 = vld [vmem:[#allocation19 + $0x58] sm:$0xff]
          %v8418 = vld [vmem:[#allocation19 + $0x60] sm:$0xff]
          %v8419 = vld [vmem:[#allocation19 + $0x68] sm:$0xff]
          %v8420 = vld [vmem:[#allocation19 + $0x70] sm:$0xff]
          %v8421 = vld [vmem:[#allocation19 + $0x78] sm:$0xff]
          %v8422 = vld [vmem:[#allocation20] sm:$0x1]
          %v8424 = vlaneseq
          %v8425 = vshrl.u32 %v8424, 7
          %v8426 = vsub.s32 0, %v8425
          %v8427 = vrot.slane %v8422, %v8426
          %8429 = vmatprep.subr.mxu0 0.0
          %8430 = vmatpush1.msra.mxu0 %v8406
          %8431 = vmatprep.subr.mxu0 0.0
          %8432 = vmatpush1.msra.mxu0 %v8407
          %8433 = vmatprep.subr.mxu0 0.0
          %8434 = vmatpush1.msra.mxu0 %v8408
          %8435 = vmatprep.subr.mxu0 0.0
          %8436 = vmatpush1.msra.mxu0 %v8409
          %8437 = vmatprep.subr.mxu0 0.0
          %8438 = vmatpush1.msra.mxu0 %v8410
          %8439 = vmatprep.subr.mxu0 0.0
          %8440 = vmatpush1.msra.mxu0 %v8411
          %8441 = vmatprep.subr.mxu0 0.0
          %8442 = vmatpush1.msra.mxu0 %v8412
          %8443 = vmatprep.subr.mxu0 0.0
          %8444 = vmatpush1.msra.mxu0 %v8413
          %8445 = vmatprep.subr.mxu0 0.0
          %8446 = vmatpush1.msra.mxu0 %v8414
          %8447 = vmatprep.subr.mxu0 0.0
          %8448 = vmatpush1.msra.mxu0 %v8415
          %8449 = vmatprep.subr.mxu0 0.0
          %8450 = vmatpush1.msra.mxu0 %v8416
          %8451 = vmatprep.subr.mxu0 0.0
          %8452 = vmatpush1.msra.mxu0 %v8417
          %8453 = vmatprep.subr.mxu0 0.0
          %8454 = vmatpush1.msra.mxu0 %v8418
          %8455 = vmatprep.subr.mxu0 0.0
          %8456 = vmatpush1.msra.mxu0 %v8419
          %8457 = vmatprep.subr.mxu0 0.0
          %8458 = vmatpush1.msra.mxu0 %v8420
          %8459 = vmatprep.subr.mxu0 0.0
          %8460 = vmatpush1.msra.mxu0 %v8421
          %8461 = vmatprep.subr.mxu0 0.0
          %8462 = vmatpush1.msra.mxu0 0.0
          %8463 = vmatprep.subr.mxu0 0.0
          %8464 = vmatpush1.msra.mxu0 0.0
          %8465 = vmatprep.subr.mxu0 0.0
          %8466 = vmatpush1.msra.mxu0 0.0
          %8467 = vmatprep.subr.mxu0 0.0
          %8468 = vmatpush1.msra.mxu0 0.0
          %8469 = vmatprep.subr.mxu0 0.0
          %8470 = vmatpush1.msra.mxu0 0.0
          %8471 = vmatprep.subr.mxu0 0.0
          %8472 = vmatpush1.msra.mxu0 0.0
          %8473 = vmatprep.subr.mxu0 0.0
          %8474 = vmatpush1.msra.mxu0 0.0
          %8475 = vmatprep.subr.mxu0 0.0
          %8476 = vmatpush1.msra.mxu0 0.0
          %8477 = vmatprep.subr.mxu0 0.0
          %8478 = vmatpush1.msra.mxu0 0.0
          %8479 = vmatprep.subr.mxu0 0.0
          %8480 = vmatpush1.msra.mxu0 0.0
          %8481 = vmatprep.subr.mxu0 0.0
          %8482 = vmatpush1.msra.mxu0 0.0
          %8483 = vmatprep.subr.mxu0 0.0
          %8484 = vmatpush1.msra.mxu0 0.0
          %8485 = vmatprep.subr.mxu0 0.0
          %8486 = vmatpush1.msra.mxu0 0.0
          %8487 = vmatprep.subr.mxu0 0.0
          %8488 = vmatpush1.msra.mxu0 0.0
          %8489 = vmatprep.subr.mxu0 0.0
          %8490 = vmatpush1.msra.mxu0 0.0
          %8491 = vmatprep.subr.mxu0 0.0
          %8492 = vmatpush1.msra.mxu0 0.0
          %8493 = vmatprep.mubr.f32.mxu0 0.0
          %8494 = vmatmul.mubr.f32.gmra.mrb[0].mxu0 %v8402
          %v8495 = vpop.f32.mrb[0].mxu0
          %v8496 = vadd.f32 %v8427, %v8495
          %v8497 = vpop.f32.mrb[0].mxu0
          %8498 = vmatprep.mubr.f32.mxu0 0.0
          %8499 = vmatmul.mubr.f32.gmra.mrb[0].mxu0 %v8403
          %v8500 = vpop.f32.mrb[0].mxu0
          %v8501 = vadd.f32 %v8427, %v8500
          %v8502 = vpop.f32.mrb[0].mxu0
          %8503 = vmatprep.mubr.f32.mxu0 0.0
          %8504 = vmatmul.mubr.f32.gmra.mrb[0].mxu0 %v8404
          %v8505 = vpop.f32.mrb[0].mxu0
          %v8506 = vadd.f32 %v8427, %v8505
          %v8507 = vpop.f32.mrb[0].mxu0
          %8508 = vmatprep.mubr.f32.mxu0 0.0
          %8509 = vmatmul.mubr.f32.gmra.mrb[0].mxu0 %v8405
          %v8510 = vpop.f32.mrb[0].mxu0
          %v8511 = vadd.f32 %v8427, %v8510
          %v8512 = vpop.f32.mrb[0].mxu0
          %8513 = vdwg.mxu0
          %8514 = vst [vmem:[%s18] sm:$0xff] %v8496
          %8515 = vst [vmem:[%s18 + $0x8] sm:$0xff] %v8501
          %8516 = vst [vmem:[%s18 + $0x10] sm:$0xff] %v8506
          %8517 = vst [vmem:[%s18 + $0x18] sm:$0xff] %v8511
        $region152: #{stgode_forward.1} parent=91 // pred_fallthru
          _
        // Predicated region
        $region153: #{stgode_forward.1} parent=91 // pred_check
          %p8518 = pneg %p480
        $region154: #{stgode_forward.1} parent=91 // pred_check_branch
          %8520 = sbr.rel (%p8518) target = $region156
        $region155: #{stgode_forward.1} parent=91 // pred_region
          _
        $region156: #{stgode_forward.1} parent=91 // pred_fallthru
          _
        // Predicated region
        $region157: #{stgode_forward.1} parent=91 // pred_check
          %p8521 = pneg %p480
        $region158: #{stgode_forward.1} parent=91 // pred_check_branch
          %8523 = sbr.rel (%p8521) target = $region160
        $region159: #{stgode_forward.1} parent=91 // pred_region
          _
        $region160: #{stgode_forward.1} parent=91 // pred_fallthru
          _
      $region92: #{stgode_forward.1} parent=5 // pred_fallthru
        _
      %p8524 = scmp.le.s32.totalorder 2, %s39
      // Predicated region
      $region161: #{stgode_forward.1} parent=5 // pred_check
        %p8525 = pneg %p8524
      $region162: #{stgode_forward.1} parent=5 // pred_check_branch
        %8527 = sbr.rel (%p8525) target = $region164
      $region163: #{stgode_forward.1} parent=5 // pred_region
        %s8528 = ssub.s32 %s39, 2
      $region164: #{stgode_forward.1} parent=5 // pred_fallthru
        _
    $region6: #{stgode_forward.1} parent=1 // loop_footer
      %s43 = sadd.s32 1, %s39
    $region7: #{stgode_forward.1} parent=1 // loop_footer_branch
      %38 = sbr.rel target = $region3
    $region8: #{stgode_forward.1} parent=1 // loop_exit
      _
    %8529 = vsyncpa [#allocation4], 1
    %s8530 = scalar_lea.sflag [#allocation4], 1
    %8531 = vsyncpa %s8530, 1
    %8532 = vsyncpa [#allocation6], 1
    %s8533 = scalar_lea.sflag [#allocation6], 1
    %8534 = vsyncpa %s8533, 1
    %8535 = vsyncpa [#allocation9], 1
    %s8536 = scalar_lea.sflag [#allocation9], 1
    %8537 = vsyncpa %s8536, 1
    %8538 = vsyncpa [#allocation12], 1
    %s8539 = scalar_lea.sflag [#allocation12], 1
    %8540 = vsyncpa %s8539, 1
    %8541 = vsyncpa [#allocation15], 1
    %8542 = vsyncpa [#allocation18], 1
    %8543 = vsyncpa [#allocation21], 1

</llo_original>
